<compile_context>
chip_gen: v7x
topology: tpu7x:2x2x1
jax: 0.10.0
libtpu: 0.0.40
codegen_flags: <defaults>
</compile_context>

<pallas_src>
import math
from functools import partial

import jax
import jax.numpy as jnp
from jax.experimental import pallas as pl
from jax.experimental.pallas import tpu as pltpu

_VMEM_LIMIT_BYTES = 32 * 1024 * 1024   # explicit; ample headroom below v7x's 64 MiB


# ----------------------------------------------------------------------------
# In-kernel helpers
# ----------------------------------------------------------------------------
def _celu(v):
    # CELU(alpha=1): x if x > 0 else exp(x) - 1 (f32).
    # TODO(synk): switch the negative branch to expm1 once Mosaic exposes it.
    return jnp.where(v > 0, v, jnp.exp(jnp.minimum(v, 0.0)) - 1.0)


# ----------------------------------------------------------------------------
# Kernel A: M-row-tiled  celu(patches @ W + b)   (conv1 and branch-fused conv2)
# ----------------------------------------------------------------------------
def _mm_bias_celu_kernel(a_ref, w_ref, b_ref, o_ref):
    acc = jnp.dot(a_ref[...], w_ref[...], preferred_element_type=jnp.float32)
    o_ref[...] = _celu(acc + b_ref[...]).astype(o_ref.dtype)


def _pick_row_tile(m, target=512, min_steps=4, align=16):
    """Row tile: multiple of `align`, <= target, aiming for >= min_steps grid
    steps so the auto-pipeline has DMA/compute overlap (the grid is a serial
    loop on v5e/v6e; on v7x the 'parallel' M axis is split across the 2 TCs)."""
    tm = min(target, max(align, math.ceil(m / min_steps)))
    return ((tm + align - 1) // align) * align


def conv_mm(patches, w, b, *, target_tile=512):
    """celu(patches @ w + b); patches (M, K) bf16, w (K, C) bf16, b (1, C) f32."""
    M, K = patches.shape
    cout = w.shape[1]
    tm = _pick_row_tile(M, target_tile)
    nt = math.ceil(M / tm)
    mpad = nt * tm
    a = jnp.pad(patches, ((0, mpad - M), (0, 0)))
    out = pl.pallas_call(
        _mm_bias_celu_kernel,
        out_shape=jax.ShapeDtypeStruct((mpad, cout), jnp.bfloat16),
        grid_spec=pltpu.PrefetchScalarGridSpec(
            num_scalar_prefetch=0,
            grid=(nt,),
            in_specs=[
                pl.BlockSpec((tm, K), lambda i: (i, 0)),
                pl.BlockSpec((K, cout), lambda i: (0, 0)),   # weight resident
                pl.BlockSpec((1, cout), lambda i: (0, 0)),
            ],
            out_specs=pl.BlockSpec((tm, cout), lambda i: (i, 0)),
        ),
        compiler_params=pltpu.CompilerParams(
            dimension_semantics=("parallel",),
            vmem_limit_bytes=_VMEM_LIMIT_BYTES),
    )(a, w, b)
    return out[:M]


# ----------------------------------------------------------------------------
# Kernel B: conv3 + flatten + fc1 + fc2_V/fc2_A + V/A + dueling combine
# ----------------------------------------------------------------------------
def _head_kernel(p3_ref, w3_ref, b3_ref, fc1w_ref, fc1b_ref, w2c_ref, b2c_ref,
                 wva_ref, bva_ref, o_ref, h3_s, hflat_s, *, action_dim):
    nb = o_ref.shape[1]                 # images handled in this grid step
    npos = p3_ref.shape[1] // nb        # conv3 spatial positions (9)
    c3 = h3_s.shape[1]                  # conv3 out channels (32)

    # conv3: one matmul over all (position, image) rows of this image tile.
    h3 = jnp.dot(p3_ref[0], w3_ref[0], preferred_element_type=jnp.float32)
    h3_s[...] = _celu(h3 + b3_ref[0])

    # PyTorch's (C,H,W) flatten is folded into the fc1 weight row order
    # (position, channel).  Gather the 9 contiguous per-position row groups into
    # a single (nb, 288) operand so fc1 is ONE K=288 matmul, not 9 K=32 pushes.
    for p in range(npos):
        hflat_s[:, p * c3:(p + 1) * c3] = h3_s[p * nb:(p + 1) * nb, :]

    h1 = _celu(jnp.dot(hflat_s[...].astype(jnp.bfloat16), fc1w_ref[0],
                       preferred_element_type=jnp.float32) + fc1b_ref[0])

    # fc2_V | fc2_A fused into one (128 -> 256) matmul.
    h2 = _celu(jnp.dot(h1.astype(jnp.bfloat16), w2c_ref[0],
                       preferred_element_type=jnp.float32) + b2c_ref[0])

    # V / A fused block-diagonally: V -> lane 0, A -> lanes [128, 128+action).
    va = jnp.dot(h2.astype(jnp.bfloat16), wva_ref[0],
                 preferred_element_type=jnp.float32) + bva_ref[0]
    v = va[:, 0:1]
    a = va[:, 128:]                     # lanes >= action_dim are exactly zero
    a_mean = jnp.sum(a, axis=1, keepdims=True) * (1.0 / action_dim)
    q = v + a - a_mean
    lane = jax.lax.broadcasted_iota(jnp.int32, q.shape, 1)
    o_ref[0] = jnp.where(lane < action_dim, q, 0.0)   # lane-dense 128-wide store


def dueling_head_both(p3, w3, b3, fc1w, fc1b, w2c, b2c, wva, bva, nb, action_dim):
    B, R, K3 = p3.shape                 # B = 2 branches, R = nt * 9 * nb
    npos = 9
    nt = R // (npos * nb)
    n_pad = nt * nb
    kern = partial(_head_kernel, action_dim=action_dim)
    return pl.pallas_call(
        kern,
        out_shape=jax.ShapeDtypeStruct((B, n_pad, 128), jnp.float32),
        grid_spec=pltpu.PrefetchScalarGridSpec(
            num_scalar_prefetch=0,
            grid=(B, nt),
            in_specs=[
                pl.BlockSpec((1, npos * nb, K3), lambda b, t: (b, t, 0)),
                pl.BlockSpec((1,) + w3.shape[1:], lambda b, t: (b, 0, 0)),
                pl.BlockSpec((1,) + b3.shape[1:], lambda b, t: (b, 0, 0)),
                pl.BlockSpec((1,) + fc1w.shape[1:], lambda b, t: (b, 0, 0)),
                pl.BlockSpec((1,) + fc1b.shape[1:], lambda b, t: (b, 0, 0)),
                pl.BlockSpec((1,) + w2c.shape[1:], lambda b, t: (b, 0, 0)),
                pl.BlockSpec((1,) + b2c.shape[1:], lambda b, t: (b, 0, 0)),
                pl.BlockSpec((1,) + wva.shape[1:], lambda b, t: (b, 0, 0)),
                pl.BlockSpec((1,) + bva.shape[1:], lambda b, t: (b, 0, 0)),
            ],
            out_specs=pl.BlockSpec((1, nb, 128), lambda b, t: (b, t, 0)),
            scratch_shapes=[
                pltpu.VMEM((npos * nb, 32), jnp.float32),   # conv3 activations
                pltpu.VMEM((nb, npos * 32), jnp.float32),   # flattened fc1 input
            ],
        ),
        compiler_params=pltpu.CompilerParams(
            dimension_semantics=("parallel", "arbitrary"),
            vmem_limit_bytes=_VMEM_LIMIT_BYTES),
    )(p3, w3, b3, fc1w, fc1b, w2c, b2c, wva, bva)


# ----------------------------------------------------------------------------
# Plain-JAX layout glue: im2col patch extraction (no heavy math)
# ----------------------------------------------------------------------------
def im2col(x, k, stride, pad):
    """NHWC -> (N, Ho*Wo, k*k*C) patches; flattening order (kh, kw, C).
    TODO(synk): fold this strided window gather into the conv kernels (in-kernel
    halo DMA) to kill the k*k HBM duplication at training batch sizes."""
    if pad > 0:
        x = jnp.pad(x, ((0, 0), (pad, pad), (pad, pad), (0, 0)))
    n, h, w, c = x.shape
    ho = (h - k) // stride + 1
    wo = (w - k) // stride + 1
    cols = []
    for i in range(k):
        for j in range(k):
            cols.append(x[:, i:i + stride * ho:stride, j:j + stride * wo:stride, :])
    patches = jnp.stack(cols, axis=3).reshape(n, ho * wo, k * k * c)
    return patches, ho, wo


def conv3_patches_branched(h2, nb):
    """conv3 has kernel == stride == 7, so its im2col is a pure reshape/transpose.
    h2: (n, 21, 21, 64) with channels [branch1 | branch2].  Per branch, rows are
    ordered (image-tile, position, image-within-tile) so the head kernel can
    slice contiguous per-position row groups."""
    n, H, W, _ = h2.shape
    oh, ow = H // 7, W // 7
    nt = n // nb
    t = h2.reshape(nt, nb, oh, 7, ow, 7, 2, 32)
    t = jnp.transpose(t, (6, 0, 2, 4, 1, 3, 5, 7))   # (br, nt, oh, ow, nb, kh, kw, c)
    return t.reshape(2, nt * oh * ow * nb, 7 * 7 * 32)


# ----------------------------------------------------------------------------
# Parameter initialization (PyTorch-default-style uniform) and packing
# ----------------------------------------------------------------------------
def _uniform(key, shape, fan_in):
    bound = 1.0 / math.sqrt(fan_in)
    return jax.random.uniform(key, shape, jnp.float32, -bound, bound)


def init_branch_raw(key, in_ch, action_dim):
    ks = jax.random.split(key, 16)

    def conv_p(kw, kb, cout, cin, k):
        fan = cin * k * k
        return _uniform(kw, (cout, cin, k, k), fan), _uniform(kb, (cout,), fan)

    def lin_p(kw, kb, dout, din):
        return _uniform(kw, (dout, din), din), _uniform(kb, (dout,), din)

    return {
        "c1": conv_p(ks[0], ks[1], 32, in_ch, 4),
        "c2": conv_p(ks[2], ks[3], 32, 32, 5),
        "c3": conv_p(ks[4], ks[5], 32, 32, 7),
        "fc1": lin_p(ks[6], ks[7], 128, 32 * 9),
        "fc2v": lin_p(ks[8], ks[9], 128, 128),
        "fc2a": lin_p(ks[10], ks[11], 128, 128),
        "v": lin_p(ks[12], ks[13], 1, 128),
        "a": lin_p(ks[14], ks[15], action_dim, 128),
    }


def _conv_flat(w):
    # (C_out, C_in, kh, kw) -> (kh, kw, C_in, C_out) -> [k*k*C_in, C_out]
    cout, cin, k, _ = w.shape
    return jnp.transpose(w, (2, 3, 1, 0)).reshape(k * k * cin, cout)


def _conv2_blockdiag(wa, wb):
    # Branch-fused conv2: rows = (kh, kw, 64 fused in-ch), cols = 64 fused out-ch,
    # with branch1 mapping [0:32)->[0:32) and branch2 [32:64)->[32:64).
    k = wa.shape[-1]
    w = jnp.zeros((k, k, 64, 64), jnp.float32)
    w = w.at[:, :, :32, :32].set(jnp.transpose(wa, (2, 3, 1, 0)))
    w = w.at[:, :, 32:, 32:].set(jnp.transpose(wb, (2, 3, 1, 0)))
    return w.reshape(k * k * 64, 64)


def _fc1_perm(w):
    # PyTorch fc1 acts on a (C=32, H=3, W=3) flatten (index c*9+p).  Reorder W.T
    # rows to (position, channel) so the head never needs an in-kernel transpose.
    wt = w.T.reshape(32, 9, 128)
    return jnp.transpose(wt, (1, 0, 2)).reshape(9 * 32, 128)


def _va_fused(r, action_dim):
    # Block-diagonal fusion of V (1 col at lane 0) and A (lanes 128:128+action).
    vw, vb = r["v"]
    aw, ab = r["a"]
    w = jnp.zeros((256, 256), jnp.float32)
    w = w.at[0:128, 0:1].set(vw.T)
    w = w.at[128:256, 128:128 + action_dim].set(aw.T)
    b = jnp.zeros((256,), jnp.float32)
    b = b.at[0].set(vb[0])
    b = b.at[128:128 + action_dim].set(ab)
    return w, b


def pack_params(r1, r2, action_dim):
    def stack(f):
        return jnp.stack([f(r1), f(r2)])

    return {
        # conv1: both branches fused along the out-channel (lane) axis.
        "w1": jnp.concatenate([_conv_flat(r1["c1"][0]),
                               _conv_flat(r2["c1"][0])], axis=1).astype(jnp.bfloat16),
        "b1": jnp.concatenate([r1["c1"][1], r2["c1"][1]]).reshape(1, 64),
        # conv2: block-diagonal branch fusion (K=1600 -> cout=64).
        "w2": _conv2_blockdiag(r1["c2"][0], r2["c2"][0]).astype(jnp.bfloat16),
        "b2": jnp.concatenate([r1["c2"][1], r2["c2"][1]]).reshape(1, 64),
        # head: branch-stacked (leading grid axis of size 2), bf16 matmul weights.
        "w3": stack(lambda r: _conv_flat(r["c3"][0])).astype(jnp.bfloat16),
        "b3": stack(lambda r: r["c3"][1]).reshape(2, 1, 32),
        "fc1w": stack(lambda r: _fc1_perm(r["fc1"][0])).astype(jnp.bfloat16),
        "fc1b": stack(lambda r: r["fc1"][1]).reshape(2, 1, 128),
        "w2c": stack(lambda r: jnp.concatenate([r["fc2v"][0].T,
                                                r["fc2a"][0].T],
                                               axis=1)).astype(jnp.bfloat16),
        "b2c": stack(lambda r: jnp.concatenate([r["fc2v"][1],
                                                r["fc2a"][1]])).reshape(2, 1, 256),
        "wva": stack(lambda r: _va_fused(r, action_dim)[0]).astype(jnp.bfloat16),
        "bva": stack(lambda r: _va_fused(r, action_dim)[1]).reshape(2, 1, 256),
    }


# ----------------------------------------------------------------------------
# Forward pass (both Q heads), mirroring Rainbow_DQN_Conv.forward
# ----------------------------------------------------------------------------
@partial(jax.jit, static_argnums=(2,))
def rainbow_dqn_forward(x_nchw, packed, action_dim):
    n = x_nchw.shape[0]
    x = jnp.transpose(x_nchw, (0, 2, 3, 1)).astype(jnp.bfloat16)   # NHWC bf16

    # conv1: shared im2col, both branches in one 64-lane matmul, M-row tiled.
    p1, ho1, wo1 = im2col(x, k=4, stride=2, pad=0)
    h1 = conv_mm(p1.reshape(n * ho1 * wo1, -1), packed["w1"], packed["b1"])
    h1 = h1.reshape(n, ho1, wo1, 64)

    # conv2: branches fused block-diagonally over channels, M-row tiled.
    p2, ho2, wo2 = im2col(h1, k=5, stride=2, pad=2)
    h2 = conv_mm(p2.reshape(n * ho2 * wo2, -1), packed["w2"], packed["b2"])
    h2 = h2.reshape(n, ho2, wo2, 64)

    # conv3 + flatten + dueling head, fused; image axis tiled for VMEM.
    nb = n if n <= 64 else 64
    n_pad = ((n + nb - 1) // nb) * nb
    if n_pad != n:
        h2 = jnp.pad(h2, ((0, n_pad - n), (0, 0), (0, 0), (0, 0)))
    p3 = conv3_patches_branched(h2, nb)                 # (2, nt*9*nb, 1568) bf16
    q = dueling_head_both(p3, packed["w3"], packed["b3"],
                          packed["fc1w"], packed["fc1b"],
                          packed["w2c"], packed["b2c"],
                          packed["wva"], packed["bva"], nb, action_dim)
    return q[0, :n, :action_dim], q[1, :n, :action_dim]


# ----------------------------------------------------------------------------
if __name__ == "__main__":
    # Smallest shapes consistent with the module's fc_input_size = 32 * 9:
    # 84x84 input -> 41 -> 21 -> 3 spatial chain (batch=2, channels=4).
    step_size, channel_size = 1, 4
    height = width = 84
    action_dim = 6
    batch = 2

    key = jax.random.PRNGKey(0)
    kx, k1, k2 = jax.random.split(key, 3)
    x = jax.random.normal(kx, (batch, step_size * channel_size, height, width),
                          dtype=jnp.float32)
    raw_q1 = init_branch_raw(k1, step_size * channel_size, action_dim)
    raw_q2 = init_branch_raw(k2, step_size * channel_size, action_dim)
    packed = pack_params(raw_q1, raw_q2, action_dim)

    q1, q2 = rainbow_dqn_forward(x, packed, action_dim)
    q1 = jax.block_until_ready(q1)
    q2 = jax.block_until_ready(q2)
    assert q1.shape == (batch, action_dim) and q2.shape == (batch, action_dim)
    assert bool(jnp.all(jnp.isfinite(q1))) and bool(jnp.all(jnp.isfinite(q2)))
    print("KERNEL_OK")
</pallas_src>

<mosaic_0001>
module attributes {stable_mosaic.version = 11 : i64} {
  func.func @_mm_bias_celu_kernel(%arg0: i32, %arg1: memref<512x64xbf16, #tpu.memory_space<vmem>>, %arg2: memref<64x64xbf16, #tpu.memory_space<vmem>>, %arg3: memref<1x64xf32, #tpu.memory_space<vmem>>, %arg4: memref<512x64xbf16, #tpu.memory_space<vmem>>) attributes {dimension_semantics = [#tpu.dimension_semantics<parallel>], iteration_bounds = array<i64: 7>, scalar_prefetch = 0 : i64, scratch_operands = 0 : i64, tpu.core_type = #tpu.core_type<tc>, window_params = [{transform_indices = @transform_0, window_bounds = array<i64: 512, 64>}, {pipeline_mode = #tpu.pipeline_mode<synchronous>, transform_indices = @transform_1, window_bounds = array<i64: 64, 64>}, {pipeline_mode = #tpu.pipeline_mode<synchronous>, transform_indices = @transform_2, window_bounds = array<i64: 1, 64>}, {transform_indices = @transform_3, window_bounds = array<i64: 512, 64>}]} {
    %c0 = arith.constant 0 : index
    %c0_0 = arith.constant 0 : index
    %0 = vector.load %arg1[%c0, %c0_0] : memref<512x64xbf16, #tpu.memory_space<vmem>>, vector<512x64xbf16>
    %c0_1 = arith.constant 0 : index
    %c0_2 = arith.constant 0 : index
    %1 = vector.load %arg2[%c0_1, %c0_2] : memref<64x64xbf16, #tpu.memory_space<vmem>>, vector<64x64xbf16>
    %cst = arith.constant dense<0.000000e+00> : vector<512x64xf32>
    %2 = tpu.matmul %0, %1, %cst {dimension_numbers = #tpu.dot_dimension_numbers<[1], [0], [0], [1], [0, 0, 1, 1], [], []>} : vector<512x64xbf16>, vector<64x64xbf16>, vector<512x64xf32> -> vector<512x64xf32>
    %c0_3 = arith.constant 0 : index
    %c0_4 = arith.constant 0 : index
    %3 = vector.load %arg3[%c0_3, %c0_4] : memref<1x64xf32, #tpu.memory_space<vmem>>, vector<1x64xf32>
    %4 = vector.broadcast %3 : vector<1x64xf32> to vector<512x64xf32>
    %5 = arith.addf %2, %4 : vector<512x64xf32>
    %cst_5 = arith.constant 0.000000e+00 : f32
    %6 = vector.broadcast %cst_5 : f32 to vector<512x64xf32>
    %7 = arith.cmpf ogt, %5, %6 : vector<512x64xf32>
    %cst_6 = arith.constant 0.000000e+00 : f32
    %8 = vector.broadcast %cst_6 : f32 to vector<512x64xf32>
    %9 = arith.minimumf %5, %8 : vector<512x64xf32>
    %10 = math.exp %9 : vector<512x64xf32>
    %cst_7 = arith.constant 1.000000e+00 : f32
    %11 = vector.broadcast %cst_7 : f32 to vector<512x64xf32>
    %12 = arith.subf %10, %11 : vector<512x64xf32>
    %13 = arith.select %7, %5, %12 : vector<512x64xi1>, vector<512x64xf32>
    %14 = arith.truncf %13 : vector<512x64xf32> to vector<512x64xbf16>
    %c0_8 = arith.constant 0 : index
    %c0_9 = arith.constant 0 : index
    %15 = vector.load %arg4[%c0_8, %c0_9] : memref<512x64xbf16, #tpu.memory_space<vmem>>, vector<512x64xbf16>
    tpu.vector_store %arg4[%c0_8, %c0_9], %14 {strides = array<i32>} : memref<512x64xbf16, #tpu.memory_space<vmem>>, vector<512x64xbf16>,
    return
  }
  func.func @transform_0(%arg0: i32) -> (i32, i32) {
    %c0_i32 = arith.constant 0 : i32
    %c0_i32_0 = arith.constant 0 : i32
    return %arg0, %c0_i32 : i32, i32
  }
  func.func @transform_1(%arg0: i32) -> (i32, i32) {
    %c0_i32 = arith.constant 0 : i32
    %c0_i32_0 = arith.constant 0 : i32
    %c0_i32_1 = arith.constant 0 : i32
    return %c0_i32, %c0_i32_0 : i32, i32
  }
  func.func @transform_2(%arg0: i32) -> (i32, i32) {
    %c0_i32 = arith.constant 0 : i32
    %c0_i32_0 = arith.constant 0 : i32
    %c0_i32_1 = arith.constant 0 : i32
    return %c0_i32, %c0_i32_0 : i32, i32
  }
  func.func @transform_3(%arg0: i32) -> (i32, i32) {
    %c0_i32 = arith.constant 0 : i32
    %c0_i32_0 = arith.constant 0 : i32
    return %arg0, %c0_i32 : i32, i32
  }
}

module attributes {stable_mosaic.version = 11 : i64} {
  func.func @_mm_bias_celu_kernel(%arg0: i32, %arg1: memref<224x1600xbf16, #tpu.memory_space<vmem>>, %arg2: memref<1600x64xbf16, #tpu.memory_space<vmem>>, %arg3: memref<1x64xf32, #tpu.memory_space<vmem>>, %arg4: memref<224x64xbf16, #tpu.memory_space<vmem>>) attributes {dimension_semantics = [#tpu.dimension_semantics<parallel>], iteration_bounds = array<i64: 4>, scalar_prefetch = 0 : i64, scratch_operands = 0 : i64, tpu.core_type = #tpu.core_type<tc>, window_params = [{transform_indices = @transform_0, window_bounds = array<i64: 224, 1600>}, {pipeline_mode = #tpu.pipeline_mode<synchronous>, transform_indices = @transform_1, window_bounds = array<i64: 1600, 64>}, {pipeline_mode = #tpu.pipeline_mode<synchronous>, transform_indices = @transform_2, window_bounds = array<i64: 1, 64>}, {transform_indices = @transform_3, window_bounds = array<i64: 224, 64>}]} {
    %c0 = arith.constant 0 : index
    %c0_0 = arith.constant 0 : index
    %0 = vector.load %arg1[%c0, %c0_0] : memref<224x1600xbf16, #tpu.memory_space<vmem>>, vector<224x1600xbf16>
    %c0_1 = arith.constant 0 : index
    %c0_2 = arith.constant 0 : index
    %1 = vector.load %arg2[%c0_1, %c0_2] : memref<1600x64xbf16, #tpu.memory_space<vmem>>, vector<1600x64xbf16>
    %cst = arith.constant dense<0.000000e+00> : vector<224x64xf32>
    %2 = tpu.matmul %0, %1, %cst {dimension_numbers = #tpu.dot_dimension_numbers<[1], [0], [0], [1], [0, 0, 1, 1], [], []>} : vector<224x1600xbf16>, vector<1600x64xbf16>, vector<224x64xf32> -> vector<224x64xf32>
    %c0_3 = arith.constant 0 : index
    %c0_4 = arith.constant 0 : index
    %3 = vector.load %arg3[%c0_3, %c0_4] : memref<1x64xf32, #tpu.memory_space<vmem>>, vector<1x64xf32>
    %4 = vector.broadcast %3 : vector<1x64xf32> to vector<224x64xf32>
    %5 = arith.addf %2, %4 : vector<224x64xf32>
    %cst_5 = arith.constant 0.000000e+00 : f32
    %6 = vector.broadcast %cst_5 : f32 to vector<224x64xf32>
    %7 = arith.cmpf ogt, %5, %6 : vector<224x64xf32>
    %cst_6 = arith.constant 0.000000e+00 : f32
    %8 = vector.broadcast %cst_6 : f32 to vector<224x64xf32>
    %9 = arith.minimumf %5, %8 : vector<224x64xf32>
    %10 = math.exp %9 : vector<224x64xf32>
    %cst_7 = arith.constant 1.000000e+00 : f32
    %11 = vector.broadcast %cst_7 : f32 to vector<224x64xf32>
    %12 = arith.subf %10, %11 : vector<224x64xf32>
    %13 = arith.select %7, %5, %12 : vector<224x64xi1>, vector<224x64xf32>
    %14 = arith.truncf %13 : vector<224x64xf32> to vector<224x64xbf16>
    %c0_8 = arith.constant 0 : index
    %c0_9 = arith.constant 0 : index
    %15 = vector.load %arg4[%c0_8, %c0_9] : memref<224x64xbf16, #tpu.memory_space<vmem>>, vector<224x64xbf16>
    tpu.vector_store %arg4[%c0_8, %c0_9], %14 {strides = array<i32>} : memref<224x64xbf16, #tpu.memory_space<vmem>>, vector<224x64xbf16>,
    return
  }
  func.func @transform_0(%arg0: i32) -> (i32, i32) {
    %c0_i32 = arith.constant 0 : i32
    %c0_i32_0 = arith.constant 0 : i32
    return %arg0, %c0_i32 : i32, i32
  }
  func.func @transform_1(%arg0: i32) -> (i32, i32) {
    %c0_i32 = arith.constant 0 : i32
    %c0_i32_0 = arith.constant 0 : i32
    %c0_i32_1 = arith.constant 0 : i32
    return %c0_i32, %c0_i32_0 : i32, i32
  }
  func.func @transform_2(%arg0: i32) -> (i32, i32) {
    %c0_i32 = arith.constant 0 : i32
    %c0_i32_0 = arith.constant 0 : i32
    %c0_i32_1 = arith.constant 0 : i32
    return %c0_i32, %c0_i32_0 : i32, i32
  }
  func.func @transform_3(%arg0: i32) -> (i32, i32) {
    %c0_i32 = arith.constant 0 : i32
    %c0_i32_0 = arith.constant 0 : i32
    return %arg0, %c0_i32 : i32, i32
  }
}

module attributes {stable_mosaic.version = 11 : i64} {
  func.func @_head_kernel(%arg0: i32, %arg1: i32, %arg2: memref<1x18x1568xbf16, #tpu.memory_space<vmem>>, %arg3: memref<1x1568x32xbf16, #tpu.memory_space<vmem>>, %arg4: memref<1x1x32xf32, #tpu.memory_space<vmem>>, %arg5: memref<1x288x128xbf16, #tpu.memory_space<vmem>>, %arg6: memref<1x1x128xf32, #tpu.memory_space<vmem>>, %arg7: memref<1x128x256xbf16, #tpu.memory_space<vmem>>, %arg8: memref<1x1x256xf32, #tpu.memory_space<vmem>>, %arg9: memref<1x256x256xbf16, #tpu.memory_space<vmem>>, %arg10: memref<1x1x256xf32, #tpu.memory_space<vmem>>, %arg11: memref<1x2x128xf32, #tpu.memory_space<vmem>>, %arg12: memref<18x32xf32, #tpu.memory_space<vmem>>, %arg13: memref<2x288xf32, #tpu.memory_space<vmem>>) attributes {dimension_semantics = [#tpu.dimension_semantics<parallel>, #tpu.dimension_semantics<arbitrary>], iteration_bounds = array<i64: 2, 1>, scalar_prefetch = 0 : i64, scratch_operands = 2 : i64, tpu.core_type = #tpu.core_type<tc>, window_params = [{transform_indices = @transform_0, window_bounds = array<i64: 1, 18, 1568>}, {transform_indices = @transform_1, window_bounds = array<i64: 1, 1568, 32>}, {transform_indices = @transform_2, window_bounds = array<i64: 1, 1, 32>}, {transform_indices = @transform_3, window_bounds = array<i64: 1, 288, 128>}, {transform_indices = @transform_4, window_bounds = array<i64: 1, 1, 128>}, {transform_indices = @transform_5, window_bounds = array<i64: 1, 128, 256>}, {transform_indices = @transform_6, window_bounds = array<i64: 1, 1, 256>}, {transform_indices = @transform_7, window_bounds = array<i64: 1, 256, 256>}, {transform_indices = @transform_8, window_bounds = array<i64: 1, 1, 256>}, {transform_indices = @transform_9, window_bounds = array<i64: 1, 2, 128>}]} {
    %c0 = arith.constant 0 : index
    %c0_0 = arith.constant 0 : index
    %c0_1 = arith.constant 0 : index
    %0 = vector.load %arg2[%c0, %c0_0, %c0_1] : memref<1x18x1568xbf16, #tpu.memory_space<vmem>>, vector<1x18x1568xbf16>
    %1 = vector.shape_cast %0 : vector<1x18x1568xbf16> to vector<18x1568xbf16>
    %c0_2 = arith.constant 0 : index
    %c0_3 = arith.constant 0 : index
    %c0_4 = arith.constant 0 : index
    %2 = vector.load %arg3[%c0_2, %c0_3, %c0_4] : memref<1x1568x32xbf16, #tpu.memory_space<vmem>>, vector<1x1568x32xbf16>
    %3 = vector.shape_cast %2 : vector<1x1568x32xbf16> to vector<1568x32xbf16>
    %cst = arith.constant dense<0.000000e+00> : vector<18x32xf32>
    %4 = tpu.matmul %1, %3, %cst {dimension_numbers = #tpu.dot_dimension_numbers<[1], [0], [0], [1], [0, 0, 1, 1], [], []>} : vector<18x1568xbf16>, vector<1568x32xbf16>, vector<18x32xf32> -> vector<18x32xf32>
    %c0_5 = arith.constant 0 : index
    %c0_6 = arith.constant 0 : index
    %c0_7 = arith.constant 0 : index
    %5 = vector.load %arg4[%c0_5, %c0_6, %c0_7] : memref<1x1x32xf32, #tpu.memory_space<vmem>>, vector<1x1x32xf32>
    %6 = vector.shape_cast %5 : vector<1x1x32xf32> to vector<1x32xf32>
    %7 = vector.broadcast %6 : vector<1x32xf32> to vector<18x32xf32>
    %8 = arith.addf %4, %7 : vector<18x32xf32>
    %cst_8 = arith.constant 0.000000e+00 : f32
    %9 = vector.broadcast %cst_8 : f32 to vector<18x32xf32>
    %10 = arith.cmpf ogt, %8, %9 : vector<18x32xf32>
    %cst_9 = arith.constant 0.000000e+00 : f32
    %11 = vector.broadcast %cst_9 : f32 to vector<18x32xf32>
    %12 = arith.minimumf %8, %11 : vector<18x32xf32>
    %13 = math.exp %12 : vector<18x32xf32>
    %cst_10 = arith.constant 1.000000e+00 : f32
    %14 = vector.broadcast %cst_10 : f32 to vector<18x32xf32>
    %15 = arith.subf %13, %14 : vector<18x32xf32>
    %16 = arith.select %10, %8, %15 : vector<18x32xi1>, vector<18x32xf32>
    %c0_11 = arith.constant 0 : index
    %c0_12 = arith.constant 0 : index
    %17 = vector.load %arg12[%c0_11, %c0_12] : memref<18x32xf32, #tpu.memory_space<vmem>>, vector<18x32xf32>
    tpu.vector_store %arg12[%c0_11, %c0_12], %16 {strides = array<i32>} : memref<18x32xf32, #tpu.memory_space<vmem>>, vector<18x32xf32>,
    %c0_13 = arith.constant 0 : index
    %c0_14 = arith.constant 0 : index
    %18 = vector.load %arg12[%c0_13, %c0_14] : memref<18x32xf32, #tpu.memory_space<vmem>>, vector<2x32xf32>
    %c0_15 = arith.constant 0 : index
    %c0_16 = arith.constant 0 : index
    %19 = vector.load %arg13[%c0_15, %c0_16] : memref<2x288xf32, #tpu.memory_space<vmem>>, vector<2x32xf32>
    tpu.vector_store %arg13[%c0_15, %c0_16], %18 {strides = array<i32>} : memref<2x288xf32, #tpu.memory_space<vmem>>, vector<2x32xf32>,
    %c2 = arith.constant 2 : index
    %c0_17 = arith.constant 0 : index
    %20 = vector.load %arg12[%c2, %c0_17] : memref<18x32xf32, #tpu.memory_space<vmem>>, vector<2x32xf32>
    %c0_18 = arith.constant 0 : index
    %c32 = arith.constant 32 : index
    %21 = vector.load %arg13[%c0_18, %c32] : memref<2x288xf32, #tpu.memory_space<vmem>>, vector<2x32xf32>
    tpu.vector_store %arg13[%c0_18, %c32], %20 {strides = array<i32>} : memref<2x288xf32, #tpu.memory_space<vmem>>, vector<2x32xf32>,
    %c4 = arith.constant 4 : index
    %c0_19 = arith.constant 0 : index
    %22 = vector.load %arg12[%c4, %c0_19] : memref<18x32xf32, #tpu.memory_space<vmem>>, vector<2x32xf32>
    %c0_20 = arith.constant 0 : index
    %c64 = arith.constant 64 : index
    %23 = vector.load %arg13[%c0_20, %c64] : memref<2x288xf32, #tpu.memory_space<vmem>>, vector<2x32xf32>
    tpu.vector_store %arg13[%c0_20, %c64], %22 {strides = array<i32>} : memref<2x288xf32, #tpu.memory_space<vmem>>, vector<2x32xf32>,
    %c6 = arith.constant 6 : index
    %c0_21 = arith.constant 0 : index
    %24 = vector.load %arg12[%c6, %c0_21] : memref<18x32xf32, #tpu.memory_space<vmem>>, vector<2x32xf32>
    %c0_22 = arith.constant 0 : index
    %c96 = arith.constant 96 : index
    %25 = vector.load %arg13[%c0_22, %c96] : memref<2x288xf32, #tpu.memory_space<vmem>>, vector<2x32xf32>
    tpu.vector_store %arg13[%c0_22, %c96], %24 {strides = array<i32>} : memref<2x288xf32, #tpu.memory_space<vmem>>, vector<2x32xf32>,
    %c8 = arith.constant 8 : index
    %c0_23 = arith.constant 0 : index
    %26 = vector.load %arg12[%c8, %c0_23] : memref<18x32xf32, #tpu.memory_space<vmem>>, vector<2x32xf32>
    %c0_24 = arith.constant 0 : index
    %c128 = arith.constant 128 : index
    %27 = vector.load %arg13[%c0_24, %c128] : memref<2x288xf32, #tpu.memory_space<vmem>>, vector<2x32xf32>
    tpu.vector_store %arg13[%c0_24, %c128], %26 {strides = array<i32>} : memref<2x288xf32, #tpu.memory_space<vmem>>, vector<2x32xf32>,
    %c10 = arith.constant 10 : index
    %c0_25 = arith.constant 0 : index
    %28 = vector.load %arg12[%c10, %c0_25] : memref<18x32xf32, #tpu.memory_space<vmem>>, vector<2x32xf32>
    %c0_26 = arith.constant 0 : index
    %c160 = arith.constant 160 : index
    %29 = vector.load %arg13[%c0_26, %c160] : memref<2x288xf32, #tpu.memory_space<vmem>>, vector<2x32xf32>
    tpu.vector_store %arg13[%c0_26, %c160], %28 {strides = array<i32>} : memref<2x288xf32, #tpu.memory_space<vmem>>, vector<2x32xf32>,
    %c12 = arith.constant 12 : index
    %c0_27 = arith.constant 0 : index
    %30 = vector.load %arg12[%c12, %c0_27] : memref<18x32xf32, #tpu.memory_space<vmem>>, vector<2x32xf32>
    %c0_28 = arith.constant 0 : index
    %c192 = arith.constant 192 : index
    %31 = vector.load %arg13[%c0_28, %c192] : memref<2x288xf32, #tpu.memory_space<vmem>>, vector<2x32xf32>
    tpu.vector_store %arg13[%c0_28, %c192], %30 {strides = array<i32>} : memref<2x288xf32, #tpu.memory_space<vmem>>, vector<2x32xf32>,
    %c14 = arith.constant 14 : index
    %c0_29 = arith.constant 0 : index
    %32 = vector.load %arg12[%c14, %c0_29] : memref<18x32xf32, #tpu.memory_space<vmem>>, vector<2x32xf32>
    %c0_30 = arith.constant 0 : index
    %c224 = arith.constant 224 : index
    %33 = vector.load %arg13[%c0_30, %c224] : memref<2x288xf32, #tpu.memory_space<vmem>>, vector<2x32xf32>
    tpu.vector_store %arg13[%c0_30, %c224], %32 {strides = array<i32>} : memref<2x288xf32, #tpu.memory_space<vmem>>, vector<2x32xf32>,
    %c16 = arith.constant 16 : index
    %c0_31 = arith.constant 0 : index
    %34 = vector.load %arg12[%c16, %c0_31] : memref<18x32xf32, #tpu.memory_space<vmem>>, vector<2x32xf32>
    %c0_32 = arith.constant 0 : index
    %c256 = arith.constant 256 : index
    %35 = vector.load %arg13[%c0_32, %c256] : memref<2x288xf32, #tpu.memory_space<vmem>>, vector<2x32xf32>
    tpu.vector_store %arg13[%c0_32, %c256], %34 {strides = array<i32>} : memref<2x288xf32, #tpu.memory_space<vmem>>, vector<2x32xf32>,
    %c0_33 = arith.constant 0 : index
    %c0_34 = arith.constant 0 : index
    %36 = vector.load %arg13[%c0_33, %c0_34] : memref<2x288xf32, #tpu.memory_space<vmem>>, vector<2x288xf32>
    %37 = arith.truncf %36 : vector<2x288xf32> to vector<2x288xbf16>
    %c0_35 = arith.constant 0 : index
    %c0_36 = arith.constant 0 : index
    %c0_37 = arith.constant 0 : index
    %38 = vector.load %arg5[%c0_35, %c0_36, %c0_37] : memref<1x288x128xbf16, #tpu.memory_space<vmem>>, vector<1x288x128xbf16>
    %39 = vector.shape_cast %38 : vector<1x288x128xbf16> to vector<288x128xbf16>
    %cst_38 = arith.constant dense<0.000000e+00> : vector<2x128xf32>
    %40 = tpu.matmul %37, %39, %cst_38 {dimension_numbers = #tpu.dot_dimension_numbers<[1], [0], [0], [1], [0, 0, 1, 1], [], []>} : vector<2x288xbf16>, vector<288x128xbf16>, vector<2x128xf32> -> vector<2x128xf32>
    %c0_39 = arith.constant 0 : index
    %c0_40 = arith.constant 0 : index
    %c0_41 = arith.constant 0 : index
    %41 = vector.load %arg6[%c0_39, %c0_40, %c0_41] : memref<1x1x128xf32, #tpu.memory_space<vmem>>, vector<1x1x128xf32>
    %42 = vector.shape_cast %41 : vector<1x1x128xf32> to vector<1x128xf32>
    %43 = vector.broadcast %42 : vector<1x128xf32> to vector<2x128xf32>
    %44 = arith.addf %40, %43 : vector<2x128xf32>
    %cst_42 = arith.constant 0.000000e+00 : f32
    %45 = vector.broadcast %cst_42 : f32 to vector<2x128xf32>
    %46 = arith.cmpf ogt, %44, %45 : vector<2x128xf32>
    %cst_43 = arith.constant 0.000000e+00 : f32
    %47 = vector.broadcast %cst_43 : f32 to vector<2x128xf32>
    %48 = arith.minimumf %44, %47 : vector<2x128xf32>
    %49 = math.exp %48 : vector<2x128xf32>
    %cst_44 = arith.constant 1.000000e+00 : f32
    %50 = vector.broadcast %cst_44 : f32 to vector<2x128xf32>
    %51 = arith.subf %49, %50 : vector<2x128xf32>
    %52 = arith.select %46, %44, %51 : vector<2x128xi1>, vector<2x128xf32>
    %53 = arith.truncf %52 : vector<2x128xf32> to vector<2x128xbf16>
    %c0_45 = arith.constant 0 : index
    %c0_46 = arith.constant 0 : index
    %c0_47 = arith.constant 0 : index
    %54 = vector.load %arg7[%c0_45, %c0_46, %c0_47] : memref<1x128x256xbf16, #tpu.memory_space<vmem>>, vector<1x128x256xbf16>
    %55 = vector.shape_cast %54 : vector<1x128x256xbf16> to vector<128x256xbf16>
    %cst_48 = arith.constant dense<0.000000e+00> : vector<2x256xf32>
    %56 = tpu.matmul %53, %55, %cst_48 {dimension_numbers = #tpu.dot_dimension_numbers<[1], [0], [0], [1], [0, 0, 1, 1], [], []>} : vector<2x128xbf16>, vector<128x256xbf16>, vector<2x256xf32> -> vector<2x256xf32>
    %c0_49 = arith.constant 0 : index
    %c0_50 = arith.constant 0 : index
    %c0_51 = arith.constant 0 : index
    %57 = vector.load %arg8[%c0_49, %c0_50, %c0_51] : memref<1x1x256xf32, #tpu.memory_space<vmem>>, vector<1x1x256xf32>
    %58 = vector.shape_cast %57 : vector<1x1x256xf32> to vector<1x256xf32>
    %59 = vector.broadcast %58 : vector<1x256xf32> to vector<2x256xf32>
    %60 = arith.addf %56, %59 : vector<2x256xf32>
    %cst_52 = arith.constant 0.000000e+00 : f32
    %61 = vector.broadcast %cst_52 : f32 to vector<2x256xf32>
    %62 = arith.cmpf ogt, %60, %61 : vector<2x256xf32>
    %cst_53 = arith.constant 0.000000e+00 : f32
    %63 = vector.broadcast %cst_53 : f32 to vector<2x256xf32>
    %64 = arith.minimumf %60, %63 : vector<2x256xf32>
    %65 = math.exp %64 : vector<2x256xf32>
    %cst_54 = arith.constant 1.000000e+00 : f32
    %66 = vector.broadcast %cst_54 : f32 to vector<2x256xf32>
    %67 = arith.subf %65, %66 : vector<2x256xf32>
    %68 = arith.select %62, %60, %67 : vector<2x256xi1>, vector<2x256xf32>
    %69 = arith.truncf %68 : vector<2x256xf32> to vector<2x256xbf16>
    %c0_55 = arith.constant 0 : index
    %c0_56 = arith.constant 0 : index
    %c0_57 = arith.constant 0 : index
    %70 = vector.load %arg9[%c0_55, %c0_56, %c0_57] : memref<1x256x256xbf16, #tpu.memory_space<vmem>>, vector<1x256x256xbf16>
    %71 = vector.shape_cast %70 : vector<1x256x256xbf16> to vector<256x256xbf16>
    %cst_58 = arith.constant dense<0.000000e+00> : vector<2x256xf32>
    %72 = tpu.matmul %69, %71, %cst_58 {dimension_numbers = #tpu.dot_dimension_numbers<[1], [0], [0], [1], [0, 0, 1, 1], [], []>} : vector<2x256xbf16>, vector<256x256xbf16>, vector<2x256xf32> -> vector<2x256xf32>
    %c0_59 = arith.constant 0 : index
    %c0_60 = arith.constant 0 : index
    %c0_61 = arith.constant 0 : index
    %73 = vector.load %arg10[%c0_59, %c0_60, %c0_61] : memref<1x1x256xf32, #tpu.memory_space<vmem>>, vector<1x1x256xf32>
    %74 = vector.shape_cast %73 : vector<1x1x256xf32> to vector<1x256xf32>
    %75 = vector.broadcast %74 : vector<1x256xf32> to vector<2x256xf32>
    %76 = arith.addf %72, %75 : vector<2x256xf32>
    %77 = vector.extract_strided_slice %76 {offsets = [0, 0], sizes = [2, 1], strides = [1, 1]} : vector<2x256xf32> to vector<2x1xf32>
    %78 = vector.extract_strided_slice %76 {offsets = [0, 128], sizes = [2, 128], strides = [1, 1]} : vector<2x256xf32> to vector<2x128xf32>
    %cst_62 = arith.constant dense<0.000000e+00> : vector<2xf32>
    %79 = vector.multi_reduction <add>, %78, %cst_62 [1] : vector<2x128xf32> to vector<2xf32>
    %80 = vector.shape_cast %79 : vector<2xf32> to vector<2x1xf32>
    %cst_63 = arith.constant 0.166666672 : f32
    %81 = vector.broadcast %cst_63 : f32 to vector<2x1xf32>
    %82 = arith.mulf %80, %81 : vector<2x1xf32>
    %83 = vector.broadcast %77 : vector<2x1xf32> to vector<2x128xf32>
    %84 = arith.addf %83, %78 : vector<2x128xf32>
    %85 = vector.broadcast %82 : vector<2x1xf32> to vector<2x128xf32>
    %86 = arith.subf %84, %85 : vector<2x128xf32>
    %87 = tpu.iota {dimensions = array<i32: 1>} : vector<2x128xi32>
    %c6_i32 = arith.constant 6 : i32
    %88 = vector.broadcast %c6_i32 : i32 to vector<2x128xi32>
    %89 = arith.cmpi slt, %87, %88 : vector<2x128xi32>
    %cst_64 = arith.constant 0.000000e+00 : f32
    %90 = vector.broadcast %cst_64 : f32 to vector<2x128xf32>
    %91 = arith.select %89, %86, %90 : vector<2x128xi1>, vector<2x128xf32>
    %c0_65 = arith.constant 0 : index
    %c0_66 = arith.constant 0 : index
    %c0_67 = arith.constant 0 : index
    %92 = vector.load %arg11[%c0_65, %c0_66, %c0_67] : memref<1x2x128xf32, #tpu.memory_space<vmem>>, vector<1x2x128xf32>
    %93 = vector.shape_cast %92 : vector<1x2x128xf32> to vector<2x128xf32>
    %94 = vector.shape_cast %91 : vector<2x128xf32> to vector<1x2x128xf32>
    tpu.vector_store %arg11[%c0_65, %c0_66, %c0_67], %94 {strides = array<i32>} : memref<1x2x128xf32, #tpu.memory_space<vmem>>, vector<1x2x128xf32>,
    return
  }
  func.func @transform_0(%arg0: i32, %arg1: i32) -> (i32, i32, i32) {
    %c0_i32 = arith.constant 0 : i32
    %c0_i32_0 = arith.constant 0 : i32
    return %arg0, %arg1, %c0_i32 : i32, i32, i32
  }
  func.func @transform_1(%arg0: i32, %arg1: i32) -> (i32, i32, i32) {
    %c0_i32 = arith.constant 0 : i32
    %c0_i32_0 = arith.constant 0 : i32
    %c0_i32_1 = arith.constant 0 : i32
    return %arg0, %c0_i32, %c0_i32_0 : i32, i32, i32
  }
  func.func @transform_2(%arg0: i32, %arg1: i32) -> (i32, i32, i32) {
    %c0_i32 = arith.constant 0 : i32
    %c0_i32_0 = arith.constant 0 : i32
    %c0_i32_1 = arith.constant 0 : i32
    return %arg0, %c0_i32, %c0_i32_0 : i32, i32, i32
  }
  func.func @transform_3(%arg0: i32, %arg1: i32) -> (i32, i32, i32) {
    %c0_i32 = arith.constant 0 : i32
    %c0_i32_0 = arith.constant 0 : i32
    %c0_i32_1 = arith.constant 0 : i32
    return %arg0, %c0_i32, %c0_i32_0 : i32, i32, i32
  }
  func.func @transform_4(%arg0: i32, %arg1: i32) -> (i32, i32, i32) {
    %c0_i32 = arith.constant 0 : i32
    %c0_i32_0 = arith.constant 0 : i32
    %c0_i32_1 = arith.constant 0 : i32
    return %arg0, %c0_i32, %c0_i32_0 : i32, i32, i32
  }
  func.func @transform_5(%arg0: i32, %arg1: i32) -> (i32, i32, i32) {
    %c0_i32 = arith.constant 0 : i32
    %c0_i32_0 = arith.constant 0 : i32
    %c0_i32_1 = arith.constant 0 : i32
    return %arg0, %c0_i32, %c0_i32_0 : i32, i32, i32
  }
  func.func @transform_6(%arg0: i32, %arg1: i32) -> (i32, i32, i32) {
    %c0_i32 = arith.constant 0 : i32
    %c0_i32_0 = arith.constant 0 : i32
    %c0_i32_1 = arith.constant 0 : i32
    return %arg0, %c0_i32, %c0_i32_0 : i32, i32, i32
  }
  func.func @transform_7(%arg0: i32, %arg1: i32) -> (i32, i32, i32) {
    %c0_i32 = arith.constant 0 : i32
    %c0_i32_0 = arith.constant 0 : i32
    %c0_i32_1 = arith.constant 0 : i32
    return %arg0, %c0_i32, %c0_i32_0 : i32, i32, i32
  }
  func.func @transform_8(%arg0: i32, %arg1: i32) -> (i32, i32, i32) {
    %c0_i32 = arith.constant 0 : i32
    %c0_i32_0 = arith.constant 0 : i32
    %c0_i32_1 = arith.constant 0 : i32
    return %arg0, %c0_i32, %c0_i32_0 : i32, i32, i32
  }
  func.func @transform_9(%arg0: i32, %arg1: i32) -> (i32, i32, i32) {
    %c0_i32 = arith.constant 0 : i32
    %c0_i32_0 = arith.constant 0 : i32
    return %arg0, %arg1, %c0_i32 : i32, i32, i32
  }
}

</mosaic_0001>

<llo_original>
// kernel: rainbow_dqn_forward.3
$region0: #{rainbow_dqn_forward.3}
  #allocation0 [shape = 'u32[]', space=smem, size = 0x4, offset = 0x4, fixed_abs, tag = 'smem constant byte address 0x4 - core index']
  #allocation1 [shape = 'u32[144,128]{1,0:T(1,128)}', space=vmem, size = 0x12000, scoped, tag = 'internal scratch']
  %s0 = inlined_call_operand.vmem [shape: bf16[3584,64], index: 0, kind: input, shape index: {}]
  %s1 = inlined_call_operand.vmem [shape: bf16[64,64], index: 1, kind: input, shape index: {}]
  %s2 = inlined_call_operand.vmem [shape: f32[1,64], index: 2, kind: input, shape index: {}]
  %s3 = inlined_call_operand.vmem [shape: bf16[3584,64], index: 3, kind: output, shape index: {}]
  %s4 = sld [smem:[#allocation0]]
  $region45: #{rainbow_dqn_forward.3} parent=0
    _
  %s6 = ssub.s32 1, %s4
  %s7 = scalar_select 0, %s6, %s4
  loop: start=0, step=1, limit=9
  $region2: #{rainbow_dqn_forward.3} parent=0 // loop_pre_header
    _
  $region3: #{rainbow_dqn_forward.3} parent=0 // loop_header
    %s9 = sphi 0, %s13
    %p10 = scmp.ge.s32.totalorder %s9, 9
    %s19 = sphi 0, %s21
    %s22 = sphi 0, %s19
    %s23 = sphi 0, %s22
    %s39 = sphi 0, %s23
    %s43 = sphi 0, %s43
    %s45 = sphi 0, %s43
    %s46 = sphi 0, %s45
    %s60 = sphi 0, %s46
    %s64 = sphi 0, %s64
    %s66 = sphi 0, %s64
    %s67 = sphi 0, %s66
    %s81 = sphi 0, %s67
    %s87 = sphi 0, %s89
    %s90 = sphi 0, %s87
    %s91 = sphi 0, %s90
    %s107 = sphi 0, %s91
  $region4: #{rainbow_dqn_forward.3} parent=0 // loop_header_branch
    %12 = sbr.rel (%p10) target = $region8
  $region5: #{rainbow_dqn_forward.3} parent=0 // loop_body
    %s14 = ssub.s32 %s9, 1
    %s15 = ssub.s32 %s9, 2
    %s16 = sadd.s32 %s9, 1
    %s17 = ssub.s32 %s9, %s16
    %p18 = scmp.eq.s32.totalorder %s17, 0
    %s20 = sadd.s32 %s19, 1
    %s21 = scalar_select %p18, %s19, %s20
    %p24 = pneg %p18
    %p25 = scmp.eq.s32.totalorder %s9, 6
    %p26 = por %p24, %p25
    %p27 = scmp.ne.s32.totalorder %s19, %s22
    %p28 = scmp.eq.s32.totalorder %s9, 0
    %p29 = por %p27, %p28
    %p30 = scmp.ne.s32.totalorder %s19, %s22
    %p31 = scmp.eq.s32.totalorder %s14, 6
    %p32 = por %p30, %p31
    %p33 = scmp.ne.s32.totalorder %s22, %s23
    %p34 = scmp.eq.s32.totalorder %s14, 0
    %p35 = por %p33, %p34
    %p36 = scmp.ne.s32.totalorder %s22, %s23
    %p37 = scmp.eq.s32.totalorder %s15, 6
    %p38 = por %p36, %p37
    %p40 = scmp.ne.s32.totalorder %s23, %s39
    %p41 = scmp.eq.s32.totalorder %s15, 0
    %p42 = por %p40, %p41
    %s44 = sadd.s32 %s43, 1
    %p47 = scmp.eq.s32.totalorder %s9, 6
    %p48 = scmp.ne.s32.totalorder %s43, %s45
    %p49 = scmp.eq.s32.totalorder %s9, 0
    %p50 = por %p48, %p49
    %p51 = scmp.ne.s32.totalorder %s43, %s45
    %p52 = scmp.eq.s32.totalorder %s14, 6
    %p53 = por %p51, %p52
    %p54 = scmp.ne.s32.totalorder %s45, %s46
    %p55 = scmp.eq.s32.totalorder %s14, 0
    %p56 = por %p54, %p55
    %p57 = scmp.ne.s32.totalorder %s45, %s46
    %p58 = scmp.eq.s32.totalorder %s15, 6
    %p59 = por %p57, %p58
    %p61 = scmp.ne.s32.totalorder %s46, %s60
    %p62 = scmp.eq.s32.totalorder %s15, 0
    %p63 = por %p61, %p62
    %s65 = sadd.s32 %s64, 1
    %p68 = scmp.eq.s32.totalorder %s9, 6
    %p69 = scmp.ne.s32.totalorder %s64, %s66
    %p70 = scmp.eq.s32.totalorder %s9, 0
    %p71 = por %p69, %p70
    %p72 = scmp.ne.s32.totalorder %s64, %s66
    %p73 = scmp.eq.s32.totalorder %s14, 6
    %p74 = por %p72, %p73
    %p75 = scmp.ne.s32.totalorder %s66, %s67
    %p76 = scmp.eq.s32.totalorder %s14, 0
    %p77 = por %p75, %p76
    %p78 = scmp.ne.s32.totalorder %s66, %s67
    %p79 = scmp.eq.s32.totalorder %s15, 6
    %p80 = por %p78, %p79
    %p82 = scmp.ne.s32.totalorder %s67, %s81
    %p83 = scmp.eq.s32.totalorder %s15, 0
    %p84 = por %p82, %p83
    %s85 = ssub.s32 %s9, %s16
    %p86 = scmp.eq.s32.totalorder %s85, 0
    %s88 = sadd.s32 %s87, 1
    %s89 = scalar_select %p86, %s87, %s88
    %p92 = pneg %p86
    %p93 = scmp.eq.s32.totalorder %s9, 6
    %p94 = por %p92, %p93
    %p95 = scmp.ne.s32.totalorder %s87, %s90
    %p96 = scmp.eq.s32.totalorder %s9, 0
    %p97 = por %p95, %p96
    %p98 = scmp.ne.s32.totalorder %s87, %s90
    %p99 = scmp.eq.s32.totalorder %s14, 6
    %p100 = por %p98, %p99
    %p101 = scmp.ne.s32.totalorder %s90, %s91
    %p102 = scmp.eq.s32.totalorder %s14, 0
    %p103 = por %p101, %p102
    %p104 = scmp.ne.s32.totalorder %s90, %s91
    %p105 = scmp.eq.s32.totalorder %s15, 6
    %p106 = por %p104, %p105
    %p108 = scmp.ne.s32.totalorder %s91, %s107
    %p109 = scmp.eq.s32.totalorder %s15, 0
    %p110 = por %p108, %p109
    %p111 = scmp.le.s32.totalorder 1, %s9
    %p112 = scmp.lt.s32.totalorder %s9, 8
    %p113 = pnand %p111, %p112
    %p114 = pneg %p113
    // Predicated region
    $region9: #{rainbow_dqn_forward.3} parent=5 // pred_check
      _
    $region10: #{rainbow_dqn_forward.3} parent=5 // pred_check_branch
      %116 = sbr.rel (%p113) target = $region12
    $region11: #{rainbow_dqn_forward.3} parent=5 // pred_region
      %s117 = ssub.s32 %s9, 1
      // Predicated region
      $region13: #{rainbow_dqn_forward.3} parent=11 // pred_check
        %p118 = pneg %p56
      $region14: #{rainbow_dqn_forward.3} parent=11 // pred_check_branch
        %120 = sbr.rel (%p118) target = $region16
      $region15: #{rainbow_dqn_forward.3} parent=11 // pred_region
        _
      $region16: #{rainbow_dqn_forward.3} parent=11 // pred_fallthru
        _
      // Predicated region
      $region17: #{rainbow_dqn_forward.3} parent=11 // pred_check
        %p121 = pneg %p77
      $region18: #{rainbow_dqn_forward.3} parent=11 // pred_check_branch
        %123 = sbr.rel (%p121) target = $region20
      $region19: #{rainbow_dqn_forward.3} parent=11 // pred_region
        _
      $region20: #{rainbow_dqn_forward.3} parent=11 // pred_fallthru
        _
    $region12: #{rainbow_dqn_forward.3} parent=5 // pred_fallthru
      _
    %p124 = scmp.lt.s32.totalorder %s9, 7
    // Predicated region
    $region21: #{rainbow_dqn_forward.3} parent=5 // pred_check
      %p125 = pneg %p124
    $region22: #{rainbow_dqn_forward.3} parent=5 // pred_check_branch
      %127 = sbr.rel (%p125) target = $region24
    $region23: #{rainbow_dqn_forward.3} parent=5 // pred_region
      // Predicated region
      $region25: #{rainbow_dqn_forward.3} parent=23 // pred_check
        %p128 = pneg %p29
      $region26: #{rainbow_dqn_forward.3} parent=23 // pred_check_branch
        %130 = sbr.rel (%p128) target = $region28
      $region27: #{rainbow_dqn_forward.3} parent=23 // pred_region
        %s131 = smul.u32 64, %s9
        %p132 = scmp.lt.s32.totalorder %s131, 447
        %s133 = scalar_select %p132, %s131, 447
        %s134 = smul.addr %s133, 4
        %s135 = scalar_lea.vmem %s0, %s134
        %s136 = smul.u32 64, %s9
      $region28: #{rainbow_dqn_forward.3} parent=23 // pred_fallthru
        _
    $region24: #{rainbow_dqn_forward.3} parent=5 // pred_fallthru
      _
    %p137 = scmp.le.s32.totalorder 1, %s9
    %p138 = scmp.lt.s32.totalorder %s9, 8
    %p139 = pnand %p137, %p138
    %p140 = pneg %p139
    // Predicated region
    $region29: #{rainbow_dqn_forward.3} parent=5 // pred_check
      _
    $region30: #{rainbow_dqn_forward.3} parent=5 // pred_check_branch
      %142 = sbr.rel (%p139) target = $region32
    $region31: #{rainbow_dqn_forward.3} parent=5 // pred_region
      %s143 = ssub.s32 %s9, 1
      %s144 = smul.u32 64, %s14
      %p145 = scmp.lt.s32.totalorder %s144, 447
      %s146 = scalar_select %p145, %s144, 447
      %s147 = smul.addr %s146, 4
      %s148 = scalar_lea.vmem %s0, %s147
      %p149 = pneg %p35
      %p150 = pneg %p32
      %p151 = pneg %p56
      %p152 = pneg %p53
      %p153 = pneg %p77
      %p154 = pneg %p74
      %p155 = pneg %p103
      %p156 = pneg %p100
      %s157 = smul.u32 64, %s14
      %p158 = scmp.lt.s32.totalorder %s157, 447
      %s159 = scalar_select %p158, %s157, 447
      %s160 = smul.addr %s159, 4
      %s161 = scalar_lea.vmem %s3, %s160
      %s162 = smul.u32 64, %s14
      %p163 = scmp.lt.s32.totalorder %s162, 447
      %s164 = scalar_select %p163, %s162, 447
      %s165 = smul.addr %s164, 4
      %s166 = scalar_lea.vmem %s0, %s165
      %s167 = smul.u32 64, %s14
      %s168 = smul.u32 64, %s14
      %p169 = scmp.lt.s32.totalorder %s168, 447
      %s170 = scalar_select %p169, %s168, 447
      %s171 = smul.addr %s170, 4
      %s172 = scalar_lea.vmem %s3, %s171
      %s173 = smul.u32 64, %s14
      %v175 = vld [vmem:[%s166] sm:$0xf]
      %v176 = vld [vmem:[%s166 + $0x4] sm:$0xf]
      %v177 = vld [vmem:[%s166 + $0x8] sm:$0xf]
      %v178 = vld [vmem:[%s166 + $0xc] sm:$0xf]
      %v179 = vld [vmem:[%s166 + $0x10] sm:$0xf]
      %v180 = vld [vmem:[%s166 + $0x14] sm:$0xf]
      %v181 = vld [vmem:[%s166 + $0x18] sm:$0xf]
      %v182 = vld [vmem:[%s166 + $0x1c] sm:$0xf]
      %v183 = vld [vmem:[%s166 + $0x20] sm:$0xf]
      %v184 = vld [vmem:[%s166 + $0x24] sm:$0xf]
      %v185 = vld [vmem:[%s166 + $0x28] sm:$0xf]
      %v186 = vld [vmem:[%s166 + $0x2c] sm:$0xf]
      %v187 = vld [vmem:[%s166 + $0x30] sm:$0xf]
      %v188 = vld [vmem:[%s166 + $0x34] sm:$0xf]
      %v189 = vld [vmem:[%s166 + $0x38] sm:$0xf]
      %v190 = vld [vmem:[%s166 + $0x3c] sm:$0xf]
      %v191 = vld [vmem:[%s166 + $0x40] sm:$0xf]
      %v192 = vld [vmem:[%s166 + $0x44] sm:$0xf]
      %v193 = vld [vmem:[%s166 + $0x48] sm:$0xf]
      %v194 = vld [vmem:[%s166 + $0x4c] sm:$0xf]
      %v195 = vld [vmem:[%s166 + $0x50] sm:$0xf]
      %v196 = vld [vmem:[%s166 + $0x54] sm:$0xf]
      %v197 = vld [vmem:[%s166 + $0x58] sm:$0xf]
      %v198 = vld [vmem:[%s166 + $0x5c] sm:$0xf]
      %v199 = vld [vmem:[%s166 + $0x60] sm:$0xf]
      %v200 = vld [vmem:[%s166 + $0x64] sm:$0xf]
      %v201 = vld [vmem:[%s166 + $0x68] sm:$0xf]
      %v202 = vld [vmem:[%s166 + $0x6c] sm:$0xf]
      %v203 = vld [vmem:[%s166 + $0x70] sm:$0xf]
      %v204 = vld [vmem:[%s166 + $0x74] sm:$0xf]
      %v205 = vld [vmem:[%s166 + $0x78] sm:$0xf]
      %v206 = vld [vmem:[%s166 + $0x7c] sm:$0xf]
      %v207 = vld [vmem:[%s166 + $0x80] sm:$0xf]
      %v208 = vld [vmem:[%s166 + $0x84] sm:$0xf]
      %v209 = vld [vmem:[%s166 + $0x88] sm:$0xf]
      %v210 = vld [vmem:[%s166 + $0x8c] sm:$0xf]
      %v211 = vld [vmem:[%s166 + $0x90] sm:$0xf]
      %v212 = vld [vmem:[%s166 + $0x94] sm:$0xf]
      %v213 = vld [vmem:[%s166 + $0x98] sm:$0xf]
      %v214 = vld [vmem:[%s166 + $0x9c] sm:$0xf]
      %v215 = vld [vmem:[%s166 + $0xa0] sm:$0xf]
      %v216 = vld [vmem:[%s166 + $0xa4] sm:$0xf]
      %v217 = vld [vmem:[%s166 + $0xa8] sm:$0xf]
      %v218 = vld [vmem:[%s166 + $0xac] sm:$0xf]
      %v219 = vld [vmem:[%s166 + $0xb0] sm:$0xf]
      %v220 = vld [vmem:[%s166 + $0xb4] sm:$0xf]
      %v221 = vld [vmem:[%s166 + $0xb8] sm:$0xf]
      %v222 = vld [vmem:[%s166 + $0xbc] sm:$0xf]
      %v223 = vld [vmem:[%s166 + $0xc0] sm:$0xf]
      %v224 = vld [vmem:[%s166 + $0xc4] sm:$0xf]
      %v225 = vld [vmem:[%s166 + $0xc8] sm:$0xf]
      %v226 = vld [vmem:[%s166 + $0xcc] sm:$0xf]
      %v227 = vld [vmem:[%s166 + $0xd0] sm:$0xf]
      %v228 = vld [vmem:[%s166 + $0xd4] sm:$0xf]
      %v229 = vld [vmem:[%s166 + $0xd8] sm:$0xf]
      %v230 = vld [vmem:[%s166 + $0xdc] sm:$0xf]
      %v231 = vld [vmem:[%s166 + $0xe0] sm:$0xf]
      %v232 = vld [vmem:[%s166 + $0xe4] sm:$0xf]
      %v233 = vld [vmem:[%s166 + $0xe8] sm:$0xf]
      %v234 = vld [vmem:[%s166 + $0xec] sm:$0xf]
      %v235 = vld [vmem:[%s166 + $0xf0] sm:$0xf]
      %v236 = vld [vmem:[%s166 + $0xf4] sm:$0xf]
      %v237 = vld [vmem:[%s166 + $0xf8] sm:$0xf]
      %v238 = vld [vmem:[%s166 + $0xfc] sm:$0xf]
      %v239 = vld [vmem:[%s1] sm:$0xf]
      %v240 = vld [vmem:[%s1 + $0x4] sm:$0xf]
      %v241 = vld [vmem:[%s1 + $0x8] sm:$0xf]
      %v242 = vld [vmem:[%s1 + $0xc] sm:$0xf]
      %v243 = vld [vmem:[%s1 + $0x10] sm:$0xf]
      %v244 = vld [vmem:[%s1 + $0x14] sm:$0xf]
      %v245 = vld [vmem:[%s1 + $0x18] sm:$0xf]
      %v246 = vld [vmem:[%s1 + $0x1c] sm:$0xf]
      %v247 = vld [vmem:[%s2] sm:$0x1]
      %v249 = vlaneseq
      %v250 = vshrl.u32 %v249, 7
      %v251 = vsub.s32 0, %v250
      %v252 = vrot.slane %v247, %v251
      %v318 = vunpack.c.l.b16 %v175
      %v319 = vunpack.c.l.b16 %v176
      %v320 = vunpack.c.l.b16 %v177
      %v321 = vunpack.c.l.b16 %v178
      %v322 = vunpack.c.l.b16 %v179
      %v323 = vunpack.c.l.b16 %v180
      %v324 = vunpack.c.l.b16 %v181
      %v325 = vunpack.c.l.b16 %v182
      %v326 = vunpack.c.l.b16 %v183
      %v327 = vunpack.c.l.b16 %v184
      %v328 = vunpack.c.l.b16 %v185
      %v329 = vunpack.c.l.b16 %v186
      %v330 = vunpack.c.l.b16 %v187
      %v331 = vunpack.c.l.b16 %v188
      %v332 = vunpack.c.l.b16 %v189
      %v333 = vunpack.c.l.b16 %v190
      %v334 = vunpack.c.l.b16 %v191
      %v335 = vunpack.c.l.b16 %v192
      %v336 = vunpack.c.l.b16 %v193
      %v337 = vunpack.c.l.b16 %v194
      %v338 = vunpack.c.l.b16 %v195
      %v339 = vunpack.c.l.b16 %v196
      %v340 = vunpack.c.l.b16 %v197
      %v341 = vunpack.c.l.b16 %v198
      %v342 = vunpack.c.l.b16 %v199
      %v343 = vunpack.c.l.b16 %v200
      %v344 = vunpack.c.l.b16 %v201
      %v345 = vunpack.c.l.b16 %v202
      %v346 = vunpack.c.l.b16 %v203
      %v347 = vunpack.c.l.b16 %v204
      %v348 = vunpack.c.l.b16 %v205
      %v349 = vunpack.c.l.b16 %v206
      %v350 = vunpack.c.l.b16 %v207
      %v351 = vunpack.c.l.b16 %v208
      %v352 = vunpack.c.l.b16 %v209
      %v353 = vunpack.c.l.b16 %v210
      %v354 = vunpack.c.l.b16 %v211
      %v355 = vunpack.c.l.b16 %v212
      %v356 = vunpack.c.l.b16 %v213
      %v357 = vunpack.c.l.b16 %v214
      %v358 = vunpack.c.l.b16 %v215
      %v359 = vunpack.c.l.b16 %v216
      %v360 = vunpack.c.l.b16 %v217
      %v361 = vunpack.c.l.b16 %v218
      %v362 = vunpack.c.l.b16 %v219
      %v363 = vunpack.c.l.b16 %v220
      %v364 = vunpack.c.l.b16 %v221
      %v365 = vunpack.c.l.b16 %v222
      %v366 = vunpack.c.l.b16 %v223
      %v367 = vunpack.c.l.b16 %v224
      %v368 = vunpack.c.l.b16 %v225
      %v369 = vunpack.c.l.b16 %v226
      %v370 = vunpack.c.l.b16 %v227
      %v371 = vunpack.c.l.b16 %v228
      %v372 = vunpack.c.l.b16 %v229
      %v373 = vunpack.c.l.b16 %v230
      %v374 = vunpack.c.l.b16 %v231
      %v375 = vunpack.c.l.b16 %v232
      %v376 = vunpack.c.l.b16 %v233
      %v377 = vunpack.c.l.b16 %v234
      %v378 = vunpack.c.l.b16 %v235
      %v379 = vunpack.c.l.b16 %v236
      %v380 = vunpack.c.l.b16 %v237
      %v381 = vunpack.c.l.b16 %v238
      %v382 = vpack.c.b16 %v319, %v318
      %v383 = vpack.c.b16 %v321, %v320
      %v384 = vpack.c.b16 %v323, %v322
      %v385 = vpack.c.b16 %v325, %v324
      %v386 = vpack.c.b16 %v327, %v326
      %v387 = vpack.c.b16 %v329, %v328
      %v388 = vpack.c.b16 %v331, %v330
      %v389 = vpack.c.b16 %v333, %v332
      %v390 = vpack.c.b16 %v335, %v334
      %v391 = vpack.c.b16 %v337, %v336
      %v392 = vpack.c.b16 %v339, %v338
      %v393 = vpack.c.b16 %v341, %v340
      %v394 = vpack.c.b16 %v343, %v342
      %v395 = vpack.c.b16 %v345, %v344
      %v396 = vpack.c.b16 %v347, %v346
      %v397 = vpack.c.b16 %v349, %v348
      %v398 = vpack.c.b16 %v351, %v350
      %v399 = vpack.c.b16 %v353, %v352
      %v400 = vpack.c.b16 %v355, %v354
      %v401 = vpack.c.b16 %v357, %v356
      %v402 = vpack.c.b16 %v359, %v358
      %v403 = vpack.c.b16 %v361, %v360
      %v404 = vpack.c.b16 %v363, %v362
      %v405 = vpack.c.b16 %v365, %v364
      %v406 = vpack.c.b16 %v367, %v366
      %v407 = vpack.c.b16 %v369, %v368
      %v408 = vpack.c.b16 %v371, %v370
      %v409 = vpack.c.b16 %v373, %v372
      %v410 = vpack.c.b16 %v375, %v374
      %v411 = vpack.c.b16 %v377, %v376
      %v412 = vpack.c.b16 %v379, %v378
      %v413 = vpack.c.b16 %v381, %v380
      %v422 = vunpack.c.l.b16 %v239
      %v423 = vunpack.c.l.b16 %v240
      %v424 = vunpack.c.l.b16 %v241
      %v425 = vunpack.c.l.b16 %v242
      %v426 = vunpack.c.l.b16 %v243
      %v427 = vunpack.c.l.b16 %v244
      %v428 = vunpack.c.l.b16 %v245
      %v429 = vunpack.c.l.b16 %v246
      %v430 = vpack.c.b16 %v423, %v422
      %v431 = vpack.c.b16 %v425, %v424
      %v432 = vpack.c.b16 %v427, %v426
      %v433 = vpack.c.b16 %v429, %v428
      %vm438 = vcmask 523264
      %v440 = vsel %vm438, %v382, 0
      %v443 = vsel %vm438, %v383, 0
      %v446 = vsel %vm438, %v384, 0
      %v449 = vsel %vm438, %v385, 0
      %v452 = vsel %vm438, %v386, 0
      %v455 = vsel %vm438, %v387, 0
      %v458 = vsel %vm438, %v388, 0
      %v461 = vsel %vm438, %v389, 0
      %v464 = vsel %vm438, %v390, 0
      %v467 = vsel %vm438, %v391, 0
      %v470 = vsel %vm438, %v392, 0
      %v473 = vsel %vm438, %v393, 0
      %v476 = vsel %vm438, %v394, 0
      %v479 = vsel %vm438, %v395, 0
      %v482 = vsel %vm438, %v396, 0
      %v485 = vsel %vm438, %v397, 0
      %v488 = vsel %vm438, %v398, 0
      %v491 = vsel %vm438, %v399, 0
      %v494 = vsel %vm438, %v400, 0
      %v497 = vsel %vm438, %v401, 0
      %v500 = vsel %vm438, %v402, 0
      %v503 = vsel %vm438, %v403, 0
      %v506 = vsel %vm438, %v404, 0
      %v509 = vsel %vm438, %v405, 0
      %v512 = vsel %vm438, %v406, 0
      %v515 = vsel %vm438, %v407, 0
      %v518 = vsel %vm438, %v408, 0
      %v521 = vsel %vm438, %v409, 0
      %v524 = vsel %vm438, %v410, 0
      %v527 = vsel %vm438, %v411, 0
      %v530 = vsel %vm438, %v412, 0
      %v533 = vsel %vm438, %v413, 0
      %535 = vmatprep.subr.bf16.mxu0 0
      %536 = vmatpush1.bf16.msra.mxu0 %v430
      %537 = vmatprep.subr.bf16.mxu0 0
      %538 = vmatpush1.bf16.msra.mxu0 %v431
      %539 = vmatprep.subr.bf16.mxu0 0
      %540 = vmatpush1.bf16.msra.mxu0 %v432
      %541 = vmatprep.subr.bf16.mxu0 0
      %542 = vmatpush1.bf16.msra.mxu0 %v433
      %543 = vmatprep.subr.bf16.mxu0 0
      %544 = vmatpush1.bf16.msra.mxu0 0
      %545 = vmatprep.subr.bf16.mxu0 0
      %546 = vmatpush1.bf16.msra.mxu0 0
      %547 = vmatprep.subr.bf16.mxu0 0
      %548 = vmatpush1.bf16.msra.mxu0 0
      %549 = vmatprep.subr.bf16.mxu0 0
      %550 = vmatpush1.bf16.msra.mxu0 0
      %551 = vmatprep.subr.bf16.mxu0 0
      %552 = vmatpush1.bf16.msra.mxu0 0
      %553 = vmatprep.subr.bf16.mxu0 0
      %554 = vmatpush1.bf16.msra.mxu0 0
      %555 = vmatprep.subr.bf16.mxu0 0
      %556 = vmatpush1.bf16.msra.mxu0 0
      %557 = vmatprep.subr.bf16.mxu0 0
      %558 = vmatpush1.bf16.msra.mxu0 0
      %559 = vmatprep.subr.bf16.mxu0 0
      %560 = vmatpush1.bf16.msra.mxu0 0
      %561 = vmatprep.subr.bf16.mxu0 0
      %562 = vmatpush1.bf16.msra.mxu0 0
      %563 = vmatprep.subr.bf16.mxu0 0
      %564 = vmatpush1.bf16.msra.mxu0 0
      %565 = vmatprep.subr.bf16.mxu0 0
      %566 = vmatpush1.bf16.msra.mxu0 0
      %567 = vmatprep.mubr.bf16.mxu0 0
      %568 = vmatmul.mubr.bf16.gmra.mrb[0].mxu0 %v440
      %v569 = vpop.f32.mrb[0].mxu0
      %v570 = vadd.f32 %v252, %v569
      %v571 = vpop.f32.mrb[0].mxu0
      %v572 = vpop.f32.mrb[0].mxu0
      %v573 = vadd.f32 %v252, %v572
      %v574 = vpop.f32.mrb[0].mxu0
      %575 = vmatprep.mubr.bf16.mxu0 0
      %576 = vmatmul.mubr.bf16.gmra.mrb[0].mxu0 %v443
      %v577 = vpop.f32.mrb[0].mxu0
      %v578 = vadd.f32 %v252, %v577
      %v579 = vpop.f32.mrb[0].mxu0
      %v580 = vpop.f32.mrb[0].mxu0
      %v581 = vadd.f32 %v252, %v580
      %v582 = vpop.f32.mrb[0].mxu0
      %583 = vmatprep.mubr.bf16.mxu0 0
      %584 = vmatmul.mubr.bf16.gmra.mrb[0].mxu0 %v446
      %v585 = vpop.f32.mrb[0].mxu0
      %v586 = vadd.f32 %v252, %v585
      %v587 = vpop.f32.mrb[0].mxu0
      %v588 = vpop.f32.mrb[0].mxu0
      %v589 = vadd.f32 %v252, %v588
      %v590 = vpop.f32.mrb[0].mxu0
      %591 = vmatprep.mubr.bf16.mxu0 0
      %592 = vmatmul.mubr.bf16.gmra.mrb[0].mxu0 %v449
      %v593 = vpop.f32.mrb[0].mxu0
      %v594 = vadd.f32 %v252, %v593
      %v595 = vpop.f32.mrb[0].mxu0
      %v596 = vpop.f32.mrb[0].mxu0
      %v597 = vadd.f32 %v252, %v596
      %v598 = vpop.f32.mrb[0].mxu0
      %599 = vmatprep.mubr.bf16.mxu0 0
      %600 = vmatmul.mubr.bf16.gmra.mrb[0].mxu0 %v452
      %v601 = vpop.f32.mrb[0].mxu0
      %v602 = vadd.f32 %v252, %v601
      %v603 = vpop.f32.mrb[0].mxu0
      %v604 = vpop.f32.mrb[0].mxu0
      %v605 = vadd.f32 %v252, %v604
      %v606 = vpop.f32.mrb[0].mxu0
      %607 = vmatprep.mubr.bf16.mxu0 0
      %608 = vmatmul.mubr.bf16.gmra.mrb[0].mxu0 %v455
      %v609 = vpop.f32.mrb[0].mxu0
      %v610 = vadd.f32 %v252, %v609
      %v611 = vpop.f32.mrb[0].mxu0
      %v612 = vpop.f32.mrb[0].mxu0
      %v613 = vadd.f32 %v252, %v612
      %v614 = vpop.f32.mrb[0].mxu0
      %615 = vmatprep.mubr.bf16.mxu0 0
      %616 = vmatmul.mubr.bf16.gmra.mrb[0].mxu0 %v458
      %v617 = vpop.f32.mrb[0].mxu0
      %v618 = vadd.f32 %v252, %v617
      %v619 = vpop.f32.mrb[0].mxu0
      %v620 = vpop.f32.mrb[0].mxu0
      %v621 = vadd.f32 %v252, %v620
      %v622 = vpop.f32.mrb[0].mxu0
      %623 = vmatprep.mubr.bf16.mxu0 0
      %624 = vmatmul.mubr.bf16.gmra.mrb[0].mxu0 %v461
      %v625 = vpop.f32.mrb[0].mxu0
      %v626 = vadd.f32 %v252, %v625
      %v627 = vpop.f32.mrb[0].mxu0
      %v628 = vpop.f32.mrb[0].mxu0
      %v629 = vadd.f32 %v252, %v628
      %v630 = vpop.f32.mrb[0].mxu0
      %631 = vmatprep.mubr.bf16.mxu0 0
      %632 = vmatmul.mubr.bf16.gmra.mrb[0].mxu0 %v464
      %v633 = vpop.f32.mrb[0].mxu0
      %v634 = vadd.f32 %v252, %v633
      %v635 = vpop.f32.mrb[0].mxu0
      %v636 = vpop.f32.mrb[0].mxu0
      %v637 = vadd.f32 %v252, %v636
      %v638 = vpop.f32.mrb[0].mxu0
      %639 = vmatprep.mubr.bf16.mxu0 0
      %640 = vmatmul.mubr.bf16.gmra.mrb[0].mxu0 %v467
      %v641 = vpop.f32.mrb[0].mxu0
      %v642 = vadd.f32 %v252, %v641
      %v643 = vpop.f32.mrb[0].mxu0
      %v644 = vpop.f32.mrb[0].mxu0
      %v645 = vadd.f32 %v252, %v644
      %v646 = vpop.f32.mrb[0].mxu0
      %647 = vmatprep.mubr.bf16.mxu0 0
      %648 = vmatmul.mubr.bf16.gmra.mrb[0].mxu0 %v470
      %v649 = vpop.f32.mrb[0].mxu0
      %v650 = vadd.f32 %v252, %v649
      %v651 = vpop.f32.mrb[0].mxu0
      %v652 = vpop.f32.mrb[0].mxu0
      %v653 = vadd.f32 %v252, %v652
      %v654 = vpop.f32.mrb[0].mxu0
      %655 = vmatprep.mubr.bf16.mxu0 0
      %656 = vmatmul.mubr.bf16.gmra.mrb[0].mxu0 %v473
      %v657 = vpop.f32.mrb[0].mxu0
      %v658 = vadd.f32 %v252, %v657
      %v659 = vpop.f32.mrb[0].mxu0
      %v660 = vpop.f32.mrb[0].mxu0
      %v661 = vadd.f32 %v252, %v660
      %v662 = vpop.f32.mrb[0].mxu0
      %663 = vmatprep.mubr.bf16.mxu0 0
      %664 = vmatmul.mubr.bf16.gmra.mrb[0].mxu0 %v476
      %v665 = vpop.f32.mrb[0].mxu0
      %v666 = vadd.f32 %v252, %v665
      %v667 = vpop.f32.mrb[0].mxu0
      %v668 = vpop.f32.mrb[0].mxu0
      %v669 = vadd.f32 %v252, %v668
      %v670 = vpop.f32.mrb[0].mxu0
      %671 = vmatprep.mubr.bf16.mxu0 0
      %672 = vmatmul.mubr.bf16.gmra.mrb[0].mxu0 %v479
      %v673 = vpop.f32.mrb[0].mxu0
      %v674 = vadd.f32 %v252, %v673
      %v675 = vpop.f32.mrb[0].mxu0
      %v676 = vpop.f32.mrb[0].mxu0
      %v677 = vadd.f32 %v252, %v676
      %v678 = vpop.f32.mrb[0].mxu0
      %679 = vmatprep.mubr.bf16.mxu0 0
      %680 = vmatmul.mubr.bf16.gmra.mrb[0].mxu0 %v482
      %v681 = vpop.f32.mrb[0].mxu0
      %v682 = vadd.f32 %v252, %v681
      %v683 = vpop.f32.mrb[0].mxu0
      %v684 = vpop.f32.mrb[0].mxu0
      %v685 = vadd.f32 %v252, %v684
      %v686 = vpop.f32.mrb[0].mxu0
      %687 = vmatprep.mubr.bf16.mxu0 0
      %688 = vmatmul.mubr.bf16.gmra.mrb[0].mxu0 %v485
      %v689 = vpop.f32.mrb[0].mxu0
      %v690 = vadd.f32 %v252, %v689
      %v691 = vpop.f32.mrb[0].mxu0
      %v692 = vpop.f32.mrb[0].mxu0
      %v693 = vadd.f32 %v252, %v692
      %v694 = vpop.f32.mrb[0].mxu0
      %695 = vmatprep.mubr.bf16.mxu0 0
      %696 = vmatmul.mubr.bf16.gmra.mrb[0].mxu0 %v488
      %v697 = vpop.f32.mrb[0].mxu0
      %v698 = vadd.f32 %v252, %v697
      %v699 = vpop.f32.mrb[0].mxu0
      %v700 = vpop.f32.mrb[0].mxu0
      %v701 = vadd.f32 %v252, %v700
      %v702 = vpop.f32.mrb[0].mxu0
      %703 = vmatprep.mubr.bf16.mxu0 0
      %704 = vmatmul.mubr.bf16.gmra.mrb[0].mxu0 %v491
      %v705 = vpop.f32.mrb[0].mxu0
      %v706 = vadd.f32 %v252, %v705
      %v707 = vpop.f32.mrb[0].mxu0
      %v708 = vpop.f32.mrb[0].mxu0
      %v709 = vadd.f32 %v252, %v708
      %v710 = vpop.f32.mrb[0].mxu0
      %711 = vmatprep.mubr.bf16.mxu0 0
      %712 = vmatmul.mubr.bf16.gmra.mrb[0].mxu0 %v494
      %v713 = vpop.f32.mrb[0].mxu0
      %v714 = vadd.f32 %v252, %v713
      %v715 = vpop.f32.mrb[0].mxu0
      %v716 = vpop.f32.mrb[0].mxu0
      %v717 = vadd.f32 %v252, %v716
      %v718 = vpop.f32.mrb[0].mxu0
      %719 = vmatprep.mubr.bf16.mxu0 0
      %720 = vmatmul.mubr.bf16.gmra.mrb[0].mxu0 %v497
      %v721 = vpop.f32.mrb[0].mxu0
      %v722 = vadd.f32 %v252, %v721
      %v723 = vpop.f32.mrb[0].mxu0
      %v724 = vpop.f32.mrb[0].mxu0
      %v725 = vadd.f32 %v252, %v724
      %v726 = vpop.f32.mrb[0].mxu0
      %727 = vmatprep.mubr.bf16.mxu0 0
      %728 = vmatmul.mubr.bf16.gmra.mrb[0].mxu0 %v500
      %v729 = vpop.f32.mrb[0].mxu0
      %v730 = vadd.f32 %v252, %v729
      %v731 = vpop.f32.mrb[0].mxu0
      %v732 = vpop.f32.mrb[0].mxu0
      %v733 = vadd.f32 %v252, %v732
      %v734 = vpop.f32.mrb[0].mxu0
      %735 = vmatprep.mubr.bf16.mxu0 0
      %736 = vmatmul.mubr.bf16.gmra.mrb[0].mxu0 %v503
      %v737 = vpop.f32.mrb[0].mxu0
      %v738 = vadd.f32 %v252, %v737
      %v739 = vpop.f32.mrb[0].mxu0
      %v740 = vpop.f32.mrb[0].mxu0
      %v741 = vadd.f32 %v252, %v740
      %v742 = vpop.f32.mrb[0].mxu0
      %743 = vmatprep.mubr.bf16.mxu0 0
      %744 = vmatmul.mubr.bf16.gmra.mrb[0].mxu0 %v506
      %v745 = vpop.f32.mrb[0].mxu0
      %v746 = vadd.f32 %v252, %v745
      %v747 = vpop.f32.mrb[0].mxu0
      %v748 = vpop.f32.mrb[0].mxu0
      %v749 = vadd.f32 %v252, %v748
      %v750 = vpop.f32.mrb[0].mxu0
      %751 = vmatprep.mubr.bf16.mxu0 0
      %752 = vmatmul.mubr.bf16.gmra.mrb[0].mxu0 %v509
      %v753 = vpop.f32.mrb[0].mxu0
      %v754 = vadd.f32 %v252, %v753
      %v755 = vpop.f32.mrb[0].mxu0
      %v756 = vpop.f32.mrb[0].mxu0
      %v757 = vadd.f32 %v252, %v756
      %v758 = vpop.f32.mrb[0].mxu0
      %759 = vmatprep.mubr.bf16.mxu0 0
      %760 = vmatmul.mubr.bf16.gmra.mrb[0].mxu0 %v512
      %v761 = vpop.f32.mrb[0].mxu0
      %v762 = vadd.f32 %v252, %v761
      %v763 = vpop.f32.mrb[0].mxu0
      %v764 = vpop.f32.mrb[0].mxu0
      %v765 = vadd.f32 %v252, %v764
      %v766 = vpop.f32.mrb[0].mxu0
      %767 = vmatprep.mubr.bf16.mxu0 0
      %768 = vmatmul.mubr.bf16.gmra.mrb[0].mxu0 %v515
      %v769 = vpop.f32.mrb[0].mxu0
      %v770 = vadd.f32 %v252, %v769
      %v771 = vpop.f32.mrb[0].mxu0
      %v772 = vpop.f32.mrb[0].mxu0
      %v773 = vadd.f32 %v252, %v772
      %v774 = vpop.f32.mrb[0].mxu0
      %775 = vmatprep.mubr.bf16.mxu0 0
      %776 = vmatmul.mubr.bf16.gmra.mrb[0].mxu0 %v518
      %v777 = vpop.f32.mrb[0].mxu0
      %v778 = vadd.f32 %v252, %v777
      %v779 = vpop.f32.mrb[0].mxu0
      %v780 = vpop.f32.mrb[0].mxu0
      %v781 = vadd.f32 %v252, %v780
      %v782 = vpop.f32.mrb[0].mxu0
      %783 = vmatprep.mubr.bf16.mxu0 0
      %784 = vmatmul.mubr.bf16.gmra.mrb[0].mxu0 %v521
      %v785 = vpop.f32.mrb[0].mxu0
      %v786 = vadd.f32 %v252, %v785
      %v787 = vpop.f32.mrb[0].mxu0
      %v788 = vpop.f32.mrb[0].mxu0
      %v789 = vadd.f32 %v252, %v788
      %v790 = vpop.f32.mrb[0].mxu0
      %791 = vmatprep.mubr.bf16.mxu0 0
      %792 = vmatmul.mubr.bf16.gmra.mrb[0].mxu0 %v524
      %v793 = vpop.f32.mrb[0].mxu0
      %v794 = vadd.f32 %v252, %v793
      %v795 = vpop.f32.mrb[0].mxu0
      %v796 = vpop.f32.mrb[0].mxu0
      %v797 = vadd.f32 %v252, %v796
      %v798 = vpop.f32.mrb[0].mxu0
      %799 = vmatprep.mubr.bf16.mxu0 0
      %800 = vmatmul.mubr.bf16.gmra.mrb[0].mxu0 %v527
      %v801 = vpop.f32.mrb[0].mxu0
      %v802 = vadd.f32 %v252, %v801
      %v803 = vpop.f32.mrb[0].mxu0
      %v804 = vpop.f32.mrb[0].mxu0
      %v805 = vadd.f32 %v252, %v804
      %v806 = vpop.f32.mrb[0].mxu0
      %807 = vmatprep.mubr.bf16.mxu0 0
      %808 = vmatmul.mubr.bf16.gmra.mrb[0].mxu0 %v530
      %v809 = vpop.f32.mrb[0].mxu0
      %v810 = vadd.f32 %v252, %v809
      %v811 = vpop.f32.mrb[0].mxu0
      %v812 = vpop.f32.mrb[0].mxu0
      %v813 = vadd.f32 %v252, %v812
      %v814 = vpop.f32.mrb[0].mxu0
      %815 = vmatprep.mubr.bf16.mxu0 0
      %816 = vmatmul.mubr.bf16.gmra.mrb[0].mxu0 %v533
      %v817 = vpop.f32.mrb[0].mxu0
      %v818 = vadd.f32 %v252, %v817
      %v819 = vpop.f32.mrb[0].mxu0
      %v820 = vpop.f32.mrb[0].mxu0
      %v821 = vadd.f32 %v252, %v820
      %v822 = vpop.f32.mrb[0].mxu0
      %823 = vdwg.mxu0
      %vm824 = vcmp.gt.f32.partialorder %v570, 0.0
      %vm825 = vcmp.gt.f32.partialorder %v573, 0.0
      %vm826 = vcmp.gt.f32.partialorder %v578, 0.0
      %vm827 = vcmp.gt.f32.partialorder %v581, 0.0
      %vm828 = vcmp.gt.f32.partialorder %v586, 0.0
      %vm829 = vcmp.gt.f32.partialorder %v589, 0.0
      %vm830 = vcmp.gt.f32.partialorder %v594, 0.0
      %vm831 = vcmp.gt.f32.partialorder %v597, 0.0
      %vm832 = vcmp.gt.f32.partialorder %v602, 0.0
      %vm833 = vcmp.gt.f32.partialorder %v605, 0.0
      %vm834 = vcmp.gt.f32.partialorder %v610, 0.0
      %vm835 = vcmp.gt.f32.partialorder %v613, 0.0
      %vm836 = vcmp.gt.f32.partialorder %v618, 0.0
      %vm837 = vcmp.gt.f32.partialorder %v621, 0.0
      %vm838 = vcmp.gt.f32.partialorder %v626, 0.0
      %vm839 = vcmp.gt.f32.partialorder %v629, 0.0
      %vm840 = vcmp.gt.f32.partialorder %v634, 0.0
      %vm841 = vcmp.gt.f32.partialorder %v637, 0.0
      %vm842 = vcmp.gt.f32.partialorder %v642, 0.0
      %vm843 = vcmp.gt.f32.partialorder %v645, 0.0
      %vm844 = vcmp.gt.f32.partialorder %v650, 0.0
      %vm845 = vcmp.gt.f32.partialorder %v653, 0.0
      %vm846 = vcmp.gt.f32.partialorder %v658, 0.0
      %vm847 = vcmp.gt.f32.partialorder %v661, 0.0
      %vm848 = vcmp.gt.f32.partialorder %v666, 0.0
      %vm849 = vcmp.gt.f32.partialorder %v669, 0.0
      %vm850 = vcmp.gt.f32.partialorder %v674, 0.0
      %vm851 = vcmp.gt.f32.partialorder %v677, 0.0
      %vm852 = vcmp.gt.f32.partialorder %v682, 0.0
      %vm853 = vcmp.gt.f32.partialorder %v685, 0.0
      %vm854 = vcmp.gt.f32.partialorder %v690, 0.0
      %vm855 = vcmp.gt.f32.partialorder %v693, 0.0
      %vm856 = vcmp.gt.f32.partialorder %v698, 0.0
      %vm857 = vcmp.gt.f32.partialorder %v701, 0.0
      %vm858 = vcmp.gt.f32.partialorder %v706, 0.0
      %vm859 = vcmp.gt.f32.partialorder %v709, 0.0
      %vm860 = vcmp.gt.f32.partialorder %v714, 0.0
      %vm861 = vcmp.gt.f32.partialorder %v717, 0.0
      %vm862 = vcmp.gt.f32.partialorder %v722, 0.0
      %vm863 = vcmp.gt.f32.partialorder %v725, 0.0
      %vm864 = vcmp.gt.f32.partialorder %v730, 0.0
      %vm865 = vcmp.gt.f32.partialorder %v733, 0.0
      %vm866 = vcmp.gt.f32.partialorder %v738, 0.0
      %vm867 = vcmp.gt.f32.partialorder %v741, 0.0
      %vm868 = vcmp.gt.f32.partialorder %v746, 0.0
      %vm869 = vcmp.gt.f32.partialorder %v749, 0.0
      %vm870 = vcmp.gt.f32.partialorder %v754, 0.0
      %vm871 = vcmp.gt.f32.partialorder %v757, 0.0
      %vm872 = vcmp.gt.f32.partialorder %v762, 0.0
      %vm873 = vcmp.gt.f32.partialorder %v765, 0.0
      %vm874 = vcmp.gt.f32.partialorder %v770, 0.0
      %vm875 = vcmp.gt.f32.partialorder %v773, 0.0
      %vm876 = vcmp.gt.f32.partialorder %v778, 0.0
      %vm877 = vcmp.gt.f32.partialorder %v781, 0.0
      %vm878 = vcmp.gt.f32.partialorder %v786, 0.0
      %vm879 = vcmp.gt.f32.partialorder %v789, 0.0
      %vm880 = vcmp.gt.f32.partialorder %v794, 0.0
      %vm881 = vcmp.gt.f32.partialorder %v797, 0.0
      %vm882 = vcmp.gt.f32.partialorder %v802, 0.0
      %vm883 = vcmp.gt.f32.partialorder %v805, 0.0
      %vm884 = vcmp.gt.f32.partialorder %v810, 0.0
      %vm885 = vcmp.gt.f32.partialorder %v813, 0.0
      %vm886 = vcmp.gt.f32.partialorder %v818, 0.0
      %vm887 = vcmp.gt.f32.partialorder %v821, 0.0
      %v888 = vmin.f32 %v570, 0.0
      %v889 = vmin.f32 %v573, 0.0
      %v890 = vmin.f32 %v578, 0.0
      %v891 = vmin.f32 %v581, 0.0
      %v892 = vmin.f32 %v586, 0.0
      %v893 = vmin.f32 %v589, 0.0
      %v894 = vmin.f32 %v594, 0.0
      %v895 = vmin.f32 %v597, 0.0
      %v896 = vmin.f32 %v602, 0.0
      %v897 = vmin.f32 %v605, 0.0
      %v898 = vmin.f32 %v610, 0.0
      %v899 = vmin.f32 %v613, 0.0
      %v900 = vmin.f32 %v618, 0.0
      %v901 = vmin.f32 %v621, 0.0
      %v902 = vmin.f32 %v626, 0.0
      %v903 = vmin.f32 %v629, 0.0
      %v904 = vmin.f32 %v634, 0.0
      %v905 = vmin.f32 %v637, 0.0
      %v906 = vmin.f32 %v642, 0.0
      %v907 = vmin.f32 %v645, 0.0
      %v908 = vmin.f32 %v650, 0.0
      %v909 = vmin.f32 %v653, 0.0
      %v910 = vmin.f32 %v658, 0.0
      %v911 = vmin.f32 %v661, 0.0
      %v912 = vmin.f32 %v666, 0.0
      %v913 = vmin.f32 %v669, 0.0
      %v914 = vmin.f32 %v674, 0.0
      %v915 = vmin.f32 %v677, 0.0
      %v916 = vmin.f32 %v682, 0.0
      %v917 = vmin.f32 %v685, 0.0
      %v918 = vmin.f32 %v690, 0.0
      %v919 = vmin.f32 %v693, 0.0
      %v920 = vmin.f32 %v698, 0.0
      %v921 = vmin.f32 %v701, 0.0
      %v922 = vmin.f32 %v706, 0.0
      %v923 = vmin.f32 %v709, 0.0
      %v924 = vmin.f32 %v714, 0.0
      %v925 = vmin.f32 %v717, 0.0
      %v926 = vmin.f32 %v722, 0.0
      %v927 = vmin.f32 %v725, 0.0
      %v928 = vmin.f32 %v730, 0.0
      %v929 = vmin.f32 %v733, 0.0
      %v930 = vmin.f32 %v738, 0.0
      %v931 = vmin.f32 %v741, 0.0
      %v932 = vmin.f32 %v746, 0.0
      %v933 = vmin.f32 %v749, 0.0
      %v934 = vmin.f32 %v754, 0.0
      %v935 = vmin.f32 %v757, 0.0
      %v936 = vmin.f32 %v762, 0.0
      %v937 = vmin.f32 %v765, 0.0
      %v938 = vmin.f32 %v770, 0.0
      %v939 = vmin.f32 %v773, 0.0
      %v940 = vmin.f32 %v778, 0.0
      %v941 = vmin.f32 %v781, 0.0
      %v942 = vmin.f32 %v786, 0.0
      %v943 = vmin.f32 %v789, 0.0
      %v944 = vmin.f32 %v794, 0.0
      %v945 = vmin.f32 %v797, 0.0
      %v946 = vmin.f32 %v802, 0.0
      %v947 = vmin.f32 %v805, 0.0
      %v948 = vmin.f32 %v810, 0.0
      %v949 = vmin.f32 %v813, 0.0
      %v950 = vmin.f32 %v818, 0.0
      %v951 = vmin.f32 %v821, 0.0
      %v952 = vmul.f32 %v888, 1.442695
      %v953 = vpow.pop %v952
      %v954 = vmul.f32 %v889, 1.442695
      %v955 = vpow.pop %v954
      %v956 = vmul.f32 %v890, 1.442695
      %v957 = vpow.pop %v956
      %v958 = vmul.f32 %v891, 1.442695
      %v959 = vpow.pop %v958
      %v960 = vmul.f32 %v892, 1.442695
      %v961 = vpow.pop %v960
      %v962 = vmul.f32 %v893, 1.442695
      %v963 = vpow.pop %v962
      %v964 = vmul.f32 %v894, 1.442695
      %v965 = vpow.pop %v964
      %v966 = vmul.f32 %v895, 1.442695
      %v967 = vpow.pop %v966
      %v968 = vmul.f32 %v896, 1.442695
      %v969 = vpow.pop %v968
      %v970 = vmul.f32 %v897, 1.442695
      %v971 = vpow.pop %v970
      %v972 = vmul.f32 %v898, 1.442695
      %v973 = vpow.pop %v972
      %v974 = vmul.f32 %v899, 1.442695
      %v975 = vpow.pop %v974
      %v976 = vmul.f32 %v900, 1.442695
      %v977 = vpow.pop %v976
      %v978 = vmul.f32 %v901, 1.442695
      %v979 = vpow.pop %v978
      %v980 = vmul.f32 %v902, 1.442695
      %v981 = vpow.pop %v980
      %v982 = vmul.f32 %v903, 1.442695
      %v983 = vpow.pop %v982
      %v984 = vmul.f32 %v904, 1.442695
      %v985 = vpow.pop %v984
      %v986 = vmul.f32 %v905, 1.442695
      %v987 = vpow.pop %v986
      %v988 = vmul.f32 %v906, 1.442695
      %v989 = vpow.pop %v988
      %v990 = vmul.f32 %v907, 1.442695
      %v991 = vpow.pop %v990
      %v992 = vmul.f32 %v908, 1.442695
      %v993 = vpow.pop %v992
      %v994 = vmul.f32 %v909, 1.442695
      %v995 = vpow.pop %v994
      %v996 = vmul.f32 %v910, 1.442695
      %v997 = vpow.pop %v996
      %v998 = vmul.f32 %v911, 1.442695
      %v999 = vpow.pop %v998
      %v1000 = vmul.f32 %v912, 1.442695
      %v1001 = vpow.pop %v1000
      %v1002 = vmul.f32 %v913, 1.442695
      %v1003 = vpow.pop %v1002
      %v1004 = vmul.f32 %v914, 1.442695
      %v1005 = vpow.pop %v1004
      %v1006 = vmul.f32 %v915, 1.442695
      %v1007 = vpow.pop %v1006
      %v1008 = vmul.f32 %v916, 1.442695
      %v1009 = vpow.pop %v1008
      %v1010 = vmul.f32 %v917, 1.442695
      %v1011 = vpow.pop %v1010
      %v1012 = vmul.f32 %v918, 1.442695
      %v1013 = vpow.pop %v1012
      %v1014 = vmul.f32 %v919, 1.442695
      %v1015 = vpow.pop %v1014
      %v1016 = vmul.f32 %v920, 1.442695
      %v1017 = vpow.pop %v1016
      %v1018 = vmul.f32 %v921, 1.442695
      %v1019 = vpow.pop %v1018
      %v1020 = vmul.f32 %v922, 1.442695
      %v1021 = vpow.pop %v1020
      %v1022 = vmul.f32 %v923, 1.442695
      %v1023 = vpow.pop %v1022
      %v1024 = vmul.f32 %v924, 1.442695
      %v1025 = vpow.pop %v1024
      %v1026 = vmul.f32 %v925, 1.442695
      %v1027 = vpow.pop %v1026
      %v1028 = vmul.f32 %v926, 1.442695
      %v1029 = vpow.pop %v1028
      %v1030 = vmul.f32 %v927, 1.442695
      %v1031 = vpow.pop %v1030
      %v1032 = vmul.f32 %v928, 1.442695
      %v1033 = vpow.pop %v1032
      %v1034 = vmul.f32 %v929, 1.442695
      %v1035 = vpow.pop %v1034
      %v1036 = vmul.f32 %v930, 1.442695
      %v1037 = vpow.pop %v1036
      %v1038 = vmul.f32 %v931, 1.442695
      %v1039 = vpow.pop %v1038
      %v1040 = vmul.f32 %v932, 1.442695
      %v1041 = vpow.pop %v1040
      %v1042 = vmul.f32 %v933, 1.442695
      %v1043 = vpow.pop %v1042
      %v1044 = vmul.f32 %v934, 1.442695
      %v1045 = vpow.pop %v1044
      %v1046 = vmul.f32 %v935, 1.442695
      %v1047 = vpow.pop %v1046
      %v1048 = vmul.f32 %v936, 1.442695
      %v1049 = vpow.pop %v1048
      %v1050 = vmul.f32 %v937, 1.442695
      %v1051 = vpow.pop %v1050
      %v1052 = vmul.f32 %v938, 1.442695
      %v1053 = vpow.pop %v1052
      %v1054 = vmul.f32 %v939, 1.442695
      %v1055 = vpow.pop %v1054
      %v1056 = vmul.f32 %v940, 1.442695
      %v1057 = vpow.pop %v1056
      %v1058 = vmul.f32 %v941, 1.442695
      %v1059 = vpow.pop %v1058
      %v1060 = vmul.f32 %v942, 1.442695
      %v1061 = vpow.pop %v1060
      %v1062 = vmul.f32 %v943, 1.442695
      %v1063 = vpow.pop %v1062
      %v1064 = vmul.f32 %v944, 1.442695
      %v1065 = vpow.pop %v1064
      %v1066 = vmul.f32 %v945, 1.442695
      %v1067 = vpow.pop %v1066
      %v1068 = vmul.f32 %v946, 1.442695
      %v1069 = vpow.pop %v1068
      %v1070 = vmul.f32 %v947, 1.442695
      %v1071 = vpow.pop %v1070
      %v1072 = vmul.f32 %v948, 1.442695
      %v1073 = vpow.pop %v1072
      %v1074 = vmul.f32 %v949, 1.442695
      %v1075 = vpow.pop %v1074
      %v1076 = vmul.f32 %v950, 1.442695
      %v1077 = vpow.pop %v1076
      %v1078 = vmul.f32 %v951, 1.442695
      %v1079 = vpow.pop %v1078
      %v1080 = vsub.f32 %v953, 1.0
      %v1081 = vsub.f32 %v955, 1.0
      %v1082 = vsub.f32 %v957, 1.0
      %v1083 = vsub.f32 %v959, 1.0
      %v1084 = vsub.f32 %v961, 1.0
      %v1085 = vsub.f32 %v963, 1.0
      %v1086 = vsub.f32 %v965, 1.0
      %v1087 = vsub.f32 %v967, 1.0
      %v1088 = vsub.f32 %v969, 1.0
      %v1089 = vsub.f32 %v971, 1.0
      %v1090 = vsub.f32 %v973, 1.0
      %v1091 = vsub.f32 %v975, 1.0
      %v1092 = vsub.f32 %v977, 1.0
      %v1093 = vsub.f32 %v979, 1.0
      %v1094 = vsub.f32 %v981, 1.0
      %v1095 = vsub.f32 %v983, 1.0
      %v1096 = vsub.f32 %v985, 1.0
      %v1097 = vsub.f32 %v987, 1.0
      %v1098 = vsub.f32 %v989, 1.0
      %v1099 = vsub.f32 %v991, 1.0
      %v1100 = vsub.f32 %v993, 1.0
      %v1101 = vsub.f32 %v995, 1.0
      %v1102 = vsub.f32 %v997, 1.0
      %v1103 = vsub.f32 %v999, 1.0
      %v1104 = vsub.f32 %v1001, 1.0
      %v1105 = vsub.f32 %v1003, 1.0
      %v1106 = vsub.f32 %v1005, 1.0
      %v1107 = vsub.f32 %v1007, 1.0
      %v1108 = vsub.f32 %v1009, 1.0
      %v1109 = vsub.f32 %v1011, 1.0
      %v1110 = vsub.f32 %v1013, 1.0
      %v1111 = vsub.f32 %v1015, 1.0
      %v1112 = vsub.f32 %v1017, 1.0
      %v1113 = vsub.f32 %v1019, 1.0
      %v1114 = vsub.f32 %v1021, 1.0
      %v1115 = vsub.f32 %v1023, 1.0
      %v1116 = vsub.f32 %v1025, 1.0
      %v1117 = vsub.f32 %v1027, 1.0
      %v1118 = vsub.f32 %v1029, 1.0
      %v1119 = vsub.f32 %v1031, 1.0
      %v1120 = vsub.f32 %v1033, 1.0
      %v1121 = vsub.f32 %v1035, 1.0
      %v1122 = vsub.f32 %v1037, 1.0
      %v1123 = vsub.f32 %v1039, 1.0
      %v1124 = vsub.f32 %v1041, 1.0
      %v1125 = vsub.f32 %v1043, 1.0
      %v1126 = vsub.f32 %v1045, 1.0
      %v1127 = vsub.f32 %v1047, 1.0
      %v1128 = vsub.f32 %v1049, 1.0
      %v1129 = vsub.f32 %v1051, 1.0
      %v1130 = vsub.f32 %v1053, 1.0
      %v1131 = vsub.f32 %v1055, 1.0
      %v1132 = vsub.f32 %v1057, 1.0
      %v1133 = vsub.f32 %v1059, 1.0
      %v1134 = vsub.f32 %v1061, 1.0
      %v1135 = vsub.f32 %v1063, 1.0
      %v1136 = vsub.f32 %v1065, 1.0
      %v1137 = vsub.f32 %v1067, 1.0
      %v1138 = vsub.f32 %v1069, 1.0
      %v1139 = vsub.f32 %v1071, 1.0
      %v1140 = vsub.f32 %v1073, 1.0
      %v1141 = vsub.f32 %v1075, 1.0
      %v1142 = vsub.f32 %v1077, 1.0
      %v1143 = vsub.f32 %v1079, 1.0
      %v1144 = vsel %vm824, %v570, %v1080
      %v1145 = vsel %vm825, %v573, %v1081
      %v1146 = vsel %vm826, %v578, %v1082
      %v1147 = vsel %vm827, %v581, %v1083
      %v1148 = vsel %vm828, %v586, %v1084
      %v1149 = vsel %vm829, %v589, %v1085
      %v1150 = vsel %vm830, %v594, %v1086
      %v1151 = vsel %vm831, %v597, %v1087
      %v1152 = vsel %vm832, %v602, %v1088
      %v1153 = vsel %vm833, %v605, %v1089
      %v1154 = vsel %vm834, %v610, %v1090
      %v1155 = vsel %vm835, %v613, %v1091
      %v1156 = vsel %vm836, %v618, %v1092
      %v1157 = vsel %vm837, %v621, %v1093
      %v1158 = vsel %vm838, %v626, %v1094
      %v1159 = vsel %vm839, %v629, %v1095
      %v1160 = vsel %vm840, %v634, %v1096
      %v1161 = vsel %vm841, %v637, %v1097
      %v1162 = vsel %vm842, %v642, %v1098
      %v1163 = vsel %vm843, %v645, %v1099
      %v1164 = vsel %vm844, %v650, %v1100
      %v1165 = vsel %vm845, %v653, %v1101
      %v1166 = vsel %vm846, %v658, %v1102
      %v1167 = vsel %vm847, %v661, %v1103
      %v1168 = vsel %vm848, %v666, %v1104
      %v1169 = vsel %vm849, %v669, %v1105
      %v1170 = vsel %vm850, %v674, %v1106
      %v1171 = vsel %vm851, %v677, %v1107
      %v1172 = vsel %vm852, %v682, %v1108
      %v1173 = vsel %vm853, %v685, %v1109
      %v1174 = vsel %vm854, %v690, %v1110
      %v1175 = vsel %vm855, %v693, %v1111
      %v1176 = vsel %vm856, %v698, %v1112
      %v1177 = vsel %vm857, %v701, %v1113
      %v1178 = vsel %vm858, %v706, %v1114
      %v1179 = vsel %vm859, %v709, %v1115
      %v1180 = vsel %vm860, %v714, %v1116
      %v1181 = vsel %vm861, %v717, %v1117
      %v1182 = vsel %vm862, %v722, %v1118
      %v1183 = vsel %vm863, %v725, %v1119
      %v1184 = vsel %vm864, %v730, %v1120
      %v1185 = vsel %vm865, %v733, %v1121
      %v1186 = vsel %vm866, %v738, %v1122
      %v1187 = vsel %vm867, %v741, %v1123
      %v1188 = vsel %vm868, %v746, %v1124
      %v1189 = vsel %vm869, %v749, %v1125
      %v1190 = vsel %vm870, %v754, %v1126
      %v1191 = vsel %vm871, %v757, %v1127
      %v1192 = vsel %vm872, %v762, %v1128
      %v1193 = vsel %vm873, %v765, %v1129
      %v1194 = vsel %vm874, %v770, %v1130
      %v1195 = vsel %vm875, %v773, %v1131
      %v1196 = vsel %vm876, %v778, %v1132
      %v1197 = vsel %vm877, %v781, %v1133
      %v1198 = vsel %vm878, %v786, %v1134
      %v1199 = vsel %vm879, %v789, %v1135
      %v1200 = vsel %vm880, %v794, %v1136
      %v1201 = vsel %vm881, %v797, %v1137
      %v1202 = vsel %vm882, %v802, %v1138
      %v1203 = vsel %vm883, %v805, %v1139
      %v1204 = vsel %vm884, %v810, %v1140
      %v1205 = vsel %vm885, %v813, %v1141
      %v1206 = vsel %vm886, %v818, %v1142
      %v1207 = vsel %vm887, %v821, %v1143
      %v1208 = vpack.c.bf16 %v1145, %v1144
      %v1209 = vpack.c.bf16 %v1147, %v1146
      %v1210 = vpack.c.bf16 %v1149, %v1148
      %v1211 = vpack.c.bf16 %v1151, %v1150
      %v1212 = vpack.c.bf16 %v1153, %v1152
      %v1213 = vpack.c.bf16 %v1155, %v1154
      %v1214 = vpack.c.bf16 %v1157, %v1156
      %v1215 = vpack.c.bf16 %v1159, %v1158
      %v1216 = vpack.c.bf16 %v1161, %v1160
      %v1217 = vpack.c.bf16 %v1163, %v1162
      %v1218 = vpack.c.bf16 %v1165, %v1164
      %v1219 = vpack.c.bf16 %v1167, %v1166
      %v1220 = vpack.c.bf16 %v1169, %v1168
      %v1221 = vpack.c.bf16 %v1171, %v1170
      %v1222 = vpack.c.bf16 %v1173, %v1172
      %v1223 = vpack.c.bf16 %v1175, %v1174
      %v1224 = vpack.c.bf16 %v1177, %v1176
      %v1225 = vpack.c.bf16 %v1179, %v1178
      %v1226 = vpack.c.bf16 %v1181, %v1180
      %v1227 = vpack.c.bf16 %v1183, %v1182
      %v1228 = vpack.c.bf16 %v1185, %v1184
      %v1229 = vpack.c.bf16 %v1187, %v1186
      %v1230 = vpack.c.bf16 %v1189, %v1188
      %v1231 = vpack.c.bf16 %v1191, %v1190
      %v1232 = vpack.c.bf16 %v1193, %v1192
      %v1233 = vpack.c.bf16 %v1195, %v1194
      %v1234 = vpack.c.bf16 %v1197, %v1196
      %v1235 = vpack.c.bf16 %v1199, %v1198
      %v1236 = vpack.c.bf16 %v1201, %v1200
      %v1237 = vpack.c.bf16 %v1203, %v1202
      %v1238 = vpack.c.bf16 %v1205, %v1204
      %v1239 = vpack.c.bf16 %v1207, %v1206
      %v1272 = vunpack.c.l.b16 %v1208
      %v1273 = vunpack.c.h.b16 %v1208
      %v1274 = vunpack.c.l.b16 %v1209
      %v1275 = vunpack.c.h.b16 %v1209
      %v1276 = vunpack.c.l.b16 %v1210
      %v1277 = vunpack.c.h.b16 %v1210
      %v1278 = vunpack.c.l.b16 %v1211
      %v1279 = vunpack.c.h.b16 %v1211
      %v1280 = vunpack.c.l.b16 %v1212
      %v1281 = vunpack.c.h.b16 %v1212
      %v1282 = vunpack.c.l.b16 %v1213
      %v1283 = vunpack.c.h.b16 %v1213
      %v1284 = vunpack.c.l.b16 %v1214
      %v1285 = vunpack.c.h.b16 %v1214
      %v1286 = vunpack.c.l.b16 %v1215
      %v1287 = vunpack.c.h.b16 %v1215
      %v1288 = vunpack.c.l.b16 %v1216
      %v1289 = vunpack.c.h.b16 %v1216
      %v1290 = vunpack.c.l.b16 %v1217
      %v1291 = vunpack.c.h.b16 %v1217
      %v1292 = vunpack.c.l.b16 %v1218
      %v1293 = vunpack.c.h.b16 %v1218
      %v1294 = vunpack.c.l.b16 %v1219
      %v1295 = vunpack.c.h.b16 %v1219
      %v1296 = vunpack.c.l.b16 %v1220
      %v1297 = vunpack.c.h.b16 %v1220
      %v1298 = vunpack.c.l.b16 %v1221
      %v1299 = vunpack.c.h.b16 %v1221
      %v1300 = vunpack.c.l.b16 %v1222
      %v1301 = vunpack.c.h.b16 %v1222
      %v1302 = vunpack.c.l.b16 %v1223
      %v1303 = vunpack.c.h.b16 %v1223
      %v1304 = vunpack.c.l.b16 %v1224
      %v1305 = vunpack.c.h.b16 %v1224
      %v1306 = vunpack.c.l.b16 %v1225
      %v1307 = vunpack.c.h.b16 %v1225
      %v1308 = vunpack.c.l.b16 %v1226
      %v1309 = vunpack.c.h.b16 %v1226
      %v1310 = vunpack.c.l.b16 %v1227
      %v1311 = vunpack.c.h.b16 %v1227
      %v1312 = vunpack.c.l.b16 %v1228
      %v1313 = vunpack.c.h.b16 %v1228
      %v1314 = vunpack.c.l.b16 %v1229
      %v1315 = vunpack.c.h.b16 %v1229
      %v1316 = vunpack.c.l.b16 %v1230
      %v1317 = vunpack.c.h.b16 %v1230
      %v1318 = vunpack.c.l.b16 %v1231
      %v1319 = vunpack.c.h.b16 %v1231
      %v1320 = vunpack.c.l.b16 %v1232
      %v1321 = vunpack.c.h.b16 %v1232
      %v1322 = vunpack.c.l.b16 %v1233
      %v1323 = vunpack.c.h.b16 %v1233
      %v1324 = vunpack.c.l.b16 %v1234
      %v1325 = vunpack.c.h.b16 %v1234
      %v1326 = vunpack.c.l.b16 %v1235
      %v1327 = vunpack.c.h.b16 %v1235
      %v1328 = vunpack.c.l.b16 %v1236
      %v1329 = vunpack.c.h.b16 %v1236
      %v1330 = vunpack.c.l.b16 %v1237
      %v1331 = vunpack.c.h.b16 %v1237
      %v1332 = vunpack.c.l.b16 %v1238
      %v1333 = vunpack.c.h.b16 %v1238
      %v1334 = vunpack.c.l.b16 %v1239
      %v1335 = vunpack.c.h.b16 %v1239
      %v1336 = vpack.c.b16 %v1272, %v1272
      %v1337 = vpack.c.b16 %v1273, %v1273
      %v1338 = vpack.c.b16 %v1274, %v1274
      %v1339 = vpack.c.b16 %v1275, %v1275
      %v1340 = vpack.c.b16 %v1276, %v1276
      %v1341 = vpack.c.b16 %v1277, %v1277
      %v1342 = vpack.c.b16 %v1278, %v1278
      %v1343 = vpack.c.b16 %v1279, %v1279
      %v1344 = vpack.c.b16 %v1280, %v1280
      %v1345 = vpack.c.b16 %v1281, %v1281
      %v1346 = vpack.c.b16 %v1282, %v1282
      %v1347 = vpack.c.b16 %v1283, %v1283
      %v1348 = vpack.c.b16 %v1284, %v1284
      %v1349 = vpack.c.b16 %v1285, %v1285
      %v1350 = vpack.c.b16 %v1286, %v1286
      %v1351 = vpack.c.b16 %v1287, %v1287
      %v1352 = vpack.c.b16 %v1288, %v1288
      %v1353 = vpack.c.b16 %v1289, %v1289
      %v1354 = vpack.c.b16 %v1290, %v1290
      %v1355 = vpack.c.b16 %v1291, %v1291
      %v1356 = vpack.c.b16 %v1292, %v1292
      %v1357 = vpack.c.b16 %v1293, %v1293
      %v1358 = vpack.c.b16 %v1294, %v1294
      %v1359 = vpack.c.b16 %v1295, %v1295
      %v1360 = vpack.c.b16 %v1296, %v1296
      %v1361 = vpack.c.b16 %v1297, %v1297
      %v1362 = vpack.c.b16 %v1298, %v1298
      %v1363 = vpack.c.b16 %v1299, %v1299
      %v1364 = vpack.c.b16 %v1300, %v1300
      %v1365 = vpack.c.b16 %v1301, %v1301
      %v1366 = vpack.c.b16 %v1302, %v1302
      %v1367 = vpack.c.b16 %v1303, %v1303
      %v1368 = vpack.c.b16 %v1304, %v1304
      %v1369 = vpack.c.b16 %v1305, %v1305
      %v1370 = vpack.c.b16 %v1306, %v1306
      %v1371 = vpack.c.b16 %v1307, %v1307
      %v1372 = vpack.c.b16 %v1308, %v1308
      %v1373 = vpack.c.b16 %v1309, %v1309
      %v1374 = vpack.c.b16 %v1310, %v1310
      %v1375 = vpack.c.b16 %v1311, %v1311
      %v1376 = vpack.c.b16 %v1312, %v1312
      %v1377 = vpack.c.b16 %v1313, %v1313
      %v1378 = vpack.c.b16 %v1314, %v1314
      %v1379 = vpack.c.b16 %v1315, %v1315
      %v1380 = vpack.c.b16 %v1316, %v1316
      %v1381 = vpack.c.b16 %v1317, %v1317
      %v1382 = vpack.c.b16 %v1318, %v1318
      %v1383 = vpack.c.b16 %v1319, %v1319
      %v1384 = vpack.c.b16 %v1320, %v1320
      %v1385 = vpack.c.b16 %v1321, %v1321
      %v1386 = vpack.c.b16 %v1322, %v1322
      %v1387 = vpack.c.b16 %v1323, %v1323
      %v1388 = vpack.c.b16 %v1324, %v1324
      %v1389 = vpack.c.b16 %v1325, %v1325
      %v1390 = vpack.c.b16 %v1326, %v1326
      %v1391 = vpack.c.b16 %v1327, %v1327
      %v1392 = vpack.c.b16 %v1328, %v1328
      %v1393 = vpack.c.b16 %v1329, %v1329
      %v1394 = vpack.c.b16 %v1330, %v1330
      %v1395 = vpack.c.b16 %v1331, %v1331
      %v1396 = vpack.c.b16 %v1332, %v1332
      %v1397 = vpack.c.b16 %v1333, %v1333
      %v1398 = vpack.c.b16 %v1334, %v1334
      %v1399 = vpack.c.b16 %v1335, %v1335
      %vm1464 = vcmask 519168
      %1465 = vst.msk [vmem:[%s172] sm:$0xf] %vm1464, %v1336
      %1466 = vst.msk [vmem:[%s172 + $0x4] sm:$0xf] %vm1464, %v1337
      %1467 = vst.msk [vmem:[%s172 + $0x8] sm:$0xf] %vm1464, %v1338
      %1468 = vst.msk [vmem:[%s172 + $0xc] sm:$0xf] %vm1464, %v1339
      %1469 = vst.msk [vmem:[%s172 + $0x10] sm:$0xf] %vm1464, %v1340
      %1470 = vst.msk [vmem:[%s172 + $0x14] sm:$0xf] %vm1464, %v1341
      %1471 = vst.msk [vmem:[%s172 + $0x18] sm:$0xf] %vm1464, %v1342
      %1472 = vst.msk [vmem:[%s172 + $0x1c] sm:$0xf] %vm1464, %v1343
      %1473 = vst.msk [vmem:[%s172 + $0x20] sm:$0xf] %vm1464, %v1344
      %1474 = vst.msk [vmem:[%s172 + $0x24] sm:$0xf] %vm1464, %v1345
      %1475 = vst.msk [vmem:[%s172 + $0x28] sm:$0xf] %vm1464, %v1346
      %1476 = vst.msk [vmem:[%s172 + $0x2c] sm:$0xf] %vm1464, %v1347
      %1477 = vst.msk [vmem:[%s172 + $0x30] sm:$0xf] %vm1464, %v1348
      %1478 = vst.msk [vmem:[%s172 + $0x34] sm:$0xf] %vm1464, %v1349
      %1479 = vst.msk [vmem:[%s172 + $0x38] sm:$0xf] %vm1464, %v1350
      %1480 = vst.msk [vmem:[%s172 + $0x3c] sm:$0xf] %vm1464, %v1351
      %1481 = vst.msk [vmem:[%s172 + $0x40] sm:$0xf] %vm1464, %v1352
      %1482 = vst.msk [vmem:[%s172 + $0x44] sm:$0xf] %vm1464, %v1353
      %1483 = vst.msk [vmem:[%s172 + $0x48] sm:$0xf] %vm1464, %v1354
      %1484 = vst.msk [vmem:[%s172 + $0x4c] sm:$0xf] %vm1464, %v1355
      %1485 = vst.msk [vmem:[%s172 + $0x50] sm:$0xf] %vm1464, %v1356
      %1486 = vst.msk [vmem:[%s172 + $0x54] sm:$0xf] %vm1464, %v1357
      %1487 = vst.msk [vmem:[%s172 + $0x58] sm:$0xf] %vm1464, %v1358
      %1488 = vst.msk [vmem:[%s172 + $0x5c] sm:$0xf] %vm1464, %v1359
      %1489 = vst.msk [vmem:[%s172 + $0x60] sm:$0xf] %vm1464, %v1360
      %1490 = vst.msk [vmem:[%s172 + $0x64] sm:$0xf] %vm1464, %v1361
      %1491 = vst.msk [vmem:[%s172 + $0x68] sm:$0xf] %vm1464, %v1362
      %1492 = vst.msk [vmem:[%s172 + $0x6c] sm:$0xf] %vm1464, %v1363
      %1493 = vst.msk [vmem:[%s172 + $0x70] sm:$0xf] %vm1464, %v1364
      %1494 = vst.msk [vmem:[%s172 + $0x74] sm:$0xf] %vm1464, %v1365
      %1495 = vst.msk [vmem:[%s172 + $0x78] sm:$0xf] %vm1464, %v1366
      %1496 = vst.msk [vmem:[%s172 + $0x7c] sm:$0xf] %vm1464, %v1367
      %1497 = vst.msk [vmem:[%s172 + $0x80] sm:$0xf] %vm1464, %v1368
      %1498 = vst.msk [vmem:[%s172 + $0x84] sm:$0xf] %vm1464, %v1369
      %1499 = vst.msk [vmem:[%s172 + $0x88] sm:$0xf] %vm1464, %v1370
      %1500 = vst.msk [vmem:[%s172 + $0x8c] sm:$0xf] %vm1464, %v1371
      %1501 = vst.msk [vmem:[%s172 + $0x90] sm:$0xf] %vm1464, %v1372
      %1502 = vst.msk [vmem:[%s172 + $0x94] sm:$0xf] %vm1464, %v1373
      %1503 = vst.msk [vmem:[%s172 + $0x98] sm:$0xf] %vm1464, %v1374
      %1504 = vst.msk [vmem:[%s172 + $0x9c] sm:$0xf] %vm1464, %v1375
      %1505 = vst.msk [vmem:[%s172 + $0xa0] sm:$0xf] %vm1464, %v1376
      %1506 = vst.msk [vmem:[%s172 + $0xa4] sm:$0xf] %vm1464, %v1377
      %1507 = vst.msk [vmem:[%s172 + $0xa8] sm:$0xf] %vm1464, %v1378
      %1508 = vst.msk [vmem:[%s172 + $0xac] sm:$0xf] %vm1464, %v1379
      %1509 = vst.msk [vmem:[%s172 + $0xb0] sm:$0xf] %vm1464, %v1380
      %1510 = vst.msk [vmem:[%s172 + $0xb4] sm:$0xf] %vm1464, %v1381
      %1511 = vst.msk [vmem:[%s172 + $0xb8] sm:$0xf] %vm1464, %v1382
      %1512 = vst.msk [vmem:[%s172 + $0xbc] sm:$0xf] %vm1464, %v1383
      %1513 = vst.msk [vmem:[%s172 + $0xc0] sm:$0xf] %vm1464, %v1384
      %1514 = vst.msk [vmem:[%s172 + $0xc4] sm:$0xf] %vm1464, %v1385
      %1515 = vst.msk [vmem:[%s172 + $0xc8] sm:$0xf] %vm1464, %v1386
      %1516 = vst.msk [vmem:[%s172 + $0xcc] sm:$0xf] %vm1464, %v1387
      %1517 = vst.msk [vmem:[%s172 + $0xd0] sm:$0xf] %vm1464, %v1388
      %1518 = vst.msk [vmem:[%s172 + $0xd4] sm:$0xf] %vm1464, %v1389
      %1519 = vst.msk [vmem:[%s172 + $0xd8] sm:$0xf] %vm1464, %v1390
      %1520 = vst.msk [vmem:[%s172 + $0xdc] sm:$0xf] %vm1464, %v1391
      %1521 = vst.msk [vmem:[%s172 + $0xe0] sm:$0xf] %vm1464, %v1392
      %1522 = vst.msk [vmem:[%s172 + $0xe4] sm:$0xf] %vm1464, %v1393
      %1523 = vst.msk [vmem:[%s172 + $0xe8] sm:$0xf] %vm1464, %v1394
      %1524 = vst.msk [vmem:[%s172 + $0xec] sm:$0xf] %vm1464, %v1395
      %1525 = vst.msk [vmem:[%s172 + $0xf0] sm:$0xf] %vm1464, %v1396
      %1526 = vst.msk [vmem:[%s172 + $0xf4] sm:$0xf] %vm1464, %v1397
      %1527 = vst.msk [vmem:[%s172 + $0xf8] sm:$0xf] %vm1464, %v1398
      %1528 = vst.msk [vmem:[%s172 + $0xfc] sm:$0xf] %vm1464, %v1399
      %s1529 = smul.u32 64, %s14
      %p1530 = scmp.lt.s32.totalorder %s1529, 447
      %s1531 = scalar_select %p1530, %s1529, 447
      %s1532 = smul.addr %s1531, 4
      %s1533 = scalar_lea.vmem %s3, %s1532
      // Predicated region
      $region33: #{rainbow_dqn_forward.3} parent=31 // pred_check
        %p1534 = pneg %p100
      $region34: #{rainbow_dqn_forward.3} parent=31 // pred_check_branch
        %1536 = sbr.rel (%p1534) target = $region36
      $region35: #{rainbow_dqn_forward.3} parent=31 // pred_region
        %s1537 = smul.u32 64, %s14
      $region36: #{rainbow_dqn_forward.3} parent=31 // pred_fallthru
        _
    $region32: #{rainbow_dqn_forward.3} parent=5 // pred_fallthru
      _
    %p1538 = scmp.le.s32.totalorder 2, %s9
    // Predicated region
    $region37: #{rainbow_dqn_forward.3} parent=5 // pred_check
      %p1539 = pneg %p1538
    $region38: #{rainbow_dqn_forward.3} parent=5 // pred_check_branch
      %1541 = sbr.rel (%p1539) target = $region40
    $region39: #{rainbow_dqn_forward.3} parent=5 // pred_region
      %s1542 = ssub.s32 %s9, 2
      // Predicated region
      $region41: #{rainbow_dqn_forward.3} parent=39 // pred_check
        %p1543 = pneg %p106
      $region42: #{rainbow_dqn_forward.3} parent=39 // pred_check_branch
        %1545 = sbr.rel (%p1543) target = $region44
      $region43: #{rainbow_dqn_forward.3} parent=39 // pred_region
        %s1546 = smul.u32 64, %s15
        %p1547 = scmp.lt.s32.totalorder %s1546, 447
        %s1548 = scalar_select %p1547, %s1546, 447
        %s1549 = smul.addr %s1548, 4
        %s1550 = scalar_lea.vmem %s3, %s1549
      $region44: #{rainbow_dqn_forward.3} parent=39 // pred_fallthru
        _
    $region40: #{rainbow_dqn_forward.3} parent=5 // pred_fallthru
      _
  $region6: #{rainbow_dqn_forward.3} parent=0 // loop_footer
    %s13 = sadd.s32 1, %s9
  $region7: #{rainbow_dqn_forward.3} parent=0 // loop_footer_branch
    %8 = sbr.rel target = $region3
  $region8: #{rainbow_dqn_forward.3} parent=0 // loop_exit
    _

// kernel: rainbow_dqn_forward.4
$region0: #{rainbow_dqn_forward.4}
  #allocation0 [shape = 'u32[]', space=smem, size = 0x4, offset = 0x4, fixed_abs, tag = 'smem constant byte address 0x4 - core index']
  #allocation1 [shape = 'u32[144,128]{1,0:T(1,128)}', space=vmem, size = 0x12000, scoped, tag = 'internal scratch']
  %s0 = inlined_call_operand.vmem [shape: bf16[896,1600], index: 0, kind: input, shape index: {}]
  %s1 = inlined_call_operand.vmem [shape: bf16[1600,64], index: 1, kind: input, shape index: {}]
  %s2 = inlined_call_operand.vmem [shape: f32[1,64], index: 2, kind: input, shape index: {}]
  %s3 = inlined_call_operand.vmem [shape: bf16[896,64], index: 3, kind: output, shape index: {}]
  %s4 = sld [smem:[#allocation0]]
  $region45: #{rainbow_dqn_forward.4} parent=0
    _
  %s6 = ssub.s32 1, %s4
  %s7 = scalar_select 0, %s6, %s4
  loop: start=0, step=1, limit=6
  $region2: #{rainbow_dqn_forward.4} parent=0 // loop_pre_header
    _
  $region3: #{rainbow_dqn_forward.4} parent=0 // loop_header
    %s9 = sphi 0, %s13
    %p10 = scmp.ge.s32.totalorder %s9, 6
    %s19 = sphi 0, %s21
    %s22 = sphi 0, %s19
    %s23 = sphi 0, %s22
    %s39 = sphi 0, %s23
    %s43 = sphi 0, %s43
    %s45 = sphi 0, %s43
    %s46 = sphi 0, %s45
    %s60 = sphi 0, %s46
    %s64 = sphi 0, %s64
    %s66 = sphi 0, %s64
    %s67 = sphi 0, %s66
    %s81 = sphi 0, %s67
    %s87 = sphi 0, %s89
    %s90 = sphi 0, %s87
    %s91 = sphi 0, %s90
    %s107 = sphi 0, %s91
  $region4: #{rainbow_dqn_forward.4} parent=0 // loop_header_branch
    %12 = sbr.rel (%p10) target = $region8
  $region5: #{rainbow_dqn_forward.4} parent=0 // loop_body
    %s14 = ssub.s32 %s9, 1
    %s15 = ssub.s32 %s9, 2
    %s16 = sadd.s32 %s9, 1
    %s17 = ssub.s32 %s9, %s16
    %p18 = scmp.eq.s32.totalorder %s17, 0
    %s20 = sadd.s32 %s19, 1
    %s21 = scalar_select %p18, %s19, %s20
    %p24 = pneg %p18
    %p25 = scmp.eq.s32.totalorder %s9, 3
    %p26 = por %p24, %p25
    %p27 = scmp.ne.s32.totalorder %s19, %s22
    %p28 = scmp.eq.s32.totalorder %s9, 0
    %p29 = por %p27, %p28
    %p30 = scmp.ne.s32.totalorder %s19, %s22
    %p31 = scmp.eq.s32.totalorder %s14, 3
    %p32 = por %p30, %p31
    %p33 = scmp.ne.s32.totalorder %s22, %s23
    %p34 = scmp.eq.s32.totalorder %s14, 0
    %p35 = por %p33, %p34
    %p36 = scmp.ne.s32.totalorder %s22, %s23
    %p37 = scmp.eq.s32.totalorder %s15, 3
    %p38 = por %p36, %p37
    %p40 = scmp.ne.s32.totalorder %s23, %s39
    %p41 = scmp.eq.s32.totalorder %s15, 0
    %p42 = por %p40, %p41
    %s44 = sadd.s32 %s43, 1
    %p47 = scmp.eq.s32.totalorder %s9, 3
    %p48 = scmp.ne.s32.totalorder %s43, %s45
    %p49 = scmp.eq.s32.totalorder %s9, 0
    %p50 = por %p48, %p49
    %p51 = scmp.ne.s32.totalorder %s43, %s45
    %p52 = scmp.eq.s32.totalorder %s14, 3
    %p53 = por %p51, %p52
    %p54 = scmp.ne.s32.totalorder %s45, %s46
    %p55 = scmp.eq.s32.totalorder %s14, 0
    %p56 = por %p54, %p55
    %p57 = scmp.ne.s32.totalorder %s45, %s46
    %p58 = scmp.eq.s32.totalorder %s15, 3
    %p59 = por %p57, %p58
    %p61 = scmp.ne.s32.totalorder %s46, %s60
    %p62 = scmp.eq.s32.totalorder %s15, 0
    %p63 = por %p61, %p62
    %s65 = sadd.s32 %s64, 1
    %p68 = scmp.eq.s32.totalorder %s9, 3
    %p69 = scmp.ne.s32.totalorder %s64, %s66
    %p70 = scmp.eq.s32.totalorder %s9, 0
    %p71 = por %p69, %p70
    %p72 = scmp.ne.s32.totalorder %s64, %s66
    %p73 = scmp.eq.s32.totalorder %s14, 3
    %p74 = por %p72, %p73
    %p75 = scmp.ne.s32.totalorder %s66, %s67
    %p76 = scmp.eq.s32.totalorder %s14, 0
    %p77 = por %p75, %p76
    %p78 = scmp.ne.s32.totalorder %s66, %s67
    %p79 = scmp.eq.s32.totalorder %s15, 3
    %p80 = por %p78, %p79
    %p82 = scmp.ne.s32.totalorder %s67, %s81
    %p83 = scmp.eq.s32.totalorder %s15, 0
    %p84 = por %p82, %p83
    %s85 = ssub.s32 %s9, %s16
    %p86 = scmp.eq.s32.totalorder %s85, 0
    %s88 = sadd.s32 %s87, 1
    %s89 = scalar_select %p86, %s87, %s88
    %p92 = pneg %p86
    %p93 = scmp.eq.s32.totalorder %s9, 3
    %p94 = por %p92, %p93
    %p95 = scmp.ne.s32.totalorder %s87, %s90
    %p96 = scmp.eq.s32.totalorder %s9, 0
    %p97 = por %p95, %p96
    %p98 = scmp.ne.s32.totalorder %s87, %s90
    %p99 = scmp.eq.s32.totalorder %s14, 3
    %p100 = por %p98, %p99
    %p101 = scmp.ne.s32.totalorder %s90, %s91
    %p102 = scmp.eq.s32.totalorder %s14, 0
    %p103 = por %p101, %p102
    %p104 = scmp.ne.s32.totalorder %s90, %s91
    %p105 = scmp.eq.s32.totalorder %s15, 3
    %p106 = por %p104, %p105
    %p108 = scmp.ne.s32.totalorder %s91, %s107
    %p109 = scmp.eq.s32.totalorder %s15, 0
    %p110 = por %p108, %p109
    %p111 = scmp.le.s32.totalorder 1, %s9
    %p112 = scmp.lt.s32.totalorder %s9, 5
    %p113 = pnand %p111, %p112
    %p114 = pneg %p113
    // Predicated region
    $region9: #{rainbow_dqn_forward.4} parent=5 // pred_check
      _
    $region10: #{rainbow_dqn_forward.4} parent=5 // pred_check_branch
      %116 = sbr.rel (%p113) target = $region12
    $region11: #{rainbow_dqn_forward.4} parent=5 // pred_region
      %s117 = ssub.s32 %s9, 1
      // Predicated region
      $region13: #{rainbow_dqn_forward.4} parent=11 // pred_check
        %p118 = pneg %p56
      $region14: #{rainbow_dqn_forward.4} parent=11 // pred_check_branch
        %120 = sbr.rel (%p118) target = $region16
      $region15: #{rainbow_dqn_forward.4} parent=11 // pred_region
        _
      $region16: #{rainbow_dqn_forward.4} parent=11 // pred_fallthru
        _
      // Predicated region
      $region17: #{rainbow_dqn_forward.4} parent=11 // pred_check
        %p121 = pneg %p77
      $region18: #{rainbow_dqn_forward.4} parent=11 // pred_check_branch
        %123 = sbr.rel (%p121) target = $region20
      $region19: #{rainbow_dqn_forward.4} parent=11 // pred_region
        _
      $region20: #{rainbow_dqn_forward.4} parent=11 // pred_fallthru
        _
    $region12: #{rainbow_dqn_forward.4} parent=5 // pred_fallthru
      _
    %p124 = scmp.lt.s32.totalorder %s9, 4
    // Predicated region
    $region21: #{rainbow_dqn_forward.4} parent=5 // pred_check
      %p125 = pneg %p124
    $region22: #{rainbow_dqn_forward.4} parent=5 // pred_check_branch
      %127 = sbr.rel (%p125) target = $region24
    $region23: #{rainbow_dqn_forward.4} parent=5 // pred_region
      // Predicated region
      $region25: #{rainbow_dqn_forward.4} parent=23 // pred_check
        %p128 = pneg %p29
      $region26: #{rainbow_dqn_forward.4} parent=23 // pred_check_branch
        %130 = sbr.rel (%p128) target = $region28
      $region27: #{rainbow_dqn_forward.4} parent=23 // pred_region
        %s131 = smul.u32 28, %s9
        %p132 = scmp.lt.s32.totalorder %s131, 111
        %s133 = scalar_select %p132, %s131, 111
        %s134 = smul.addr %s133, 13
        %s135 = smul.addr %s134, 4
        %s136 = scalar_lea.vmem %s0, %s135
        %s137 = smul.u32 28, %s9
      $region28: #{rainbow_dqn_forward.4} parent=23 // pred_fallthru
        _
    $region24: #{rainbow_dqn_forward.4} parent=5 // pred_fallthru
      _
    %p138 = scmp.le.s32.totalorder 1, %s9
    %p139 = scmp.lt.s32.totalorder %s9, 5
    %p140 = pnand %p138, %p139
    %p141 = pneg %p140
    // Predicated region
    $region29: #{rainbow_dqn_forward.4} parent=5 // pred_check
      _
    $region30: #{rainbow_dqn_forward.4} parent=5 // pred_check_branch
      %143 = sbr.rel (%p140) target = $region32
    $region31: #{rainbow_dqn_forward.4} parent=5 // pred_region
      %s144 = ssub.s32 %s9, 1
      %s145 = smul.u32 28, %s14
      %p146 = scmp.lt.s32.totalorder %s145, 111
      %s147 = scalar_select %p146, %s145, 111
      %s148 = smul.addr %s147, 13
      %s149 = smul.addr %s148, 4
      %s150 = scalar_lea.vmem %s0, %s149
      %p151 = pneg %p35
      %p152 = pneg %p32
      %p153 = pneg %p56
      %p154 = pneg %p53
      %p155 = pneg %p77
      %p156 = pneg %p74
      %p157 = pneg %p103
      %p158 = pneg %p100
      %s159 = smul.u32 28, %s14
      %p160 = scmp.lt.s32.totalorder %s159, 111
      %s161 = scalar_select %p160, %s159, 111
      %s162 = smul.addr %s161, 4
      %s163 = scalar_lea.vmem %s3, %s162
      %s164 = smul.u32 28, %s14
      %p165 = scmp.lt.s32.totalorder %s164, 111
      %s166 = scalar_select %p165, %s164, 111
      %s167 = smul.addr %s166, 13
      %s168 = smul.addr %s167, 4
      %s169 = scalar_lea.vmem %s0, %s168
      %s170 = smul.u32 28, %s14
      %s171 = smul.u32 28, %s14
      %p172 = scmp.lt.s32.totalorder %s171, 111
      %s173 = scalar_select %p172, %s171, 111
      %s174 = smul.addr %s173, 4
      %s175 = scalar_lea.vmem %s3, %s174
      %s176 = smul.u32 28, %s14
      %v178 = vld [vmem:[%s169] sm:$0xff]
      %v179 = vld [vmem:[%s169 + $0x8] sm:$0xff]
      %v180 = vld [vmem:[%s169 + $0x10] sm:$0xff]
      %v181 = vld [vmem:[%s169 + $0x18] sm:$0xff]
      %v182 = vld [vmem:[%s169 + $0x20] sm:$0xff]
      %v183 = vld [vmem:[%s169 + $0x28] sm:$0xff]
      %v184 = vld [vmem:[%s169 + $0x30] sm:$0xf]
      %v185 = vld [vmem:[%s169 + $0x34] sm:$0xff]
      %v186 = vld [vmem:[%s169 + $0x3c] sm:$0xff]
      %v187 = vld [vmem:[%s169 + $0x44] sm:$0xff]
      %v188 = vld [vmem:[%s169 + $0x4c] sm:$0xff]
      %v189 = vld [vmem:[%s169 + $0x54] sm:$0xff]
      %v190 = vld [vmem:[%s169 + $0x5c] sm:$0xff]
      %v191 = vld [vmem:[%s169 + $0x64] sm:$0xf]
      %v192 = vld [vmem:[%s169 + $0x68] sm:$0xff]
      %v193 = vld [vmem:[%s169 + $0x70] sm:$0xff]
      %v194 = vld [vmem:[%s169 + $0x78] sm:$0xff]
      %v195 = vld [vmem:[%s169 + $0x80] sm:$0xff]
      %v196 = vld [vmem:[%s169 + $0x88] sm:$0xff]
      %v197 = vld [vmem:[%s169 + $0x90] sm:$0xff]
      %v198 = vld [vmem:[%s169 + $0x98] sm:$0xf]
      %v199 = vld [vmem:[%s169 + $0x9c] sm:$0xff]
      %v200 = vld [vmem:[%s169 + $0xa4] sm:$0xff]
      %v201 = vld [vmem:[%s169 + $0xac] sm:$0xff]
      %v202 = vld [vmem:[%s169 + $0xb4] sm:$0xff]
      %v203 = vld [vmem:[%s169 + $0xbc] sm:$0xff]
      %v204 = vld [vmem:[%s169 + $0xc4] sm:$0xff]
      %v205 = vld [vmem:[%s169 + $0xcc] sm:$0xf]
      %v206 = vld [vmem:[%s169 + $0xd0] sm:$0xff]
      %v207 = vld [vmem:[%s169 + $0xd8] sm:$0xff]
      %v208 = vld [vmem:[%s169 + $0xe0] sm:$0xff]
      %v209 = vld [vmem:[%s169 + $0xe8] sm:$0xff]
      %v210 = vld [vmem:[%s169 + $0xf0] sm:$0xff]
      %v211 = vld [vmem:[%s169 + $0xf8] sm:$0xff]
      %v212 = vld [vmem:[%s169 + $0x100] sm:$0xf]
      %v213 = vld [vmem:[%s169 + $0x104] sm:$0xff]
      %v214 = vld [vmem:[%s169 + $0x10c] sm:$0xff]
      %v215 = vld [vmem:[%s169 + $0x114] sm:$0xff]
      %v216 = vld [vmem:[%s169 + $0x11c] sm:$0xff]
      %v217 = vld [vmem:[%s169 + $0x124] sm:$0xff]
      %v218 = vld [vmem:[%s169 + $0x12c] sm:$0xff]
      %v219 = vld [vmem:[%s169 + $0x134] sm:$0xf]
      %v220 = vld [vmem:[%s169 + $0x138] sm:$0xff]
      %v221 = vld [vmem:[%s169 + $0x140] sm:$0xff]
      %v222 = vld [vmem:[%s169 + $0x148] sm:$0xff]
      %v223 = vld [vmem:[%s169 + $0x150] sm:$0xff]
      %v224 = vld [vmem:[%s169 + $0x158] sm:$0xff]
      %v225 = vld [vmem:[%s169 + $0x160] sm:$0xff]
      %v226 = vld [vmem:[%s169 + $0x168] sm:$0xf]
      %v227 = vld [vmem:[%s169 + $0x16c] sm:$0xff]
      %v228 = vld [vmem:[%s169 + $0x174] sm:$0xff]
      %v229 = vld [vmem:[%s169 + $0x17c] sm:$0xff]
      %v230 = vld [vmem:[%s169 + $0x184] sm:$0xff]
      %v231 = vld [vmem:[%s169 + $0x18c] sm:$0xff]
      %v232 = vld [vmem:[%s169 + $0x194] sm:$0xff]
      %v233 = vld [vmem:[%s169 + $0x19c] sm:$0xf]
      %v234 = vld [vmem:[%s169 + $0x1a0] sm:$0xff]
      %v235 = vld [vmem:[%s169 + $0x1a8] sm:$0xff]
      %v236 = vld [vmem:[%s169 + $0x1b0] sm:$0xff]
      %v237 = vld [vmem:[%s169 + $0x1b8] sm:$0xff]
      %v238 = vld [vmem:[%s169 + $0x1c0] sm:$0xff]
      %v239 = vld [vmem:[%s169 + $0x1c8] sm:$0xff]
      %v240 = vld [vmem:[%s169 + $0x1d0] sm:$0xf]
      %v241 = vld [vmem:[%s169 + $0x1d4] sm:$0xff]
      %v242 = vld [vmem:[%s169 + $0x1dc] sm:$0xff]
      %v243 = vld [vmem:[%s169 + $0x1e4] sm:$0xff]
      %v244 = vld [vmem:[%s169 + $0x1ec] sm:$0xff]
      %v245 = vld [vmem:[%s169 + $0x1f4] sm:$0xff]
      %v246 = vld [vmem:[%s169 + $0x1fc] sm:$0xff]
      %v247 = vld [vmem:[%s169 + $0x204] sm:$0xf]
      %v248 = vld [vmem:[%s169 + $0x208] sm:$0xff]
      %v249 = vld [vmem:[%s169 + $0x210] sm:$0xff]
      %v250 = vld [vmem:[%s169 + $0x218] sm:$0xff]
      %v251 = vld [vmem:[%s169 + $0x220] sm:$0xff]
      %v252 = vld [vmem:[%s169 + $0x228] sm:$0xff]
      %v253 = vld [vmem:[%s169 + $0x230] sm:$0xff]
      %v254 = vld [vmem:[%s169 + $0x238] sm:$0xf]
      %v255 = vld [vmem:[%s169 + $0x23c] sm:$0xff]
      %v256 = vld [vmem:[%s169 + $0x244] sm:$0xff]
      %v257 = vld [vmem:[%s169 + $0x24c] sm:$0xff]
      %v258 = vld [vmem:[%s169 + $0x254] sm:$0xff]
      %v259 = vld [vmem:[%s169 + $0x25c] sm:$0xff]
      %v260 = vld [vmem:[%s169 + $0x264] sm:$0xff]
      %v261 = vld [vmem:[%s169 + $0x26c] sm:$0xf]
      %v262 = vld [vmem:[%s169 + $0x270] sm:$0xff]
      %v263 = vld [vmem:[%s169 + $0x278] sm:$0xff]
      %v264 = vld [vmem:[%s169 + $0x280] sm:$0xff]
      %v265 = vld [vmem:[%s169 + $0x288] sm:$0xff]
      %v266 = vld [vmem:[%s169 + $0x290] sm:$0xff]
      %v267 = vld [vmem:[%s169 + $0x298] sm:$0xff]
      %v268 = vld [vmem:[%s169 + $0x2a0] sm:$0xf]
      %v269 = vld [vmem:[%s169 + $0x2a4] sm:$0xff]
      %v270 = vld [vmem:[%s169 + $0x2ac] sm:$0xff]
      %v271 = vld [vmem:[%s169 + $0x2b4] sm:$0xff]
      %v272 = vld [vmem:[%s169 + $0x2bc] sm:$0xff]
      %v273 = vld [vmem:[%s169 + $0x2c4] sm:$0xff]
      %v274 = vld [vmem:[%s169 + $0x2cc] sm:$0xff]
      %v275 = vld [vmem:[%s169 + $0x2d4] sm:$0xf]
      %v276 = vld [vmem:[%s169 + $0x2d8] sm:$0xff]
      %v277 = vld [vmem:[%s169 + $0x2e0] sm:$0xff]
      %v278 = vld [vmem:[%s169 + $0x2e8] sm:$0xff]
      %v279 = vld [vmem:[%s169 + $0x2f0] sm:$0xff]
      %v280 = vld [vmem:[%s169 + $0x2f8] sm:$0xff]
      %v281 = vld [vmem:[%s169 + $0x300] sm:$0xff]
      %v282 = vld [vmem:[%s169 + $0x308] sm:$0xf]
      %v283 = vld [vmem:[%s169 + $0x30c] sm:$0xff]
      %v284 = vld [vmem:[%s169 + $0x314] sm:$0xff]
      %v285 = vld [vmem:[%s169 + $0x31c] sm:$0xff]
      %v286 = vld [vmem:[%s169 + $0x324] sm:$0xff]
      %v287 = vld [vmem:[%s169 + $0x32c] sm:$0xff]
      %v288 = vld [vmem:[%s169 + $0x334] sm:$0xff]
      %v289 = vld [vmem:[%s169 + $0x33c] sm:$0xf]
      %v290 = vld [vmem:[%s169 + $0x340] sm:$0xff]
      %v291 = vld [vmem:[%s169 + $0x348] sm:$0xff]
      %v292 = vld [vmem:[%s169 + $0x350] sm:$0xff]
      %v293 = vld [vmem:[%s169 + $0x358] sm:$0xff]
      %v294 = vld [vmem:[%s169 + $0x360] sm:$0xff]
      %v295 = vld [vmem:[%s169 + $0x368] sm:$0xff]
      %v296 = vld [vmem:[%s169 + $0x370] sm:$0xf]
      %v297 = vld [vmem:[%s169 + $0x374] sm:$0xff]
      %v298 = vld [vmem:[%s169 + $0x37c] sm:$0xff]
      %v299 = vld [vmem:[%s169 + $0x384] sm:$0xff]
      %v300 = vld [vmem:[%s169 + $0x38c] sm:$0xff]
      %v301 = vld [vmem:[%s169 + $0x394] sm:$0xff]
      %v302 = vld [vmem:[%s169 + $0x39c] sm:$0xff]
      %v303 = vld [vmem:[%s169 + $0x3a4] sm:$0xf]
      %v304 = vld [vmem:[%s169 + $0x3a8] sm:$0xff]
      %v305 = vld [vmem:[%s169 + $0x3b0] sm:$0xff]
      %v306 = vld [vmem:[%s169 + $0x3b8] sm:$0xff]
      %v307 = vld [vmem:[%s169 + $0x3c0] sm:$0xff]
      %v308 = vld [vmem:[%s169 + $0x3c8] sm:$0xff]
      %v309 = vld [vmem:[%s169 + $0x3d0] sm:$0xff]
      %v310 = vld [vmem:[%s169 + $0x3d8] sm:$0xf]
      %v311 = vld [vmem:[%s169 + $0x3dc] sm:$0xff]
      %v312 = vld [vmem:[%s169 + $0x3e4] sm:$0xff]
      %v313 = vld [vmem:[%s169 + $0x3ec] sm:$0xff]
      %v314 = vld [vmem:[%s169 + $0x3f4] sm:$0xff]
      %v315 = vld [vmem:[%s169 + $0x3fc] sm:$0xff]
      %v316 = vld [vmem:[%s169 + $0x404] sm:$0xff]
      %v317 = vld [vmem:[%s169 + $0x40c] sm:$0xf]
      %v318 = vld [vmem:[%s169 + $0x410] sm:$0xff]
      %v319 = vld [vmem:[%s169 + $0x418] sm:$0xff]
      %v320 = vld [vmem:[%s169 + $0x420] sm:$0xff]
      %v321 = vld [vmem:[%s169 + $0x428] sm:$0xff]
      %v322 = vld [vmem:[%s169 + $0x430] sm:$0xff]
      %v323 = vld [vmem:[%s169 + $0x438] sm:$0xff]
      %v324 = vld [vmem:[%s169 + $0x440] sm:$0xf]
      %v325 = vld [vmem:[%s169 + $0x444] sm:$0xff]
      %v326 = vld [vmem:[%s169 + $0x44c] sm:$0xff]
      %v327 = vld [vmem:[%s169 + $0x454] sm:$0xff]
      %v328 = vld [vmem:[%s169 + $0x45c] sm:$0xff]
      %v329 = vld [vmem:[%s169 + $0x464] sm:$0xff]
      %v330 = vld [vmem:[%s169 + $0x46c] sm:$0xff]
      %v331 = vld [vmem:[%s169 + $0x474] sm:$0xf]
      %v332 = vld [vmem:[%s169 + $0x478] sm:$0xff]
      %v333 = vld [vmem:[%s169 + $0x480] sm:$0xff]
      %v334 = vld [vmem:[%s169 + $0x488] sm:$0xff]
      %v335 = vld [vmem:[%s169 + $0x490] sm:$0xff]
      %v336 = vld [vmem:[%s169 + $0x498] sm:$0xff]
      %v337 = vld [vmem:[%s169 + $0x4a0] sm:$0xff]
      %v338 = vld [vmem:[%s169 + $0x4a8] sm:$0xf]
      %v339 = vld [vmem:[%s169 + $0x4ac] sm:$0xff]
      %v340 = vld [vmem:[%s169 + $0x4b4] sm:$0xff]
      %v341 = vld [vmem:[%s169 + $0x4bc] sm:$0xff]
      %v342 = vld [vmem:[%s169 + $0x4c4] sm:$0xff]
      %v343 = vld [vmem:[%s169 + $0x4cc] sm:$0xff]
      %v344 = vld [vmem:[%s169 + $0x4d4] sm:$0xff]
      %v345 = vld [vmem:[%s169 + $0x4dc] sm:$0xf]
      %v346 = vld [vmem:[%s169 + $0x4e0] sm:$0xff]
      %v347 = vld [vmem:[%s169 + $0x4e8] sm:$0xff]
      %v348 = vld [vmem:[%s169 + $0x4f0] sm:$0xff]
      %v349 = vld [vmem:[%s169 + $0x4f8] sm:$0xff]
      %v350 = vld [vmem:[%s169 + $0x500] sm:$0xff]
      %v351 = vld [vmem:[%s169 + $0x508] sm:$0xff]
      %v352 = vld [vmem:[%s169 + $0x510] sm:$0xf]
      %v353 = vld [vmem:[%s169 + $0x514] sm:$0xff]
      %v354 = vld [vmem:[%s169 + $0x51c] sm:$0xff]
      %v355 = vld [vmem:[%s169 + $0x524] sm:$0xff]
      %v356 = vld [vmem:[%s169 + $0x52c] sm:$0xff]
      %v357 = vld [vmem:[%s169 + $0x534] sm:$0xff]
      %v358 = vld [vmem:[%s169 + $0x53c] sm:$0xff]
      %v359 = vld [vmem:[%s169 + $0x544] sm:$0xf]
      %v360 = vld [vmem:[%s169 + $0x548] sm:$0xff]
      %v361 = vld [vmem:[%s169 + $0x550] sm:$0xff]
      %v362 = vld [vmem:[%s169 + $0x558] sm:$0xff]
      %v363 = vld [vmem:[%s169 + $0x560] sm:$0xff]
      %v364 = vld [vmem:[%s169 + $0x568] sm:$0xff]
      %v365 = vld [vmem:[%s169 + $0x570] sm:$0xff]
      %v366 = vld [vmem:[%s169 + $0x578] sm:$0xf]
      %v367 = vld [vmem:[%s169 + $0x57c] sm:$0xff]
      %v368 = vld [vmem:[%s169 + $0x584] sm:$0xff]
      %v369 = vld [vmem:[%s169 + $0x58c] sm:$0xff]
      %v370 = vld [vmem:[%s169 + $0x594] sm:$0xff]
      %v371 = vld [vmem:[%s169 + $0x59c] sm:$0xff]
      %v372 = vld [vmem:[%s169 + $0x5a4] sm:$0xff]
      %v373 = vld [vmem:[%s169 + $0x5ac] sm:$0xf]
      %v374 = vld [vmem:[%s1] sm:$0xf]
      %v375 = vld [vmem:[%s1 + $0x4] sm:$0xf]
      %v376 = vld [vmem:[%s1 + $0x8] sm:$0xf]
      %v377 = vld [vmem:[%s1 + $0xc] sm:$0xf]
      %v378 = vld [vmem:[%s1 + $0x10] sm:$0xf]
      %v379 = vld [vmem:[%s1 + $0x14] sm:$0xf]
      %v380 = vld [vmem:[%s1 + $0x18] sm:$0xf]
      %v381 = vld [vmem:[%s1 + $0x1c] sm:$0xf]
      %v382 = vld [vmem:[%s1 + $0x20] sm:$0xf]
      %v383 = vld [vmem:[%s1 + $0x24] sm:$0xf]
      %v384 = vld [vmem:[%s1 + $0x28] sm:$0xf]
      %v385 = vld [vmem:[%s1 + $0x2c] sm:$0xf]
      %v386 = vld [vmem:[%s1 + $0x30] sm:$0xf]
      %v387 = vld [vmem:[%s1 + $0x34] sm:$0xf]
      %v388 = vld [vmem:[%s1 + $0x38] sm:$0xf]
      %v389 = vld [vmem:[%s1 + $0x3c] sm:$0xf]
      %v390 = vld [vmem:[%s1 + $0x40] sm:$0xf]
      %v391 = vld [vmem:[%s1 + $0x44] sm:$0xf]
      %v392 = vld [vmem:[%s1 + $0x48] sm:$0xf]
      %v393 = vld [vmem:[%s1 + $0x4c] sm:$0xf]
      %v394 = vld [vmem:[%s1 + $0x50] sm:$0xf]
      %v395 = vld [vmem:[%s1 + $0x54] sm:$0xf]
      %v396 = vld [vmem:[%s1 + $0x58] sm:$0xf]
      %v397 = vld [vmem:[%s1 + $0x5c] sm:$0xf]
      %v398 = vld [vmem:[%s1 + $0x60] sm:$0xf]
      %v399 = vld [vmem:[%s1 + $0x64] sm:$0xf]
      %v400 = vld [vmem:[%s1 + $0x68] sm:$0xf]
      %v401 = vld [vmem:[%s1 + $0x6c] sm:$0xf]
      %v402 = vld [vmem:[%s1 + $0x70] sm:$0xf]
      %v403 = vld [vmem:[%s1 + $0x74] sm:$0xf]
      %v404 = vld [vmem:[%s1 + $0x78] sm:$0xf]
      %v405 = vld [vmem:[%s1 + $0x7c] sm:$0xf]
      %v406 = vld [vmem:[%s1 + $0x80] sm:$0xf]
      %v407 = vld [vmem:[%s1 + $0x84] sm:$0xf]
      %v408 = vld [vmem:[%s1 + $0x88] sm:$0xf]
      %v409 = vld [vmem:[%s1 + $0x8c] sm:$0xf]
      %v410 = vld [vmem:[%s1 + $0x90] sm:$0xf]
      %v411 = vld [vmem:[%s1 + $0x94] sm:$0xf]
      %v412 = vld [vmem:[%s1 + $0x98] sm:$0xf]
      %v413 = vld [vmem:[%s1 + $0x9c] sm:$0xf]
      %v414 = vld [vmem:[%s1 + $0xa0] sm:$0xf]
      %v415 = vld [vmem:[%s1 + $0xa4] sm:$0xf]
      %v416 = vld [vmem:[%s1 + $0xa8] sm:$0xf]
      %v417 = vld [vmem:[%s1 + $0xac] sm:$0xf]
      %v418 = vld [vmem:[%s1 + $0xb0] sm:$0xf]
      %v419 = vld [vmem:[%s1 + $0xb4] sm:$0xf]
      %v420 = vld [vmem:[%s1 + $0xb8] sm:$0xf]
      %v421 = vld [vmem:[%s1 + $0xbc] sm:$0xf]
      %v422 = vld [vmem:[%s1 + $0xc0] sm:$0xf]
      %v423 = vld [vmem:[%s1 + $0xc4] sm:$0xf]
      %v424 = vld [vmem:[%s1 + $0xc8] sm:$0xf]
      %v425 = vld [vmem:[%s1 + $0xcc] sm:$0xf]
      %v426 = vld [vmem:[%s1 + $0xd0] sm:$0xf]
      %v427 = vld [vmem:[%s1 + $0xd4] sm:$0xf]
      %v428 = vld [vmem:[%s1 + $0xd8] sm:$0xf]
      %v429 = vld [vmem:[%s1 + $0xdc] sm:$0xf]
      %v430 = vld [vmem:[%s1 + $0xe0] sm:$0xf]
      %v431 = vld [vmem:[%s1 + $0xe4] sm:$0xf]
      %v432 = vld [vmem:[%s1 + $0xe8] sm:$0xf]
      %v433 = vld [vmem:[%s1 + $0xec] sm:$0xf]
      %v434 = vld [vmem:[%s1 + $0xf0] sm:$0xf]
      %v435 = vld [vmem:[%s1 + $0xf4] sm:$0xf]
      %v436 = vld [vmem:[%s1 + $0xf8] sm:$0xf]
      %v437 = vld [vmem:[%s1 + $0xfc] sm:$0xf]
      %v438 = vld [vmem:[%s1 + $0x100] sm:$0xf]
      %v439 = vld [vmem:[%s1 + $0x104] sm:$0xf]
      %v440 = vld [vmem:[%s1 + $0x108] sm:$0xf]
      %v441 = vld [vmem:[%s1 + $0x10c] sm:$0xf]
      %v442 = vld [vmem:[%s1 + $0x110] sm:$0xf]
      %v443 = vld [vmem:[%s1 + $0x114] sm:$0xf]
      %v444 = vld [vmem:[%s1 + $0x118] sm:$0xf]
      %v445 = vld [vmem:[%s1 + $0x11c] sm:$0xf]
      %v446 = vld [vmem:[%s1 + $0x120] sm:$0xf]
      %v447 = vld [vmem:[%s1 + $0x124] sm:$0xf]
      %v448 = vld [vmem:[%s1 + $0x128] sm:$0xf]
      %v449 = vld [vmem:[%s1 + $0x12c] sm:$0xf]
      %v450 = vld [vmem:[%s1 + $0x130] sm:$0xf]
      %v451 = vld [vmem:[%s1 + $0x134] sm:$0xf]
      %v452 = vld [vmem:[%s1 + $0x138] sm:$0xf]
      %v453 = vld [vmem:[%s1 + $0x13c] sm:$0xf]
      %v454 = vld [vmem:[%s1 + $0x140] sm:$0xf]
      %v455 = vld [vmem:[%s1 + $0x144] sm:$0xf]
      %v456 = vld [vmem:[%s1 + $0x148] sm:$0xf]
      %v457 = vld [vmem:[%s1 + $0x14c] sm:$0xf]
      %v458 = vld [vmem:[%s1 + $0x150] sm:$0xf]
      %v459 = vld [vmem:[%s1 + $0x154] sm:$0xf]
      %v460 = vld [vmem:[%s1 + $0x158] sm:$0xf]
      %v461 = vld [vmem:[%s1 + $0x15c] sm:$0xf]
      %v462 = vld [vmem:[%s1 + $0x160] sm:$0xf]
      %v463 = vld [vmem:[%s1 + $0x164] sm:$0xf]
      %v464 = vld [vmem:[%s1 + $0x168] sm:$0xf]
      %v465 = vld [vmem:[%s1 + $0x16c] sm:$0xf]
      %v466 = vld [vmem:[%s1 + $0x170] sm:$0xf]
      %v467 = vld [vmem:[%s1 + $0x174] sm:$0xf]
      %v468 = vld [vmem:[%s1 + $0x178] sm:$0xf]
      %v469 = vld [vmem:[%s1 + $0x17c] sm:$0xf]
      %v470 = vld [vmem:[%s1 + $0x180] sm:$0xf]
      %v471 = vld [vmem:[%s1 + $0x184] sm:$0xf]
      %v472 = vld [vmem:[%s1 + $0x188] sm:$0xf]
      %v473 = vld [vmem:[%s1 + $0x18c] sm:$0xf]
      %v474 = vld [vmem:[%s1 + $0x190] sm:$0xf]
      %v475 = vld [vmem:[%s1 + $0x194] sm:$0xf]
      %v476 = vld [vmem:[%s1 + $0x198] sm:$0xf]
      %v477 = vld [vmem:[%s1 + $0x19c] sm:$0xf]
      %v478 = vld [vmem:[%s1 + $0x1a0] sm:$0xf]
      %v479 = vld [vmem:[%s1 + $0x1a4] sm:$0xf]
      %v480 = vld [vmem:[%s1 + $0x1a8] sm:$0xf]
      %v481 = vld [vmem:[%s1 + $0x1ac] sm:$0xf]
      %v482 = vld [vmem:[%s1 + $0x1b0] sm:$0xf]
      %v483 = vld [vmem:[%s1 + $0x1b4] sm:$0xf]
      %v484 = vld [vmem:[%s1 + $0x1b8] sm:$0xf]
      %v485 = vld [vmem:[%s1 + $0x1bc] sm:$0xf]
      %v486 = vld [vmem:[%s1 + $0x1c0] sm:$0xf]
      %v487 = vld [vmem:[%s1 + $0x1c4] sm:$0xf]
      %v488 = vld [vmem:[%s1 + $0x1c8] sm:$0xf]
      %v489 = vld [vmem:[%s1 + $0x1cc] sm:$0xf]
      %v490 = vld [vmem:[%s1 + $0x1d0] sm:$0xf]
      %v491 = vld [vmem:[%s1 + $0x1d4] sm:$0xf]
      %v492 = vld [vmem:[%s1 + $0x1d8] sm:$0xf]
      %v493 = vld [vmem:[%s1 + $0x1dc] sm:$0xf]
      %v494 = vld [vmem:[%s1 + $0x1e0] sm:$0xf]
      %v495 = vld [vmem:[%s1 + $0x1e4] sm:$0xf]
      %v496 = vld [vmem:[%s1 + $0x1e8] sm:$0xf]
      %v497 = vld [vmem:[%s1 + $0x1ec] sm:$0xf]
      %v498 = vld [vmem:[%s1 + $0x1f0] sm:$0xf]
      %v499 = vld [vmem:[%s1 + $0x1f4] sm:$0xf]
      %v500 = vld [vmem:[%s1 + $0x1f8] sm:$0xf]
      %v501 = vld [vmem:[%s1 + $0x1fc] sm:$0xf]
      %v502 = vld [vmem:[%s1 + $0x200] sm:$0xf]
      %v503 = vld [vmem:[%s1 + $0x204] sm:$0xf]
      %v504 = vld [vmem:[%s1 + $0x208] sm:$0xf]
      %v505 = vld [vmem:[%s1 + $0x20c] sm:$0xf]
      %v506 = vld [vmem:[%s1 + $0x210] sm:$0xf]
      %v507 = vld [vmem:[%s1 + $0x214] sm:$0xf]
      %v508 = vld [vmem:[%s1 + $0x218] sm:$0xf]
      %v509 = vld [vmem:[%s1 + $0x21c] sm:$0xf]
      %v510 = vld [vmem:[%s1 + $0x220] sm:$0xf]
      %v511 = vld [vmem:[%s1 + $0x224] sm:$0xf]
      %v512 = vld [vmem:[%s1 + $0x228] sm:$0xf]
      %v513 = vld [vmem:[%s1 + $0x22c] sm:$0xf]
      %v514 = vld [vmem:[%s1 + $0x230] sm:$0xf]
      %v515 = vld [vmem:[%s1 + $0x234] sm:$0xf]
      %v516 = vld [vmem:[%s1 + $0x238] sm:$0xf]
      %v517 = vld [vmem:[%s1 + $0x23c] sm:$0xf]
      %v518 = vld [vmem:[%s1 + $0x240] sm:$0xf]
      %v519 = vld [vmem:[%s1 + $0x244] sm:$0xf]
      %v520 = vld [vmem:[%s1 + $0x248] sm:$0xf]
      %v521 = vld [vmem:[%s1 + $0x24c] sm:$0xf]
      %v522 = vld [vmem:[%s1 + $0x250] sm:$0xf]
      %v523 = vld [vmem:[%s1 + $0x254] sm:$0xf]
      %v524 = vld [vmem:[%s1 + $0x258] sm:$0xf]
      %v525 = vld [vmem:[%s1 + $0x25c] sm:$0xf]
      %v526 = vld [vmem:[%s1 + $0x260] sm:$0xf]
      %v527 = vld [vmem:[%s1 + $0x264] sm:$0xf]
      %v528 = vld [vmem:[%s1 + $0x268] sm:$0xf]
      %v529 = vld [vmem:[%s1 + $0x26c] sm:$0xf]
      %v530 = vld [vmem:[%s1 + $0x270] sm:$0xf]
      %v531 = vld [vmem:[%s1 + $0x274] sm:$0xf]
      %v532 = vld [vmem:[%s1 + $0x278] sm:$0xf]
      %v533 = vld [vmem:[%s1 + $0x27c] sm:$0xf]
      %v534 = vld [vmem:[%s1 + $0x280] sm:$0xf]
      %v535 = vld [vmem:[%s1 + $0x284] sm:$0xf]
      %v536 = vld [vmem:[%s1 + $0x288] sm:$0xf]
      %v537 = vld [vmem:[%s1 + $0x28c] sm:$0xf]
      %v538 = vld [vmem:[%s1 + $0x290] sm:$0xf]
      %v539 = vld [vmem:[%s1 + $0x294] sm:$0xf]
      %v540 = vld [vmem:[%s1 + $0x298] sm:$0xf]
      %v541 = vld [vmem:[%s1 + $0x29c] sm:$0xf]
      %v542 = vld [vmem:[%s1 + $0x2a0] sm:$0xf]
      %v543 = vld [vmem:[%s1 + $0x2a4] sm:$0xf]
      %v544 = vld [vmem:[%s1 + $0x2a8] sm:$0xf]
      %v545 = vld [vmem:[%s1 + $0x2ac] sm:$0xf]
      %v546 = vld [vmem:[%s1 + $0x2b0] sm:$0xf]
      %v547 = vld [vmem:[%s1 + $0x2b4] sm:$0xf]
      %v548 = vld [vmem:[%s1 + $0x2b8] sm:$0xf]
      %v549 = vld [vmem:[%s1 + $0x2bc] sm:$0xf]
      %v550 = vld [vmem:[%s1 + $0x2c0] sm:$0xf]
      %v551 = vld [vmem:[%s1 + $0x2c4] sm:$0xf]
      %v552 = vld [vmem:[%s1 + $0x2c8] sm:$0xf]
      %v553 = vld [vmem:[%s1 + $0x2cc] sm:$0xf]
      %v554 = vld [vmem:[%s1 + $0x2d0] sm:$0xf]
      %v555 = vld [vmem:[%s1 + $0x2d4] sm:$0xf]
      %v556 = vld [vmem:[%s1 + $0x2d8] sm:$0xf]
      %v557 = vld [vmem:[%s1 + $0x2dc] sm:$0xf]
      %v558 = vld [vmem:[%s1 + $0x2e0] sm:$0xf]
      %v559 = vld [vmem:[%s1 + $0x2e4] sm:$0xf]
      %v560 = vld [vmem:[%s1 + $0x2e8] sm:$0xf]
      %v561 = vld [vmem:[%s1 + $0x2ec] sm:$0xf]
      %v562 = vld [vmem:[%s1 + $0x2f0] sm:$0xf]
      %v563 = vld [vmem:[%s1 + $0x2f4] sm:$0xf]
      %v564 = vld [vmem:[%s1 + $0x2f8] sm:$0xf]
      %v565 = vld [vmem:[%s1 + $0x2fc] sm:$0xf]
      %v566 = vld [vmem:[%s1 + $0x300] sm:$0xf]
      %v567 = vld [vmem:[%s1 + $0x304] sm:$0xf]
      %v568 = vld [vmem:[%s1 + $0x308] sm:$0xf]
      %v569 = vld [vmem:[%s1 + $0x30c] sm:$0xf]
      %v570 = vld [vmem:[%s1 + $0x310] sm:$0xf]
      %v571 = vld [vmem:[%s1 + $0x314] sm:$0xf]
      %v572 = vld [vmem:[%s1 + $0x318] sm:$0xf]
      %v573 = vld [vmem:[%s1 + $0x31c] sm:$0xf]
      %v574 = vld [vmem:[%s2] sm:$0x1]
      %v576 = vlaneseq
      %v577 = vshrl.u32 %v576, 7
      %v578 = vsub.s32 0, %v577
      %v579 = vrot.slane %v574, %v578
      %v777 = vunpack.c.l.b16 %v178
      %v778 = vunpack.c.h.b16 %v178
      %v779 = vunpack.c.l.b16 %v179
      %v780 = vunpack.c.h.b16 %v179
      %v781 = vunpack.c.l.b16 %v180
      %v782 = vunpack.c.h.b16 %v180
      %v783 = vunpack.c.l.b16 %v181
      %v784 = vunpack.c.h.b16 %v181
      %v785 = vunpack.c.l.b16 %v182
      %v786 = vunpack.c.h.b16 %v182
      %v787 = vunpack.c.l.b16 %v183
      %v788 = vunpack.c.h.b16 %v183
      %v789 = vunpack.c.l.b16 %v184
      %v790 = vunpack.c.l.b16 %v185
      %v791 = vunpack.c.h.b16 %v185
      %v792 = vunpack.c.l.b16 %v186
      %v793 = vunpack.c.h.b16 %v186
      %v794 = vunpack.c.l.b16 %v187
      %v795 = vunpack.c.h.b16 %v187
      %v796 = vunpack.c.l.b16 %v188
      %v797 = vunpack.c.h.b16 %v188
      %v798 = vunpack.c.l.b16 %v189
      %v799 = vunpack.c.h.b16 %v189
      %v800 = vunpack.c.l.b16 %v190
      %v801 = vunpack.c.h.b16 %v190
      %v802 = vunpack.c.l.b16 %v191
      %v803 = vunpack.c.l.b16 %v192
      %v804 = vunpack.c.h.b16 %v192
      %v805 = vunpack.c.l.b16 %v193
      %v806 = vunpack.c.h.b16 %v193
      %v807 = vunpack.c.l.b16 %v194
      %v808 = vunpack.c.h.b16 %v194
      %v809 = vunpack.c.l.b16 %v195
      %v810 = vunpack.c.h.b16 %v195
      %v811 = vunpack.c.l.b16 %v196
      %v812 = vunpack.c.h.b16 %v196
      %v813 = vunpack.c.l.b16 %v197
      %v814 = vunpack.c.h.b16 %v197
      %v815 = vunpack.c.l.b16 %v198
      %v816 = vunpack.c.l.b16 %v199
      %v817 = vunpack.c.h.b16 %v199
      %v818 = vunpack.c.l.b16 %v200
      %v819 = vunpack.c.h.b16 %v200
      %v820 = vunpack.c.l.b16 %v201
      %v821 = vunpack.c.h.b16 %v201
      %v822 = vunpack.c.l.b16 %v202
      %v823 = vunpack.c.h.b16 %v202
      %v824 = vunpack.c.l.b16 %v203
      %v825 = vunpack.c.h.b16 %v203
      %v826 = vunpack.c.l.b16 %v204
      %v827 = vunpack.c.h.b16 %v204
      %v828 = vunpack.c.l.b16 %v205
      %v829 = vunpack.c.l.b16 %v206
      %v830 = vunpack.c.h.b16 %v206
      %v831 = vunpack.c.l.b16 %v207
      %v832 = vunpack.c.h.b16 %v207
      %v833 = vunpack.c.l.b16 %v208
      %v834 = vunpack.c.h.b16 %v208
      %v835 = vunpack.c.l.b16 %v209
      %v836 = vunpack.c.h.b16 %v209
      %v837 = vunpack.c.l.b16 %v210
      %v838 = vunpack.c.h.b16 %v210
      %v839 = vunpack.c.l.b16 %v211
      %v840 = vunpack.c.h.b16 %v211
      %v841 = vunpack.c.l.b16 %v212
      %v842 = vunpack.c.l.b16 %v213
      %v843 = vunpack.c.h.b16 %v213
      %v844 = vunpack.c.l.b16 %v214
      %v845 = vunpack.c.h.b16 %v214
      %v846 = vunpack.c.l.b16 %v215
      %v847 = vunpack.c.h.b16 %v215
      %v848 = vunpack.c.l.b16 %v216
      %v849 = vunpack.c.h.b16 %v216
      %v850 = vunpack.c.l.b16 %v217
      %v851 = vunpack.c.h.b16 %v217
      %v852 = vunpack.c.l.b16 %v218
      %v853 = vunpack.c.h.b16 %v218
      %v854 = vunpack.c.l.b16 %v219
      %v855 = vunpack.c.l.b16 %v220
      %v856 = vunpack.c.h.b16 %v220
      %v857 = vunpack.c.l.b16 %v221
      %v858 = vunpack.c.h.b16 %v221
      %v859 = vunpack.c.l.b16 %v222
      %v860 = vunpack.c.h.b16 %v222
      %v861 = vunpack.c.l.b16 %v223
      %v862 = vunpack.c.h.b16 %v223
      %v863 = vunpack.c.l.b16 %v224
      %v864 = vunpack.c.h.b16 %v224
      %v865 = vunpack.c.l.b16 %v225
      %v866 = vunpack.c.h.b16 %v225
      %v867 = vunpack.c.l.b16 %v226
      %v868 = vunpack.c.l.b16 %v227
      %v869 = vunpack.c.h.b16 %v227
      %v870 = vunpack.c.l.b16 %v228
      %v871 = vunpack.c.h.b16 %v228
      %v872 = vunpack.c.l.b16 %v229
      %v873 = vunpack.c.h.b16 %v229
      %v874 = vunpack.c.l.b16 %v230
      %v875 = vunpack.c.h.b16 %v230
      %v876 = vunpack.c.l.b16 %v231
      %v877 = vunpack.c.h.b16 %v231
      %v878 = vunpack.c.l.b16 %v232
      %v879 = vunpack.c.h.b16 %v232
      %v880 = vunpack.c.l.b16 %v233
      %v881 = vunpack.c.l.b16 %v234
      %v882 = vunpack.c.h.b16 %v234
      %v883 = vunpack.c.l.b16 %v235
      %v884 = vunpack.c.h.b16 %v235
      %v885 = vunpack.c.l.b16 %v236
      %v886 = vunpack.c.h.b16 %v236
      %v887 = vunpack.c.l.b16 %v237
      %v888 = vunpack.c.h.b16 %v237
      %v889 = vunpack.c.l.b16 %v238
      %v890 = vunpack.c.h.b16 %v238
      %v891 = vunpack.c.l.b16 %v239
      %v892 = vunpack.c.h.b16 %v239
      %v893 = vunpack.c.l.b16 %v240
      %v894 = vunpack.c.l.b16 %v241
      %v895 = vunpack.c.h.b16 %v241
      %v896 = vunpack.c.l.b16 %v242
      %v897 = vunpack.c.h.b16 %v242
      %v898 = vunpack.c.l.b16 %v243
      %v899 = vunpack.c.h.b16 %v243
      %v900 = vunpack.c.l.b16 %v244
      %v901 = vunpack.c.h.b16 %v244
      %v902 = vunpack.c.l.b16 %v245
      %v903 = vunpack.c.h.b16 %v245
      %v904 = vunpack.c.l.b16 %v246
      %v905 = vunpack.c.h.b16 %v246
      %v906 = vunpack.c.l.b16 %v247
      %v907 = vunpack.c.l.b16 %v248
      %v908 = vunpack.c.h.b16 %v248
      %v909 = vunpack.c.l.b16 %v249
      %v910 = vunpack.c.h.b16 %v249
      %v911 = vunpack.c.l.b16 %v250
      %v912 = vunpack.c.h.b16 %v250
      %v913 = vunpack.c.l.b16 %v251
      %v914 = vunpack.c.h.b16 %v251
      %v915 = vunpack.c.l.b16 %v252
      %v916 = vunpack.c.h.b16 %v252
      %v917 = vunpack.c.l.b16 %v253
      %v918 = vunpack.c.h.b16 %v253
      %v919 = vunpack.c.l.b16 %v254
      %v920 = vunpack.c.l.b16 %v255
      %v921 = vunpack.c.h.b16 %v255
      %v922 = vunpack.c.l.b16 %v256
      %v923 = vunpack.c.h.b16 %v256
      %v924 = vunpack.c.l.b16 %v257
      %v925 = vunpack.c.h.b16 %v257
      %v926 = vunpack.c.l.b16 %v258
      %v927 = vunpack.c.h.b16 %v258
      %v928 = vunpack.c.l.b16 %v259
      %v929 = vunpack.c.h.b16 %v259
      %v930 = vunpack.c.l.b16 %v260
      %v931 = vunpack.c.h.b16 %v260
      %v932 = vunpack.c.l.b16 %v261
      %v933 = vunpack.c.l.b16 %v262
      %v934 = vunpack.c.h.b16 %v262
      %v935 = vunpack.c.l.b16 %v263
      %v936 = vunpack.c.h.b16 %v263
      %v937 = vunpack.c.l.b16 %v264
      %v938 = vunpack.c.h.b16 %v264
      %v939 = vunpack.c.l.b16 %v265
      %v940 = vunpack.c.h.b16 %v265
      %v941 = vunpack.c.l.b16 %v266
      %v942 = vunpack.c.h.b16 %v266
      %v943 = vunpack.c.l.b16 %v267
      %v944 = vunpack.c.h.b16 %v267
      %v945 = vunpack.c.l.b16 %v268
      %v946 = vunpack.c.l.b16 %v269
      %v947 = vunpack.c.h.b16 %v269
      %v948 = vunpack.c.l.b16 %v270
      %v949 = vunpack.c.h.b16 %v270
      %v950 = vunpack.c.l.b16 %v271
      %v951 = vunpack.c.h.b16 %v271
      %v952 = vunpack.c.l.b16 %v272
      %v953 = vunpack.c.h.b16 %v272
      %v954 = vunpack.c.l.b16 %v273
      %v955 = vunpack.c.h.b16 %v273
      %v956 = vunpack.c.l.b16 %v274
      %v957 = vunpack.c.h.b16 %v274
      %v958 = vunpack.c.l.b16 %v275
      %v959 = vunpack.c.l.b16 %v276
      %v960 = vunpack.c.h.b16 %v276
      %v961 = vunpack.c.l.b16 %v277
      %v962 = vunpack.c.h.b16 %v277
      %v963 = vunpack.c.l.b16 %v278
      %v964 = vunpack.c.h.b16 %v278
      %v965 = vunpack.c.l.b16 %v279
      %v966 = vunpack.c.h.b16 %v279
      %v967 = vunpack.c.l.b16 %v280
      %v968 = vunpack.c.h.b16 %v280
      %v969 = vunpack.c.l.b16 %v281
      %v970 = vunpack.c.h.b16 %v281
      %v971 = vunpack.c.l.b16 %v282
      %v972 = vunpack.c.l.b16 %v283
      %v973 = vunpack.c.h.b16 %v283
      %v974 = vunpack.c.l.b16 %v284
      %v975 = vunpack.c.h.b16 %v284
      %v976 = vunpack.c.l.b16 %v285
      %v977 = vunpack.c.h.b16 %v285
      %v978 = vunpack.c.l.b16 %v286
      %v979 = vunpack.c.h.b16 %v286
      %v980 = vunpack.c.l.b16 %v287
      %v981 = vunpack.c.h.b16 %v287
      %v982 = vunpack.c.l.b16 %v288
      %v983 = vunpack.c.h.b16 %v288
      %v984 = vunpack.c.l.b16 %v289
      %v985 = vunpack.c.l.b16 %v290
      %v986 = vunpack.c.h.b16 %v290
      %v987 = vunpack.c.l.b16 %v291
      %v988 = vunpack.c.h.b16 %v291
      %v989 = vunpack.c.l.b16 %v292
      %v990 = vunpack.c.h.b16 %v292
      %v991 = vunpack.c.l.b16 %v293
      %v992 = vunpack.c.h.b16 %v293
      %v993 = vunpack.c.l.b16 %v294
      %v994 = vunpack.c.h.b16 %v294
      %v995 = vunpack.c.l.b16 %v295
      %v996 = vunpack.c.h.b16 %v295
      %v997 = vunpack.c.l.b16 %v296
      %v998 = vunpack.c.l.b16 %v297
      %v999 = vunpack.c.h.b16 %v297
      %v1000 = vunpack.c.l.b16 %v298
      %v1001 = vunpack.c.h.b16 %v298
      %v1002 = vunpack.c.l.b16 %v299
      %v1003 = vunpack.c.h.b16 %v299
      %v1004 = vunpack.c.l.b16 %v300
      %v1005 = vunpack.c.h.b16 %v300
      %v1006 = vunpack.c.l.b16 %v301
      %v1007 = vunpack.c.h.b16 %v301
      %v1008 = vunpack.c.l.b16 %v302
      %v1009 = vunpack.c.h.b16 %v302
      %v1010 = vunpack.c.l.b16 %v303
      %v1011 = vunpack.c.l.b16 %v304
      %v1012 = vunpack.c.h.b16 %v304
      %v1013 = vunpack.c.l.b16 %v305
      %v1014 = vunpack.c.h.b16 %v305
      %v1015 = vunpack.c.l.b16 %v306
      %v1016 = vunpack.c.h.b16 %v306
      %v1017 = vunpack.c.l.b16 %v307
      %v1018 = vunpack.c.h.b16 %v307
      %v1019 = vunpack.c.l.b16 %v308
      %v1020 = vunpack.c.h.b16 %v308
      %v1021 = vunpack.c.l.b16 %v309
      %v1022 = vunpack.c.h.b16 %v309
      %v1023 = vunpack.c.l.b16 %v310
      %v1024 = vunpack.c.l.b16 %v311
      %v1025 = vunpack.c.h.b16 %v311
      %v1026 = vunpack.c.l.b16 %v312
      %v1027 = vunpack.c.h.b16 %v312
      %v1028 = vunpack.c.l.b16 %v313
      %v1029 = vunpack.c.h.b16 %v313
      %v1030 = vunpack.c.l.b16 %v314
      %v1031 = vunpack.c.h.b16 %v314
      %v1032 = vunpack.c.l.b16 %v315
      %v1033 = vunpack.c.h.b16 %v315
      %v1034 = vunpack.c.l.b16 %v316
      %v1035 = vunpack.c.h.b16 %v316
      %v1036 = vunpack.c.l.b16 %v317
      %v1037 = vunpack.c.l.b16 %v318
      %v1038 = vunpack.c.h.b16 %v318
      %v1039 = vunpack.c.l.b16 %v319
      %v1040 = vunpack.c.h.b16 %v319
      %v1041 = vunpack.c.l.b16 %v320
      %v1042 = vunpack.c.h.b16 %v320
      %v1043 = vunpack.c.l.b16 %v321
      %v1044 = vunpack.c.h.b16 %v321
      %v1045 = vunpack.c.l.b16 %v322
      %v1046 = vunpack.c.h.b16 %v322
      %v1047 = vunpack.c.l.b16 %v323
      %v1048 = vunpack.c.h.b16 %v323
      %v1049 = vunpack.c.l.b16 %v324
      %v1050 = vunpack.c.l.b16 %v325
      %v1051 = vunpack.c.h.b16 %v325
      %v1052 = vunpack.c.l.b16 %v326
      %v1053 = vunpack.c.h.b16 %v326
      %v1054 = vunpack.c.l.b16 %v327
      %v1055 = vunpack.c.h.b16 %v327
      %v1056 = vunpack.c.l.b16 %v328
      %v1057 = vunpack.c.h.b16 %v328
      %v1058 = vunpack.c.l.b16 %v329
      %v1059 = vunpack.c.h.b16 %v329
      %v1060 = vunpack.c.l.b16 %v330
      %v1061 = vunpack.c.h.b16 %v330
      %v1062 = vunpack.c.l.b16 %v331
      %v1063 = vunpack.c.l.b16 %v332
      %v1064 = vunpack.c.h.b16 %v332
      %v1065 = vunpack.c.l.b16 %v333
      %v1066 = vunpack.c.h.b16 %v333
      %v1067 = vunpack.c.l.b16 %v334
      %v1068 = vunpack.c.h.b16 %v334
      %v1069 = vunpack.c.l.b16 %v335
      %v1070 = vunpack.c.h.b16 %v335
      %v1071 = vunpack.c.l.b16 %v336
      %v1072 = vunpack.c.h.b16 %v336
      %v1073 = vunpack.c.l.b16 %v337
      %v1074 = vunpack.c.h.b16 %v337
      %v1075 = vunpack.c.l.b16 %v338
      %v1076 = vunpack.c.l.b16 %v339
      %v1077 = vunpack.c.h.b16 %v339
      %v1078 = vunpack.c.l.b16 %v340
      %v1079 = vunpack.c.h.b16 %v340
      %v1080 = vunpack.c.l.b16 %v341
      %v1081 = vunpack.c.h.b16 %v341
      %v1082 = vunpack.c.l.b16 %v342
      %v1083 = vunpack.c.h.b16 %v342
      %v1084 = vunpack.c.l.b16 %v343
      %v1085 = vunpack.c.h.b16 %v343
      %v1086 = vunpack.c.l.b16 %v344
      %v1087 = vunpack.c.h.b16 %v344
      %v1088 = vunpack.c.l.b16 %v345
      %v1089 = vunpack.c.l.b16 %v346
      %v1090 = vunpack.c.h.b16 %v346
      %v1091 = vunpack.c.l.b16 %v347
      %v1092 = vunpack.c.h.b16 %v347
      %v1093 = vunpack.c.l.b16 %v348
      %v1094 = vunpack.c.h.b16 %v348
      %v1095 = vunpack.c.l.b16 %v349
      %v1096 = vunpack.c.h.b16 %v349
      %v1097 = vunpack.c.l.b16 %v350
      %v1098 = vunpack.c.h.b16 %v350
      %v1099 = vunpack.c.l.b16 %v351
      %v1100 = vunpack.c.h.b16 %v351
      %v1101 = vunpack.c.l.b16 %v352
      %v1102 = vunpack.c.l.b16 %v353
      %v1103 = vunpack.c.h.b16 %v353
      %v1104 = vunpack.c.l.b16 %v354
      %v1105 = vunpack.c.h.b16 %v354
      %v1106 = vunpack.c.l.b16 %v355
      %v1107 = vunpack.c.h.b16 %v355
      %v1108 = vunpack.c.l.b16 %v356
      %v1109 = vunpack.c.h.b16 %v356
      %v1110 = vunpack.c.l.b16 %v357
      %v1111 = vunpack.c.h.b16 %v357
      %v1112 = vunpack.c.l.b16 %v358
      %v1113 = vunpack.c.h.b16 %v358
      %v1114 = vunpack.c.l.b16 %v359
      %v1115 = vunpack.c.l.b16 %v360
      %v1116 = vunpack.c.h.b16 %v360
      %v1117 = vunpack.c.l.b16 %v361
      %v1118 = vunpack.c.h.b16 %v361
      %v1119 = vunpack.c.l.b16 %v362
      %v1120 = vunpack.c.h.b16 %v362
      %v1121 = vunpack.c.l.b16 %v363
      %v1122 = vunpack.c.h.b16 %v363
      %v1123 = vunpack.c.l.b16 %v364
      %v1124 = vunpack.c.h.b16 %v364
      %v1125 = vunpack.c.l.b16 %v365
      %v1126 = vunpack.c.h.b16 %v365
      %v1127 = vunpack.c.l.b16 %v366
      %v1128 = vunpack.c.l.b16 %v367
      %v1129 = vunpack.c.h.b16 %v367
      %v1130 = vunpack.c.l.b16 %v368
      %v1131 = vunpack.c.h.b16 %v368
      %v1132 = vunpack.c.l.b16 %v369
      %v1133 = vunpack.c.h.b16 %v369
      %v1134 = vunpack.c.l.b16 %v370
      %v1135 = vunpack.c.h.b16 %v370
      %v1136 = vunpack.c.l.b16 %v371
      %v1137 = vunpack.c.h.b16 %v371
      %v1138 = vunpack.c.l.b16 %v372
      %v1139 = vunpack.c.h.b16 %v372
      %v1140 = vunpack.c.l.b16 %v373
      %v1141 = vpack.c.b16 %v790, %v777
      %v1142 = vpack.c.b16 %v791, %v778
      %v1143 = vpack.c.b16 %v792, %v779
      %v1144 = vpack.c.b16 %v793, %v780
      %v1145 = vpack.c.b16 %v794, %v781
      %v1146 = vpack.c.b16 %v795, %v782
      %v1147 = vpack.c.b16 %v796, %v783
      %v1148 = vpack.c.b16 %v797, %v784
      %v1149 = vpack.c.b16 %v798, %v785
      %v1150 = vpack.c.b16 %v799, %v786
      %v1151 = vpack.c.b16 %v800, %v787
      %v1152 = vpack.c.b16 %v801, %v788
      %v1153 = vpack.c.b16 %v802, %v789
      %v1154 = vpack.c.b16 %v816, %v803
      %v1155 = vpack.c.b16 %v817, %v804
      %v1156 = vpack.c.b16 %v818, %v805
      %v1157 = vpack.c.b16 %v819, %v806
      %v1158 = vpack.c.b16 %v820, %v807
      %v1159 = vpack.c.b16 %v821, %v808
      %v1160 = vpack.c.b16 %v822, %v809
      %v1161 = vpack.c.b16 %v823, %v810
      %v1162 = vpack.c.b16 %v824, %v811
      %v1163 = vpack.c.b16 %v825, %v812
      %v1164 = vpack.c.b16 %v826, %v813
      %v1165 = vpack.c.b16 %v827, %v814
      %v1166 = vpack.c.b16 %v828, %v815
      %v1167 = vpack.c.b16 %v842, %v829
      %v1168 = vpack.c.b16 %v843, %v830
      %v1169 = vpack.c.b16 %v844, %v831
      %v1170 = vpack.c.b16 %v845, %v832
      %v1171 = vpack.c.b16 %v846, %v833
      %v1172 = vpack.c.b16 %v847, %v834
      %v1173 = vpack.c.b16 %v848, %v835
      %v1174 = vpack.c.b16 %v849, %v836
      %v1175 = vpack.c.b16 %v850, %v837
      %v1176 = vpack.c.b16 %v851, %v838
      %v1177 = vpack.c.b16 %v852, %v839
      %v1178 = vpack.c.b16 %v853, %v840
      %v1179 = vpack.c.b16 %v854, %v841
      %v1180 = vpack.c.b16 %v868, %v855
      %v1181 = vpack.c.b16 %v869, %v856
      %v1182 = vpack.c.b16 %v870, %v857
      %v1183 = vpack.c.b16 %v871, %v858
      %v1184 = vpack.c.b16 %v872, %v859
      %v1185 = vpack.c.b16 %v873, %v860
      %v1186 = vpack.c.b16 %v874, %v861
      %v1187 = vpack.c.b16 %v875, %v862
      %v1188 = vpack.c.b16 %v876, %v863
      %v1189 = vpack.c.b16 %v877, %v864
      %v1190 = vpack.c.b16 %v878, %v865
      %v1191 = vpack.c.b16 %v879, %v866
      %v1192 = vpack.c.b16 %v880, %v867
      %v1193 = vpack.c.b16 %v894, %v881
      %v1194 = vpack.c.b16 %v895, %v882
      %v1195 = vpack.c.b16 %v896, %v883
      %v1196 = vpack.c.b16 %v897, %v884
      %v1197 = vpack.c.b16 %v898, %v885
      %v1198 = vpack.c.b16 %v899, %v886
      %v1199 = vpack.c.b16 %v900, %v887
      %v1200 = vpack.c.b16 %v901, %v888
      %v1201 = vpack.c.b16 %v902, %v889
      %v1202 = vpack.c.b16 %v903, %v890
      %v1203 = vpack.c.b16 %v904, %v891
      %v1204 = vpack.c.b16 %v905, %v892
      %v1205 = vpack.c.b16 %v906, %v893
      %v1206 = vpack.c.b16 %v920, %v907
      %v1207 = vpack.c.b16 %v921, %v908
      %v1208 = vpack.c.b16 %v922, %v909
      %v1209 = vpack.c.b16 %v923, %v910
      %v1210 = vpack.c.b16 %v924, %v911
      %v1211 = vpack.c.b16 %v925, %v912
      %v1212 = vpack.c.b16 %v926, %v913
      %v1213 = vpack.c.b16 %v927, %v914
      %v1214 = vpack.c.b16 %v928, %v915
      %v1215 = vpack.c.b16 %v929, %v916
      %v1216 = vpack.c.b16 %v930, %v917
      %v1217 = vpack.c.b16 %v931, %v918
      %v1218 = vpack.c.b16 %v932, %v919
      %v1219 = vpack.c.b16 %v946, %v933
      %v1220 = vpack.c.b16 %v947, %v934
      %v1221 = vpack.c.b16 %v948, %v935
      %v1222 = vpack.c.b16 %v949, %v936
      %v1223 = vpack.c.b16 %v950, %v937
      %v1224 = vpack.c.b16 %v951, %v938
      %v1225 = vpack.c.b16 %v952, %v939
      %v1226 = vpack.c.b16 %v953, %v940
      %v1227 = vpack.c.b16 %v954, %v941
      %v1228 = vpack.c.b16 %v955, %v942
      %v1229 = vpack.c.b16 %v956, %v943
      %v1230 = vpack.c.b16 %v957, %v944
      %v1231 = vpack.c.b16 %v958, %v945
      %v1232 = vpack.c.b16 %v972, %v959
      %v1233 = vpack.c.b16 %v973, %v960
      %v1234 = vpack.c.b16 %v974, %v961
      %v1235 = vpack.c.b16 %v975, %v962
      %v1236 = vpack.c.b16 %v976, %v963
      %v1237 = vpack.c.b16 %v977, %v964
      %v1238 = vpack.c.b16 %v978, %v965
      %v1239 = vpack.c.b16 %v979, %v966
      %v1240 = vpack.c.b16 %v980, %v967
      %v1241 = vpack.c.b16 %v981, %v968
      %v1242 = vpack.c.b16 %v982, %v969
      %v1243 = vpack.c.b16 %v983, %v970
      %v1244 = vpack.c.b16 %v984, %v971
      %v1245 = vpack.c.b16 %v998, %v985
      %v1246 = vpack.c.b16 %v999, %v986
      %v1247 = vpack.c.b16 %v1000, %v987
      %v1248 = vpack.c.b16 %v1001, %v988
      %v1249 = vpack.c.b16 %v1002, %v989
      %v1250 = vpack.c.b16 %v1003, %v990
      %v1251 = vpack.c.b16 %v1004, %v991
      %v1252 = vpack.c.b16 %v1005, %v992
      %v1253 = vpack.c.b16 %v1006, %v993
      %v1254 = vpack.c.b16 %v1007, %v994
      %v1255 = vpack.c.b16 %v1008, %v995
      %v1256 = vpack.c.b16 %v1009, %v996
      %v1257 = vpack.c.b16 %v1010, %v997
      %v1258 = vpack.c.b16 %v1024, %v1011
      %v1259 = vpack.c.b16 %v1025, %v1012
      %v1260 = vpack.c.b16 %v1026, %v1013
      %v1261 = vpack.c.b16 %v1027, %v1014
      %v1262 = vpack.c.b16 %v1028, %v1015
      %v1263 = vpack.c.b16 %v1029, %v1016
      %v1264 = vpack.c.b16 %v1030, %v1017
      %v1265 = vpack.c.b16 %v1031, %v1018
      %v1266 = vpack.c.b16 %v1032, %v1019
      %v1267 = vpack.c.b16 %v1033, %v1020
      %v1268 = vpack.c.b16 %v1034, %v1021
      %v1269 = vpack.c.b16 %v1035, %v1022
      %v1270 = vpack.c.b16 %v1036, %v1023
      %v1271 = vpack.c.b16 %v1050, %v1037
      %v1272 = vpack.c.b16 %v1051, %v1038
      %v1273 = vpack.c.b16 %v1052, %v1039
      %v1274 = vpack.c.b16 %v1053, %v1040
      %v1275 = vpack.c.b16 %v1054, %v1041
      %v1276 = vpack.c.b16 %v1055, %v1042
      %v1277 = vpack.c.b16 %v1056, %v1043
      %v1278 = vpack.c.b16 %v1057, %v1044
      %v1279 = vpack.c.b16 %v1058, %v1045
      %v1280 = vpack.c.b16 %v1059, %v1046
      %v1281 = vpack.c.b16 %v1060, %v1047
      %v1282 = vpack.c.b16 %v1061, %v1048
      %v1283 = vpack.c.b16 %v1062, %v1049
      %v1284 = vpack.c.b16 %v1076, %v1063
      %v1285 = vpack.c.b16 %v1077, %v1064
      %v1286 = vpack.c.b16 %v1078, %v1065
      %v1287 = vpack.c.b16 %v1079, %v1066
      %v1288 = vpack.c.b16 %v1080, %v1067
      %v1289 = vpack.c.b16 %v1081, %v1068
      %v1290 = vpack.c.b16 %v1082, %v1069
      %v1291 = vpack.c.b16 %v1083, %v1070
      %v1292 = vpack.c.b16 %v1084, %v1071
      %v1293 = vpack.c.b16 %v1085, %v1072
      %v1294 = vpack.c.b16 %v1086, %v1073
      %v1295 = vpack.c.b16 %v1087, %v1074
      %v1296 = vpack.c.b16 %v1088, %v1075
      %v1297 = vpack.c.b16 %v1102, %v1089
      %v1298 = vpack.c.b16 %v1103, %v1090
      %v1299 = vpack.c.b16 %v1104, %v1091
      %v1300 = vpack.c.b16 %v1105, %v1092
      %v1301 = vpack.c.b16 %v1106, %v1093
      %v1302 = vpack.c.b16 %v1107, %v1094
      %v1303 = vpack.c.b16 %v1108, %v1095
      %v1304 = vpack.c.b16 %v1109, %v1096
      %v1305 = vpack.c.b16 %v1110, %v1097
      %v1306 = vpack.c.b16 %v1111, %v1098
      %v1307 = vpack.c.b16 %v1112, %v1099
      %v1308 = vpack.c.b16 %v1113, %v1100
      %v1309 = vpack.c.b16 %v1114, %v1101
      %v1310 = vpack.c.b16 %v1128, %v1115
      %v1311 = vpack.c.b16 %v1129, %v1116
      %v1312 = vpack.c.b16 %v1130, %v1117
      %v1313 = vpack.c.b16 %v1131, %v1118
      %v1314 = vpack.c.b16 %v1132, %v1119
      %v1315 = vpack.c.b16 %v1133, %v1120
      %v1316 = vpack.c.b16 %v1134, %v1121
      %v1317 = vpack.c.b16 %v1135, %v1122
      %v1318 = vpack.c.b16 %v1136, %v1123
      %v1319 = vpack.c.b16 %v1137, %v1124
      %v1320 = vpack.c.b16 %v1138, %v1125
      %v1321 = vpack.c.b16 %v1139, %v1126
      %v1322 = vpack.c.b16 %v1140, %v1127
      %v1691 = vunpack.c.l.b16 %v374
      %v1692 = vunpack.c.l.b16 %v375
      %v1693 = vunpack.c.l.b16 %v376
      %v1694 = vunpack.c.l.b16 %v377
      %v1695 = vunpack.c.l.b16 %v378
      %v1696 = vunpack.c.l.b16 %v379
      %v1697 = vunpack.c.l.b16 %v380
      %v1698 = vunpack.c.l.b16 %v381
      %v1699 = vunpack.c.l.b16 %v382
      %v1700 = vunpack.c.l.b16 %v383
      %v1701 = vunpack.c.l.b16 %v384
      %v1702 = vunpack.c.l.b16 %v385
      %v1703 = vunpack.c.l.b16 %v386
      %v1704 = vunpack.c.l.b16 %v387
      %v1705 = vunpack.c.l.b16 %v388
      %v1706 = vunpack.c.l.b16 %v389
      %v1707 = vunpack.c.l.b16 %v390
      %v1708 = vunpack.c.l.b16 %v391
      %v1709 = vunpack.c.l.b16 %v392
      %v1710 = vunpack.c.l.b16 %v393
      %v1711 = vunpack.c.l.b16 %v394
      %v1712 = vunpack.c.l.b16 %v395
      %v1713 = vunpack.c.l.b16 %v396
      %v1714 = vunpack.c.l.b16 %v397
      %v1715 = vunpack.c.l.b16 %v398
      %v1716 = vunpack.c.l.b16 %v399
      %v1717 = vunpack.c.l.b16 %v400
      %v1718 = vunpack.c.l.b16 %v401
      %v1719 = vunpack.c.l.b16 %v402
      %v1720 = vunpack.c.l.b16 %v403
      %v1721 = vunpack.c.l.b16 %v404
      %v1722 = vunpack.c.l.b16 %v405
      %v1723 = vunpack.c.l.b16 %v406
      %v1724 = vunpack.c.l.b16 %v407
      %v1725 = vunpack.c.l.b16 %v408
      %v1726 = vunpack.c.l.b16 %v409
      %v1727 = vunpack.c.l.b16 %v410
      %v1728 = vunpack.c.l.b16 %v411
      %v1729 = vunpack.c.l.b16 %v412
      %v1730 = vunpack.c.l.b16 %v413
      %v1731 = vunpack.c.l.b16 %v414
      %v1732 = vunpack.c.l.b16 %v415
      %v1733 = vunpack.c.l.b16 %v416
      %v1734 = vunpack.c.l.b16 %v417
      %v1735 = vunpack.c.l.b16 %v418
      %v1736 = vunpack.c.l.b16 %v419
      %v1737 = vunpack.c.l.b16 %v420
      %v1738 = vunpack.c.l.b16 %v421
      %v1739 = vunpack.c.l.b16 %v422
      %v1740 = vunpack.c.l.b16 %v423
      %v1741 = vunpack.c.l.b16 %v424
      %v1742 = vunpack.c.l.b16 %v425
      %v1743 = vunpack.c.l.b16 %v426
      %v1744 = vunpack.c.l.b16 %v427
      %v1745 = vunpack.c.l.b16 %v428
      %v1746 = vunpack.c.l.b16 %v429
      %v1747 = vunpack.c.l.b16 %v430
      %v1748 = vunpack.c.l.b16 %v431
      %v1749 = vunpack.c.l.b16 %v432
      %v1750 = vunpack.c.l.b16 %v433
      %v1751 = vunpack.c.l.b16 %v434
      %v1752 = vunpack.c.l.b16 %v435
      %v1753 = vunpack.c.l.b16 %v436
      %v1754 = vunpack.c.l.b16 %v437
      %v1755 = vunpack.c.l.b16 %v438
      %v1756 = vunpack.c.l.b16 %v439
      %v1757 = vunpack.c.l.b16 %v440
      %v1758 = vunpack.c.l.b16 %v441
      %v1759 = vunpack.c.l.b16 %v442
      %v1760 = vunpack.c.l.b16 %v443
      %v1761 = vunpack.c.l.b16 %v444
      %v1762 = vunpack.c.l.b16 %v445
      %v1763 = vunpack.c.l.b16 %v446
      %v1764 = vunpack.c.l.b16 %v447
      %v1765 = vunpack.c.l.b16 %v448
      %v1766 = vunpack.c.l.b16 %v449
      %v1767 = vunpack.c.l.b16 %v450
      %v1768 = vunpack.c.l.b16 %v451
      %v1769 = vunpack.c.l.b16 %v452
      %v1770 = vunpack.c.l.b16 %v453
      %v1771 = vunpack.c.l.b16 %v454
      %v1772 = vunpack.c.l.b16 %v455
      %v1773 = vunpack.c.l.b16 %v456
      %v1774 = vunpack.c.l.b16 %v457
      %v1775 = vunpack.c.l.b16 %v458
      %v1776 = vunpack.c.l.b16 %v459
      %v1777 = vunpack.c.l.b16 %v460
      %v1778 = vunpack.c.l.b16 %v461
      %v1779 = vunpack.c.l.b16 %v462
      %v1780 = vunpack.c.l.b16 %v463
      %v1781 = vunpack.c.l.b16 %v464
      %v1782 = vunpack.c.l.b16 %v465
      %v1783 = vunpack.c.l.b16 %v466
      %v1784 = vunpack.c.l.b16 %v467
      %v1785 = vunpack.c.l.b16 %v468
      %v1786 = vunpack.c.l.b16 %v469
      %v1787 = vunpack.c.l.b16 %v470
      %v1788 = vunpack.c.l.b16 %v471
      %v1789 = vunpack.c.l.b16 %v472
      %v1790 = vunpack.c.l.b16 %v473
      %v1791 = vunpack.c.l.b16 %v474
      %v1792 = vunpack.c.l.b16 %v475
      %v1793 = vunpack.c.l.b16 %v476
      %v1794 = vunpack.c.l.b16 %v477
      %v1795 = vunpack.c.l.b16 %v478
      %v1796 = vunpack.c.l.b16 %v479
      %v1797 = vunpack.c.l.b16 %v480
      %v1798 = vunpack.c.l.b16 %v481
      %v1799 = vunpack.c.l.b16 %v482
      %v1800 = vunpack.c.l.b16 %v483
      %v1801 = vunpack.c.l.b16 %v484
      %v1802 = vunpack.c.l.b16 %v485
      %v1803 = vunpack.c.l.b16 %v486
      %v1804 = vunpack.c.l.b16 %v487
      %v1805 = vunpack.c.l.b16 %v488
      %v1806 = vunpack.c.l.b16 %v489
      %v1807 = vunpack.c.l.b16 %v490
      %v1808 = vunpack.c.l.b16 %v491
      %v1809 = vunpack.c.l.b16 %v492
      %v1810 = vunpack.c.l.b16 %v493
      %v1811 = vunpack.c.l.b16 %v494
      %v1812 = vunpack.c.l.b16 %v495
      %v1813 = vunpack.c.l.b16 %v496
      %v1814 = vunpack.c.l.b16 %v497
      %v1815 = vunpack.c.l.b16 %v498
      %v1816 = vunpack.c.l.b16 %v499
      %v1817 = vunpack.c.l.b16 %v500
      %v1818 = vunpack.c.l.b16 %v501
      %v1819 = vunpack.c.l.b16 %v502
      %v1820 = vunpack.c.l.b16 %v503
      %v1821 = vunpack.c.l.b16 %v504
      %v1822 = vunpack.c.l.b16 %v505
      %v1823 = vunpack.c.l.b16 %v506
      %v1824 = vunpack.c.l.b16 %v507
      %v1825 = vunpack.c.l.b16 %v508
      %v1826 = vunpack.c.l.b16 %v509
      %v1827 = vunpack.c.l.b16 %v510
      %v1828 = vunpack.c.l.b16 %v511
      %v1829 = vunpack.c.l.b16 %v512
      %v1830 = vunpack.c.l.b16 %v513
      %v1831 = vunpack.c.l.b16 %v514
      %v1832 = vunpack.c.l.b16 %v515
      %v1833 = vunpack.c.l.b16 %v516
      %v1834 = vunpack.c.l.b16 %v517
      %v1835 = vunpack.c.l.b16 %v518
      %v1836 = vunpack.c.l.b16 %v519
      %v1837 = vunpack.c.l.b16 %v520
      %v1838 = vunpack.c.l.b16 %v521
      %v1839 = vunpack.c.l.b16 %v522
      %v1840 = vunpack.c.l.b16 %v523
      %v1841 = vunpack.c.l.b16 %v524
      %v1842 = vunpack.c.l.b16 %v525
      %v1843 = vunpack.c.l.b16 %v526
      %v1844 = vunpack.c.l.b16 %v527
      %v1845 = vunpack.c.l.b16 %v528
      %v1846 = vunpack.c.l.b16 %v529
      %v1847 = vunpack.c.l.b16 %v530
      %v1848 = vunpack.c.l.b16 %v531
      %v1849 = vunpack.c.l.b16 %v532
      %v1850 = vunpack.c.l.b16 %v533
      %v1851 = vunpack.c.l.b16 %v534
      %v1852 = vunpack.c.l.b16 %v535
      %v1853 = vunpack.c.l.b16 %v536
      %v1854 = vunpack.c.l.b16 %v537
      %v1855 = vunpack.c.l.b16 %v538
      %v1856 = vunpack.c.l.b16 %v539
      %v1857 = vunpack.c.l.b16 %v540
      %v1858 = vunpack.c.l.b16 %v541
      %v1859 = vunpack.c.l.b16 %v542
      %v1860 = vunpack.c.l.b16 %v543
      %v1861 = vunpack.c.l.b16 %v544
      %v1862 = vunpack.c.l.b16 %v545
      %v1863 = vunpack.c.l.b16 %v546
      %v1864 = vunpack.c.l.b16 %v547
      %v1865 = vunpack.c.l.b16 %v548
      %v1866 = vunpack.c.l.b16 %v549
      %v1867 = vunpack.c.l.b16 %v550
      %v1868 = vunpack.c.l.b16 %v551
      %v1869 = vunpack.c.l.b16 %v552
      %v1870 = vunpack.c.l.b16 %v553
      %v1871 = vunpack.c.l.b16 %v554
      %v1872 = vunpack.c.l.b16 %v555
      %v1873 = vunpack.c.l.b16 %v556
      %v1874 = vunpack.c.l.b16 %v557
      %v1875 = vunpack.c.l.b16 %v558
      %v1876 = vunpack.c.l.b16 %v559
      %v1877 = vunpack.c.l.b16 %v560
      %v1878 = vunpack.c.l.b16 %v561
      %v1879 = vunpack.c.l.b16 %v562
      %v1880 = vunpack.c.l.b16 %v563
      %v1881 = vunpack.c.l.b16 %v564
      %v1882 = vunpack.c.l.b16 %v565
      %v1883 = vunpack.c.l.b16 %v566
      %v1884 = vunpack.c.l.b16 %v567
      %v1885 = vunpack.c.l.b16 %v568
      %v1886 = vunpack.c.l.b16 %v569
      %v1887 = vunpack.c.l.b16 %v570
      %v1888 = vunpack.c.l.b16 %v571
      %v1889 = vunpack.c.l.b16 %v572
      %v1890 = vunpack.c.l.b16 %v573
      %v1891 = vpack.c.b16 %v1692, %v1691
      %v1892 = vpack.c.b16 %v1694, %v1693
      %v1893 = vpack.c.b16 %v1696, %v1695
      %v1894 = vpack.c.b16 %v1698, %v1697
      %v1895 = vpack.c.b16 %v1700, %v1699
      %v1896 = vpack.c.b16 %v1702, %v1701
      %v1897 = vpack.c.b16 %v1704, %v1703
      %v1898 = vpack.c.b16 %v1706, %v1705
      %v1899 = vpack.c.b16 %v1708, %v1707
      %v1900 = vpack.c.b16 %v1710, %v1709
      %v1901 = vpack.c.b16 %v1712, %v1711
      %v1902 = vpack.c.b16 %v1714, %v1713
      %v1903 = vpack.c.b16 %v1716, %v1715
      %v1904 = vpack.c.b16 %v1718, %v1717
      %v1905 = vpack.c.b16 %v1720, %v1719
      %v1906 = vpack.c.b16 %v1722, %v1721
      %v1907 = vpack.c.b16 %v1724, %v1723
      %v1908 = vpack.c.b16 %v1726, %v1725
      %v1909 = vpack.c.b16 %v1728, %v1727
      %v1910 = vpack.c.b16 %v1730, %v1729
      %v1911 = vpack.c.b16 %v1732, %v1731
      %v1912 = vpack.c.b16 %v1734, %v1733
      %v1913 = vpack.c.b16 %v1736, %v1735
      %v1914 = vpack.c.b16 %v1738, %v1737
      %v1915 = vpack.c.b16 %v1740, %v1739
      %v1916 = vpack.c.b16 %v1742, %v1741
      %v1917 = vpack.c.b16 %v1744, %v1743
      %v1918 = vpack.c.b16 %v1746, %v1745
      %v1919 = vpack.c.b16 %v1748, %v1747
      %v1920 = vpack.c.b16 %v1750, %v1749
      %v1921 = vpack.c.b16 %v1752, %v1751
      %v1922 = vpack.c.b16 %v1754, %v1753
      %v1923 = vpack.c.b16 %v1756, %v1755
      %v1924 = vpack.c.b16 %v1758, %v1757
      %v1925 = vpack.c.b16 %v1760, %v1759
      %v1926 = vpack.c.b16 %v1762, %v1761
      %v1927 = vpack.c.b16 %v1764, %v1763
      %v1928 = vpack.c.b16 %v1766, %v1765
      %v1929 = vpack.c.b16 %v1768, %v1767
      %v1930 = vpack.c.b16 %v1770, %v1769
      %v1931 = vpack.c.b16 %v1772, %v1771
      %v1932 = vpack.c.b16 %v1774, %v1773
      %v1933 = vpack.c.b16 %v1776, %v1775
      %v1934 = vpack.c.b16 %v1778, %v1777
      %v1935 = vpack.c.b16 %v1780, %v1779
      %v1936 = vpack.c.b16 %v1782, %v1781
      %v1937 = vpack.c.b16 %v1784, %v1783
      %v1938 = vpack.c.b16 %v1786, %v1785
      %v1939 = vpack.c.b16 %v1788, %v1787
      %v1940 = vpack.c.b16 %v1790, %v1789
      %v1941 = vpack.c.b16 %v1792, %v1791
      %v1942 = vpack.c.b16 %v1794, %v1793
      %v1943 = vpack.c.b16 %v1796, %v1795
      %v1944 = vpack.c.b16 %v1798, %v1797
      %v1945 = vpack.c.b16 %v1800, %v1799
      %v1946 = vpack.c.b16 %v1802, %v1801
      %v1947 = vpack.c.b16 %v1804, %v1803
      %v1948 = vpack.c.b16 %v1806, %v1805
      %v1949 = vpack.c.b16 %v1808, %v1807
      %v1950 = vpack.c.b16 %v1810, %v1809
      %v1951 = vpack.c.b16 %v1812, %v1811
      %v1952 = vpack.c.b16 %v1814, %v1813
      %v1953 = vpack.c.b16 %v1816, %v1815
      %v1954 = vpack.c.b16 %v1818, %v1817
      %v1955 = vpack.c.b16 %v1820, %v1819
      %v1956 = vpack.c.b16 %v1822, %v1821
      %v1957 = vpack.c.b16 %v1824, %v1823
      %v1958 = vpack.c.b16 %v1826, %v1825
      %v1959 = vpack.c.b16 %v1828, %v1827
      %v1960 = vpack.c.b16 %v1830, %v1829
      %v1961 = vpack.c.b16 %v1832, %v1831
      %v1962 = vpack.c.b16 %v1834, %v1833
      %v1963 = vpack.c.b16 %v1836, %v1835
      %v1964 = vpack.c.b16 %v1838, %v1837
      %v1965 = vpack.c.b16 %v1840, %v1839
      %v1966 = vpack.c.b16 %v1842, %v1841
      %v1967 = vpack.c.b16 %v1844, %v1843
      %v1968 = vpack.c.b16 %v1846, %v1845
      %v1969 = vpack.c.b16 %v1848, %v1847
      %v1970 = vpack.c.b16 %v1850, %v1849
      %v1971 = vpack.c.b16 %v1852, %v1851
      %v1972 = vpack.c.b16 %v1854, %v1853
      %v1973 = vpack.c.b16 %v1856, %v1855
      %v1974 = vpack.c.b16 %v1858, %v1857
      %v1975 = vpack.c.b16 %v1860, %v1859
      %v1976 = vpack.c.b16 %v1862, %v1861
      %v1977 = vpack.c.b16 %v1864, %v1863
      %v1978 = vpack.c.b16 %v1866, %v1865
      %v1979 = vpack.c.b16 %v1868, %v1867
      %v1980 = vpack.c.b16 %v1870, %v1869
      %v1981 = vpack.c.b16 %v1872, %v1871
      %v1982 = vpack.c.b16 %v1874, %v1873
      %v1983 = vpack.c.b16 %v1876, %v1875
      %v1984 = vpack.c.b16 %v1878, %v1877
      %v1985 = vpack.c.b16 %v1880, %v1879
      %v1986 = vpack.c.b16 %v1882, %v1881
      %v1987 = vpack.c.b16 %v1884, %v1883
      %v1988 = vpack.c.b16 %v1886, %v1885
      %v1989 = vpack.c.b16 %v1888, %v1887
      %v1990 = vpack.c.b16 %v1890, %v1889
      %vm2091 = vcmask 523264
      %v2093 = vsel %vm2091, %v1153, 0
      %v2096 = vsel %vm2091, %v1166, 0
      %v2099 = vsel %vm2091, %v1179, 0
      %v2102 = vsel %vm2091, %v1192, 0
      %v2105 = vsel %vm2091, %v1205, 0
      %v2108 = vsel %vm2091, %v1218, 0
      %v2111 = vsel %vm2091, %v1231, 0
      %v2114 = vsel %vm2091, %v1244, 0
      %v2117 = vsel %vm2091, %v1257, 0
      %v2120 = vsel %vm2091, %v1270, 0
      %v2123 = vsel %vm2091, %v1283, 0
      %v2126 = vsel %vm2091, %v1296, 0
      %v2129 = vsel %vm2091, %v1309, 0
      %v2132 = vsel %vm2091, %v1322, 0
      %2134 = vmatprep.subr.bf16.mxu0 0
      %2135 = vmatpush1.bf16.msra.mxu0 %v1891
      %2136 = vmatprep.subr.bf16.mxu0 0
      %2137 = vmatpush1.bf16.msra.mxu0 %v1892
      %2138 = vmatprep.subr.bf16.mxu0 0
      %2139 = vmatpush1.bf16.msra.mxu0 %v1893
      %2140 = vmatprep.subr.bf16.mxu0 0
      %2141 = vmatpush1.bf16.msra.mxu0 %v1894
      %2142 = vmatprep.subr.bf16.mxu0 0
      %2143 = vmatpush1.bf16.msra.mxu0 %v1895
      %2144 = vmatprep.subr.bf16.mxu0 0
      %2145 = vmatpush1.bf16.msra.mxu0 %v1896
      %2146 = vmatprep.subr.bf16.mxu0 0
      %2147 = vmatpush1.bf16.msra.mxu0 %v1897
      %2148 = vmatprep.subr.bf16.mxu0 0
      %2149 = vmatpush1.bf16.msra.mxu0 %v1898
      %2150 = vmatprep.subr.bf16.mxu0 0
      %2151 = vmatpush1.bf16.msra.mxu0 %v1899
      %2152 = vmatprep.subr.bf16.mxu0 0
      %2153 = vmatpush1.bf16.msra.mxu0 %v1900
      %2154 = vmatprep.subr.bf16.mxu0 0
      %2155 = vmatpush1.bf16.msra.mxu0 %v1901
      %2156 = vmatprep.subr.bf16.mxu0 0
      %2157 = vmatpush1.bf16.msra.mxu0 %v1902
      %2158 = vmatprep.subr.bf16.mxu0 0
      %2159 = vmatpush1.bf16.msra.mxu0 %v1903
      %2160 = vmatprep.subr.bf16.mxu0 0
      %2161 = vmatpush1.bf16.msra.mxu0 %v1904
      %2162 = vmatprep.subr.bf16.mxu0 0
      %2163 = vmatpush1.bf16.msra.mxu0 %v1905
      %2164 = vmatprep.subr.bf16.mxu0 0
      %2165 = vmatpush1.bf16.msra.mxu0 %v1906
      %2166 = vmatprep.mubr.bf16.mxu0 %v1142
      %2167 = vmatmul.mubr.bf16.gmra.mrb[0].mxu0 %v1141
      %v2168 = vpop.f32.mrb[0].mxu0
      %v2169 = vadd.f32 %v579, %v2168
      %v2170 = vpop.f32.mrb[0].mxu0
      %v2171 = vpop.f32.mrb[0].mxu0
      %v2172 = vadd.f32 %v579, %v2171
      %v2173 = vpop.f32.mrb[0].mxu0
      %2174 = vmatprep.mubr.bf16.mxu0 %v1155
      %2175 = vmatmul.mubr.bf16.gmra.mrb[0].mxu0 %v1154
      %v2176 = vpop.f32.mrb[0].mxu0
      %v2177 = vadd.f32 %v579, %v2176
      %v2178 = vpop.f32.mrb[0].mxu0
      %v2179 = vpop.f32.mrb[0].mxu0
      %v2180 = vadd.f32 %v579, %v2179
      %v2181 = vpop.f32.mrb[0].mxu0
      %2182 = vmatprep.mubr.bf16.mxu0 %v1168
      %2183 = vmatmul.mubr.bf16.gmra.mrb[0].mxu0 %v1167
      %v2184 = vpop.f32.mrb[0].mxu0
      %v2185 = vadd.f32 %v579, %v2184
      %v2186 = vpop.f32.mrb[0].mxu0
      %v2187 = vpop.f32.mrb[0].mxu0
      %v2188 = vadd.f32 %v579, %v2187
      %v2189 = vpop.f32.mrb[0].mxu0
      %2190 = vmatprep.mubr.bf16.mxu0 %v1181
      %2191 = vmatmul.mubr.bf16.gmra.mrb[0].mxu0 %v1180
      %v2192 = vpop.f32.mrb[0].mxu0
      %v2193 = vadd.f32 %v579, %v2192
      %v2194 = vpop.f32.mrb[0].mxu0
      %v2195 = vpop.f32.mrb[0].mxu0
      %v2196 = vadd.f32 %v579, %v2195
      %v2197 = vpop.f32.mrb[0].mxu0
      %2198 = vmatprep.mubr.bf16.mxu0 %v1194
      %2199 = vmatmul.mubr.bf16.gmra.mrb[0].mxu0 %v1193
      %v2200 = vpop.f32.mrb[0].mxu0
      %v2201 = vadd.f32 %v579, %v2200
      %v2202 = vpop.f32.mrb[0].mxu0
      %v2203 = vpop.f32.mrb[0].mxu0
      %v2204 = vadd.f32 %v579, %v2203
      %v2205 = vpop.f32.mrb[0].mxu0
      %2206 = vmatprep.mubr.bf16.mxu0 %v1207
      %2207 = vmatmul.mubr.bf16.gmra.mrb[0].mxu0 %v1206
      %v2208 = vpop.f32.mrb[0].mxu0
      %v2209 = vadd.f32 %v579, %v2208
      %v2210 = vpop.f32.mrb[0].mxu0
      %v2211 = vpop.f32.mrb[0].mxu0
      %v2212 = vadd.f32 %v579, %v2211
      %v2213 = vpop.f32.mrb[0].mxu0
      %2214 = vmatprep.mubr.bf16.mxu0 %v1220
      %2215 = vmatmul.mubr.bf16.gmra.mrb[0].mxu0 %v1219
      %v2216 = vpop.f32.mrb[0].mxu0
      %v2217 = vadd.f32 %v579, %v2216
      %v2218 = vpop.f32.mrb[0].mxu0
      %v2219 = vpop.f32.mrb[0].mxu0
      %v2220 = vadd.f32 %v579, %v2219
      %v2221 = vpop.f32.mrb[0].mxu0
      %2222 = vmatprep.mubr.bf16.mxu0 %v1233
      %2223 = vmatmul.mubr.bf16.gmra.mrb[0].mxu0 %v1232
      %v2224 = vpop.f32.mrb[0].mxu0
      %v2225 = vadd.f32 %v579, %v2224
      %v2226 = vpop.f32.mrb[0].mxu0
      %v2227 = vpop.f32.mrb[0].mxu0
      %v2228 = vadd.f32 %v579, %v2227
      %v2229 = vpop.f32.mrb[0].mxu0
      %2230 = vmatprep.mubr.bf16.mxu0 %v1246
      %2231 = vmatmul.mubr.bf16.gmra.mrb[0].mxu0 %v1245
      %v2232 = vpop.f32.mrb[0].mxu0
      %v2233 = vadd.f32 %v579, %v2232
      %v2234 = vpop.f32.mrb[0].mxu0
      %v2235 = vpop.f32.mrb[0].mxu0
      %v2236 = vadd.f32 %v579, %v2235
      %v2237 = vpop.f32.mrb[0].mxu0
      %2238 = vmatprep.mubr.bf16.mxu0 %v1259
      %2239 = vmatmul.mubr.bf16.gmra.mrb[0].mxu0 %v1258
      %v2240 = vpop.f32.mrb[0].mxu0
      %v2241 = vadd.f32 %v579, %v2240
      %v2242 = vpop.f32.mrb[0].mxu0
      %v2243 = vpop.f32.mrb[0].mxu0
      %v2244 = vadd.f32 %v579, %v2243
      %v2245 = vpop.f32.mrb[0].mxu0
      %2246 = vmatprep.mubr.bf16.mxu0 %v1272
      %2247 = vmatmul.mubr.bf16.gmra.mrb[0].mxu0 %v1271
      %v2248 = vpop.f32.mrb[0].mxu0
      %v2249 = vadd.f32 %v579, %v2248
      %v2250 = vpop.f32.mrb[0].mxu0
      %v2251 = vpop.f32.mrb[0].mxu0
      %v2252 = vadd.f32 %v579, %v2251
      %v2253 = vpop.f32.mrb[0].mxu0
      %2254 = vmatprep.mubr.bf16.mxu0 %v1285
      %2255 = vmatmul.mubr.bf16.gmra.mrb[0].mxu0 %v1284
      %v2256 = vpop.f32.mrb[0].mxu0
      %v2257 = vadd.f32 %v579, %v2256
      %v2258 = vpop.f32.mrb[0].mxu0
      %v2259 = vpop.f32.mrb[0].mxu0
      %v2260 = vadd.f32 %v579, %v2259
      %v2261 = vpop.f32.mrb[0].mxu0
      %2262 = vmatprep.mubr.bf16.mxu0 %v1298
      %2263 = vmatmul.mubr.bf16.gmra.mrb[0].mxu0 %v1297
      %v2264 = vpop.f32.mrb[0].mxu0
      %v2265 = vadd.f32 %v579, %v2264
      %v2266 = vpop.f32.mrb[0].mxu0
      %v2267 = vpop.f32.mrb[0].mxu0
      %v2268 = vadd.f32 %v579, %v2267
      %v2269 = vpop.f32.mrb[0].mxu0
      %2270 = vmatprep.mubr.bf16.mxu0 %v1311
      %2271 = vmatmul.mubr.bf16.gmra.mrb[0].mxu0 %v1310
      %v2272 = vpop.f32.mrb[0].mxu0
      %v2273 = vadd.f32 %v579, %v2272
      %v2274 = vpop.f32.mrb[0].mxu0
      %v2275 = vpop.f32.mrb[0].mxu0
      %v2276 = vadd.f32 %v579, %v2275
      %v2277 = vpop.f32.mrb[0].mxu0
      %2278 = vdwg.mxu0
      %2279 = vmatprep.subr.bf16.mxu0 0
      %2280 = vmatpush1.bf16.msra.mxu0 %v1907
      %2281 = vmatprep.subr.bf16.mxu0 0
      %2282 = vmatpush1.bf16.msra.mxu0 %v1908
      %2283 = vmatprep.subr.bf16.mxu0 0
      %2284 = vmatpush1.bf16.msra.mxu0 %v1909
      %2285 = vmatprep.subr.bf16.mxu0 0
      %2286 = vmatpush1.bf16.msra.mxu0 %v1910
      %2287 = vmatprep.subr.bf16.mxu0 0
      %2288 = vmatpush1.bf16.msra.mxu0 %v1911
      %2289 = vmatprep.subr.bf16.mxu0 0
      %2290 = vmatpush1.bf16.msra.mxu0 %v1912
      %2291 = vmatprep.subr.bf16.mxu0 0
      %2292 = vmatpush1.bf16.msra.mxu0 %v1913
      %2293 = vmatprep.subr.bf16.mxu0 0
      %2294 = vmatpush1.bf16.msra.mxu0 %v1914
      %2295 = vmatprep.subr.bf16.mxu0 0
      %2296 = vmatpush1.bf16.msra.mxu0 %v1915
      %2297 = vmatprep.subr.bf16.mxu0 0
      %2298 = vmatpush1.bf16.msra.mxu0 %v1916
      %2299 = vmatprep.subr.bf16.mxu0 0
      %2300 = vmatpush1.bf16.msra.mxu0 %v1917
      %2301 = vmatprep.subr.bf16.mxu0 0
      %2302 = vmatpush1.bf16.msra.mxu0 %v1918
      %2303 = vmatprep.subr.bf16.mxu0 0
      %2304 = vmatpush1.bf16.msra.mxu0 %v1919
      %2305 = vmatprep.subr.bf16.mxu0 0
      %2306 = vmatpush1.bf16.msra.mxu0 %v1920
      %2307 = vmatprep.subr.bf16.mxu0 0
      %2308 = vmatpush1.bf16.msra.mxu0 %v1921
      %2309 = vmatprep.subr.bf16.mxu0 0
      %2310 = vmatpush1.bf16.msra.mxu0 %v1922
      %2311 = vmatprep.mubr.bf16.mxu0 %v1144
      %2312 = vmatmul.mubr.bf16.gmra.mrb[0].mxu0 %v1143
      %v2313 = vpop.f32.mrb[0].mxu0
      %v2314 = vadd.f32 %v2169, %v2313
      %v2315 = vpop.f32.mrb[0].mxu0
      %v2316 = vpop.f32.mrb[0].mxu0
      %v2317 = vadd.f32 %v2172, %v2316
      %v2318 = vpop.f32.mrb[0].mxu0
      %2319 = vmatprep.mubr.bf16.mxu0 %v1157
      %2320 = vmatmul.mubr.bf16.gmra.mrb[0].mxu0 %v1156
      %v2321 = vpop.f32.mrb[0].mxu0
      %v2322 = vadd.f32 %v2177, %v2321
      %v2323 = vpop.f32.mrb[0].mxu0
      %v2324 = vpop.f32.mrb[0].mxu0
      %v2325 = vadd.f32 %v2180, %v2324
      %v2326 = vpop.f32.mrb[0].mxu0
      %2327 = vmatprep.mubr.bf16.mxu0 %v1170
      %2328 = vmatmul.mubr.bf16.gmra.mrb[0].mxu0 %v1169
      %v2329 = vpop.f32.mrb[0].mxu0
      %v2330 = vadd.f32 %v2185, %v2329
      %v2331 = vpop.f32.mrb[0].mxu0
      %v2332 = vpop.f32.mrb[0].mxu0
      %v2333 = vadd.f32 %v2188, %v2332
      %v2334 = vpop.f32.mrb[0].mxu0
      %2335 = vmatprep.mubr.bf16.mxu0 %v1183
      %2336 = vmatmul.mubr.bf16.gmra.mrb[0].mxu0 %v1182
      %v2337 = vpop.f32.mrb[0].mxu0
      %v2338 = vadd.f32 %v2193, %v2337
      %v2339 = vpop.f32.mrb[0].mxu0
      %v2340 = vpop.f32.mrb[0].mxu0
      %v2341 = vadd.f32 %v2196, %v2340
      %v2342 = vpop.f32.mrb[0].mxu0
      %2343 = vmatprep.mubr.bf16.mxu0 %v1196
      %2344 = vmatmul.mubr.bf16.gmra.mrb[0].mxu0 %v1195
      %v2345 = vpop.f32.mrb[0].mxu0
      %v2346 = vadd.f32 %v2201, %v2345
      %v2347 = vpop.f32.mrb[0].mxu0
      %v2348 = vpop.f32.mrb[0].mxu0
      %v2349 = vadd.f32 %v2204, %v2348
      %v2350 = vpop.f32.mrb[0].mxu0
      %2351 = vmatprep.mubr.bf16.mxu0 %v1209
      %2352 = vmatmul.mubr.bf16.gmra.mrb[0].mxu0 %v1208
      %v2353 = vpop.f32.mrb[0].mxu0
      %v2354 = vadd.f32 %v2209, %v2353
      %v2355 = vpop.f32.mrb[0].mxu0
      %v2356 = vpop.f32.mrb[0].mxu0
      %v2357 = vadd.f32 %v2212, %v2356
      %v2358 = vpop.f32.mrb[0].mxu0
      %2359 = vmatprep.mubr.bf16.mxu0 %v1222
      %2360 = vmatmul.mubr.bf16.gmra.mrb[0].mxu0 %v1221
      %v2361 = vpop.f32.mrb[0].mxu0
      %v2362 = vadd.f32 %v2217, %v2361
      %v2363 = vpop.f32.mrb[0].mxu0
      %v2364 = vpop.f32.mrb[0].mxu0
      %v2365 = vadd.f32 %v2220, %v2364
      %v2366 = vpop.f32.mrb[0].mxu0
      %2367 = vmatprep.mubr.bf16.mxu0 %v1235
      %2368 = vmatmul.mubr.bf16.gmra.mrb[0].mxu0 %v1234
      %v2369 = vpop.f32.mrb[0].mxu0
      %v2370 = vadd.f32 %v2225, %v2369
      %v2371 = vpop.f32.mrb[0].mxu0
      %v2372 = vpop.f32.mrb[0].mxu0
      %v2373 = vadd.f32 %v2228, %v2372
      %v2374 = vpop.f32.mrb[0].mxu0
      %2375 = vmatprep.mubr.bf16.mxu0 %v1248
      %2376 = vmatmul.mubr.bf16.gmra.mrb[0].mxu0 %v1247
      %v2377 = vpop.f32.mrb[0].mxu0
      %v2378 = vadd.f32 %v2233, %v2377
      %v2379 = vpop.f32.mrb[0].mxu0
      %v2380 = vpop.f32.mrb[0].mxu0
      %v2381 = vadd.f32 %v2236, %v2380
      %v2382 = vpop.f32.mrb[0].mxu0
      %2383 = vmatprep.mubr.bf16.mxu0 %v1261
      %2384 = vmatmul.mubr.bf16.gmra.mrb[0].mxu0 %v1260
      %v2385 = vpop.f32.mrb[0].mxu0
      %v2386 = vadd.f32 %v2241, %v2385
      %v2387 = vpop.f32.mrb[0].mxu0
      %v2388 = vpop.f32.mrb[0].mxu0
      %v2389 = vadd.f32 %v2244, %v2388
      %v2390 = vpop.f32.mrb[0].mxu0
      %2391 = vmatprep.mubr.bf16.mxu0 %v1274
      %2392 = vmatmul.mubr.bf16.gmra.mrb[0].mxu0 %v1273
      %v2393 = vpop.f32.mrb[0].mxu0
      %v2394 = vadd.f32 %v2249, %v2393
      %v2395 = vpop.f32.mrb[0].mxu0
      %v2396 = vpop.f32.mrb[0].mxu0
      %v2397 = vadd.f32 %v2252, %v2396
      %v2398 = vpop.f32.mrb[0].mxu0
      %2399 = vmatprep.mubr.bf16.mxu0 %v1287
      %2400 = vmatmul.mubr.bf16.gmra.mrb[0].mxu0 %v1286
      %v2401 = vpop.f32.mrb[0].mxu0
      %v2402 = vadd.f32 %v2257, %v2401
      %v2403 = vpop.f32.mrb[0].mxu0
      %v2404 = vpop.f32.mrb[0].mxu0
      %v2405 = vadd.f32 %v2260, %v2404
      %v2406 = vpop.f32.mrb[0].mxu0
      %2407 = vmatprep.mubr.bf16.mxu0 %v1300
      %2408 = vmatmul.mubr.bf16.gmra.mrb[0].mxu0 %v1299
      %v2409 = vpop.f32.mrb[0].mxu0
      %v2410 = vadd.f32 %v2265, %v2409
      %v2411 = vpop.f32.mrb[0].mxu0
      %v2412 = vpop.f32.mrb[0].mxu0
      %v2413 = vadd.f32 %v2268, %v2412
      %v2414 = vpop.f32.mrb[0].mxu0
      %2415 = vmatprep.mubr.bf16.mxu0 %v1313
      %2416 = vmatmul.mubr.bf16.gmra.mrb[0].mxu0 %v1312
      %v2417 = vpop.f32.mrb[0].mxu0
      %v2418 = vadd.f32 %v2273, %v2417
      %v2419 = vpop.f32.mrb[0].mxu0
      %v2420 = vpop.f32.mrb[0].mxu0
      %v2421 = vadd.f32 %v2276, %v2420
      %v2422 = vpop.f32.mrb[0].mxu0
      %2423 = vdwg.mxu0
      %2424 = vmatprep.subr.bf16.mxu0 0
      %2425 = vmatpush1.bf16.msra.mxu0 %v1923
      %2426 = vmatprep.subr.bf16.mxu0 0
      %2427 = vmatpush1.bf16.msra.mxu0 %v1924
      %2428 = vmatprep.subr.bf16.mxu0 0
      %2429 = vmatpush1.bf16.msra.mxu0 %v1925
      %2430 = vmatprep.subr.bf16.mxu0 0
      %2431 = vmatpush1.bf16.msra.mxu0 %v1926
      %2432 = vmatprep.subr.bf16.mxu0 0
      %2433 = vmatpush1.bf16.msra.mxu0 %v1927
      %2434 = vmatprep.subr.bf16.mxu0 0
      %2435 = vmatpush1.bf16.msra.mxu0 %v1928
      %2436 = vmatprep.subr.bf16.mxu0 0
      %2437 = vmatpush1.bf16.msra.mxu0 %v1929
      %2438 = vmatprep.subr.bf16.mxu0 0
      %2439 = vmatpush1.bf16.msra.mxu0 %v1930
      %2440 = vmatprep.subr.bf16.mxu0 0
      %2441 = vmatpush1.bf16.msra.mxu0 %v1931
      %2442 = vmatprep.subr.bf16.mxu0 0
      %2443 = vmatpush1.bf16.msra.mxu0 %v1932
      %2444 = vmatprep.subr.bf16.mxu0 0
      %2445 = vmatpush1.bf16.msra.mxu0 %v1933
      %2446 = vmatprep.subr.bf16.mxu0 0
      %2447 = vmatpush1.bf16.msra.mxu0 %v1934
      %2448 = vmatprep.subr.bf16.mxu0 0
      %2449 = vmatpush1.bf16.msra.mxu0 %v1935
      %2450 = vmatprep.subr.bf16.mxu0 0
      %2451 = vmatpush1.bf16.msra.mxu0 %v1936
      %2452 = vmatprep.subr.bf16.mxu0 0
      %2453 = vmatpush1.bf16.msra.mxu0 %v1937
      %2454 = vmatprep.subr.bf16.mxu0 0
      %2455 = vmatpush1.bf16.msra.mxu0 %v1938
      %2456 = vmatprep.mubr.bf16.mxu0 %v1146
      %2457 = vmatmul.mubr.bf16.gmra.mrb[0].mxu0 %v1145
      %v2458 = vpop.f32.mrb[0].mxu0
      %v2459 = vadd.f32 %v2314, %v2458
      %v2460 = vpop.f32.mrb[0].mxu0
      %v2461 = vpop.f32.mrb[0].mxu0
      %v2462 = vadd.f32 %v2317, %v2461
      %v2463 = vpop.f32.mrb[0].mxu0
      %2464 = vmatprep.mubr.bf16.mxu0 %v1159
      %2465 = vmatmul.mubr.bf16.gmra.mrb[0].mxu0 %v1158
      %v2466 = vpop.f32.mrb[0].mxu0
      %v2467 = vadd.f32 %v2322, %v2466
      %v2468 = vpop.f32.mrb[0].mxu0
      %v2469 = vpop.f32.mrb[0].mxu0
      %v2470 = vadd.f32 %v2325, %v2469
      %v2471 = vpop.f32.mrb[0].mxu0
      %2472 = vmatprep.mubr.bf16.mxu0 %v1172
      %2473 = vmatmul.mubr.bf16.gmra.mrb[0].mxu0 %v1171
      %v2474 = vpop.f32.mrb[0].mxu0
      %v2475 = vadd.f32 %v2330, %v2474
      %v2476 = vpop.f32.mrb[0].mxu0
      %v2477 = vpop.f32.mrb[0].mxu0
      %v2478 = vadd.f32 %v2333, %v2477
      %v2479 = vpop.f32.mrb[0].mxu0
      %2480 = vmatprep.mubr.bf16.mxu0 %v1185
      %2481 = vmatmul.mubr.bf16.gmra.mrb[0].mxu0 %v1184
      %v2482 = vpop.f32.mrb[0].mxu0
      %v2483 = vadd.f32 %v2338, %v2482
      %v2484 = vpop.f32.mrb[0].mxu0
      %v2485 = vpop.f32.mrb[0].mxu0
      %v2486 = vadd.f32 %v2341, %v2485
      %v2487 = vpop.f32.mrb[0].mxu0
      %2488 = vmatprep.mubr.bf16.mxu0 %v1198
      %2489 = vmatmul.mubr.bf16.gmra.mrb[0].mxu0 %v1197
      %v2490 = vpop.f32.mrb[0].mxu0
      %v2491 = vadd.f32 %v2346, %v2490
      %v2492 = vpop.f32.mrb[0].mxu0
      %v2493 = vpop.f32.mrb[0].mxu0
      %v2494 = vadd.f32 %v2349, %v2493
      %v2495 = vpop.f32.mrb[0].mxu0
      %2496 = vmatprep.mubr.bf16.mxu0 %v1211
      %2497 = vmatmul.mubr.bf16.gmra.mrb[0].mxu0 %v1210
      %v2498 = vpop.f32.mrb[0].mxu0
      %v2499 = vadd.f32 %v2354, %v2498
      %v2500 = vpop.f32.mrb[0].mxu0
      %v2501 = vpop.f32.mrb[0].mxu0
      %v2502 = vadd.f32 %v2357, %v2501
      %v2503 = vpop.f32.mrb[0].mxu0
      %2504 = vmatprep.mubr.bf16.mxu0 %v1224
      %2505 = vmatmul.mubr.bf16.gmra.mrb[0].mxu0 %v1223
      %v2506 = vpop.f32.mrb[0].mxu0
      %v2507 = vadd.f32 %v2362, %v2506
      %v2508 = vpop.f32.mrb[0].mxu0
      %v2509 = vpop.f32.mrb[0].mxu0
      %v2510 = vadd.f32 %v2365, %v2509
      %v2511 = vpop.f32.mrb[0].mxu0
      %2512 = vmatprep.mubr.bf16.mxu0 %v1237
      %2513 = vmatmul.mubr.bf16.gmra.mrb[0].mxu0 %v1236
      %v2514 = vpop.f32.mrb[0].mxu0
      %v2515 = vadd.f32 %v2370, %v2514
      %v2516 = vpop.f32.mrb[0].mxu0
      %v2517 = vpop.f32.mrb[0].mxu0
      %v2518 = vadd.f32 %v2373, %v2517
      %v2519 = vpop.f32.mrb[0].mxu0
      %2520 = vmatprep.mubr.bf16.mxu0 %v1250
      %2521 = vmatmul.mubr.bf16.gmra.mrb[0].mxu0 %v1249
      %v2522 = vpop.f32.mrb[0].mxu0
      %v2523 = vadd.f32 %v2378, %v2522
      %v2524 = vpop.f32.mrb[0].mxu0
      %v2525 = vpop.f32.mrb[0].mxu0
      %v2526 = vadd.f32 %v2381, %v2525
      %v2527 = vpop.f32.mrb[0].mxu0
      %2528 = vmatprep.mubr.bf16.mxu0 %v1263
      %2529 = vmatmul.mubr.bf16.gmra.mrb[0].mxu0 %v1262
      %v2530 = vpop.f32.mrb[0].mxu0
      %v2531 = vadd.f32 %v2386, %v2530
      %v2532 = vpop.f32.mrb[0].mxu0
      %v2533 = vpop.f32.mrb[0].mxu0
      %v2534 = vadd.f32 %v2389, %v2533
      %v2535 = vpop.f32.mrb[0].mxu0
      %2536 = vmatprep.mubr.bf16.mxu0 %v1276
      %2537 = vmatmul.mubr.bf16.gmra.mrb[0].mxu0 %v1275
      %v2538 = vpop.f32.mrb[0].mxu0
      %v2539 = vadd.f32 %v2394, %v2538
      %v2540 = vpop.f32.mrb[0].mxu0
      %v2541 = vpop.f32.mrb[0].mxu0
      %v2542 = vadd.f32 %v2397, %v2541
      %v2543 = vpop.f32.mrb[0].mxu0
      %2544 = vmatprep.mubr.bf16.mxu0 %v1289
      %2545 = vmatmul.mubr.bf16.gmra.mrb[0].mxu0 %v1288
      %v2546 = vpop.f32.mrb[0].mxu0
      %v2547 = vadd.f32 %v2402, %v2546
      %v2548 = vpop.f32.mrb[0].mxu0
      %v2549 = vpop.f32.mrb[0].mxu0
      %v2550 = vadd.f32 %v2405, %v2549
      %v2551 = vpop.f32.mrb[0].mxu0
      %2552 = vmatprep.mubr.bf16.mxu0 %v1302
      %2553 = vmatmul.mubr.bf16.gmra.mrb[0].mxu0 %v1301
      %v2554 = vpop.f32.mrb[0].mxu0
      %v2555 = vadd.f32 %v2410, %v2554
      %v2556 = vpop.f32.mrb[0].mxu0
      %v2557 = vpop.f32.mrb[0].mxu0
      %v2558 = vadd.f32 %v2413, %v2557
      %v2559 = vpop.f32.mrb[0].mxu0
      %2560 = vmatprep.mubr.bf16.mxu0 %v1315
      %2561 = vmatmul.mubr.bf16.gmra.mrb[0].mxu0 %v1314
      %v2562 = vpop.f32.mrb[0].mxu0
      %v2563 = vadd.f32 %v2418, %v2562
      %v2564 = vpop.f32.mrb[0].mxu0
      %v2565 = vpop.f32.mrb[0].mxu0
      %v2566 = vadd.f32 %v2421, %v2565
      %v2567 = vpop.f32.mrb[0].mxu0
      %2568 = vdwg.mxu0
      %2569 = vmatprep.subr.bf16.mxu0 0
      %2570 = vmatpush1.bf16.msra.mxu0 %v1939
      %2571 = vmatprep.subr.bf16.mxu0 0
      %2572 = vmatpush1.bf16.msra.mxu0 %v1940
      %2573 = vmatprep.subr.bf16.mxu0 0
      %2574 = vmatpush1.bf16.msra.mxu0 %v1941
      %2575 = vmatprep.subr.bf16.mxu0 0
      %2576 = vmatpush1.bf16.msra.mxu0 %v1942
      %2577 = vmatprep.subr.bf16.mxu0 0
      %2578 = vmatpush1.bf16.msra.mxu0 %v1943
      %2579 = vmatprep.subr.bf16.mxu0 0
      %2580 = vmatpush1.bf16.msra.mxu0 %v1944
      %2581 = vmatprep.subr.bf16.mxu0 0
      %2582 = vmatpush1.bf16.msra.mxu0 %v1945
      %2583 = vmatprep.subr.bf16.mxu0 0
      %2584 = vmatpush1.bf16.msra.mxu0 %v1946
      %2585 = vmatprep.subr.bf16.mxu0 0
      %2586 = vmatpush1.bf16.msra.mxu0 %v1947
      %2587 = vmatprep.subr.bf16.mxu0 0
      %2588 = vmatpush1.bf16.msra.mxu0 %v1948
      %2589 = vmatprep.subr.bf16.mxu0 0
      %2590 = vmatpush1.bf16.msra.mxu0 %v1949
      %2591 = vmatprep.subr.bf16.mxu0 0
      %2592 = vmatpush1.bf16.msra.mxu0 %v1950
      %2593 = vmatprep.subr.bf16.mxu0 0
      %2594 = vmatpush1.bf16.msra.mxu0 %v1951
      %2595 = vmatprep.subr.bf16.mxu0 0
      %2596 = vmatpush1.bf16.msra.mxu0 %v1952
      %2597 = vmatprep.subr.bf16.mxu0 0
      %2598 = vmatpush1.bf16.msra.mxu0 %v1953
      %2599 = vmatprep.subr.bf16.mxu0 0
      %2600 = vmatpush1.bf16.msra.mxu0 %v1954
      %2601 = vmatprep.mubr.bf16.mxu0 %v1148
      %2602 = vmatmul.mubr.bf16.gmra.mrb[0].mxu0 %v1147
      %v2603 = vpop.f32.mrb[0].mxu0
      %v2604 = vadd.f32 %v2459, %v2603
      %v2605 = vpop.f32.mrb[0].mxu0
      %v2606 = vpop.f32.mrb[0].mxu0
      %v2607 = vadd.f32 %v2462, %v2606
      %v2608 = vpop.f32.mrb[0].mxu0
      %2609 = vmatprep.mubr.bf16.mxu0 %v1161
      %2610 = vmatmul.mubr.bf16.gmra.mrb[0].mxu0 %v1160
      %v2611 = vpop.f32.mrb[0].mxu0
      %v2612 = vadd.f32 %v2467, %v2611
      %v2613 = vpop.f32.mrb[0].mxu0
      %v2614 = vpop.f32.mrb[0].mxu0
      %v2615 = vadd.f32 %v2470, %v2614
      %v2616 = vpop.f32.mrb[0].mxu0
      %2617 = vmatprep.mubr.bf16.mxu0 %v1174
      %2618 = vmatmul.mubr.bf16.gmra.mrb[0].mxu0 %v1173
      %v2619 = vpop.f32.mrb[0].mxu0
      %v2620 = vadd.f32 %v2475, %v2619
      %v2621 = vpop.f32.mrb[0].mxu0
      %v2622 = vpop.f32.mrb[0].mxu0
      %v2623 = vadd.f32 %v2478, %v2622
      %v2624 = vpop.f32.mrb[0].mxu0
      %2625 = vmatprep.mubr.bf16.mxu0 %v1187
      %2626 = vmatmul.mubr.bf16.gmra.mrb[0].mxu0 %v1186
      %v2627 = vpop.f32.mrb[0].mxu0
      %v2628 = vadd.f32 %v2483, %v2627
      %v2629 = vpop.f32.mrb[0].mxu0
      %v2630 = vpop.f32.mrb[0].mxu0
      %v2631 = vadd.f32 %v2486, %v2630
      %v2632 = vpop.f32.mrb[0].mxu0
      %2633 = vmatprep.mubr.bf16.mxu0 %v1200
      %2634 = vmatmul.mubr.bf16.gmra.mrb[0].mxu0 %v1199
      %v2635 = vpop.f32.mrb[0].mxu0
      %v2636 = vadd.f32 %v2491, %v2635
      %v2637 = vpop.f32.mrb[0].mxu0
      %v2638 = vpop.f32.mrb[0].mxu0
      %v2639 = vadd.f32 %v2494, %v2638
      %v2640 = vpop.f32.mrb[0].mxu0
      %2641 = vmatprep.mubr.bf16.mxu0 %v1213
      %2642 = vmatmul.mubr.bf16.gmra.mrb[0].mxu0 %v1212
      %v2643 = vpop.f32.mrb[0].mxu0
      %v2644 = vadd.f32 %v2499, %v2643
      %v2645 = vpop.f32.mrb[0].mxu0
      %v2646 = vpop.f32.mrb[0].mxu0
      %v2647 = vadd.f32 %v2502, %v2646
      %v2648 = vpop.f32.mrb[0].mxu0
      %2649 = vmatprep.mubr.bf16.mxu0 %v1226
      %2650 = vmatmul.mubr.bf16.gmra.mrb[0].mxu0 %v1225
      %v2651 = vpop.f32.mrb[0].mxu0
      %v2652 = vadd.f32 %v2507, %v2651
      %v2653 = vpop.f32.mrb[0].mxu0
      %v2654 = vpop.f32.mrb[0].mxu0
      %v2655 = vadd.f32 %v2510, %v2654
      %v2656 = vpop.f32.mrb[0].mxu0
      %2657 = vmatprep.mubr.bf16.mxu0 %v1239
      %2658 = vmatmul.mubr.bf16.gmra.mrb[0].mxu0 %v1238
      %v2659 = vpop.f32.mrb[0].mxu0
      %v2660 = vadd.f32 %v2515, %v2659
      %v2661 = vpop.f32.mrb[0].mxu0
      %v2662 = vpop.f32.mrb[0].mxu0
      %v2663 = vadd.f32 %v2518, %v2662
      %v2664 = vpop.f32.mrb[0].mxu0
      %2665 = vmatprep.mubr.bf16.mxu0 %v1252
      %2666 = vmatmul.mubr.bf16.gmra.mrb[0].mxu0 %v1251
      %v2667 = vpop.f32.mrb[0].mxu0
      %v2668 = vadd.f32 %v2523, %v2667
      %v2669 = vpop.f32.mrb[0].mxu0
      %v2670 = vpop.f32.mrb[0].mxu0
      %v2671 = vadd.f32 %v2526, %v2670
      %v2672 = vpop.f32.mrb[0].mxu0
      %2673 = vmatprep.mubr.bf16.mxu0 %v1265
      %2674 = vmatmul.mubr.bf16.gmra.mrb[0].mxu0 %v1264
      %v2675 = vpop.f32.mrb[0].mxu0
      %v2676 = vadd.f32 %v2531, %v2675
      %v2677 = vpop.f32.mrb[0].mxu0
      %v2678 = vpop.f32.mrb[0].mxu0
      %v2679 = vadd.f32 %v2534, %v2678
      %v2680 = vpop.f32.mrb[0].mxu0
      %2681 = vmatprep.mubr.bf16.mxu0 %v1278
      %2682 = vmatmul.mubr.bf16.gmra.mrb[0].mxu0 %v1277
      %v2683 = vpop.f32.mrb[0].mxu0
      %v2684 = vadd.f32 %v2539, %v2683
      %v2685 = vpop.f32.mrb[0].mxu0
      %v2686 = vpop.f32.mrb[0].mxu0
      %v2687 = vadd.f32 %v2542, %v2686
      %v2688 = vpop.f32.mrb[0].mxu0
      %2689 = vmatprep.mubr.bf16.mxu0 %v1291
      %2690 = vmatmul.mubr.bf16.gmra.mrb[0].mxu0 %v1290
      %v2691 = vpop.f32.mrb[0].mxu0
      %v2692 = vadd.f32 %v2547, %v2691
      %v2693 = vpop.f32.mrb[0].mxu0
      %v2694 = vpop.f32.mrb[0].mxu0
      %v2695 = vadd.f32 %v2550, %v2694
      %v2696 = vpop.f32.mrb[0].mxu0
      %2697 = vmatprep.mubr.bf16.mxu0 %v1304
      %2698 = vmatmul.mubr.bf16.gmra.mrb[0].mxu0 %v1303
      %v2699 = vpop.f32.mrb[0].mxu0
      %v2700 = vadd.f32 %v2555, %v2699
      %v2701 = vpop.f32.mrb[0].mxu0
      %v2702 = vpop.f32.mrb[0].mxu0
      %v2703 = vadd.f32 %v2558, %v2702
      %v2704 = vpop.f32.mrb[0].mxu0
      %2705 = vmatprep.mubr.bf16.mxu0 %v1317
      %2706 = vmatmul.mubr.bf16.gmra.mrb[0].mxu0 %v1316
      %v2707 = vpop.f32.mrb[0].mxu0
      %v2708 = vadd.f32 %v2563, %v2707
      %v2709 = vpop.f32.mrb[0].mxu0
      %v2710 = vpop.f32.mrb[0].mxu0
      %v2711 = vadd.f32 %v2566, %v2710
      %v2712 = vpop.f32.mrb[0].mxu0
      %2713 = vdwg.mxu0
      %2714 = vmatprep.subr.bf16.mxu0 0
      %2715 = vmatpush1.bf16.msra.mxu0 %v1955
      %2716 = vmatprep.subr.bf16.mxu0 0
      %2717 = vmatpush1.bf16.msra.mxu0 %v1956
      %2718 = vmatprep.subr.bf16.mxu0 0
      %2719 = vmatpush1.bf16.msra.mxu0 %v1957
      %2720 = vmatprep.subr.bf16.mxu0 0
      %2721 = vmatpush1.bf16.msra.mxu0 %v1958
      %2722 = vmatprep.subr.bf16.mxu0 0
      %2723 = vmatpush1.bf16.msra.mxu0 %v1959
      %2724 = vmatprep.subr.bf16.mxu0 0
      %2725 = vmatpush1.bf16.msra.mxu0 %v1960
      %2726 = vmatprep.subr.bf16.mxu0 0
      %2727 = vmatpush1.bf16.msra.mxu0 %v1961
      %2728 = vmatprep.subr.bf16.mxu0 0
      %2729 = vmatpush1.bf16.msra.mxu0 %v1962
      %2730 = vmatprep.subr.bf16.mxu0 0
      %2731 = vmatpush1.bf16.msra.mxu0 %v1963
      %2732 = vmatprep.subr.bf16.mxu0 0
      %2733 = vmatpush1.bf16.msra.mxu0 %v1964
      %2734 = vmatprep.subr.bf16.mxu0 0
      %2735 = vmatpush1.bf16.msra.mxu0 %v1965
      %2736 = vmatprep.subr.bf16.mxu0 0
      %2737 = vmatpush1.bf16.msra.mxu0 %v1966
      %2738 = vmatprep.subr.bf16.mxu0 0
      %2739 = vmatpush1.bf16.msra.mxu0 %v1967
      %2740 = vmatprep.subr.bf16.mxu0 0
      %2741 = vmatpush1.bf16.msra.mxu0 %v1968
      %2742 = vmatprep.subr.bf16.mxu0 0
      %2743 = vmatpush1.bf16.msra.mxu0 %v1969
      %2744 = vmatprep.subr.bf16.mxu0 0
      %2745 = vmatpush1.bf16.msra.mxu0 %v1970
      %2746 = vmatprep.mubr.bf16.mxu0 %v1150
      %2747 = vmatmul.mubr.bf16.gmra.mrb[0].mxu0 %v1149
      %v2748 = vpop.f32.mrb[0].mxu0
      %v2749 = vadd.f32 %v2604, %v2748
      %v2750 = vpop.f32.mrb[0].mxu0
      %v2751 = vpop.f32.mrb[0].mxu0
      %v2752 = vadd.f32 %v2607, %v2751
      %v2753 = vpop.f32.mrb[0].mxu0
      %2754 = vmatprep.mubr.bf16.mxu0 %v1163
      %2755 = vmatmul.mubr.bf16.gmra.mrb[0].mxu0 %v1162
      %v2756 = vpop.f32.mrb[0].mxu0
      %v2757 = vadd.f32 %v2612, %v2756
      %v2758 = vpop.f32.mrb[0].mxu0
      %v2759 = vpop.f32.mrb[0].mxu0
      %v2760 = vadd.f32 %v2615, %v2759
      %v2761 = vpop.f32.mrb[0].mxu0
      %2762 = vmatprep.mubr.bf16.mxu0 %v1176
      %2763 = vmatmul.mubr.bf16.gmra.mrb[0].mxu0 %v1175
      %v2764 = vpop.f32.mrb[0].mxu0
      %v2765 = vadd.f32 %v2620, %v2764
      %v2766 = vpop.f32.mrb[0].mxu0
      %v2767 = vpop.f32.mrb[0].mxu0
      %v2768 = vadd.f32 %v2623, %v2767
      %v2769 = vpop.f32.mrb[0].mxu0
      %2770 = vmatprep.mubr.bf16.mxu0 %v1189
      %2771 = vmatmul.mubr.bf16.gmra.mrb[0].mxu0 %v1188
      %v2772 = vpop.f32.mrb[0].mxu0
      %v2773 = vadd.f32 %v2628, %v2772
      %v2774 = vpop.f32.mrb[0].mxu0
      %v2775 = vpop.f32.mrb[0].mxu0
      %v2776 = vadd.f32 %v2631, %v2775
      %v2777 = vpop.f32.mrb[0].mxu0
      %2778 = vmatprep.mubr.bf16.mxu0 %v1202
      %2779 = vmatmul.mubr.bf16.gmra.mrb[0].mxu0 %v1201
      %v2780 = vpop.f32.mrb[0].mxu0
      %v2781 = vadd.f32 %v2636, %v2780
      %v2782 = vpop.f32.mrb[0].mxu0
      %v2783 = vpop.f32.mrb[0].mxu0
      %v2784 = vadd.f32 %v2639, %v2783
      %v2785 = vpop.f32.mrb[0].mxu0
      %2786 = vmatprep.mubr.bf16.mxu0 %v1215
      %2787 = vmatmul.mubr.bf16.gmra.mrb[0].mxu0 %v1214
      %v2788 = vpop.f32.mrb[0].mxu0
      %v2789 = vadd.f32 %v2644, %v2788
      %v2790 = vpop.f32.mrb[0].mxu0
      %v2791 = vpop.f32.mrb[0].mxu0
      %v2792 = vadd.f32 %v2647, %v2791
      %v2793 = vpop.f32.mrb[0].mxu0
      %2794 = vmatprep.mubr.bf16.mxu0 %v1228
      %2795 = vmatmul.mubr.bf16.gmra.mrb[0].mxu0 %v1227
      %v2796 = vpop.f32.mrb[0].mxu0
      %v2797 = vadd.f32 %v2652, %v2796
      %v2798 = vpop.f32.mrb[0].mxu0
      %v2799 = vpop.f32.mrb[0].mxu0
      %v2800 = vadd.f32 %v2655, %v2799
      %v2801 = vpop.f32.mrb[0].mxu0
      %2802 = vmatprep.mubr.bf16.mxu0 %v1241
      %2803 = vmatmul.mubr.bf16.gmra.mrb[0].mxu0 %v1240
      %v2804 = vpop.f32.mrb[0].mxu0
      %v2805 = vadd.f32 %v2660, %v2804
      %v2806 = vpop.f32.mrb[0].mxu0
      %v2807 = vpop.f32.mrb[0].mxu0
      %v2808 = vadd.f32 %v2663, %v2807
      %v2809 = vpop.f32.mrb[0].mxu0
      %2810 = vmatprep.mubr.bf16.mxu0 %v1254
      %2811 = vmatmul.mubr.bf16.gmra.mrb[0].mxu0 %v1253
      %v2812 = vpop.f32.mrb[0].mxu0
      %v2813 = vadd.f32 %v2668, %v2812
      %v2814 = vpop.f32.mrb[0].mxu0
      %v2815 = vpop.f32.mrb[0].mxu0
      %v2816 = vadd.f32 %v2671, %v2815
      %v2817 = vpop.f32.mrb[0].mxu0
      %2818 = vmatprep.mubr.bf16.mxu0 %v1267
      %2819 = vmatmul.mubr.bf16.gmra.mrb[0].mxu0 %v1266
      %v2820 = vpop.f32.mrb[0].mxu0
      %v2821 = vadd.f32 %v2676, %v2820
      %v2822 = vpop.f32.mrb[0].mxu0
      %v2823 = vpop.f32.mrb[0].mxu0
      %v2824 = vadd.f32 %v2679, %v2823
      %v2825 = vpop.f32.mrb[0].mxu0
      %2826 = vmatprep.mubr.bf16.mxu0 %v1280
      %2827 = vmatmul.mubr.bf16.gmra.mrb[0].mxu0 %v1279
      %v2828 = vpop.f32.mrb[0].mxu0
      %v2829 = vadd.f32 %v2684, %v2828
      %v2830 = vpop.f32.mrb[0].mxu0
      %v2831 = vpop.f32.mrb[0].mxu0
      %v2832 = vadd.f32 %v2687, %v2831
      %v2833 = vpop.f32.mrb[0].mxu0
      %2834 = vmatprep.mubr.bf16.mxu0 %v1293
      %2835 = vmatmul.mubr.bf16.gmra.mrb[0].mxu0 %v1292
      %v2836 = vpop.f32.mrb[0].mxu0
      %v2837 = vadd.f32 %v2692, %v2836
      %v2838 = vpop.f32.mrb[0].mxu0
      %v2839 = vpop.f32.mrb[0].mxu0
      %v2840 = vadd.f32 %v2695, %v2839
      %v2841 = vpop.f32.mrb[0].mxu0
      %2842 = vmatprep.mubr.bf16.mxu0 %v1306
      %2843 = vmatmul.mubr.bf16.gmra.mrb[0].mxu0 %v1305
      %v2844 = vpop.f32.mrb[0].mxu0
      %v2845 = vadd.f32 %v2700, %v2844
      %v2846 = vpop.f32.mrb[0].mxu0
      %v2847 = vpop.f32.mrb[0].mxu0
      %v2848 = vadd.f32 %v2703, %v2847
      %v2849 = vpop.f32.mrb[0].mxu0
      %2850 = vmatprep.mubr.bf16.mxu0 %v1319
      %2851 = vmatmul.mubr.bf16.gmra.mrb[0].mxu0 %v1318
      %v2852 = vpop.f32.mrb[0].mxu0
      %v2853 = vadd.f32 %v2708, %v2852
      %v2854 = vpop.f32.mrb[0].mxu0
      %v2855 = vpop.f32.mrb[0].mxu0
      %v2856 = vadd.f32 %v2711, %v2855
      %v2857 = vpop.f32.mrb[0].mxu0
      %2858 = vdwg.mxu0
      %2859 = vmatprep.subr.bf16.mxu0 0
      %2860 = vmatpush1.bf16.msra.mxu0 %v1971
      %2861 = vmatprep.subr.bf16.mxu0 0
      %2862 = vmatpush1.bf16.msra.mxu0 %v1972
      %2863 = vmatprep.subr.bf16.mxu0 0
      %2864 = vmatpush1.bf16.msra.mxu0 %v1973
      %2865 = vmatprep.subr.bf16.mxu0 0
      %2866 = vmatpush1.bf16.msra.mxu0 %v1974
      %2867 = vmatprep.subr.bf16.mxu0 0
      %2868 = vmatpush1.bf16.msra.mxu0 %v1975
      %2869 = vmatprep.subr.bf16.mxu0 0
      %2870 = vmatpush1.bf16.msra.mxu0 %v1976
      %2871 = vmatprep.subr.bf16.mxu0 0
      %2872 = vmatpush1.bf16.msra.mxu0 %v1977
      %2873 = vmatprep.subr.bf16.mxu0 0
      %2874 = vmatpush1.bf16.msra.mxu0 %v1978
      %2875 = vmatprep.subr.bf16.mxu0 0
      %2876 = vmatpush1.bf16.msra.mxu0 %v1979
      %2877 = vmatprep.subr.bf16.mxu0 0
      %2878 = vmatpush1.bf16.msra.mxu0 %v1980
      %2879 = vmatprep.subr.bf16.mxu0 0
      %2880 = vmatpush1.bf16.msra.mxu0 %v1981
      %2881 = vmatprep.subr.bf16.mxu0 0
      %2882 = vmatpush1.bf16.msra.mxu0 %v1982
      %2883 = vmatprep.subr.bf16.mxu0 0
      %2884 = vmatpush1.bf16.msra.mxu0 %v1983
      %2885 = vmatprep.subr.bf16.mxu0 0
      %2886 = vmatpush1.bf16.msra.mxu0 %v1984
      %2887 = vmatprep.subr.bf16.mxu0 0
      %2888 = vmatpush1.bf16.msra.mxu0 %v1985
      %2889 = vmatprep.subr.bf16.mxu0 0
      %2890 = vmatpush1.bf16.msra.mxu0 %v1986
      %2891 = vmatprep.mubr.bf16.mxu0 %v1152
      %2892 = vmatmul.mubr.bf16.gmra.mrb[0].mxu0 %v1151
      %v2893 = vpop.f32.mrb[0].mxu0
      %v2894 = vadd.f32 %v2749, %v2893
      %v2895 = vpop.f32.mrb[0].mxu0
      %v2896 = vpop.f32.mrb[0].mxu0
      %v2897 = vadd.f32 %v2752, %v2896
      %v2898 = vpop.f32.mrb[0].mxu0
      %2899 = vmatprep.mubr.bf16.mxu0 %v1165
      %2900 = vmatmul.mubr.bf16.gmra.mrb[0].mxu0 %v1164
      %v2901 = vpop.f32.mrb[0].mxu0
      %v2902 = vadd.f32 %v2757, %v2901
      %v2903 = vpop.f32.mrb[0].mxu0
      %v2904 = vpop.f32.mrb[0].mxu0
      %v2905 = vadd.f32 %v2760, %v2904
      %v2906 = vpop.f32.mrb[0].mxu0
      %2907 = vmatprep.mubr.bf16.mxu0 %v1178
      %2908 = vmatmul.mubr.bf16.gmra.mrb[0].mxu0 %v1177
      %v2909 = vpop.f32.mrb[0].mxu0
      %v2910 = vadd.f32 %v2765, %v2909
      %v2911 = vpop.f32.mrb[0].mxu0
      %v2912 = vpop.f32.mrb[0].mxu0
      %v2913 = vadd.f32 %v2768, %v2912
      %v2914 = vpop.f32.mrb[0].mxu0
      %2915 = vmatprep.mubr.bf16.mxu0 %v1191
      %2916 = vmatmul.mubr.bf16.gmra.mrb[0].mxu0 %v1190
      %v2917 = vpop.f32.mrb[0].mxu0
      %v2918 = vadd.f32 %v2773, %v2917
      %v2919 = vpop.f32.mrb[0].mxu0
      %v2920 = vpop.f32.mrb[0].mxu0
      %v2921 = vadd.f32 %v2776, %v2920
      %v2922 = vpop.f32.mrb[0].mxu0
      %2923 = vmatprep.mubr.bf16.mxu0 %v1204
      %2924 = vmatmul.mubr.bf16.gmra.mrb[0].mxu0 %v1203
      %v2925 = vpop.f32.mrb[0].mxu0
      %v2926 = vadd.f32 %v2781, %v2925
      %v2927 = vpop.f32.mrb[0].mxu0
      %v2928 = vpop.f32.mrb[0].mxu0
      %v2929 = vadd.f32 %v2784, %v2928
      %v2930 = vpop.f32.mrb[0].mxu0
      %2931 = vmatprep.mubr.bf16.mxu0 %v1217
      %2932 = vmatmul.mubr.bf16.gmra.mrb[0].mxu0 %v1216
      %v2933 = vpop.f32.mrb[0].mxu0
      %v2934 = vadd.f32 %v2789, %v2933
      %v2935 = vpop.f32.mrb[0].mxu0
      %v2936 = vpop.f32.mrb[0].mxu0
      %v2937 = vadd.f32 %v2792, %v2936
      %v2938 = vpop.f32.mrb[0].mxu0
      %2939 = vmatprep.mubr.bf16.mxu0 %v1230
      %2940 = vmatmul.mubr.bf16.gmra.mrb[0].mxu0 %v1229
      %v2941 = vpop.f32.mrb[0].mxu0
      %v2942 = vadd.f32 %v2797, %v2941
      %v2943 = vpop.f32.mrb[0].mxu0
      %v2944 = vpop.f32.mrb[0].mxu0
      %v2945 = vadd.f32 %v2800, %v2944
      %v2946 = vpop.f32.mrb[0].mxu0
      %2947 = vmatprep.mubr.bf16.mxu0 %v1243
      %2948 = vmatmul.mubr.bf16.gmra.mrb[0].mxu0 %v1242
      %v2949 = vpop.f32.mrb[0].mxu0
      %v2950 = vadd.f32 %v2805, %v2949
      %v2951 = vpop.f32.mrb[0].mxu0
      %v2952 = vpop.f32.mrb[0].mxu0
      %v2953 = vadd.f32 %v2808, %v2952
      %v2954 = vpop.f32.mrb[0].mxu0
      %2955 = vmatprep.mubr.bf16.mxu0 %v1256
      %2956 = vmatmul.mubr.bf16.gmra.mrb[0].mxu0 %v1255
      %v2957 = vpop.f32.mrb[0].mxu0
      %v2958 = vadd.f32 %v2813, %v2957
      %v2959 = vpop.f32.mrb[0].mxu0
      %v2960 = vpop.f32.mrb[0].mxu0
      %v2961 = vadd.f32 %v2816, %v2960
      %v2962 = vpop.f32.mrb[0].mxu0
      %2963 = vmatprep.mubr.bf16.mxu0 %v1269
      %2964 = vmatmul.mubr.bf16.gmra.mrb[0].mxu0 %v1268
      %v2965 = vpop.f32.mrb[0].mxu0
      %v2966 = vadd.f32 %v2821, %v2965
      %v2967 = vpop.f32.mrb[0].mxu0
      %v2968 = vpop.f32.mrb[0].mxu0
      %v2969 = vadd.f32 %v2824, %v2968
      %v2970 = vpop.f32.mrb[0].mxu0
      %2971 = vmatprep.mubr.bf16.mxu0 %v1282
      %2972 = vmatmul.mubr.bf16.gmra.mrb[0].mxu0 %v1281
      %v2973 = vpop.f32.mrb[0].mxu0
      %v2974 = vadd.f32 %v2829, %v2973
      %v2975 = vpop.f32.mrb[0].mxu0
      %v2976 = vpop.f32.mrb[0].mxu0
      %v2977 = vadd.f32 %v2832, %v2976
      %v2978 = vpop.f32.mrb[0].mxu0
      %2979 = vmatprep.mubr.bf16.mxu0 %v1295
      %2980 = vmatmul.mubr.bf16.gmra.mrb[0].mxu0 %v1294
      %v2981 = vpop.f32.mrb[0].mxu0
      %v2982 = vadd.f32 %v2837, %v2981
      %v2983 = vpop.f32.mrb[0].mxu0
      %v2984 = vpop.f32.mrb[0].mxu0
      %v2985 = vadd.f32 %v2840, %v2984
      %v2986 = vpop.f32.mrb[0].mxu0
      %2987 = vmatprep.mubr.bf16.mxu0 %v1308
      %2988 = vmatmul.mubr.bf16.gmra.mrb[0].mxu0 %v1307
      %v2989 = vpop.f32.mrb[0].mxu0
      %v2990 = vadd.f32 %v2845, %v2989
      %v2991 = vpop.f32.mrb[0].mxu0
      %v2992 = vpop.f32.mrb[0].mxu0
      %v2993 = vadd.f32 %v2848, %v2992
      %v2994 = vpop.f32.mrb[0].mxu0
      %2995 = vmatprep.mubr.bf16.mxu0 %v1321
      %2996 = vmatmul.mubr.bf16.gmra.mrb[0].mxu0 %v1320
      %v2997 = vpop.f32.mrb[0].mxu0
      %v2998 = vadd.f32 %v2853, %v2997
      %v2999 = vpop.f32.mrb[0].mxu0
      %v3000 = vpop.f32.mrb[0].mxu0
      %v3001 = vadd.f32 %v2856, %v3000
      %v3002 = vpop.f32.mrb[0].mxu0
      %3003 = vdwg.mxu0
      %3004 = vmatprep.subr.bf16.mxu0 0
      %3005 = vmatpush1.bf16.msra.mxu0 %v1987
      %3006 = vmatprep.subr.bf16.mxu0 0
      %3007 = vmatpush1.bf16.msra.mxu0 %v1988
      %3008 = vmatprep.subr.bf16.mxu0 0
      %3009 = vmatpush1.bf16.msra.mxu0 %v1989
      %3010 = vmatprep.subr.bf16.mxu0 0
      %3011 = vmatpush1.bf16.msra.mxu0 %v1990
      %3012 = vmatprep.subr.bf16.mxu0 0
      %3013 = vmatpush1.bf16.msra.mxu0 0
      %3014 = vmatprep.subr.bf16.mxu0 0
      %3015 = vmatpush1.bf16.msra.mxu0 0
      %3016 = vmatprep.subr.bf16.mxu0 0
      %3017 = vmatpush1.bf16.msra.mxu0 0
      %3018 = vmatprep.subr.bf16.mxu0 0
      %3019 = vmatpush1.bf16.msra.mxu0 0
      %3020 = vmatprep.subr.bf16.mxu0 0
      %3021 = vmatpush1.bf16.msra.mxu0 0
      %3022 = vmatprep.subr.bf16.mxu0 0
      %3023 = vmatpush1.bf16.msra.mxu0 0
      %3024 = vmatprep.subr.bf16.mxu0 0
      %3025 = vmatpush1.bf16.msra.mxu0 0
      %3026 = vmatprep.subr.bf16.mxu0 0
      %3027 = vmatpush1.bf16.msra.mxu0 0
      %3028 = vmatprep.subr.bf16.mxu0 0
      %3029 = vmatpush1.bf16.msra.mxu0 0
      %3030 = vmatprep.subr.bf16.mxu0 0
      %3031 = vmatpush1.bf16.msra.mxu0 0
      %3032 = vmatprep.subr.bf16.mxu0 0
      %3033 = vmatpush1.bf16.msra.mxu0 0
      %3034 = vmatprep.subr.bf16.mxu0 0
      %3035 = vmatpush1.bf16.msra.mxu0 0
      %3036 = vmatprep.mubr.bf16.mxu0 0
      %3037 = vmatmul.mubr.bf16.gmra.mrb[0].mxu0 %v2093
      %v3038 = vpop.f32.mrb[0].mxu0
      %v3039 = vadd.f32 %v2894, %v3038
      %v3040 = vpop.f32.mrb[0].mxu0
      %v3041 = vpop.f32.mrb[0].mxu0
      %v3042 = vadd.f32 %v2897, %v3041
      %v3043 = vpop.f32.mrb[0].mxu0
      %3044 = vmatprep.mubr.bf16.mxu0 0
      %3045 = vmatmul.mubr.bf16.gmra.mrb[0].mxu0 %v2096
      %v3046 = vpop.f32.mrb[0].mxu0
      %v3047 = vadd.f32 %v2902, %v3046
      %v3048 = vpop.f32.mrb[0].mxu0
      %v3049 = vpop.f32.mrb[0].mxu0
      %v3050 = vadd.f32 %v2905, %v3049
      %v3051 = vpop.f32.mrb[0].mxu0
      %3052 = vmatprep.mubr.bf16.mxu0 0
      %3053 = vmatmul.mubr.bf16.gmra.mrb[0].mxu0 %v2099
      %v3054 = vpop.f32.mrb[0].mxu0
      %v3055 = vadd.f32 %v2910, %v3054
      %v3056 = vpop.f32.mrb[0].mxu0
      %v3057 = vpop.f32.mrb[0].mxu0
      %v3058 = vadd.f32 %v2913, %v3057
      %v3059 = vpop.f32.mrb[0].mxu0
      %3060 = vmatprep.mubr.bf16.mxu0 0
      %3061 = vmatmul.mubr.bf16.gmra.mrb[0].mxu0 %v2102
      %v3062 = vpop.f32.mrb[0].mxu0
      %v3063 = vadd.f32 %v2918, %v3062
      %v3064 = vpop.f32.mrb[0].mxu0
      %v3065 = vpop.f32.mrb[0].mxu0
      %v3066 = vadd.f32 %v2921, %v3065
      %v3067 = vpop.f32.mrb[0].mxu0
      %3068 = vmatprep.mubr.bf16.mxu0 0
      %3069 = vmatmul.mubr.bf16.gmra.mrb[0].mxu0 %v2105
      %v3070 = vpop.f32.mrb[0].mxu0
      %v3071 = vadd.f32 %v2926, %v3070
      %v3072 = vpop.f32.mrb[0].mxu0
      %v3073 = vpop.f32.mrb[0].mxu0
      %v3074 = vadd.f32 %v2929, %v3073
      %v3075 = vpop.f32.mrb[0].mxu0
      %3076 = vmatprep.mubr.bf16.mxu0 0
      %3077 = vmatmul.mubr.bf16.gmra.mrb[0].mxu0 %v2108
      %v3078 = vpop.f32.mrb[0].mxu0
      %v3079 = vadd.f32 %v2934, %v3078
      %v3080 = vpop.f32.mrb[0].mxu0
      %v3081 = vpop.f32.mrb[0].mxu0
      %v3082 = vadd.f32 %v2937, %v3081
      %v3083 = vpop.f32.mrb[0].mxu0
      %3084 = vmatprep.mubr.bf16.mxu0 0
      %3085 = vmatmul.mubr.bf16.gmra.mrb[0].mxu0 %v2111
      %v3086 = vpop.f32.mrb[0].mxu0
      %v3087 = vadd.f32 %v2942, %v3086
      %v3088 = vpop.f32.mrb[0].mxu0
      %v3089 = vpop.f32.mrb[0].mxu0
      %v3090 = vadd.f32 %v2945, %v3089
      %v3091 = vpop.f32.mrb[0].mxu0
      %3092 = vmatprep.mubr.bf16.mxu0 0
      %3093 = vmatmul.mubr.bf16.gmra.mrb[0].mxu0 %v2114
      %v3094 = vpop.f32.mrb[0].mxu0
      %v3095 = vadd.f32 %v2950, %v3094
      %v3096 = vpop.f32.mrb[0].mxu0
      %v3097 = vpop.f32.mrb[0].mxu0
      %v3098 = vadd.f32 %v2953, %v3097
      %v3099 = vpop.f32.mrb[0].mxu0
      %3100 = vmatprep.mubr.bf16.mxu0 0
      %3101 = vmatmul.mubr.bf16.gmra.mrb[0].mxu0 %v2117
      %v3102 = vpop.f32.mrb[0].mxu0
      %v3103 = vadd.f32 %v2958, %v3102
      %v3104 = vpop.f32.mrb[0].mxu0
      %v3105 = vpop.f32.mrb[0].mxu0
      %v3106 = vadd.f32 %v2961, %v3105
      %v3107 = vpop.f32.mrb[0].mxu0
      %3108 = vmatprep.mubr.bf16.mxu0 0
      %3109 = vmatmul.mubr.bf16.gmra.mrb[0].mxu0 %v2120
      %v3110 = vpop.f32.mrb[0].mxu0
      %v3111 = vadd.f32 %v2966, %v3110
      %v3112 = vpop.f32.mrb[0].mxu0
      %v3113 = vpop.f32.mrb[0].mxu0
      %v3114 = vadd.f32 %v2969, %v3113
      %v3115 = vpop.f32.mrb[0].mxu0
      %3116 = vmatprep.mubr.bf16.mxu0 0
      %3117 = vmatmul.mubr.bf16.gmra.mrb[0].mxu0 %v2123
      %v3118 = vpop.f32.mrb[0].mxu0
      %v3119 = vadd.f32 %v2974, %v3118
      %v3120 = vpop.f32.mrb[0].mxu0
      %v3121 = vpop.f32.mrb[0].mxu0
      %v3122 = vadd.f32 %v2977, %v3121
      %v3123 = vpop.f32.mrb[0].mxu0
      %3124 = vmatprep.mubr.bf16.mxu0 0
      %3125 = vmatmul.mubr.bf16.gmra.mrb[0].mxu0 %v2126
      %v3126 = vpop.f32.mrb[0].mxu0
      %v3127 = vadd.f32 %v2982, %v3126
      %v3128 = vpop.f32.mrb[0].mxu0
      %v3129 = vpop.f32.mrb[0].mxu0
      %v3130 = vadd.f32 %v2985, %v3129
      %v3131 = vpop.f32.mrb[0].mxu0
      %3132 = vmatprep.mubr.bf16.mxu0 0
      %3133 = vmatmul.mubr.bf16.gmra.mrb[0].mxu0 %v2129
      %v3134 = vpop.f32.mrb[0].mxu0
      %v3135 = vadd.f32 %v2990, %v3134
      %v3136 = vpop.f32.mrb[0].mxu0
      %v3137 = vpop.f32.mrb[0].mxu0
      %v3138 = vadd.f32 %v2993, %v3137
      %v3139 = vpop.f32.mrb[0].mxu0
      %3140 = vmatprep.mubr.bf16.mxu0 0
      %3141 = vmatmul.mubr.bf16.gmra.mrb[0].mxu0 %v2132
      %v3142 = vpop.f32.mrb[0].mxu0
      %v3143 = vadd.f32 %v2998, %v3142
      %v3144 = vpop.f32.mrb[0].mxu0
      %v3145 = vpop.f32.mrb[0].mxu0
      %v3146 = vadd.f32 %v3001, %v3145
      %v3147 = vpop.f32.mrb[0].mxu0
      %3148 = vdwg.mxu0
      %vm3149 = vcmp.gt.f32.partialorder %v3039, 0.0
      %vm3150 = vcmp.gt.f32.partialorder %v3042, 0.0
      %vm3151 = vcmp.gt.f32.partialorder %v3047, 0.0
      %vm3152 = vcmp.gt.f32.partialorder %v3050, 0.0
      %vm3153 = vcmp.gt.f32.partialorder %v3055, 0.0
      %vm3154 = vcmp.gt.f32.partialorder %v3058, 0.0
      %vm3155 = vcmp.gt.f32.partialorder %v3063, 0.0
      %vm3156 = vcmp.gt.f32.partialorder %v3066, 0.0
      %vm3157 = vcmp.gt.f32.partialorder %v3071, 0.0
      %vm3158 = vcmp.gt.f32.partialorder %v3074, 0.0
      %vm3159 = vcmp.gt.f32.partialorder %v3079, 0.0
      %vm3160 = vcmp.gt.f32.partialorder %v3082, 0.0
      %vm3161 = vcmp.gt.f32.partialorder %v3087, 0.0
      %vm3162 = vcmp.gt.f32.partialorder %v3090, 0.0
      %vm3163 = vcmp.gt.f32.partialorder %v3095, 0.0
      %vm3164 = vcmp.gt.f32.partialorder %v3098, 0.0
      %vm3165 = vcmp.gt.f32.partialorder %v3103, 0.0
      %vm3166 = vcmp.gt.f32.partialorder %v3106, 0.0
      %vm3167 = vcmp.gt.f32.partialorder %v3111, 0.0
      %vm3168 = vcmp.gt.f32.partialorder %v3114, 0.0
      %vm3169 = vcmp.gt.f32.partialorder %v3119, 0.0
      %vm3170 = vcmp.gt.f32.partialorder %v3122, 0.0
      %vm3171 = vcmp.gt.f32.partialorder %v3127, 0.0
      %vm3172 = vcmp.gt.f32.partialorder %v3130, 0.0
      %vm3173 = vcmp.gt.f32.partialorder %v3135, 0.0
      %vm3174 = vcmp.gt.f32.partialorder %v3138, 0.0
      %vm3175 = vcmp.gt.f32.partialorder %v3143, 0.0
      %vm3176 = vcmp.gt.f32.partialorder %v3146, 0.0
      %v3177 = vmin.f32 %v3039, 0.0
      %v3178 = vmin.f32 %v3042, 0.0
      %v3179 = vmin.f32 %v3047, 0.0
      %v3180 = vmin.f32 %v3050, 0.0
      %v3181 = vmin.f32 %v3055, 0.0
      %v3182 = vmin.f32 %v3058, 0.0
      %v3183 = vmin.f32 %v3063, 0.0
      %v3184 = vmin.f32 %v3066, 0.0
      %v3185 = vmin.f32 %v3071, 0.0
      %v3186 = vmin.f32 %v3074, 0.0
      %v3187 = vmin.f32 %v3079, 0.0
      %v3188 = vmin.f32 %v3082, 0.0
      %v3189 = vmin.f32 %v3087, 0.0
      %v3190 = vmin.f32 %v3090, 0.0
      %v3191 = vmin.f32 %v3095, 0.0
      %v3192 = vmin.f32 %v3098, 0.0
      %v3193 = vmin.f32 %v3103, 0.0
      %v3194 = vmin.f32 %v3106, 0.0
      %v3195 = vmin.f32 %v3111, 0.0
      %v3196 = vmin.f32 %v3114, 0.0
      %v3197 = vmin.f32 %v3119, 0.0
      %v3198 = vmin.f32 %v3122, 0.0
      %v3199 = vmin.f32 %v3127, 0.0
      %v3200 = vmin.f32 %v3130, 0.0
      %v3201 = vmin.f32 %v3135, 0.0
      %v3202 = vmin.f32 %v3138, 0.0
      %v3203 = vmin.f32 %v3143, 0.0
      %v3204 = vmin.f32 %v3146, 0.0
      %v3205 = vmul.f32 %v3177, 1.442695
      %v3206 = vpow.pop %v3205
      %v3207 = vmul.f32 %v3178, 1.442695
      %v3208 = vpow.pop %v3207
      %v3209 = vmul.f32 %v3179, 1.442695
      %v3210 = vpow.pop %v3209
      %v3211 = vmul.f32 %v3180, 1.442695
      %v3212 = vpow.pop %v3211
      %v3213 = vmul.f32 %v3181, 1.442695
      %v3214 = vpow.pop %v3213
      %v3215 = vmul.f32 %v3182, 1.442695
      %v3216 = vpow.pop %v3215
      %v3217 = vmul.f32 %v3183, 1.442695
      %v3218 = vpow.pop %v3217
      %v3219 = vmul.f32 %v3184, 1.442695
      %v3220 = vpow.pop %v3219
      %v3221 = vmul.f32 %v3185, 1.442695
      %v3222 = vpow.pop %v3221
      %v3223 = vmul.f32 %v3186, 1.442695
      %v3224 = vpow.pop %v3223
      %v3225 = vmul.f32 %v3187, 1.442695
      %v3226 = vpow.pop %v3225
      %v3227 = vmul.f32 %v3188, 1.442695
      %v3228 = vpow.pop %v3227
      %v3229 = vmul.f32 %v3189, 1.442695
      %v3230 = vpow.pop %v3229
      %v3231 = vmul.f32 %v3190, 1.442695
      %v3232 = vpow.pop %v3231
      %v3233 = vmul.f32 %v3191, 1.442695
      %v3234 = vpow.pop %v3233
      %v3235 = vmul.f32 %v3192, 1.442695
      %v3236 = vpow.pop %v3235
      %v3237 = vmul.f32 %v3193, 1.442695
      %v3238 = vpow.pop %v3237
      %v3239 = vmul.f32 %v3194, 1.442695
      %v3240 = vpow.pop %v3239
      %v3241 = vmul.f32 %v3195, 1.442695
      %v3242 = vpow.pop %v3241
      %v3243 = vmul.f32 %v3196, 1.442695
      %v3244 = vpow.pop %v3243
      %v3245 = vmul.f32 %v3197, 1.442695
      %v3246 = vpow.pop %v3245
      %v3247 = vmul.f32 %v3198, 1.442695
      %v3248 = vpow.pop %v3247
      %v3249 = vmul.f32 %v3199, 1.442695
      %v3250 = vpow.pop %v3249
      %v3251 = vmul.f32 %v3200, 1.442695
      %v3252 = vpow.pop %v3251
      %v3253 = vmul.f32 %v3201, 1.442695
      %v3254 = vpow.pop %v3253
      %v3255 = vmul.f32 %v3202, 1.442695
      %v3256 = vpow.pop %v3255
      %v3257 = vmul.f32 %v3203, 1.442695
      %v3258 = vpow.pop %v3257
      %v3259 = vmul.f32 %v3204, 1.442695
      %v3260 = vpow.pop %v3259
      %v3261 = vsub.f32 %v3206, 1.0
      %v3262 = vsub.f32 %v3208, 1.0
      %v3263 = vsub.f32 %v3210, 1.0
      %v3264 = vsub.f32 %v3212, 1.0
      %v3265 = vsub.f32 %v3214, 1.0
      %v3266 = vsub.f32 %v3216, 1.0
      %v3267 = vsub.f32 %v3218, 1.0
      %v3268 = vsub.f32 %v3220, 1.0
      %v3269 = vsub.f32 %v3222, 1.0
      %v3270 = vsub.f32 %v3224, 1.0
      %v3271 = vsub.f32 %v3226, 1.0
      %v3272 = vsub.f32 %v3228, 1.0
      %v3273 = vsub.f32 %v3230, 1.0
      %v3274 = vsub.f32 %v3232, 1.0
      %v3275 = vsub.f32 %v3234, 1.0
      %v3276 = vsub.f32 %v3236, 1.0
      %v3277 = vsub.f32 %v3238, 1.0
      %v3278 = vsub.f32 %v3240, 1.0
      %v3279 = vsub.f32 %v3242, 1.0
      %v3280 = vsub.f32 %v3244, 1.0
      %v3281 = vsub.f32 %v3246, 1.0
      %v3282 = vsub.f32 %v3248, 1.0
      %v3283 = vsub.f32 %v3250, 1.0
      %v3284 = vsub.f32 %v3252, 1.0
      %v3285 = vsub.f32 %v3254, 1.0
      %v3286 = vsub.f32 %v3256, 1.0
      %v3287 = vsub.f32 %v3258, 1.0
      %v3288 = vsub.f32 %v3260, 1.0
      %v3289 = vsel %vm3149, %v3039, %v3261
      %v3290 = vsel %vm3150, %v3042, %v3262
      %v3291 = vsel %vm3151, %v3047, %v3263
      %v3292 = vsel %vm3152, %v3050, %v3264
      %v3293 = vsel %vm3153, %v3055, %v3265
      %v3294 = vsel %vm3154, %v3058, %v3266
      %v3295 = vsel %vm3155, %v3063, %v3267
      %v3296 = vsel %vm3156, %v3066, %v3268
      %v3297 = vsel %vm3157, %v3071, %v3269
      %v3298 = vsel %vm3158, %v3074, %v3270
      %v3299 = vsel %vm3159, %v3079, %v3271
      %v3300 = vsel %vm3160, %v3082, %v3272
      %v3301 = vsel %vm3161, %v3087, %v3273
      %v3302 = vsel %vm3162, %v3090, %v3274
      %v3303 = vsel %vm3163, %v3095, %v3275
      %v3304 = vsel %vm3164, %v3098, %v3276
      %v3305 = vsel %vm3165, %v3103, %v3277
      %v3306 = vsel %vm3166, %v3106, %v3278
      %v3307 = vsel %vm3167, %v3111, %v3279
      %v3308 = vsel %vm3168, %v3114, %v3280
      %v3309 = vsel %vm3169, %v3119, %v3281
      %v3310 = vsel %vm3170, %v3122, %v3282
      %v3311 = vsel %vm3171, %v3127, %v3283
      %v3312 = vsel %vm3172, %v3130, %v3284
      %v3313 = vsel %vm3173, %v3135, %v3285
      %v3314 = vsel %vm3174, %v3138, %v3286
      %v3315 = vsel %vm3175, %v3143, %v3287
      %v3316 = vsel %vm3176, %v3146, %v3288
      %v3317 = vpack.c.bf16 %v3290, %v3289
      %v3318 = vpack.c.bf16 %v3292, %v3291
      %v3319 = vpack.c.bf16 %v3294, %v3293
      %v3320 = vpack.c.bf16 %v3296, %v3295
      %v3321 = vpack.c.bf16 %v3298, %v3297
      %v3322 = vpack.c.bf16 %v3300, %v3299
      %v3323 = vpack.c.bf16 %v3302, %v3301
      %v3324 = vpack.c.bf16 %v3304, %v3303
      %v3325 = vpack.c.bf16 %v3306, %v3305
      %v3326 = vpack.c.bf16 %v3308, %v3307
      %v3327 = vpack.c.bf16 %v3310, %v3309
      %v3328 = vpack.c.bf16 %v3312, %v3311
      %v3329 = vpack.c.bf16 %v3314, %v3313
      %v3330 = vpack.c.bf16 %v3316, %v3315
      %v3345 = vunpack.c.l.b16 %v3317
      %v3346 = vunpack.c.h.b16 %v3317
      %v3347 = vunpack.c.l.b16 %v3318
      %v3348 = vunpack.c.h.b16 %v3318
      %v3349 = vunpack.c.l.b16 %v3319
      %v3350 = vunpack.c.h.b16 %v3319
      %v3351 = vunpack.c.l.b16 %v3320
      %v3352 = vunpack.c.h.b16 %v3320
      %v3353 = vunpack.c.l.b16 %v3321
      %v3354 = vunpack.c.h.b16 %v3321
      %v3355 = vunpack.c.l.b16 %v3322
      %v3356 = vunpack.c.h.b16 %v3322
      %v3357 = vunpack.c.l.b16 %v3323
      %v3358 = vunpack.c.h.b16 %v3323
      %v3359 = vunpack.c.l.b16 %v3324
      %v3360 = vunpack.c.h.b16 %v3324
      %v3361 = vunpack.c.l.b16 %v3325
      %v3362 = vunpack.c.h.b16 %v3325
      %v3363 = vunpack.c.l.b16 %v3326
      %v3364 = vunpack.c.h.b16 %v3326
      %v3365 = vunpack.c.l.b16 %v3327
      %v3366 = vunpack.c.h.b16 %v3327
      %v3367 = vunpack.c.l.b16 %v3328
      %v3368 = vunpack.c.h.b16 %v3328
      %v3369 = vunpack.c.l.b16 %v3329
      %v3370 = vunpack.c.h.b16 %v3329
      %v3371 = vunpack.c.l.b16 %v3330
      %v3372 = vunpack.c.h.b16 %v3330
      %v3373 = vpack.c.b16 %v3345, %v3345
      %v3374 = vpack.c.b16 %v3346, %v3346
      %v3375 = vpack.c.b16 %v3347, %v3347
      %v3376 = vpack.c.b16 %v3348, %v3348
      %v3377 = vpack.c.b16 %v3349, %v3349
      %v3378 = vpack.c.b16 %v3350, %v3350
      %v3379 = vpack.c.b16 %v3351, %v3351
      %v3380 = vpack.c.b16 %v3352, %v3352
      %v3381 = vpack.c.b16 %v3353, %v3353
      %v3382 = vpack.c.b16 %v3354, %v3354
      %v3383 = vpack.c.b16 %v3355, %v3355
      %v3384 = vpack.c.b16 %v3356, %v3356
      %v3385 = vpack.c.b16 %v3357, %v3357
      %v3386 = vpack.c.b16 %v3358, %v3358
      %v3387 = vpack.c.b16 %v3359, %v3359
      %v3388 = vpack.c.b16 %v3360, %v3360
      %v3389 = vpack.c.b16 %v3361, %v3361
      %v3390 = vpack.c.b16 %v3362, %v3362
      %v3391 = vpack.c.b16 %v3363, %v3363
      %v3392 = vpack.c.b16 %v3364, %v3364
      %v3393 = vpack.c.b16 %v3365, %v3365
      %v3394 = vpack.c.b16 %v3366, %v3366
      %v3395 = vpack.c.b16 %v3367, %v3367
      %v3396 = vpack.c.b16 %v3368, %v3368
      %v3397 = vpack.c.b16 %v3369, %v3369
      %v3398 = vpack.c.b16 %v3370, %v3370
      %v3399 = vpack.c.b16 %v3371, %v3371
      %v3400 = vpack.c.b16 %v3372, %v3372
      %vm3429 = vcmask 519168
      %3430 = vst.msk [vmem:[%s175] sm:$0xf] %vm3429, %v3373
      %3431 = vst.msk [vmem:[%s175 + $0x4] sm:$0xf] %vm3429, %v3374
      %3432 = vst.msk [vmem:[%s175 + $0x8] sm:$0xf] %vm3429, %v3375
      %3433 = vst.msk [vmem:[%s175 + $0xc] sm:$0xf] %vm3429, %v3376
      %3434 = vst.msk [vmem:[%s175 + $0x10] sm:$0xf] %vm3429, %v3377
      %3435 = vst.msk [vmem:[%s175 + $0x14] sm:$0xf] %vm3429, %v3378
      %3436 = vst.msk [vmem:[%s175 + $0x18] sm:$0xf] %vm3429, %v3379
      %3437 = vst.msk [vmem:[%s175 + $0x1c] sm:$0xf] %vm3429, %v3380
      %3438 = vst.msk [vmem:[%s175 + $0x20] sm:$0xf] %vm3429, %v3381
      %3439 = vst.msk [vmem:[%s175 + $0x24] sm:$0xf] %vm3429, %v3382
      %3440 = vst.msk [vmem:[%s175 + $0x28] sm:$0xf] %vm3429, %v3383
      %3441 = vst.msk [vmem:[%s175 + $0x2c] sm:$0xf] %vm3429, %v3384
      %3442 = vst.msk [vmem:[%s175 + $0x30] sm:$0xf] %vm3429, %v3385
      %3443 = vst.msk [vmem:[%s175 + $0x34] sm:$0xf] %vm3429, %v3386
      %3444 = vst.msk [vmem:[%s175 + $0x38] sm:$0xf] %vm3429, %v3387
      %3445 = vst.msk [vmem:[%s175 + $0x3c] sm:$0xf] %vm3429, %v3388
      %3446 = vst.msk [vmem:[%s175 + $0x40] sm:$0xf] %vm3429, %v3389
      %3447 = vst.msk [vmem:[%s175 + $0x44] sm:$0xf] %vm3429, %v3390
      %3448 = vst.msk [vmem:[%s175 + $0x48] sm:$0xf] %vm3429, %v3391
      %3449 = vst.msk [vmem:[%s175 + $0x4c] sm:$0xf] %vm3429, %v3392
      %3450 = vst.msk [vmem:[%s175 + $0x50] sm:$0xf] %vm3429, %v3393
      %3451 = vst.msk [vmem:[%s175 + $0x54] sm:$0xf] %vm3429, %v3394
      %3452 = vst.msk [vmem:[%s175 + $0x58] sm:$0xf] %vm3429, %v3395
      %3453 = vst.msk [vmem:[%s175 + $0x5c] sm:$0xf] %vm3429, %v3396
      %3454 = vst.msk [vmem:[%s175 + $0x60] sm:$0xf] %vm3429, %v3397
      %3455 = vst.msk [vmem:[%s175 + $0x64] sm:$0xf] %vm3429, %v3398
      %3456 = vst.msk [vmem:[%s175 + $0x68] sm:$0xf] %vm3429, %v3399
      %3457 = vst.msk [vmem:[%s175 + $0x6c] sm:$0xf] %vm3429, %v3400
      %s3458 = smul.u32 28, %s14
      %p3459 = scmp.lt.s32.totalorder %s3458, 111
      %s3460 = scalar_select %p3459, %s3458, 111
      %s3461 = smul.addr %s3460, 4
      %s3462 = scalar_lea.vmem %s3, %s3461
      // Predicated region
      $region33: #{rainbow_dqn_forward.4} parent=31 // pred_check
        %p3463 = pneg %p100
      $region34: #{rainbow_dqn_forward.4} parent=31 // pred_check_branch
        %3465 = sbr.rel (%p3463) target = $region36
      $region35: #{rainbow_dqn_forward.4} parent=31 // pred_region
        %s3466 = smul.u32 28, %s14
      $region36: #{rainbow_dqn_forward.4} parent=31 // pred_fallthru
        _
    $region32: #{rainbow_dqn_forward.4} parent=5 // pred_fallthru
      _
    %p3467 = scmp.le.s32.totalorder 2, %s9
    // Predicated region
    $region37: #{rainbow_dqn_forward.4} parent=5 // pred_check
      %p3468 = pneg %p3467
    $region38: #{rainbow_dqn_forward.4} parent=5 // pred_check_branch
      %3470 = sbr.rel (%p3468) target = $region40
    $region39: #{rainbow_dqn_forward.4} parent=5 // pred_region
      %s3471 = ssub.s32 %s9, 2
      // Predicated region
      $region41: #{rainbow_dqn_forward.4} parent=39 // pred_check
        %p3472 = pneg %p106
      $region42: #{rainbow_dqn_forward.4} parent=39 // pred_check_branch
        %3474 = sbr.rel (%p3472) target = $region44
      $region43: #{rainbow_dqn_forward.4} parent=39 // pred_region
        %s3475 = smul.u32 28, %s15
        %p3476 = scmp.lt.s32.totalorder %s3475, 111
        %s3477 = scalar_select %p3476, %s3475, 111
        %s3478 = smul.addr %s3477, 4
        %s3479 = scalar_lea.vmem %s3, %s3478
      $region44: #{rainbow_dqn_forward.4} parent=39 // pred_fallthru
        _
    $region40: #{rainbow_dqn_forward.4} parent=5 // pred_fallthru
      _
  $region6: #{rainbow_dqn_forward.4} parent=0 // loop_footer
    %s13 = sadd.s32 1, %s9
  $region7: #{rainbow_dqn_forward.4} parent=0 // loop_footer_branch
    %8 = sbr.rel target = $region3
  $region8: #{rainbow_dqn_forward.4} parent=0 // loop_exit
    _

// kernel: rainbow_dqn_forward.5
$region0: #{rainbow_dqn_forward.5}
  #allocation0 [shape = 'u32[]', space=smem, size = 0x4, offset = 0x4, fixed_abs, tag = 'smem constant byte address 0x4 - core index']
  #allocation1 [shape = 'u32[144,128]{1,0:T(1,128)}', space=vmem, size = 0x12000, scoped, tag = 'internal scratch']
  #allocation2 [shape = 'f32[18,32]{1,0:T(8,128)}', space=vmem, size = 0x3000, scoped, tag = 'scratch operand']
  #allocation3 [shape = 'f32[2,288]{1,0:T(2,128)}', space=vmem, size = 0xc00, scoped, tag = 'scratch operand']
  %s0 = inlined_call_operand.vmem [shape: bf16[2,18,1568], index: 0, kind: input, shape index: {}]
  %s1 = inlined_call_operand.vmem [shape: bf16[2,1568,32], index: 1, kind: input, shape index: {}]
  %s2 = inlined_call_operand.vmem [shape: f32[2,1,32], index: 2, kind: input, shape index: {}]
  %s3 = inlined_call_operand.vmem [shape: bf16[2,288,128], index: 3, kind: input, shape index: {}]
  %s4 = inlined_call_operand.vmem [shape: f32[2,1,128], index: 4, kind: input, shape index: {}]
  %s5 = inlined_call_operand.vmem [shape: bf16[2,128,256], index: 5, kind: input, shape index: {}]
  %s6 = inlined_call_operand.vmem [shape: f32[2,1,256], index: 6, kind: input, shape index: {}]
  %s7 = inlined_call_operand.vmem [shape: bf16[2,256,256], index: 7, kind: input, shape index: {}]
  %s8 = inlined_call_operand.vmem [shape: f32[2,1,256], index: 8, kind: input, shape index: {}]
  %s9 = inlined_call_operand.vmem [shape: f32[2,2,128], index: 9, kind: output, shape index: {}]
  %s10 = sld [smem:[#allocation0]]
  $region69: #{rainbow_dqn_forward.5} parent=0
    _
  %s12 = ssub.s32 1, %s10
  %s13 = scalar_select 0, %s12, %s10
  loop: start=0, step=1, limit=4
  $region2: #{rainbow_dqn_forward.5} parent=0 // loop_pre_header
    _
  $region3: #{rainbow_dqn_forward.5} parent=0 // loop_header
    %s15 = sphi 0, %s19
    %p16 = scmp.ge.s32.totalorder %s15, 4
    %s22 = sphi 0, %s34
    %s23 = sphi 0, %s30
    %s24 = sphi 0, %s22
    %s25 = sphi 0, %s23
    %s26 = sphi 0, %s24
    %s27 = sphi 0, %s25
    %s39 = sphi 0, %s41
    %s42 = sphi 0, %s39
    %s43 = sphi 0, %s42
    %s59 = sphi 0, %s43
    %s65 = sphi 0, %s67
    %s68 = sphi 0, %s65
    %s69 = sphi 0, %s68
    %s85 = sphi 0, %s69
    %s91 = sphi 0, %s93
    %s94 = sphi 0, %s91
    %s95 = sphi 0, %s94
    %s111 = sphi 0, %s95
    %s117 = sphi 0, %s119
    %s120 = sphi 0, %s117
    %s121 = sphi 0, %s120
    %s137 = sphi 0, %s121
    %s143 = sphi 0, %s145
    %s146 = sphi 0, %s143
    %s147 = sphi 0, %s146
    %s163 = sphi 0, %s147
    %s169 = sphi 0, %s171
    %s172 = sphi 0, %s169
    %s173 = sphi 0, %s172
    %s189 = sphi 0, %s173
    %s195 = sphi 0, %s197
    %s198 = sphi 0, %s195
    %s199 = sphi 0, %s198
    %s215 = sphi 0, %s199
    %s221 = sphi 0, %s223
    %s224 = sphi 0, %s221
    %s225 = sphi 0, %s224
    %s241 = sphi 0, %s225
    %s247 = sphi 0, %s249
    %s250 = sphi 0, %s247
    %s251 = sphi 0, %s250
    %s267 = sphi 0, %s251
    %s275 = sphi 0, %s277
    %s278 = sphi 0, %s275
    %s279 = sphi 0, %s278
    %s295 = sphi 0, %s279
  $region4: #{rainbow_dqn_forward.5} parent=0 // loop_header_branch
    %18 = sbr.rel (%p16) target = $region8
  $region5: #{rainbow_dqn_forward.5} parent=0 // loop_body
    %s20 = ssub.s32 %s15, 1
    %s21 = ssub.s32 %s15, 2
    %s28 = sadd.s32 1, %s23
    %p29 = scmp.ge.s32.totalorder %s28, 1
    %s30 = scalar_select %p29, 0, %s28
    %s31 = sadd.s32 1, %s22
    %s32 = scalar_select %p29, %s31, %s22
    %p33 = scmp.ge.s32.totalorder %s32, 2
    %s34 = scalar_select %p33, 0, %s32
    %s35 = ssub.s32 %s22, %s34
    %s36 = ssub.s32 %s23, %s30
    %s37 = sor.u32 %s35, %s36
    %p38 = scmp.eq.s32.totalorder %s37, 0
    %s40 = sadd.s32 %s39, 1
    %s41 = scalar_select %p38, %s39, %s40
    %p44 = pneg %p38
    %p45 = scmp.eq.s32.totalorder %s15, 1
    %p46 = por %p44, %p45
    %p47 = scmp.ne.s32.totalorder %s39, %s42
    %p48 = scmp.eq.s32.totalorder %s15, 0
    %p49 = por %p47, %p48
    %p50 = scmp.ne.s32.totalorder %s39, %s42
    %p51 = scmp.eq.s32.totalorder %s20, 1
    %p52 = por %p50, %p51
    %p53 = scmp.ne.s32.totalorder %s42, %s43
    %p54 = scmp.eq.s32.totalorder %s20, 0
    %p55 = por %p53, %p54
    %p56 = scmp.ne.s32.totalorder %s42, %s43
    %p57 = scmp.eq.s32.totalorder %s21, 1
    %p58 = por %p56, %p57
    %p60 = scmp.ne.s32.totalorder %s43, %s59
    %p61 = scmp.eq.s32.totalorder %s21, 0
    %p62 = por %p60, %p61
    %s63 = ssub.s32 %s22, %s34
    %p64 = scmp.eq.s32.totalorder %s63, 0
    %s66 = sadd.s32 %s65, 1
    %s67 = scalar_select %p64, %s65, %s66
    %p70 = pneg %p64
    %p71 = scmp.eq.s32.totalorder %s15, 1
    %p72 = por %p70, %p71
    %p73 = scmp.ne.s32.totalorder %s65, %s68
    %p74 = scmp.eq.s32.totalorder %s15, 0
    %p75 = por %p73, %p74
    %p76 = scmp.ne.s32.totalorder %s65, %s68
    %p77 = scmp.eq.s32.totalorder %s20, 1
    %p78 = por %p76, %p77
    %p79 = scmp.ne.s32.totalorder %s68, %s69
    %p80 = scmp.eq.s32.totalorder %s20, 0
    %p81 = por %p79, %p80
    %p82 = scmp.ne.s32.totalorder %s68, %s69
    %p83 = scmp.eq.s32.totalorder %s21, 1
    %p84 = por %p82, %p83
    %p86 = scmp.ne.s32.totalorder %s69, %s85
    %p87 = scmp.eq.s32.totalorder %s21, 0
    %p88 = por %p86, %p87
    %s89 = ssub.s32 %s22, %s34
    %p90 = scmp.eq.s32.totalorder %s89, 0
    %s92 = sadd.s32 %s91, 1
    %s93 = scalar_select %p90, %s91, %s92
    %p96 = pneg %p90
    %p97 = scmp.eq.s32.totalorder %s15, 1
    %p98 = por %p96, %p97
    %p99 = scmp.ne.s32.totalorder %s91, %s94
    %p100 = scmp.eq.s32.totalorder %s15, 0
    %p101 = por %p99, %p100
    %p102 = scmp.ne.s32.totalorder %s91, %s94
    %p103 = scmp.eq.s32.totalorder %s20, 1
    %p104 = por %p102, %p103
    %p105 = scmp.ne.s32.totalorder %s94, %s95
    %p106 = scmp.eq.s32.totalorder %s20, 0
    %p107 = por %p105, %p106
    %p108 = scmp.ne.s32.totalorder %s94, %s95
    %p109 = scmp.eq.s32.totalorder %s21, 1
    %p110 = por %p108, %p109
    %p112 = scmp.ne.s32.totalorder %s95, %s111
    %p113 = scmp.eq.s32.totalorder %s21, 0
    %p114 = por %p112, %p113
    %s115 = ssub.s32 %s22, %s34
    %p116 = scmp.eq.s32.totalorder %s115, 0
    %s118 = sadd.s32 %s117, 1
    %s119 = scalar_select %p116, %s117, %s118
    %p122 = pneg %p116
    %p123 = scmp.eq.s32.totalorder %s15, 1
    %p124 = por %p122, %p123
    %p125 = scmp.ne.s32.totalorder %s117, %s120
    %p126 = scmp.eq.s32.totalorder %s15, 0
    %p127 = por %p125, %p126
    %p128 = scmp.ne.s32.totalorder %s117, %s120
    %p129 = scmp.eq.s32.totalorder %s20, 1
    %p130 = por %p128, %p129
    %p131 = scmp.ne.s32.totalorder %s120, %s121
    %p132 = scmp.eq.s32.totalorder %s20, 0
    %p133 = por %p131, %p132
    %p134 = scmp.ne.s32.totalorder %s120, %s121
    %p135 = scmp.eq.s32.totalorder %s21, 1
    %p136 = por %p134, %p135
    %p138 = scmp.ne.s32.totalorder %s121, %s137
    %p139 = scmp.eq.s32.totalorder %s21, 0
    %p140 = por %p138, %p139
    %s141 = ssub.s32 %s22, %s34
    %p142 = scmp.eq.s32.totalorder %s141, 0
    %s144 = sadd.s32 %s143, 1
    %s145 = scalar_select %p142, %s143, %s144
    %p148 = pneg %p142
    %p149 = scmp.eq.s32.totalorder %s15, 1
    %p150 = por %p148, %p149
    %p151 = scmp.ne.s32.totalorder %s143, %s146
    %p152 = scmp.eq.s32.totalorder %s15, 0
    %p153 = por %p151, %p152
    %p154 = scmp.ne.s32.totalorder %s143, %s146
    %p155 = scmp.eq.s32.totalorder %s20, 1
    %p156 = por %p154, %p155
    %p157 = scmp.ne.s32.totalorder %s146, %s147
    %p158 = scmp.eq.s32.totalorder %s20, 0
    %p159 = por %p157, %p158
    %p160 = scmp.ne.s32.totalorder %s146, %s147
    %p161 = scmp.eq.s32.totalorder %s21, 1
    %p162 = por %p160, %p161
    %p164 = scmp.ne.s32.totalorder %s147, %s163
    %p165 = scmp.eq.s32.totalorder %s21, 0
    %p166 = por %p164, %p165
    %s167 = ssub.s32 %s22, %s34
    %p168 = scmp.eq.s32.totalorder %s167, 0
    %s170 = sadd.s32 %s169, 1
    %s171 = scalar_select %p168, %s169, %s170
    %p174 = pneg %p168
    %p175 = scmp.eq.s32.totalorder %s15, 1
    %p176 = por %p174, %p175
    %p177 = scmp.ne.s32.totalorder %s169, %s172
    %p178 = scmp.eq.s32.totalorder %s15, 0
    %p179 = por %p177, %p178
    %p180 = scmp.ne.s32.totalorder %s169, %s172
    %p181 = scmp.eq.s32.totalorder %s20, 1
    %p182 = por %p180, %p181
    %p183 = scmp.ne.s32.totalorder %s172, %s173
    %p184 = scmp.eq.s32.totalorder %s20, 0
    %p185 = por %p183, %p184
    %p186 = scmp.ne.s32.totalorder %s172, %s173
    %p187 = scmp.eq.s32.totalorder %s21, 1
    %p188 = por %p186, %p187
    %p190 = scmp.ne.s32.totalorder %s173, %s189
    %p191 = scmp.eq.s32.totalorder %s21, 0
    %p192 = por %p190, %p191
    %s193 = ssub.s32 %s22, %s34
    %p194 = scmp.eq.s32.totalorder %s193, 0
    %s196 = sadd.s32 %s195, 1
    %s197 = scalar_select %p194, %s195, %s196
    %p200 = pneg %p194
    %p201 = scmp.eq.s32.totalorder %s15, 1
    %p202 = por %p200, %p201
    %p203 = scmp.ne.s32.totalorder %s195, %s198
    %p204 = scmp.eq.s32.totalorder %s15, 0
    %p205 = por %p203, %p204
    %p206 = scmp.ne.s32.totalorder %s195, %s198
    %p207 = scmp.eq.s32.totalorder %s20, 1
    %p208 = por %p206, %p207
    %p209 = scmp.ne.s32.totalorder %s198, %s199
    %p210 = scmp.eq.s32.totalorder %s20, 0
    %p211 = por %p209, %p210
    %p212 = scmp.ne.s32.totalorder %s198, %s199
    %p213 = scmp.eq.s32.totalorder %s21, 1
    %p214 = por %p212, %p213
    %p216 = scmp.ne.s32.totalorder %s199, %s215
    %p217 = scmp.eq.s32.totalorder %s21, 0
    %p218 = por %p216, %p217
    %s219 = ssub.s32 %s22, %s34
    %p220 = scmp.eq.s32.totalorder %s219, 0
    %s222 = sadd.s32 %s221, 1
    %s223 = scalar_select %p220, %s221, %s222
    %p226 = pneg %p220
    %p227 = scmp.eq.s32.totalorder %s15, 1
    %p228 = por %p226, %p227
    %p229 = scmp.ne.s32.totalorder %s221, %s224
    %p230 = scmp.eq.s32.totalorder %s15, 0
    %p231 = por %p229, %p230
    %p232 = scmp.ne.s32.totalorder %s221, %s224
    %p233 = scmp.eq.s32.totalorder %s20, 1
    %p234 = por %p232, %p233
    %p235 = scmp.ne.s32.totalorder %s224, %s225
    %p236 = scmp.eq.s32.totalorder %s20, 0
    %p237 = por %p235, %p236
    %p238 = scmp.ne.s32.totalorder %s224, %s225
    %p239 = scmp.eq.s32.totalorder %s21, 1
    %p240 = por %p238, %p239
    %p242 = scmp.ne.s32.totalorder %s225, %s241
    %p243 = scmp.eq.s32.totalorder %s21, 0
    %p244 = por %p242, %p243
    %s245 = ssub.s32 %s22, %s34
    %p246 = scmp.eq.s32.totalorder %s245, 0
    %s248 = sadd.s32 %s247, 1
    %s249 = scalar_select %p246, %s247, %s248
    %p252 = pneg %p246
    %p253 = scmp.eq.s32.totalorder %s15, 1
    %p254 = por %p252, %p253
    %p255 = scmp.ne.s32.totalorder %s247, %s250
    %p256 = scmp.eq.s32.totalorder %s15, 0
    %p257 = por %p255, %p256
    %p258 = scmp.ne.s32.totalorder %s247, %s250
    %p259 = scmp.eq.s32.totalorder %s20, 1
    %p260 = por %p258, %p259
    %p261 = scmp.ne.s32.totalorder %s250, %s251
    %p262 = scmp.eq.s32.totalorder %s20, 0
    %p263 = por %p261, %p262
    %p264 = scmp.ne.s32.totalorder %s250, %s251
    %p265 = scmp.eq.s32.totalorder %s21, 1
    %p266 = por %p264, %p265
    %p268 = scmp.ne.s32.totalorder %s251, %s267
    %p269 = scmp.eq.s32.totalorder %s21, 0
    %p270 = por %p268, %p269
    %s271 = ssub.s32 %s22, %s34
    %s272 = ssub.s32 %s23, %s30
    %s273 = sor.u32 %s271, %s272
    %p274 = scmp.eq.s32.totalorder %s273, 0
    %s276 = sadd.s32 %s275, 1
    %s277 = scalar_select %p274, %s275, %s276
    %p280 = pneg %p274
    %p281 = scmp.eq.s32.totalorder %s15, 1
    %p282 = por %p280, %p281
    %p283 = scmp.ne.s32.totalorder %s275, %s278
    %p284 = scmp.eq.s32.totalorder %s15, 0
    %p285 = por %p283, %p284
    %p286 = scmp.ne.s32.totalorder %s275, %s278
    %p287 = scmp.eq.s32.totalorder %s20, 1
    %p288 = por %p286, %p287
    %p289 = scmp.ne.s32.totalorder %s278, %s279
    %p290 = scmp.eq.s32.totalorder %s20, 0
    %p291 = por %p289, %p290
    %p292 = scmp.ne.s32.totalorder %s278, %s279
    %p293 = scmp.eq.s32.totalorder %s21, 1
    %p294 = por %p292, %p293
    %p296 = scmp.ne.s32.totalorder %s279, %s295
    %p297 = scmp.eq.s32.totalorder %s21, 0
    %p298 = por %p296, %p297
    %p299 = scmp.le.s32.totalorder 1, %s15
    %p300 = scmp.lt.s32.totalorder %s15, 3
    %p301 = pnand %p299, %p300
    %p302 = pneg %p301
    // Predicated region
    $region9: #{rainbow_dqn_forward.5} parent=5 // pred_check
      _
    $region10: #{rainbow_dqn_forward.5} parent=5 // pred_check_branch
      %304 = sbr.rel (%p301) target = $region12
    $region11: #{rainbow_dqn_forward.5} parent=5 // pred_region
      %s305 = ssub.s32 %s15, 1
    $region12: #{rainbow_dqn_forward.5} parent=5 // pred_fallthru
      _
    %p306 = scmp.lt.s32.totalorder %s15, 2
    // Predicated region
    $region13: #{rainbow_dqn_forward.5} parent=5 // pred_check
      %p307 = pneg %p306
    $region14: #{rainbow_dqn_forward.5} parent=5 // pred_check_branch
      %309 = sbr.rel (%p307) target = $region16
    $region15: #{rainbow_dqn_forward.5} parent=5 // pred_region
      // Predicated region
      $region17: #{rainbow_dqn_forward.5} parent=15 // pred_check
        %p310 = pneg %p49
      $region18: #{rainbow_dqn_forward.5} parent=15 // pred_check_branch
        %312 = sbr.rel (%p310) target = $region20
      $region19: #{rainbow_dqn_forward.5} parent=15 // pred_region
        %s313 = smul.u32 3, %s23
        %p314 = scmp.lt.s32.totalorder %s22, 1
        %s315 = scalar_select %p314, %s22, 1
        %p316 = scmp.lt.s32.totalorder %s313, 2
        %s317 = scalar_select %p316, %s313, 2
        %s318 = smul.addr %s317, 13
        %s319 = smul.addr %s315, 39
        %s320 = sadd.s32 %s318, %s319
        %s321 = smul.addr %s320, 4
        %s322 = scalar_lea.vmem %s0, %s321
        %s323 = smul.u32 3, %s23
      $region20: #{rainbow_dqn_forward.5} parent=15 // pred_fallthru
        _
      // Predicated region
      $region21: #{rainbow_dqn_forward.5} parent=15 // pred_check
        %p324 = pneg %p75
      $region22: #{rainbow_dqn_forward.5} parent=15 // pred_check_branch
        %326 = sbr.rel (%p324) target = $region24
      $region23: #{rainbow_dqn_forward.5} parent=15 // pred_region
        %p327 = scmp.lt.s32.totalorder %s22, 1
        %s328 = scalar_select %p327, %s22, 1
        %s329 = smul.addr %s328, 196
        %s330 = smul.addr %s329, 4
        %s331 = scalar_lea.vmem %s1, %s330
      $region24: #{rainbow_dqn_forward.5} parent=15 // pred_fallthru
        _
      // Predicated region
      $region25: #{rainbow_dqn_forward.5} parent=15 // pred_check
        %p332 = pneg %p101
      $region26: #{rainbow_dqn_forward.5} parent=15 // pred_check_branch
        %334 = sbr.rel (%p332) target = $region28
      $region27: #{rainbow_dqn_forward.5} parent=15 // pred_region
        %p335 = scmp.lt.s32.totalorder %s22, 1
        %s336 = scalar_select %p335, %s22, 1
        %s337 = scalar_lea.vmem %s2, %s336
      $region28: #{rainbow_dqn_forward.5} parent=15 // pred_fallthru
        _
      // Predicated region
      $region29: #{rainbow_dqn_forward.5} parent=15 // pred_check
        %p338 = pneg %p127
      $region30: #{rainbow_dqn_forward.5} parent=15 // pred_check_branch
        %340 = sbr.rel (%p338) target = $region32
      $region31: #{rainbow_dqn_forward.5} parent=15 // pred_region
        %p341 = scmp.lt.s32.totalorder %s22, 1
        %s342 = scalar_select %p341, %s22, 1
        %s343 = smul.addr %s342, 36
        %s344 = smul.addr %s343, 4
        %s345 = scalar_lea.vmem %s3, %s344
      $region32: #{rainbow_dqn_forward.5} parent=15 // pred_fallthru
        _
      // Predicated region
      $region33: #{rainbow_dqn_forward.5} parent=15 // pred_check
        %p346 = pneg %p153
      $region34: #{rainbow_dqn_forward.5} parent=15 // pred_check_branch
        %348 = sbr.rel (%p346) target = $region36
      $region35: #{rainbow_dqn_forward.5} parent=15 // pred_region
        %p349 = scmp.lt.s32.totalorder %s22, 1
        %s350 = scalar_select %p349, %s22, 1
        %s351 = scalar_lea.vmem %s4, %s350
      $region36: #{rainbow_dqn_forward.5} parent=15 // pred_fallthru
        _
      // Predicated region
      $region37: #{rainbow_dqn_forward.5} parent=15 // pred_check
        %p352 = pneg %p179
      $region38: #{rainbow_dqn_forward.5} parent=15 // pred_check_branch
        %354 = sbr.rel (%p352) target = $region40
      $region39: #{rainbow_dqn_forward.5} parent=15 // pred_region
        %p355 = scmp.lt.s32.totalorder %s22, 1
        %s356 = scalar_select %p355, %s22, 1
        %s357 = smul.addr %s356, 32
        %s358 = smul.addr %s357, 4
        %s359 = scalar_lea.vmem %s5, %s358
      $region40: #{rainbow_dqn_forward.5} parent=15 // pred_fallthru
        _
      // Predicated region
      $region41: #{rainbow_dqn_forward.5} parent=15 // pred_check
        %p360 = pneg %p205
      $region42: #{rainbow_dqn_forward.5} parent=15 // pred_check_branch
        %362 = sbr.rel (%p360) target = $region44
      $region43: #{rainbow_dqn_forward.5} parent=15 // pred_region
        %p363 = scmp.lt.s32.totalorder %s22, 1
        %s364 = scalar_select %p363, %s22, 1
        %s365 = smul.addr %s364, 2
        %s366 = scalar_lea.vmem %s6, %s365
      $region44: #{rainbow_dqn_forward.5} parent=15 // pred_fallthru
        _
      // Predicated region
      $region45: #{rainbow_dqn_forward.5} parent=15 // pred_check
        %p367 = pneg %p231
      $region46: #{rainbow_dqn_forward.5} parent=15 // pred_check_branch
        %369 = sbr.rel (%p367) target = $region48
      $region47: #{rainbow_dqn_forward.5} parent=15 // pred_region
        %p370 = scmp.lt.s32.totalorder %s22, 1
        %s371 = scalar_select %p370, %s22, 1
        %s372 = smul.addr %s371, 64
        %s373 = smul.addr %s372, 4
        %s374 = scalar_lea.vmem %s7, %s373
      $region48: #{rainbow_dqn_forward.5} parent=15 // pred_fallthru
        _
      // Predicated region
      $region49: #{rainbow_dqn_forward.5} parent=15 // pred_check
        %p375 = pneg %p257
      $region50: #{rainbow_dqn_forward.5} parent=15 // pred_check_branch
        %377 = sbr.rel (%p375) target = $region52
      $region51: #{rainbow_dqn_forward.5} parent=15 // pred_region
        %p378 = scmp.lt.s32.totalorder %s22, 1
        %s379 = scalar_select %p378, %s22, 1
        %s380 = smul.addr %s379, 2
        %s381 = scalar_lea.vmem %s8, %s380
      $region52: #{rainbow_dqn_forward.5} parent=15 // pred_fallthru
        _
    $region16: #{rainbow_dqn_forward.5} parent=5 // pred_fallthru
      _
    %p382 = scmp.le.s32.totalorder 1, %s15
    %p383 = scmp.lt.s32.totalorder %s15, 3
    %p384 = pnand %p382, %p383
    %p385 = pneg %p384
    // Predicated region
    $region53: #{rainbow_dqn_forward.5} parent=5 // pred_check
      _
    $region54: #{rainbow_dqn_forward.5} parent=5 // pred_check_branch
      %387 = sbr.rel (%p384) target = $region56
    $region55: #{rainbow_dqn_forward.5} parent=5 // pred_region
      %s388 = ssub.s32 %s15, 1
      %s389 = smul.u32 3, %s25
      %p390 = scmp.lt.s32.totalorder %s24, 1
      %s391 = scalar_select %p390, %s24, 1
      %p392 = scmp.lt.s32.totalorder %s389, 2
      %s393 = scalar_select %p392, %s389, 2
      %s394 = smul.addr %s393, 13
      %s395 = smul.addr %s391, 39
      %s396 = sadd.s32 %s394, %s395
      %s397 = smul.addr %s396, 4
      %s398 = scalar_lea.vmem %s0, %s397
      %p399 = pneg %p55
      %p400 = pneg %p52
      %p401 = scmp.lt.s32.totalorder %s24, 1
      %s402 = scalar_select %p401, %s24, 1
      %s403 = smul.addr %s402, 196
      %s404 = smul.addr %s403, 4
      %s405 = scalar_lea.vmem %s1, %s404
      %p406 = pneg %p81
      %p407 = pneg %p78
      %p408 = scmp.lt.s32.totalorder %s24, 1
      %s409 = scalar_select %p408, %s24, 1
      %s410 = scalar_lea.vmem %s2, %s409
      %p411 = pneg %p107
      %p412 = pneg %p104
      %p413 = scmp.lt.s32.totalorder %s24, 1
      %s414 = scalar_select %p413, %s24, 1
      %s415 = smul.addr %s414, 36
      %s416 = smul.addr %s415, 4
      %s417 = scalar_lea.vmem %s3, %s416
      %p418 = pneg %p133
      %p419 = pneg %p130
      %p420 = scmp.lt.s32.totalorder %s24, 1
      %s421 = scalar_select %p420, %s24, 1
      %s422 = scalar_lea.vmem %s4, %s421
      %p423 = pneg %p159
      %p424 = pneg %p156
      %p425 = scmp.lt.s32.totalorder %s24, 1
      %s426 = scalar_select %p425, %s24, 1
      %s427 = smul.addr %s426, 32
      %s428 = smul.addr %s427, 4
      %s429 = scalar_lea.vmem %s5, %s428
      %p430 = pneg %p185
      %p431 = pneg %p182
      %p432 = scmp.lt.s32.totalorder %s24, 1
      %s433 = scalar_select %p432, %s24, 1
      %s434 = smul.addr %s433, 2
      %s435 = scalar_lea.vmem %s6, %s434
      %p436 = pneg %p211
      %p437 = pneg %p208
      %p438 = scmp.lt.s32.totalorder %s24, 1
      %s439 = scalar_select %p438, %s24, 1
      %s440 = smul.addr %s439, 64
      %s441 = smul.addr %s440, 4
      %s442 = scalar_lea.vmem %s7, %s441
      %p443 = pneg %p237
      %p444 = pneg %p234
      %p445 = scmp.lt.s32.totalorder %s24, 1
      %s446 = scalar_select %p445, %s24, 1
      %s447 = smul.addr %s446, 2
      %s448 = scalar_lea.vmem %s8, %s447
      %p449 = pneg %p263
      %p450 = pneg %p260
      %p451 = pneg %p291
      %p452 = pneg %p288
      %p453 = scmp.lt.s32.totalorder %s24, 1
      %s454 = scalar_select %p453, %s24, 1
      %p455 = scmp.lt.s32.totalorder %s25, 0
      %s456 = scalar_select %p455, %s25, 0
      %s457 = sadd.s32 %s456, %s454
      %s458 = smul.addr %s457, 2
      %s459 = scalar_lea.vmem %s9, %s458
      %s460 = smul.u32 3, %s25
      %p461 = scmp.lt.s32.totalorder %s24, 1
      %s462 = scalar_select %p461, %s24, 1
      %p463 = scmp.lt.s32.totalorder %s460, 2
      %s464 = scalar_select %p463, %s460, 2
      %s465 = smul.addr %s464, 13
      %s466 = smul.addr %s462, 39
      %s467 = sadd.s32 %s465, %s466
      %s468 = smul.addr %s467, 4
      %s469 = scalar_lea.vmem %s0, %s468
      %s470 = smul.u32 3, %s25
      %p471 = scmp.lt.s32.totalorder %s24, 1
      %s472 = scalar_select %p471, %s24, 1
      %s473 = smul.addr %s472, 196
      %s474 = smul.addr %s473, 4
      %s475 = scalar_lea.vmem %s1, %s474
      %p476 = scmp.lt.s32.totalorder %s24, 1
      %s477 = scalar_select %p476, %s24, 1
      %s478 = scalar_lea.vmem %s2, %s477
      %p479 = scmp.lt.s32.totalorder %s24, 1
      %s480 = scalar_select %p479, %s24, 1
      %s481 = smul.addr %s480, 36
      %s482 = smul.addr %s481, 4
      %s483 = scalar_lea.vmem %s3, %s482
      %p484 = scmp.lt.s32.totalorder %s24, 1
      %s485 = scalar_select %p484, %s24, 1
      %s486 = scalar_lea.vmem %s4, %s485
      %p487 = scmp.lt.s32.totalorder %s24, 1
      %s488 = scalar_select %p487, %s24, 1
      %s489 = smul.addr %s488, 32
      %s490 = smul.addr %s489, 4
      %s491 = scalar_lea.vmem %s5, %s490
      %p492 = scmp.lt.s32.totalorder %s24, 1
      %s493 = scalar_select %p492, %s24, 1
      %s494 = smul.addr %s493, 2
      %s495 = scalar_lea.vmem %s6, %s494
      %p496 = scmp.lt.s32.totalorder %s24, 1
      %s497 = scalar_select %p496, %s24, 1
      %s498 = smul.addr %s497, 64
      %s499 = smul.addr %s498, 4
      %s500 = scalar_lea.vmem %s7, %s499
      %p501 = scmp.lt.s32.totalorder %s24, 1
      %s502 = scalar_select %p501, %s24, 1
      %s503 = smul.addr %s502, 2
      %s504 = scalar_lea.vmem %s8, %s503
      %p505 = scmp.lt.s32.totalorder %s24, 1
      %s506 = scalar_select %p505, %s24, 1
      %p507 = scmp.lt.s32.totalorder %s25, 0
      %s508 = scalar_select %p507, %s25, 0
      %s509 = sadd.s32 %s508, %s506
      %s510 = smul.addr %s509, 2
      %s511 = scalar_lea.vmem %s9, %s510
      %v513 = vld [vmem:[%s469] sm:$0xff]
      %v514 = vld [vmem:[%s469 + $0x8] sm:$0xff]
      %v515 = vld [vmem:[%s469 + $0x10] sm:$0xff]
      %v516 = vld [vmem:[%s469 + $0x18] sm:$0xff]
      %v517 = vld [vmem:[%s469 + $0x20] sm:$0xff]
      %v518 = vld [vmem:[%s469 + $0x28] sm:$0xff]
      %v519 = vld [vmem:[%s469 + $0x30] sm:$0xf]
      %v520 = vld [vmem:[%s469 + $0x34] sm:$0xff]
      %v521 = vld [vmem:[%s469 + $0x3c] sm:$0xff]
      %v522 = vld [vmem:[%s469 + $0x44] sm:$0xff]
      %v523 = vld [vmem:[%s469 + $0x4c] sm:$0xff]
      %v524 = vld [vmem:[%s469 + $0x54] sm:$0xff]
      %v525 = vld [vmem:[%s469 + $0x5c] sm:$0xff]
      %v526 = vld [vmem:[%s469 + $0x64] sm:$0xf]
      %v527 = vld [vmem:[%s469 + $0x68] sm:$0x11]
      %v528 = vld [vmem:[%s469 + $0x70] sm:$0x11]
      %v529 = vld [vmem:[%s469 + $0x78] sm:$0x11]
      %v530 = vld [vmem:[%s469 + $0x80] sm:$0x11]
      %v531 = vld [vmem:[%s469 + $0x88] sm:$0x11]
      %v532 = vld [vmem:[%s469 + $0x90] sm:$0x11]
      %v533 = vld [vmem:[%s469 + $0x98] sm:$0x1]
      %v534 = vld [vmem:[%s475] sm:$0xf]
      %v535 = vld [vmem:[%s475 + $0x4] sm:$0xf]
      %v536 = vld [vmem:[%s475 + $0x8] sm:$0xf]
      %v537 = vld [vmem:[%s475 + $0xc] sm:$0xf]
      %v538 = vld [vmem:[%s475 + $0x10] sm:$0xf]
      %v539 = vld [vmem:[%s475 + $0x14] sm:$0xf]
      %v540 = vld [vmem:[%s475 + $0x18] sm:$0xf]
      %v541 = vld [vmem:[%s475 + $0x1c] sm:$0xf]
      %v542 = vld [vmem:[%s475 + $0x20] sm:$0xf]
      %v543 = vld [vmem:[%s475 + $0x24] sm:$0xf]
      %v544 = vld [vmem:[%s475 + $0x28] sm:$0xf]
      %v545 = vld [vmem:[%s475 + $0x2c] sm:$0xf]
      %v546 = vld [vmem:[%s475 + $0x30] sm:$0xf]
      %v547 = vld [vmem:[%s475 + $0x34] sm:$0xf]
      %v548 = vld [vmem:[%s475 + $0x38] sm:$0xf]
      %v549 = vld [vmem:[%s475 + $0x3c] sm:$0xf]
      %v550 = vld [vmem:[%s475 + $0x40] sm:$0xf]
      %v551 = vld [vmem:[%s475 + $0x44] sm:$0xf]
      %v552 = vld [vmem:[%s475 + $0x48] sm:$0xf]
      %v553 = vld [vmem:[%s475 + $0x4c] sm:$0xf]
      %v554 = vld [vmem:[%s475 + $0x50] sm:$0xf]
      %v555 = vld [vmem:[%s475 + $0x54] sm:$0xf]
      %v556 = vld [vmem:[%s475 + $0x58] sm:$0xf]
      %v557 = vld [vmem:[%s475 + $0x5c] sm:$0xf]
      %v558 = vld [vmem:[%s475 + $0x60] sm:$0xf]
      %v559 = vld [vmem:[%s475 + $0x64] sm:$0xf]
      %v560 = vld [vmem:[%s475 + $0x68] sm:$0xf]
      %v561 = vld [vmem:[%s475 + $0x6c] sm:$0xf]
      %v562 = vld [vmem:[%s475 + $0x70] sm:$0xf]
      %v563 = vld [vmem:[%s475 + $0x74] sm:$0xf]
      %v564 = vld [vmem:[%s475 + $0x78] sm:$0xf]
      %v565 = vld [vmem:[%s475 + $0x7c] sm:$0xf]
      %v566 = vld [vmem:[%s475 + $0x80] sm:$0xf]
      %v567 = vld [vmem:[%s475 + $0x84] sm:$0xf]
      %v568 = vld [vmem:[%s475 + $0x88] sm:$0xf]
      %v569 = vld [vmem:[%s475 + $0x8c] sm:$0xf]
      %v570 = vld [vmem:[%s475 + $0x90] sm:$0xf]
      %v571 = vld [vmem:[%s475 + $0x94] sm:$0xf]
      %v572 = vld [vmem:[%s475 + $0x98] sm:$0xf]
      %v573 = vld [vmem:[%s475 + $0x9c] sm:$0xf]
      %v574 = vld [vmem:[%s475 + $0xa0] sm:$0xf]
      %v575 = vld [vmem:[%s475 + $0xa4] sm:$0xf]
      %v576 = vld [vmem:[%s475 + $0xa8] sm:$0xf]
      %v577 = vld [vmem:[%s475 + $0xac] sm:$0xf]
      %v578 = vld [vmem:[%s475 + $0xb0] sm:$0xf]
      %v579 = vld [vmem:[%s475 + $0xb4] sm:$0xf]
      %v580 = vld [vmem:[%s475 + $0xb8] sm:$0xf]
      %v581 = vld [vmem:[%s475 + $0xbc] sm:$0xf]
      %v582 = vld [vmem:[%s475 + $0xc0] sm:$0xf]
      %v583 = vld [vmem:[%s475 + $0xc4] sm:$0xf]
      %v584 = vld [vmem:[%s475 + $0xc8] sm:$0xf]
      %v585 = vld [vmem:[%s475 + $0xcc] sm:$0xf]
      %v586 = vld [vmem:[%s475 + $0xd0] sm:$0xf]
      %v587 = vld [vmem:[%s475 + $0xd4] sm:$0xf]
      %v588 = vld [vmem:[%s475 + $0xd8] sm:$0xf]
      %v589 = vld [vmem:[%s475 + $0xdc] sm:$0xf]
      %v590 = vld [vmem:[%s475 + $0xe0] sm:$0xf]
      %v591 = vld [vmem:[%s475 + $0xe4] sm:$0xf]
      %v592 = vld [vmem:[%s475 + $0xe8] sm:$0xf]
      %v593 = vld [vmem:[%s475 + $0xec] sm:$0xf]
      %v594 = vld [vmem:[%s475 + $0xf0] sm:$0xf]
      %v595 = vld [vmem:[%s475 + $0xf4] sm:$0xf]
      %v596 = vld [vmem:[%s475 + $0xf8] sm:$0xf]
      %v597 = vld [vmem:[%s475 + $0xfc] sm:$0xf]
      %v598 = vld [vmem:[%s475 + $0x100] sm:$0xf]
      %v599 = vld [vmem:[%s475 + $0x104] sm:$0xf]
      %v600 = vld [vmem:[%s475 + $0x108] sm:$0xf]
      %v601 = vld [vmem:[%s475 + $0x10c] sm:$0xf]
      %v602 = vld [vmem:[%s475 + $0x110] sm:$0xf]
      %v603 = vld [vmem:[%s475 + $0x114] sm:$0xf]
      %v604 = vld [vmem:[%s475 + $0x118] sm:$0xf]
      %v605 = vld [vmem:[%s475 + $0x11c] sm:$0xf]
      %v606 = vld [vmem:[%s475 + $0x120] sm:$0xf]
      %v607 = vld [vmem:[%s475 + $0x124] sm:$0xf]
      %v608 = vld [vmem:[%s475 + $0x128] sm:$0xf]
      %v609 = vld [vmem:[%s475 + $0x12c] sm:$0xf]
      %v610 = vld [vmem:[%s475 + $0x130] sm:$0xf]
      %v611 = vld [vmem:[%s475 + $0x134] sm:$0xf]
      %v612 = vld [vmem:[%s475 + $0x138] sm:$0xf]
      %v613 = vld [vmem:[%s475 + $0x13c] sm:$0xf]
      %v614 = vld [vmem:[%s475 + $0x140] sm:$0xf]
      %v615 = vld [vmem:[%s475 + $0x144] sm:$0xf]
      %v616 = vld [vmem:[%s475 + $0x148] sm:$0xf]
      %v617 = vld [vmem:[%s475 + $0x14c] sm:$0xf]
      %v618 = vld [vmem:[%s475 + $0x150] sm:$0xf]
      %v619 = vld [vmem:[%s475 + $0x154] sm:$0xf]
      %v620 = vld [vmem:[%s475 + $0x158] sm:$0xf]
      %v621 = vld [vmem:[%s475 + $0x15c] sm:$0xf]
      %v622 = vld [vmem:[%s475 + $0x160] sm:$0xf]
      %v623 = vld [vmem:[%s475 + $0x164] sm:$0xf]
      %v624 = vld [vmem:[%s475 + $0x168] sm:$0xf]
      %v625 = vld [vmem:[%s475 + $0x16c] sm:$0xf]
      %v626 = vld [vmem:[%s475 + $0x170] sm:$0xf]
      %v627 = vld [vmem:[%s475 + $0x174] sm:$0xf]
      %v628 = vld [vmem:[%s475 + $0x178] sm:$0xf]
      %v629 = vld [vmem:[%s475 + $0x17c] sm:$0xf]
      %v630 = vld [vmem:[%s475 + $0x180] sm:$0xf]
      %v631 = vld [vmem:[%s475 + $0x184] sm:$0xf]
      %v632 = vld [vmem:[%s475 + $0x188] sm:$0xf]
      %v633 = vld [vmem:[%s475 + $0x18c] sm:$0xf]
      %v634 = vld [vmem:[%s475 + $0x190] sm:$0xf]
      %v635 = vld [vmem:[%s475 + $0x194] sm:$0xf]
      %v636 = vld [vmem:[%s475 + $0x198] sm:$0xf]
      %v637 = vld [vmem:[%s475 + $0x19c] sm:$0xf]
      %v638 = vld [vmem:[%s475 + $0x1a0] sm:$0xf]
      %v639 = vld [vmem:[%s475 + $0x1a4] sm:$0xf]
      %v640 = vld [vmem:[%s475 + $0x1a8] sm:$0xf]
      %v641 = vld [vmem:[%s475 + $0x1ac] sm:$0xf]
      %v642 = vld [vmem:[%s475 + $0x1b0] sm:$0xf]
      %v643 = vld [vmem:[%s475 + $0x1b4] sm:$0xf]
      %v644 = vld [vmem:[%s475 + $0x1b8] sm:$0xf]
      %v645 = vld [vmem:[%s475 + $0x1bc] sm:$0xf]
      %v646 = vld [vmem:[%s475 + $0x1c0] sm:$0xf]
      %v647 = vld [vmem:[%s475 + $0x1c4] sm:$0xf]
      %v648 = vld [vmem:[%s475 + $0x1c8] sm:$0xf]
      %v649 = vld [vmem:[%s475 + $0x1cc] sm:$0xf]
      %v650 = vld [vmem:[%s475 + $0x1d0] sm:$0xf]
      %v651 = vld [vmem:[%s475 + $0x1d4] sm:$0xf]
      %v652 = vld [vmem:[%s475 + $0x1d8] sm:$0xf]
      %v653 = vld [vmem:[%s475 + $0x1dc] sm:$0xf]
      %v654 = vld [vmem:[%s475 + $0x1e0] sm:$0xf]
      %v655 = vld [vmem:[%s475 + $0x1e4] sm:$0xf]
      %v656 = vld [vmem:[%s475 + $0x1e8] sm:$0xf]
      %v657 = vld [vmem:[%s475 + $0x1ec] sm:$0xf]
      %v658 = vld [vmem:[%s475 + $0x1f0] sm:$0xf]
      %v659 = vld [vmem:[%s475 + $0x1f4] sm:$0xf]
      %v660 = vld [vmem:[%s475 + $0x1f8] sm:$0xf]
      %v661 = vld [vmem:[%s475 + $0x1fc] sm:$0xf]
      %v662 = vld [vmem:[%s475 + $0x200] sm:$0xf]
      %v663 = vld [vmem:[%s475 + $0x204] sm:$0xf]
      %v664 = vld [vmem:[%s475 + $0x208] sm:$0xf]
      %v665 = vld [vmem:[%s475 + $0x20c] sm:$0xf]
      %v666 = vld [vmem:[%s475 + $0x210] sm:$0xf]
      %v667 = vld [vmem:[%s475 + $0x214] sm:$0xf]
      %v668 = vld [vmem:[%s475 + $0x218] sm:$0xf]
      %v669 = vld [vmem:[%s475 + $0x21c] sm:$0xf]
      %v670 = vld [vmem:[%s475 + $0x220] sm:$0xf]
      %v671 = vld [vmem:[%s475 + $0x224] sm:$0xf]
      %v672 = vld [vmem:[%s475 + $0x228] sm:$0xf]
      %v673 = vld [vmem:[%s475 + $0x22c] sm:$0xf]
      %v674 = vld [vmem:[%s475 + $0x230] sm:$0xf]
      %v675 = vld [vmem:[%s475 + $0x234] sm:$0xf]
      %v676 = vld [vmem:[%s475 + $0x238] sm:$0xf]
      %v677 = vld [vmem:[%s475 + $0x23c] sm:$0xf]
      %v678 = vld [vmem:[%s475 + $0x240] sm:$0xf]
      %v679 = vld [vmem:[%s475 + $0x244] sm:$0xf]
      %v680 = vld [vmem:[%s475 + $0x248] sm:$0xf]
      %v681 = vld [vmem:[%s475 + $0x24c] sm:$0xf]
      %v682 = vld [vmem:[%s475 + $0x250] sm:$0xf]
      %v683 = vld [vmem:[%s475 + $0x254] sm:$0xf]
      %v684 = vld [vmem:[%s475 + $0x258] sm:$0xf]
      %v685 = vld [vmem:[%s475 + $0x25c] sm:$0xf]
      %v686 = vld [vmem:[%s475 + $0x260] sm:$0xf]
      %v687 = vld [vmem:[%s475 + $0x264] sm:$0xf]
      %v688 = vld [vmem:[%s475 + $0x268] sm:$0xf]
      %v689 = vld [vmem:[%s475 + $0x26c] sm:$0xf]
      %v690 = vld [vmem:[%s475 + $0x270] sm:$0xf]
      %v691 = vld [vmem:[%s475 + $0x274] sm:$0xf]
      %v692 = vld [vmem:[%s475 + $0x278] sm:$0xf]
      %v693 = vld [vmem:[%s475 + $0x27c] sm:$0xf]
      %v694 = vld [vmem:[%s475 + $0x280] sm:$0xf]
      %v695 = vld [vmem:[%s475 + $0x284] sm:$0xf]
      %v696 = vld [vmem:[%s475 + $0x288] sm:$0xf]
      %v697 = vld [vmem:[%s475 + $0x28c] sm:$0xf]
      %v698 = vld [vmem:[%s475 + $0x290] sm:$0xf]
      %v699 = vld [vmem:[%s475 + $0x294] sm:$0xf]
      %v700 = vld [vmem:[%s475 + $0x298] sm:$0xf]
      %v701 = vld [vmem:[%s475 + $0x29c] sm:$0xf]
      %v702 = vld [vmem:[%s475 + $0x2a0] sm:$0xf]
      %v703 = vld [vmem:[%s475 + $0x2a4] sm:$0xf]
      %v704 = vld [vmem:[%s475 + $0x2a8] sm:$0xf]
      %v705 = vld [vmem:[%s475 + $0x2ac] sm:$0xf]
      %v706 = vld [vmem:[%s475 + $0x2b0] sm:$0xf]
      %v707 = vld [vmem:[%s475 + $0x2b4] sm:$0xf]
      %v708 = vld [vmem:[%s475 + $0x2b8] sm:$0xf]
      %v709 = vld [vmem:[%s475 + $0x2bc] sm:$0xf]
      %v710 = vld [vmem:[%s475 + $0x2c0] sm:$0xf]
      %v711 = vld [vmem:[%s475 + $0x2c4] sm:$0xf]
      %v712 = vld [vmem:[%s475 + $0x2c8] sm:$0xf]
      %v713 = vld [vmem:[%s475 + $0x2cc] sm:$0xf]
      %v714 = vld [vmem:[%s475 + $0x2d0] sm:$0xf]
      %v715 = vld [vmem:[%s475 + $0x2d4] sm:$0xf]
      %v716 = vld [vmem:[%s475 + $0x2d8] sm:$0xf]
      %v717 = vld [vmem:[%s475 + $0x2dc] sm:$0xf]
      %v718 = vld [vmem:[%s475 + $0x2e0] sm:$0xf]
      %v719 = vld [vmem:[%s475 + $0x2e4] sm:$0xf]
      %v720 = vld [vmem:[%s475 + $0x2e8] sm:$0xf]
      %v721 = vld [vmem:[%s475 + $0x2ec] sm:$0xf]
      %v722 = vld [vmem:[%s475 + $0x2f0] sm:$0xf]
      %v723 = vld [vmem:[%s475 + $0x2f4] sm:$0xf]
      %v724 = vld [vmem:[%s475 + $0x2f8] sm:$0xf]
      %v725 = vld [vmem:[%s475 + $0x2fc] sm:$0xf]
      %v726 = vld [vmem:[%s475 + $0x300] sm:$0xf]
      %v727 = vld [vmem:[%s475 + $0x304] sm:$0xf]
      %v728 = vld [vmem:[%s475 + $0x308] sm:$0xf]
      %v729 = vld [vmem:[%s475 + $0x30c] sm:$0xf]
      %v730 = vld [vmem:[%s478] sm:$0x1]
      %v732 = vlaneseq
      %v733 = vshrl.u32 %v732, 7
      %v734 = vsub.s32 0, %v733
      %v735 = vrot.slane %v730, %v734
      %v758 = vunpack.c.l.b16 %v513
      %v759 = vunpack.c.h.b16 %v513
      %v760 = vunpack.c.l.b16 %v514
      %v761 = vunpack.c.h.b16 %v514
      %v762 = vunpack.c.l.b16 %v515
      %v763 = vunpack.c.h.b16 %v515
      %v764 = vunpack.c.l.b16 %v516
      %v765 = vunpack.c.h.b16 %v516
      %v766 = vunpack.c.l.b16 %v517
      %v767 = vunpack.c.h.b16 %v517
      %v768 = vunpack.c.l.b16 %v518
      %v769 = vunpack.c.h.b16 %v518
      %v770 = vunpack.c.l.b16 %v519
      %v771 = vunpack.c.l.b16 %v520
      %v772 = vunpack.c.h.b16 %v520
      %v773 = vunpack.c.l.b16 %v521
      %v774 = vunpack.c.h.b16 %v521
      %v775 = vunpack.c.l.b16 %v522
      %v776 = vunpack.c.h.b16 %v522
      %v777 = vunpack.c.l.b16 %v523
      %v778 = vunpack.c.h.b16 %v523
      %v779 = vunpack.c.l.b16 %v524
      %v780 = vunpack.c.h.b16 %v524
      %v781 = vunpack.c.l.b16 %v525
      %v782 = vunpack.c.h.b16 %v525
      %v783 = vunpack.c.l.b16 %v526
      %v784 = vunpack.c.l.b16 %v527
      %v785 = vunpack.c.h.b16 %v527
      %v786 = vunpack.c.l.b16 %v528
      %v787 = vunpack.c.h.b16 %v528
      %v788 = vunpack.c.l.b16 %v529
      %v789 = vunpack.c.h.b16 %v529
      %v790 = vunpack.c.l.b16 %v530
      %v791 = vunpack.c.h.b16 %v530
      %v792 = vunpack.c.l.b16 %v531
      %v793 = vunpack.c.h.b16 %v531
      %v794 = vunpack.c.l.b16 %v532
      %v795 = vunpack.c.h.b16 %v532
      %v796 = vunpack.c.l.b16 %v533
      %v797 = vpack.c.b16 %v771, %v758
      %v798 = vpack.c.b16 %v772, %v759
      %v799 = vpack.c.b16 %v773, %v760
      %v800 = vpack.c.b16 %v774, %v761
      %v801 = vpack.c.b16 %v775, %v762
      %v802 = vpack.c.b16 %v776, %v763
      %v803 = vpack.c.b16 %v777, %v764
      %v804 = vpack.c.b16 %v778, %v765
      %v805 = vpack.c.b16 %v779, %v766
      %v806 = vpack.c.b16 %v780, %v767
      %v807 = vpack.c.b16 %v781, %v768
      %v808 = vpack.c.b16 %v782, %v769
      %v809 = vpack.c.b16 %v783, %v770
      %v810 = vpack.c.b16 %v784, %v784
      %v811 = vpack.c.b16 %v785, %v785
      %v812 = vpack.c.b16 %v786, %v786
      %v813 = vpack.c.b16 %v787, %v787
      %v814 = vpack.c.b16 %v788, %v788
      %v815 = vpack.c.b16 %v789, %v789
      %v816 = vpack.c.b16 %v790, %v790
      %v817 = vpack.c.b16 %v791, %v791
      %v818 = vpack.c.b16 %v792, %v792
      %v819 = vpack.c.b16 %v793, %v793
      %v820 = vpack.c.b16 %v794, %v794
      %v821 = vpack.c.b16 %v795, %v795
      %v822 = vpack.c.b16 %v796, %v796
      %v1043 = vunpack.c.l.b16 %v534
      %v1044 = vunpack.c.l.b16 %v535
      %v1045 = vunpack.c.l.b16 %v536
      %v1046 = vunpack.c.l.b16 %v537
      %v1047 = vunpack.c.l.b16 %v538
      %v1048 = vunpack.c.l.b16 %v539
      %v1049 = vunpack.c.l.b16 %v540
      %v1050 = vunpack.c.l.b16 %v541
      %v1051 = vunpack.c.l.b16 %v542
      %v1052 = vunpack.c.l.b16 %v543
      %v1053 = vunpack.c.l.b16 %v544
      %v1054 = vunpack.c.l.b16 %v545
      %v1055 = vunpack.c.l.b16 %v546
      %v1056 = vunpack.c.l.b16 %v547
      %v1057 = vunpack.c.l.b16 %v548
      %v1058 = vunpack.c.l.b16 %v549
      %v1059 = vunpack.c.l.b16 %v550
      %v1060 = vunpack.c.l.b16 %v551
      %v1061 = vunpack.c.l.b16 %v552
      %v1062 = vunpack.c.l.b16 %v553
      %v1063 = vunpack.c.l.b16 %v554
      %v1064 = vunpack.c.l.b16 %v555
      %v1065 = vunpack.c.l.b16 %v556
      %v1066 = vunpack.c.l.b16 %v557
      %v1067 = vunpack.c.l.b16 %v558
      %v1068 = vunpack.c.l.b16 %v559
      %v1069 = vunpack.c.l.b16 %v560
      %v1070 = vunpack.c.l.b16 %v561
      %v1071 = vunpack.c.l.b16 %v562
      %v1072 = vunpack.c.l.b16 %v563
      %v1073 = vunpack.c.l.b16 %v564
      %v1074 = vunpack.c.l.b16 %v565
      %v1075 = vunpack.c.l.b16 %v566
      %v1076 = vunpack.c.l.b16 %v567
      %v1077 = vunpack.c.l.b16 %v568
      %v1078 = vunpack.c.l.b16 %v569
      %v1079 = vunpack.c.l.b16 %v570
      %v1080 = vunpack.c.l.b16 %v571
      %v1081 = vunpack.c.l.b16 %v572
      %v1082 = vunpack.c.l.b16 %v573
      %v1083 = vunpack.c.l.b16 %v574
      %v1084 = vunpack.c.l.b16 %v575
      %v1085 = vunpack.c.l.b16 %v576
      %v1086 = vunpack.c.l.b16 %v577
      %v1087 = vunpack.c.l.b16 %v578
      %v1088 = vunpack.c.l.b16 %v579
      %v1089 = vunpack.c.l.b16 %v580
      %v1090 = vunpack.c.l.b16 %v581
      %v1091 = vunpack.c.l.b16 %v582
      %v1092 = vunpack.c.l.b16 %v583
      %v1093 = vunpack.c.l.b16 %v584
      %v1094 = vunpack.c.l.b16 %v585
      %v1095 = vunpack.c.l.b16 %v586
      %v1096 = vunpack.c.l.b16 %v587
      %v1097 = vunpack.c.l.b16 %v588
      %v1098 = vunpack.c.l.b16 %v589
      %v1099 = vunpack.c.l.b16 %v590
      %v1100 = vunpack.c.l.b16 %v591
      %v1101 = vunpack.c.l.b16 %v592
      %v1102 = vunpack.c.l.b16 %v593
      %v1103 = vunpack.c.l.b16 %v594
      %v1104 = vunpack.c.l.b16 %v595
      %v1105 = vunpack.c.l.b16 %v596
      %v1106 = vunpack.c.l.b16 %v597
      %v1107 = vunpack.c.l.b16 %v598
      %v1108 = vunpack.c.l.b16 %v599
      %v1109 = vunpack.c.l.b16 %v600
      %v1110 = vunpack.c.l.b16 %v601
      %v1111 = vunpack.c.l.b16 %v602
      %v1112 = vunpack.c.l.b16 %v603
      %v1113 = vunpack.c.l.b16 %v604
      %v1114 = vunpack.c.l.b16 %v605
      %v1115 = vunpack.c.l.b16 %v606
      %v1116 = vunpack.c.l.b16 %v607
      %v1117 = vunpack.c.l.b16 %v608
      %v1118 = vunpack.c.l.b16 %v609
      %v1119 = vunpack.c.l.b16 %v610
      %v1120 = vunpack.c.l.b16 %v611
      %v1121 = vunpack.c.l.b16 %v612
      %v1122 = vunpack.c.l.b16 %v613
      %v1123 = vunpack.c.l.b16 %v614
      %v1124 = vunpack.c.l.b16 %v615
      %v1125 = vunpack.c.l.b16 %v616
      %v1126 = vunpack.c.l.b16 %v617
      %v1127 = vunpack.c.l.b16 %v618
      %v1128 = vunpack.c.l.b16 %v619
      %v1129 = vunpack.c.l.b16 %v620
      %v1130 = vunpack.c.l.b16 %v621
      %v1131 = vunpack.c.l.b16 %v622
      %v1132 = vunpack.c.l.b16 %v623
      %v1133 = vunpack.c.l.b16 %v624
      %v1134 = vunpack.c.l.b16 %v625
      %v1135 = vunpack.c.l.b16 %v626
      %v1136 = vunpack.c.l.b16 %v627
      %v1137 = vunpack.c.l.b16 %v628
      %v1138 = vunpack.c.l.b16 %v629
      %v1139 = vunpack.c.l.b16 %v630
      %v1140 = vunpack.c.l.b16 %v631
      %v1141 = vunpack.c.l.b16 %v632
      %v1142 = vunpack.c.l.b16 %v633
      %v1143 = vunpack.c.l.b16 %v634
      %v1144 = vunpack.c.l.b16 %v635
      %v1145 = vunpack.c.l.b16 %v636
      %v1146 = vunpack.c.l.b16 %v637
      %v1147 = vunpack.c.l.b16 %v638
      %v1148 = vunpack.c.l.b16 %v639
      %v1149 = vunpack.c.l.b16 %v640
      %v1150 = vunpack.c.l.b16 %v641
      %v1151 = vunpack.c.l.b16 %v642
      %v1152 = vunpack.c.l.b16 %v643
      %v1153 = vunpack.c.l.b16 %v644
      %v1154 = vunpack.c.l.b16 %v645
      %v1155 = vunpack.c.l.b16 %v646
      %v1156 = vunpack.c.l.b16 %v647
      %v1157 = vunpack.c.l.b16 %v648
      %v1158 = vunpack.c.l.b16 %v649
      %v1159 = vunpack.c.l.b16 %v650
      %v1160 = vunpack.c.l.b16 %v651
      %v1161 = vunpack.c.l.b16 %v652
      %v1162 = vunpack.c.l.b16 %v653
      %v1163 = vunpack.c.l.b16 %v654
      %v1164 = vunpack.c.l.b16 %v655
      %v1165 = vunpack.c.l.b16 %v656
      %v1166 = vunpack.c.l.b16 %v657
      %v1167 = vunpack.c.l.b16 %v658
      %v1168 = vunpack.c.l.b16 %v659
      %v1169 = vunpack.c.l.b16 %v660
      %v1170 = vunpack.c.l.b16 %v661
      %v1171 = vunpack.c.l.b16 %v662
      %v1172 = vunpack.c.l.b16 %v663
      %v1173 = vunpack.c.l.b16 %v664
      %v1174 = vunpack.c.l.b16 %v665
      %v1175 = vunpack.c.l.b16 %v666
      %v1176 = vunpack.c.l.b16 %v667
      %v1177 = vunpack.c.l.b16 %v668
      %v1178 = vunpack.c.l.b16 %v669
      %v1179 = vunpack.c.l.b16 %v670
      %v1180 = vunpack.c.l.b16 %v671
      %v1181 = vunpack.c.l.b16 %v672
      %v1182 = vunpack.c.l.b16 %v673
      %v1183 = vunpack.c.l.b16 %v674
      %v1184 = vunpack.c.l.b16 %v675
      %v1185 = vunpack.c.l.b16 %v676
      %v1186 = vunpack.c.l.b16 %v677
      %v1187 = vunpack.c.l.b16 %v678
      %v1188 = vunpack.c.l.b16 %v679
      %v1189 = vunpack.c.l.b16 %v680
      %v1190 = vunpack.c.l.b16 %v681
      %v1191 = vunpack.c.l.b16 %v682
      %v1192 = vunpack.c.l.b16 %v683
      %v1193 = vunpack.c.l.b16 %v684
      %v1194 = vunpack.c.l.b16 %v685
      %v1195 = vunpack.c.l.b16 %v686
      %v1196 = vunpack.c.l.b16 %v687
      %v1197 = vunpack.c.l.b16 %v688
      %v1198 = vunpack.c.l.b16 %v689
      %v1199 = vunpack.c.l.b16 %v690
      %v1200 = vunpack.c.l.b16 %v691
      %v1201 = vunpack.c.l.b16 %v692
      %v1202 = vunpack.c.l.b16 %v693
      %v1203 = vunpack.c.l.b16 %v694
      %v1204 = vunpack.c.l.b16 %v695
      %v1205 = vunpack.c.l.b16 %v696
      %v1206 = vunpack.c.l.b16 %v697
      %v1207 = vunpack.c.l.b16 %v698
      %v1208 = vunpack.c.l.b16 %v699
      %v1209 = vunpack.c.l.b16 %v700
      %v1210 = vunpack.c.l.b16 %v701
      %v1211 = vunpack.c.l.b16 %v702
      %v1212 = vunpack.c.l.b16 %v703
      %v1213 = vunpack.c.l.b16 %v704
      %v1214 = vunpack.c.l.b16 %v705
      %v1215 = vunpack.c.l.b16 %v706
      %v1216 = vunpack.c.l.b16 %v707
      %v1217 = vunpack.c.l.b16 %v708
      %v1218 = vunpack.c.l.b16 %v709
      %v1219 = vunpack.c.l.b16 %v710
      %v1220 = vunpack.c.l.b16 %v711
      %v1221 = vunpack.c.l.b16 %v712
      %v1222 = vunpack.c.l.b16 %v713
      %v1223 = vunpack.c.l.b16 %v714
      %v1224 = vunpack.c.l.b16 %v715
      %v1225 = vunpack.c.l.b16 %v716
      %v1226 = vunpack.c.l.b16 %v717
      %v1227 = vunpack.c.l.b16 %v718
      %v1228 = vunpack.c.l.b16 %v719
      %v1229 = vunpack.c.l.b16 %v720
      %v1230 = vunpack.c.l.b16 %v721
      %v1231 = vunpack.c.l.b16 %v722
      %v1232 = vunpack.c.l.b16 %v723
      %v1233 = vunpack.c.l.b16 %v724
      %v1234 = vunpack.c.l.b16 %v725
      %v1235 = vunpack.c.l.b16 %v726
      %v1236 = vunpack.c.l.b16 %v727
      %v1237 = vunpack.c.l.b16 %v728
      %v1238 = vunpack.c.l.b16 %v729
      %v1239 = vpack.c.b16 %v1044, %v1043
      %v1240 = vpack.c.b16 %v1046, %v1045
      %v1241 = vpack.c.b16 %v1048, %v1047
      %v1242 = vpack.c.b16 %v1050, %v1049
      %v1243 = vpack.c.b16 %v1052, %v1051
      %v1244 = vpack.c.b16 %v1054, %v1053
      %v1245 = vpack.c.b16 %v1056, %v1055
      %v1246 = vpack.c.b16 %v1058, %v1057
      %v1247 = vpack.c.b16 %v1060, %v1059
      %v1248 = vpack.c.b16 %v1062, %v1061
      %v1249 = vpack.c.b16 %v1064, %v1063
      %v1250 = vpack.c.b16 %v1066, %v1065
      %v1251 = vpack.c.b16 %v1068, %v1067
      %v1252 = vpack.c.b16 %v1070, %v1069
      %v1253 = vpack.c.b16 %v1072, %v1071
      %v1254 = vpack.c.b16 %v1074, %v1073
      %v1255 = vpack.c.b16 %v1076, %v1075
      %v1256 = vpack.c.b16 %v1078, %v1077
      %v1257 = vpack.c.b16 %v1080, %v1079
      %v1258 = vpack.c.b16 %v1082, %v1081
      %v1259 = vpack.c.b16 %v1084, %v1083
      %v1260 = vpack.c.b16 %v1086, %v1085
      %v1261 = vpack.c.b16 %v1088, %v1087
      %v1262 = vpack.c.b16 %v1090, %v1089
      %v1263 = vpack.c.b16 %v1092, %v1091
      %v1264 = vpack.c.b16 %v1094, %v1093
      %v1265 = vpack.c.b16 %v1096, %v1095
      %v1266 = vpack.c.b16 %v1098, %v1097
      %v1267 = vpack.c.b16 %v1100, %v1099
      %v1268 = vpack.c.b16 %v1102, %v1101
      %v1269 = vpack.c.b16 %v1104, %v1103
      %v1270 = vpack.c.b16 %v1106, %v1105
      %v1271 = vpack.c.b16 %v1108, %v1107
      %v1272 = vpack.c.b16 %v1110, %v1109
      %v1273 = vpack.c.b16 %v1112, %v1111
      %v1274 = vpack.c.b16 %v1114, %v1113
      %v1275 = vpack.c.b16 %v1116, %v1115
      %v1276 = vpack.c.b16 %v1118, %v1117
      %v1277 = vpack.c.b16 %v1120, %v1119
      %v1278 = vpack.c.b16 %v1122, %v1121
      %v1279 = vpack.c.b16 %v1124, %v1123
      %v1280 = vpack.c.b16 %v1126, %v1125
      %v1281 = vpack.c.b16 %v1128, %v1127
      %v1282 = vpack.c.b16 %v1130, %v1129
      %v1283 = vpack.c.b16 %v1132, %v1131
      %v1284 = vpack.c.b16 %v1134, %v1133
      %v1285 = vpack.c.b16 %v1136, %v1135
      %v1286 = vpack.c.b16 %v1138, %v1137
      %v1287 = vpack.c.b16 %v1140, %v1139
      %v1288 = vpack.c.b16 %v1142, %v1141
      %v1289 = vpack.c.b16 %v1144, %v1143
      %v1290 = vpack.c.b16 %v1146, %v1145
      %v1291 = vpack.c.b16 %v1148, %v1147
      %v1292 = vpack.c.b16 %v1150, %v1149
      %v1293 = vpack.c.b16 %v1152, %v1151
      %v1294 = vpack.c.b16 %v1154, %v1153
      %v1295 = vpack.c.b16 %v1156, %v1155
      %v1296 = vpack.c.b16 %v1158, %v1157
      %v1297 = vpack.c.b16 %v1160, %v1159
      %v1298 = vpack.c.b16 %v1162, %v1161
      %v1299 = vpack.c.b16 %v1164, %v1163
      %v1300 = vpack.c.b16 %v1166, %v1165
      %v1301 = vpack.c.b16 %v1168, %v1167
      %v1302 = vpack.c.b16 %v1170, %v1169
      %v1303 = vpack.c.b16 %v1172, %v1171
      %v1304 = vpack.c.b16 %v1174, %v1173
      %v1305 = vpack.c.b16 %v1176, %v1175
      %v1306 = vpack.c.b16 %v1178, %v1177
      %v1307 = vpack.c.b16 %v1180, %v1179
      %v1308 = vpack.c.b16 %v1182, %v1181
      %v1309 = vpack.c.b16 %v1184, %v1183
      %v1310 = vpack.c.b16 %v1186, %v1185
      %v1311 = vpack.c.b16 %v1188, %v1187
      %v1312 = vpack.c.b16 %v1190, %v1189
      %v1313 = vpack.c.b16 %v1192, %v1191
      %v1314 = vpack.c.b16 %v1194, %v1193
      %v1315 = vpack.c.b16 %v1196, %v1195
      %v1316 = vpack.c.b16 %v1198, %v1197
      %v1317 = vpack.c.b16 %v1200, %v1199
      %v1318 = vpack.c.b16 %v1202, %v1201
      %v1319 = vpack.c.b16 %v1204, %v1203
      %v1320 = vpack.c.b16 %v1206, %v1205
      %v1321 = vpack.c.b16 %v1208, %v1207
      %v1322 = vpack.c.b16 %v1210, %v1209
      %v1323 = vpack.c.b16 %v1212, %v1211
      %v1324 = vpack.c.b16 %v1214, %v1213
      %v1325 = vpack.c.b16 %v1216, %v1215
      %v1326 = vpack.c.b16 %v1218, %v1217
      %v1327 = vpack.c.b16 %v1220, %v1219
      %v1328 = vpack.c.b16 %v1222, %v1221
      %v1329 = vpack.c.b16 %v1224, %v1223
      %v1330 = vpack.c.b16 %v1226, %v1225
      %v1331 = vpack.c.b16 %v1228, %v1227
      %v1332 = vpack.c.b16 %v1230, %v1229
      %v1333 = vpack.c.b16 %v1232, %v1231
      %v1334 = vpack.c.b16 %v1234, %v1233
      %v1335 = vpack.c.b16 %v1236, %v1235
      %v1336 = vpack.c.b16 %v1238, %v1237
      %vm1435 = vcmask 261120
      %v1437 = vsel %vm1435, %v809, 0
      %v1440 = vsel %vm1435, %v822, 0
      %1442 = vmatprep.subr.bf16.mxu0 0
      %1443 = vmatpush1.bf16.msra.mxu0 %v1239
      %1444 = vmatprep.subr.bf16.mxu0 0
      %1445 = vmatpush1.bf16.msra.mxu0 %v1240
      %1446 = vmatprep.subr.bf16.mxu0 0
      %1447 = vmatpush1.bf16.msra.mxu0 %v1241
      %1448 = vmatprep.subr.bf16.mxu0 0
      %1449 = vmatpush1.bf16.msra.mxu0 %v1242
      %1450 = vmatprep.subr.bf16.mxu0 0
      %1451 = vmatpush1.bf16.msra.mxu0 %v1243
      %1452 = vmatprep.subr.bf16.mxu0 0
      %1453 = vmatpush1.bf16.msra.mxu0 %v1244
      %1454 = vmatprep.subr.bf16.mxu0 0
      %1455 = vmatpush1.bf16.msra.mxu0 %v1245
      %1456 = vmatprep.subr.bf16.mxu0 0
      %1457 = vmatpush1.bf16.msra.mxu0 %v1246
      %1458 = vmatprep.subr.bf16.mxu0 0
      %1459 = vmatpush1.bf16.msra.mxu0 %v1247
      %1460 = vmatprep.subr.bf16.mxu0 0
      %1461 = vmatpush1.bf16.msra.mxu0 %v1248
      %1462 = vmatprep.subr.bf16.mxu0 0
      %1463 = vmatpush1.bf16.msra.mxu0 %v1249
      %1464 = vmatprep.subr.bf16.mxu0 0
      %1465 = vmatpush1.bf16.msra.mxu0 %v1250
      %1466 = vmatprep.subr.bf16.mxu0 0
      %1467 = vmatpush1.bf16.msra.mxu0 %v1251
      %1468 = vmatprep.subr.bf16.mxu0 0
      %1469 = vmatpush1.bf16.msra.mxu0 %v1252
      %1470 = vmatprep.subr.bf16.mxu0 0
      %1471 = vmatpush1.bf16.msra.mxu0 %v1253
      %1472 = vmatprep.subr.bf16.mxu0 0
      %1473 = vmatpush1.bf16.msra.mxu0 %v1254
      %1474 = vmatprep.mubr.bf16.mxu0 %v798
      %1475 = vmatmul.mubr.bf16.gmra.mrb[0].mxu0 %v797
      %v1476 = vpop.f32.mrb[0].mxu0
      %v1477 = vadd.f32 %v735, %v1476
      %v1478 = vpop.f32.mrb[0].mxu0
      %v1479 = vpop.f32.mrb[0].mxu0
      %v1480 = vadd.f32 %v735, %v1479
      %v1481 = vpop.f32.mrb[0].mxu0
      %1482 = vmatprep.mubr.bf16.mxu0 %v811
      %1483 = vmatmul.mubr.bf16.gmra.mrb[0].mxu0 %v810
      %v1484 = vpop.f32.mrb[0].mxu0
      %v1485 = vadd.f32 %v735, %v1484
      %v1486 = vpop.f32.mrb[0].mxu0
      %v1487 = vpop.f32.mrb[0].mxu0
      %v1488 = vpop.f32.mrb[0].mxu0
      %1489 = vdwg.mxu0
      %1490 = vmatprep.subr.bf16.mxu0 0
      %1491 = vmatpush1.bf16.msra.mxu0 %v1255
      %1492 = vmatprep.subr.bf16.mxu0 0
      %1493 = vmatpush1.bf16.msra.mxu0 %v1256
      %1494 = vmatprep.subr.bf16.mxu0 0
      %1495 = vmatpush1.bf16.msra.mxu0 %v1257
      %1496 = vmatprep.subr.bf16.mxu0 0
      %1497 = vmatpush1.bf16.msra.mxu0 %v1258
      %1498 = vmatprep.subr.bf16.mxu0 0
      %1499 = vmatpush1.bf16.msra.mxu0 %v1259
      %1500 = vmatprep.subr.bf16.mxu0 0
      %1501 = vmatpush1.bf16.msra.mxu0 %v1260
      %1502 = vmatprep.subr.bf16.mxu0 0
      %1503 = vmatpush1.bf16.msra.mxu0 %v1261
      %1504 = vmatprep.subr.bf16.mxu0 0
      %1505 = vmatpush1.bf16.msra.mxu0 %v1262
      %1506 = vmatprep.subr.bf16.mxu0 0
      %1507 = vmatpush1.bf16.msra.mxu0 %v1263
      %1508 = vmatprep.subr.bf16.mxu0 0
      %1509 = vmatpush1.bf16.msra.mxu0 %v1264
      %1510 = vmatprep.subr.bf16.mxu0 0
      %1511 = vmatpush1.bf16.msra.mxu0 %v1265
      %1512 = vmatprep.subr.bf16.mxu0 0
      %1513 = vmatpush1.bf16.msra.mxu0 %v1266
      %1514 = vmatprep.subr.bf16.mxu0 0
      %1515 = vmatpush1.bf16.msra.mxu0 %v1267
      %1516 = vmatprep.subr.bf16.mxu0 0
      %1517 = vmatpush1.bf16.msra.mxu0 %v1268
      %1518 = vmatprep.subr.bf16.mxu0 0
      %1519 = vmatpush1.bf16.msra.mxu0 %v1269
      %1520 = vmatprep.subr.bf16.mxu0 0
      %1521 = vmatpush1.bf16.msra.mxu0 %v1270
      %1522 = vmatprep.mubr.bf16.mxu0 %v800
      %1523 = vmatmul.mubr.bf16.gmra.mrb[0].mxu0 %v799
      %v1524 = vpop.f32.mrb[0].mxu0
      %v1525 = vadd.f32 %v1477, %v1524
      %v1526 = vpop.f32.mrb[0].mxu0
      %v1527 = vpop.f32.mrb[0].mxu0
      %v1528 = vadd.f32 %v1480, %v1527
      %v1529 = vpop.f32.mrb[0].mxu0
      %1530 = vmatprep.mubr.bf16.mxu0 %v813
      %1531 = vmatmul.mubr.bf16.gmra.mrb[0].mxu0 %v812
      %v1532 = vpop.f32.mrb[0].mxu0
      %v1533 = vadd.f32 %v1485, %v1532
      %v1534 = vpop.f32.mrb[0].mxu0
      %v1535 = vpop.f32.mrb[0].mxu0
      %v1536 = vpop.f32.mrb[0].mxu0
      %1537 = vdwg.mxu0
      %1538 = vmatprep.subr.bf16.mxu0 0
      %1539 = vmatpush1.bf16.msra.mxu0 %v1271
      %1540 = vmatprep.subr.bf16.mxu0 0
      %1541 = vmatpush1.bf16.msra.mxu0 %v1272
      %1542 = vmatprep.subr.bf16.mxu0 0
      %1543 = vmatpush1.bf16.msra.mxu0 %v1273
      %1544 = vmatprep.subr.bf16.mxu0 0
      %1545 = vmatpush1.bf16.msra.mxu0 %v1274
      %1546 = vmatprep.subr.bf16.mxu0 0
      %1547 = vmatpush1.bf16.msra.mxu0 %v1275
      %1548 = vmatprep.subr.bf16.mxu0 0
      %1549 = vmatpush1.bf16.msra.mxu0 %v1276
      %1550 = vmatprep.subr.bf16.mxu0 0
      %1551 = vmatpush1.bf16.msra.mxu0 %v1277
      %1552 = vmatprep.subr.bf16.mxu0 0
      %1553 = vmatpush1.bf16.msra.mxu0 %v1278
      %1554 = vmatprep.subr.bf16.mxu0 0
      %1555 = vmatpush1.bf16.msra.mxu0 %v1279
      %1556 = vmatprep.subr.bf16.mxu0 0
      %1557 = vmatpush1.bf16.msra.mxu0 %v1280
      %1558 = vmatprep.subr.bf16.mxu0 0
      %1559 = vmatpush1.bf16.msra.mxu0 %v1281
      %1560 = vmatprep.subr.bf16.mxu0 0
      %1561 = vmatpush1.bf16.msra.mxu0 %v1282
      %1562 = vmatprep.subr.bf16.mxu0 0
      %1563 = vmatpush1.bf16.msra.mxu0 %v1283
      %1564 = vmatprep.subr.bf16.mxu0 0
      %1565 = vmatpush1.bf16.msra.mxu0 %v1284
      %1566 = vmatprep.subr.bf16.mxu0 0
      %1567 = vmatpush1.bf16.msra.mxu0 %v1285
      %1568 = vmatprep.subr.bf16.mxu0 0
      %1569 = vmatpush1.bf16.msra.mxu0 %v1286
      %1570 = vmatprep.mubr.bf16.mxu0 %v802
      %1571 = vmatmul.mubr.bf16.gmra.mrb[0].mxu0 %v801
      %v1572 = vpop.f32.mrb[0].mxu0
      %v1573 = vadd.f32 %v1525, %v1572
      %v1574 = vpop.f32.mrb[0].mxu0
      %v1575 = vpop.f32.mrb[0].mxu0
      %v1576 = vadd.f32 %v1528, %v1575
      %v1577 = vpop.f32.mrb[0].mxu0
      %1578 = vmatprep.mubr.bf16.mxu0 %v815
      %1579 = vmatmul.mubr.bf16.gmra.mrb[0].mxu0 %v814
      %v1580 = vpop.f32.mrb[0].mxu0
      %v1581 = vadd.f32 %v1533, %v1580
      %v1582 = vpop.f32.mrb[0].mxu0
      %v1583 = vpop.f32.mrb[0].mxu0
      %v1584 = vpop.f32.mrb[0].mxu0
      %1585 = vdwg.mxu0
      %1586 = vmatprep.subr.bf16.mxu0 0
      %1587 = vmatpush1.bf16.msra.mxu0 %v1287
      %1588 = vmatprep.subr.bf16.mxu0 0
      %1589 = vmatpush1.bf16.msra.mxu0 %v1288
      %1590 = vmatprep.subr.bf16.mxu0 0
      %1591 = vmatpush1.bf16.msra.mxu0 %v1289
      %1592 = vmatprep.subr.bf16.mxu0 0
      %1593 = vmatpush1.bf16.msra.mxu0 %v1290
      %1594 = vmatprep.subr.bf16.mxu0 0
      %1595 = vmatpush1.bf16.msra.mxu0 %v1291
      %1596 = vmatprep.subr.bf16.mxu0 0
      %1597 = vmatpush1.bf16.msra.mxu0 %v1292
      %1598 = vmatprep.subr.bf16.mxu0 0
      %1599 = vmatpush1.bf16.msra.mxu0 %v1293
      %1600 = vmatprep.subr.bf16.mxu0 0
      %1601 = vmatpush1.bf16.msra.mxu0 %v1294
      %1602 = vmatprep.subr.bf16.mxu0 0
      %1603 = vmatpush1.bf16.msra.mxu0 %v1295
      %1604 = vmatprep.subr.bf16.mxu0 0
      %1605 = vmatpush1.bf16.msra.mxu0 %v1296
      %1606 = vmatprep.subr.bf16.mxu0 0
      %1607 = vmatpush1.bf16.msra.mxu0 %v1297
      %1608 = vmatprep.subr.bf16.mxu0 0
      %1609 = vmatpush1.bf16.msra.mxu0 %v1298
      %1610 = vmatprep.subr.bf16.mxu0 0
      %1611 = vmatpush1.bf16.msra.mxu0 %v1299
      %1612 = vmatprep.subr.bf16.mxu0 0
      %1613 = vmatpush1.bf16.msra.mxu0 %v1300
      %1614 = vmatprep.subr.bf16.mxu0 0
      %1615 = vmatpush1.bf16.msra.mxu0 %v1301
      %1616 = vmatprep.subr.bf16.mxu0 0
      %1617 = vmatpush1.bf16.msra.mxu0 %v1302
      %1618 = vmatprep.mubr.bf16.mxu0 %v804
      %1619 = vmatmul.mubr.bf16.gmra.mrb[0].mxu0 %v803
      %v1620 = vpop.f32.mrb[0].mxu0
      %v1621 = vadd.f32 %v1573, %v1620
      %v1622 = vpop.f32.mrb[0].mxu0
      %v1623 = vpop.f32.mrb[0].mxu0
      %v1624 = vadd.f32 %v1576, %v1623
      %v1625 = vpop.f32.mrb[0].mxu0
      %1626 = vmatprep.mubr.bf16.mxu0 %v817
      %1627 = vmatmul.mubr.bf16.gmra.mrb[0].mxu0 %v816
      %v1628 = vpop.f32.mrb[0].mxu0
      %v1629 = vadd.f32 %v1581, %v1628
      %v1630 = vpop.f32.mrb[0].mxu0
      %v1631 = vpop.f32.mrb[0].mxu0
      %v1632 = vpop.f32.mrb[0].mxu0
      %1633 = vdwg.mxu0
      %1634 = vmatprep.subr.bf16.mxu0 0
      %1635 = vmatpush1.bf16.msra.mxu0 %v1303
      %1636 = vmatprep.subr.bf16.mxu0 0
      %1637 = vmatpush1.bf16.msra.mxu0 %v1304
      %1638 = vmatprep.subr.bf16.mxu0 0
      %1639 = vmatpush1.bf16.msra.mxu0 %v1305
      %1640 = vmatprep.subr.bf16.mxu0 0
      %1641 = vmatpush1.bf16.msra.mxu0 %v1306
      %1642 = vmatprep.subr.bf16.mxu0 0
      %1643 = vmatpush1.bf16.msra.mxu0 %v1307
      %1644 = vmatprep.subr.bf16.mxu0 0
      %1645 = vmatpush1.bf16.msra.mxu0 %v1308
      %1646 = vmatprep.subr.bf16.mxu0 0
      %1647 = vmatpush1.bf16.msra.mxu0 %v1309
      %1648 = vmatprep.subr.bf16.mxu0 0
      %1649 = vmatpush1.bf16.msra.mxu0 %v1310
      %1650 = vmatprep.subr.bf16.mxu0 0
      %1651 = vmatpush1.bf16.msra.mxu0 %v1311
      %1652 = vmatprep.subr.bf16.mxu0 0
      %1653 = vmatpush1.bf16.msra.mxu0 %v1312
      %1654 = vmatprep.subr.bf16.mxu0 0
      %1655 = vmatpush1.bf16.msra.mxu0 %v1313
      %1656 = vmatprep.subr.bf16.mxu0 0
      %1657 = vmatpush1.bf16.msra.mxu0 %v1314
      %1658 = vmatprep.subr.bf16.mxu0 0
      %1659 = vmatpush1.bf16.msra.mxu0 %v1315
      %1660 = vmatprep.subr.bf16.mxu0 0
      %1661 = vmatpush1.bf16.msra.mxu0 %v1316
      %1662 = vmatprep.subr.bf16.mxu0 0
      %1663 = vmatpush1.bf16.msra.mxu0 %v1317
      %1664 = vmatprep.subr.bf16.mxu0 0
      %1665 = vmatpush1.bf16.msra.mxu0 %v1318
      %1666 = vmatprep.mubr.bf16.mxu0 %v806
      %1667 = vmatmul.mubr.bf16.gmra.mrb[0].mxu0 %v805
      %v1668 = vpop.f32.mrb[0].mxu0
      %v1669 = vadd.f32 %v1621, %v1668
      %v1670 = vpop.f32.mrb[0].mxu0
      %v1671 = vpop.f32.mrb[0].mxu0
      %v1672 = vadd.f32 %v1624, %v1671
      %v1673 = vpop.f32.mrb[0].mxu0
      %1674 = vmatprep.mubr.bf16.mxu0 %v819
      %1675 = vmatmul.mubr.bf16.gmra.mrb[0].mxu0 %v818
      %v1676 = vpop.f32.mrb[0].mxu0
      %v1677 = vadd.f32 %v1629, %v1676
      %v1678 = vpop.f32.mrb[0].mxu0
      %v1679 = vpop.f32.mrb[0].mxu0
      %v1680 = vpop.f32.mrb[0].mxu0
      %1681 = vdwg.mxu0
      %1682 = vmatprep.subr.bf16.mxu0 0
      %1683 = vmatpush1.bf16.msra.mxu0 %v1319
      %1684 = vmatprep.subr.bf16.mxu0 0
      %1685 = vmatpush1.bf16.msra.mxu0 %v1320
      %1686 = vmatprep.subr.bf16.mxu0 0
      %1687 = vmatpush1.bf16.msra.mxu0 %v1321
      %1688 = vmatprep.subr.bf16.mxu0 0
      %1689 = vmatpush1.bf16.msra.mxu0 %v1322
      %1690 = vmatprep.subr.bf16.mxu0 0
      %1691 = vmatpush1.bf16.msra.mxu0 %v1323
      %1692 = vmatprep.subr.bf16.mxu0 0
      %1693 = vmatpush1.bf16.msra.mxu0 %v1324
      %1694 = vmatprep.subr.bf16.mxu0 0
      %1695 = vmatpush1.bf16.msra.mxu0 %v1325
      %1696 = vmatprep.subr.bf16.mxu0 0
      %1697 = vmatpush1.bf16.msra.mxu0 %v1326
      %1698 = vmatprep.subr.bf16.mxu0 0
      %1699 = vmatpush1.bf16.msra.mxu0 %v1327
      %1700 = vmatprep.subr.bf16.mxu0 0
      %1701 = vmatpush1.bf16.msra.mxu0 %v1328
      %1702 = vmatprep.subr.bf16.mxu0 0
      %1703 = vmatpush1.bf16.msra.mxu0 %v1329
      %1704 = vmatprep.subr.bf16.mxu0 0
      %1705 = vmatpush1.bf16.msra.mxu0 %v1330
      %1706 = vmatprep.subr.bf16.mxu0 0
      %1707 = vmatpush1.bf16.msra.mxu0 %v1331
      %1708 = vmatprep.subr.bf16.mxu0 0
      %1709 = vmatpush1.bf16.msra.mxu0 %v1332
      %1710 = vmatprep.subr.bf16.mxu0 0
      %1711 = vmatpush1.bf16.msra.mxu0 %v1333
      %1712 = vmatprep.subr.bf16.mxu0 0
      %1713 = vmatpush1.bf16.msra.mxu0 %v1334
      %1714 = vmatprep.mubr.bf16.mxu0 %v808
      %1715 = vmatmul.mubr.bf16.gmra.mrb[0].mxu0 %v807
      %v1716 = vpop.f32.mrb[0].mxu0
      %v1717 = vadd.f32 %v1669, %v1716
      %v1718 = vpop.f32.mrb[0].mxu0
      %v1719 = vpop.f32.mrb[0].mxu0
      %v1720 = vadd.f32 %v1672, %v1719
      %v1721 = vpop.f32.mrb[0].mxu0
      %1722 = vmatprep.mubr.bf16.mxu0 %v821
      %1723 = vmatmul.mubr.bf16.gmra.mrb[0].mxu0 %v820
      %v1724 = vpop.f32.mrb[0].mxu0
      %v1725 = vadd.f32 %v1677, %v1724
      %v1726 = vpop.f32.mrb[0].mxu0
      %v1727 = vpop.f32.mrb[0].mxu0
      %v1728 = vpop.f32.mrb[0].mxu0
      %1729 = vdwg.mxu0
      %1730 = vmatprep.subr.bf16.mxu0 0
      %1731 = vmatpush1.bf16.msra.mxu0 %v1335
      %1732 = vmatprep.subr.bf16.mxu0 0
      %1733 = vmatpush1.bf16.msra.mxu0 %v1336
      %1734 = vmatprep.subr.bf16.mxu0 0
      %1735 = vmatpush1.bf16.msra.mxu0 0
      %1736 = vmatprep.subr.bf16.mxu0 0
      %1737 = vmatpush1.bf16.msra.mxu0 0
      %1738 = vmatprep.subr.bf16.mxu0 0
      %1739 = vmatpush1.bf16.msra.mxu0 0
      %1740 = vmatprep.subr.bf16.mxu0 0
      %1741 = vmatpush1.bf16.msra.mxu0 0
      %1742 = vmatprep.subr.bf16.mxu0 0
      %1743 = vmatpush1.bf16.msra.mxu0 0
      %1744 = vmatprep.subr.bf16.mxu0 0
      %1745 = vmatpush1.bf16.msra.mxu0 0
      %1746 = vmatprep.subr.bf16.mxu0 0
      %1747 = vmatpush1.bf16.msra.mxu0 0
      %1748 = vmatprep.subr.bf16.mxu0 0
      %1749 = vmatpush1.bf16.msra.mxu0 0
      %1750 = vmatprep.subr.bf16.mxu0 0
      %1751 = vmatpush1.bf16.msra.mxu0 0
      %1752 = vmatprep.subr.bf16.mxu0 0
      %1753 = vmatpush1.bf16.msra.mxu0 0
      %1754 = vmatprep.subr.bf16.mxu0 0
      %1755 = vmatpush1.bf16.msra.mxu0 0
      %1756 = vmatprep.subr.bf16.mxu0 0
      %1757 = vmatpush1.bf16.msra.mxu0 0
      %1758 = vmatprep.subr.bf16.mxu0 0
      %1759 = vmatpush1.bf16.msra.mxu0 0
      %1760 = vmatprep.subr.bf16.mxu0 0
      %1761 = vmatpush1.bf16.msra.mxu0 0
      %1762 = vmatprep.mubr.bf16.mxu0 0
      %1763 = vmatmul.mubr.bf16.gmra.mrb[0].mxu0 %v1437
      %v1764 = vpop.f32.mrb[0].mxu0
      %v1765 = vadd.f32 %v1717, %v1764
      %v1766 = vpop.f32.mrb[0].mxu0
      %v1767 = vpop.f32.mrb[0].mxu0
      %v1768 = vadd.f32 %v1720, %v1767
      %v1769 = vpop.f32.mrb[0].mxu0
      %1770 = vmatprep.mubr.bf16.mxu0 0
      %1771 = vmatmul.mubr.bf16.gmra.mrb[0].mxu0 %v1440
      %v1772 = vpop.f32.mrb[0].mxu0
      %v1773 = vadd.f32 %v1725, %v1772
      %v1774 = vpop.f32.mrb[0].mxu0
      %v1775 = vpop.f32.mrb[0].mxu0
      %v1776 = vpop.f32.mrb[0].mxu0
      %1777 = vdwg.mxu0
      %vm1778 = vcmp.gt.f32.partialorder %v1765, 0.0
      %vm1779 = vcmp.gt.f32.partialorder %v1768, 0.0
      %vm1780 = vcmp.gt.f32.partialorder %v1773, 0.0
      %v1781 = vmin.f32 %v1765, 0.0
      %v1782 = vmin.f32 %v1768, 0.0
      %v1783 = vmin.f32 %v1773, 0.0
      %v1784 = vmul.f32 %v1781, 1.442695
      %v1785 = vpow.pop %v1784
      %v1786 = vmul.f32 %v1782, 1.442695
      %v1787 = vpow.pop %v1786
      %v1788 = vmul.f32 %v1783, 1.442695
      %v1789 = vpow.pop %v1788
      %v1790 = vsub.f32 %v1785, 1.0
      %v1791 = vsub.f32 %v1787, 1.0
      %v1792 = vsub.f32 %v1789, 1.0
      %v1793 = vsel %vm1778, %v1765, %v1790
      %v1794 = vsel %vm1779, %v1768, %v1791
      %v1795 = vsel %vm1780, %v1773, %v1792
      %1796 = vst.msk [vmem:[#allocation2] sm:$0xff] %vm1435, %v1793
      %1797 = vst.msk [vmem:[#allocation2 + $0x8] sm:$0xff] %vm1435, %v1794
      %vm1798 = vcmask 254976
      %1799 = vst.msk [vmem:[#allocation2 + $0x10] sm:$0x3] %vm1798, %v1795
      %v1800 = vld [vmem:[#allocation2] sm:$0x3]
      %1801 = vst.msk [vmem:[#allocation3] sm:$0x3] %vm1798, %v1800
      %v1802 = vld [vmem:[#allocation2 + $0x2] sm:$0x3]
      %v1805 = vunpack.c.l.s4 1983009808
      %v1806 = vunpack.c.0.s8 %v1805
      %v1807 = vlaneseq
      %v1808 = vshrl.u32 %v1807, 7
      %v1809 = vsub.s32 %v1806, %v1808
      %v1810 = vrot.slane %v1802, %v1809
      %1811 = vrot.lane.b32.xlu0 %v1810, 32
      %v1812 = vpop.permute.xlu0 %1811
      %vm1814 = vcmask 517376
      %1815 = vst.msk [vmem:[#allocation3] sm:$0x3] %vm1814, %v1812
      %v1816 = vld [vmem:[#allocation2 + $0x4] sm:$0x3]
      %v1819 = vunpack.c.l.s4 1983009808
      %v1820 = vunpack.c.0.s8 %v1819
      %v1821 = vlaneseq
      %v1822 = vshrl.u32 %v1821, 7
      %v1823 = vsub.s32 %v1820, %v1822
      %v1824 = vrot.slane %v1816, %v1823
      %1825 = vrot.lane.b32.xlu0 %v1824, 64
      %v1826 = vpop.permute.xlu0 %1825
      %vm1828 = vcmask 779776
      %1829 = vst.msk [vmem:[#allocation3] sm:$0x3] %vm1828, %v1826
      %v1830 = vld [vmem:[#allocation2 + $0x6] sm:$0x3]
      %v1833 = vunpack.c.l.s4 1983009808
      %v1834 = vunpack.c.0.s8 %v1833
      %v1835 = vlaneseq
      %v1836 = vshrl.u32 %v1835, 7
      %v1837 = vsub.s32 %v1834, %v1836
      %v1838 = vrot.slane %v1830, %v1837
      %1839 = vrot.lane.b32.xlu0 %v1838, 96
      %v1840 = vpop.permute.xlu0 %1839
      %vm1842 = vcmask 1042176
      %1843 = vst.msk [vmem:[#allocation3] sm:$0x3] %vm1842, %v1840
      %v1844 = vld [vmem:[#allocation2 + $0x8] sm:$0x3]
      %1845 = vst.msk [vmem:[#allocation3 + $0x2] sm:$0x3] %vm1798, %v1844
      %v1846 = vld [vmem:[#allocation2 + $0xa] sm:$0x3]
      %v1849 = vunpack.c.l.s4 1983009808
      %v1850 = vunpack.c.0.s8 %v1849
      %v1851 = vlaneseq
      %v1852 = vshrl.u32 %v1851, 7
      %v1853 = vsub.s32 %v1850, %v1852
      %v1854 = vrot.slane %v1846, %v1853
      %1855 = vrot.lane.b32.xlu0 %v1854, 32
      %v1856 = vpop.permute.xlu0 %1855
      %1858 = vst.msk [vmem:[#allocation3 + $0x2] sm:$0x3] %vm1814, %v1856
      %v1859 = vld [vmem:[#allocation2 + $0xc] sm:$0x3]
      %v1862 = vunpack.c.l.s4 1983009808
      %v1863 = vunpack.c.0.s8 %v1862
      %v1864 = vlaneseq
      %v1865 = vshrl.u32 %v1864, 7
      %v1866 = vsub.s32 %v1863, %v1865
      %v1867 = vrot.slane %v1859, %v1866
      %1868 = vrot.lane.b32.xlu0 %v1867, 64
      %v1869 = vpop.permute.xlu0 %1868
      %1871 = vst.msk [vmem:[#allocation3 + $0x2] sm:$0x3] %vm1828, %v1869
      %v1872 = vld [vmem:[#allocation2 + $0xe] sm:$0x3]
      %v1875 = vunpack.c.l.s4 1983009808
      %v1876 = vunpack.c.0.s8 %v1875
      %v1877 = vlaneseq
      %v1878 = vshrl.u32 %v1877, 7
      %v1879 = vsub.s32 %v1876, %v1878
      %v1880 = vrot.slane %v1872, %v1879
      %1881 = vrot.lane.b32.xlu0 %v1880, 96
      %v1882 = vpop.permute.xlu0 %1881
      %1884 = vst.msk [vmem:[#allocation3 + $0x2] sm:$0x3] %vm1842, %v1882
      %v1885 = vld [vmem:[#allocation2 + $0x10] sm:$0x3]
      %1886 = vst.msk [vmem:[#allocation3 + $0x4] sm:$0x3] %vm1798, %v1885
      %v1887 = vld [vmem:[#allocation3] sm:$0x3f]
      %v1889 = vcombine.high %v1887, %v1887
      %v1891 = vunpack.c.l.s4 1983009808
      %v1892 = vunpack.c.0.s8 %v1891
      %v1893 = vlaneseq
      %v1894 = vshrl.u32 %v1893, 7
      %v1895 = vsub.s32 %v1892, %v1894
      %v1896 = vrot.slane %v1887, %v1895
      %v1898 = vunpack.c.l.s4 1983009808
      %v1899 = vunpack.c.0.s8 %v1898
      %v1900 = vlaneseq
      %v1901 = vshrl.u32 %v1900, 7
      %v1902 = vsub.s32 %v1899, %v1901
      %v1903 = vrot.slane %v1889, %v1902
      %v1904 = vcombine.high %v1896, %v1896
      %v1908 = vpack.c.bf16 %v1896, %v1896
      %v1909 = vpack.c.bf16 %v1904, %v1904
      %v1910 = vpack.c.bf16 %v1903, %v1903
      %v1911 = vld [vmem:[%s483] sm:$0xf]
      %v1912 = vld [vmem:[%s483 + $0x4] sm:$0xf]
      %v1913 = vld [vmem:[%s483 + $0x8] sm:$0xf]
      %v1914 = vld [vmem:[%s483 + $0xc] sm:$0xf]
      %v1915 = vld [vmem:[%s483 + $0x10] sm:$0xf]
      %v1916 = vld [vmem:[%s483 + $0x14] sm:$0xf]
      %v1917 = vld [vmem:[%s483 + $0x18] sm:$0xf]
      %v1918 = vld [vmem:[%s483 + $0x1c] sm:$0xf]
      %v1919 = vld [vmem:[%s483 + $0x20] sm:$0xf]
      %v1920 = vld [vmem:[%s483 + $0x24] sm:$0xf]
      %v1921 = vld [vmem:[%s483 + $0x28] sm:$0xf]
      %v1922 = vld [vmem:[%s483 + $0x2c] sm:$0xf]
      %v1923 = vld [vmem:[%s483 + $0x30] sm:$0xf]
      %v1924 = vld [vmem:[%s483 + $0x34] sm:$0xf]
      %v1925 = vld [vmem:[%s483 + $0x38] sm:$0xf]
      %v1926 = vld [vmem:[%s483 + $0x3c] sm:$0xf]
      %v1927 = vld [vmem:[%s483 + $0x40] sm:$0xf]
      %v1928 = vld [vmem:[%s483 + $0x44] sm:$0xf]
      %v1929 = vld [vmem:[%s483 + $0x48] sm:$0xf]
      %v1930 = vld [vmem:[%s483 + $0x4c] sm:$0xf]
      %v1931 = vld [vmem:[%s483 + $0x50] sm:$0xf]
      %v1932 = vld [vmem:[%s483 + $0x54] sm:$0xf]
      %v1933 = vld [vmem:[%s483 + $0x58] sm:$0xf]
      %v1934 = vld [vmem:[%s483 + $0x5c] sm:$0xf]
      %v1935 = vld [vmem:[%s483 + $0x60] sm:$0xf]
      %v1936 = vld [vmem:[%s483 + $0x64] sm:$0xf]
      %v1937 = vld [vmem:[%s483 + $0x68] sm:$0xf]
      %v1938 = vld [vmem:[%s483 + $0x6c] sm:$0xf]
      %v1939 = vld [vmem:[%s483 + $0x70] sm:$0xf]
      %v1940 = vld [vmem:[%s483 + $0x74] sm:$0xf]
      %v1941 = vld [vmem:[%s483 + $0x78] sm:$0xf]
      %v1942 = vld [vmem:[%s483 + $0x7c] sm:$0xf]
      %v1943 = vld [vmem:[%s483 + $0x80] sm:$0xf]
      %v1944 = vld [vmem:[%s483 + $0x84] sm:$0xf]
      %v1945 = vld [vmem:[%s483 + $0x88] sm:$0xf]
      %v1946 = vld [vmem:[%s483 + $0x8c] sm:$0xf]
      %v1947 = vld [vmem:[%s486] sm:$0x1]
      %v1949 = vlaneseq
      %v1950 = vshrl.u32 %v1949, 7
      %v1951 = vsub.s32 0, %v1950
      %v1952 = vrot.slane %v1947, %v1951
      %v1990 = vunpack.c.l.b16 %v1911
      %v1991 = vunpack.c.l.b16 %v1912
      %v1992 = vunpack.c.l.b16 %v1913
      %v1993 = vunpack.c.l.b16 %v1914
      %v1994 = vunpack.c.l.b16 %v1915
      %v1995 = vunpack.c.l.b16 %v1916
      %v1996 = vunpack.c.l.b16 %v1917
      %v1997 = vunpack.c.l.b16 %v1918
      %v1998 = vunpack.c.l.b16 %v1919
      %v1999 = vunpack.c.l.b16 %v1920
      %v2000 = vunpack.c.l.b16 %v1921
      %v2001 = vunpack.c.l.b16 %v1922
      %v2002 = vunpack.c.l.b16 %v1923
      %v2003 = vunpack.c.l.b16 %v1924
      %v2004 = vunpack.c.l.b16 %v1925
      %v2005 = vunpack.c.l.b16 %v1926
      %v2006 = vunpack.c.l.b16 %v1927
      %v2007 = vunpack.c.l.b16 %v1928
      %v2008 = vunpack.c.l.b16 %v1929
      %v2009 = vunpack.c.l.b16 %v1930
      %v2010 = vunpack.c.l.b16 %v1931
      %v2011 = vunpack.c.l.b16 %v1932
      %v2012 = vunpack.c.l.b16 %v1933
      %v2013 = vunpack.c.l.b16 %v1934
      %v2014 = vunpack.c.l.b16 %v1935
      %v2015 = vunpack.c.l.b16 %v1936
      %v2016 = vunpack.c.l.b16 %v1937
      %v2017 = vunpack.c.l.b16 %v1938
      %v2018 = vunpack.c.l.b16 %v1939
      %v2019 = vunpack.c.l.b16 %v1940
      %v2020 = vunpack.c.l.b16 %v1941
      %v2021 = vunpack.c.l.b16 %v1942
      %v2022 = vunpack.c.l.b16 %v1943
      %v2023 = vunpack.c.l.b16 %v1944
      %v2024 = vunpack.c.l.b16 %v1945
      %v2025 = vunpack.c.l.b16 %v1946
      %v2026 = vpack.c.b16 %v1991, %v1990
      %v2027 = vpack.c.b16 %v1993, %v1992
      %v2028 = vpack.c.b16 %v1995, %v1994
      %v2029 = vpack.c.b16 %v1997, %v1996
      %v2030 = vpack.c.b16 %v1999, %v1998
      %v2031 = vpack.c.b16 %v2001, %v2000
      %v2032 = vpack.c.b16 %v2003, %v2002
      %v2033 = vpack.c.b16 %v2005, %v2004
      %v2034 = vpack.c.b16 %v2007, %v2006
      %v2035 = vpack.c.b16 %v2009, %v2008
      %v2036 = vpack.c.b16 %v2011, %v2010
      %v2037 = vpack.c.b16 %v2013, %v2012
      %v2038 = vpack.c.b16 %v2015, %v2014
      %v2039 = vpack.c.b16 %v2017, %v2016
      %v2040 = vpack.c.b16 %v2019, %v2018
      %v2041 = vpack.c.b16 %v2021, %v2020
      %v2042 = vpack.c.b16 %v2023, %v2022
      %v2043 = vpack.c.b16 %v2025, %v2024
      %v2063 = vsel %vm1435, %v1910, 0
      %2065 = vmatprep.subr.bf16.mxu0 0
      %2066 = vmatpush1.bf16.msra.mxu0 %v2026
      %2067 = vmatprep.subr.bf16.mxu0 0
      %2068 = vmatpush1.bf16.msra.mxu0 %v2027
      %2069 = vmatprep.subr.bf16.mxu0 0
      %2070 = vmatpush1.bf16.msra.mxu0 %v2028
      %2071 = vmatprep.subr.bf16.mxu0 0
      %2072 = vmatpush1.bf16.msra.mxu0 %v2029
      %2073 = vmatprep.subr.bf16.mxu0 0
      %2074 = vmatpush1.bf16.msra.mxu0 %v2030
      %2075 = vmatprep.subr.bf16.mxu0 0
      %2076 = vmatpush1.bf16.msra.mxu0 %v2031
      %2077 = vmatprep.subr.bf16.mxu0 0
      %2078 = vmatpush1.bf16.msra.mxu0 %v2032
      %2079 = vmatprep.subr.bf16.mxu0 0
      %2080 = vmatpush1.bf16.msra.mxu0 %v2033
      %2081 = vmatprep.subr.bf16.mxu0 0
      %2082 = vmatpush1.bf16.msra.mxu0 %v2034
      %2083 = vmatprep.subr.bf16.mxu0 0
      %2084 = vmatpush1.bf16.msra.mxu0 %v2035
      %2085 = vmatprep.subr.bf16.mxu0 0
      %2086 = vmatpush1.bf16.msra.mxu0 %v2036
      %2087 = vmatprep.subr.bf16.mxu0 0
      %2088 = vmatpush1.bf16.msra.mxu0 %v2037
      %2089 = vmatprep.subr.bf16.mxu0 0
      %2090 = vmatpush1.bf16.msra.mxu0 %v2038
      %2091 = vmatprep.subr.bf16.mxu0 0
      %2092 = vmatpush1.bf16.msra.mxu0 %v2039
      %2093 = vmatprep.subr.bf16.mxu0 0
      %2094 = vmatpush1.bf16.msra.mxu0 %v2040
      %2095 = vmatprep.subr.bf16.mxu0 0
      %2096 = vmatpush1.bf16.msra.mxu0 %v2041
      %2097 = vmatprep.mubr.bf16.mxu0 %v1909
      %2098 = vmatmul.mubr.bf16.gmra.mrb[0].mxu0 %v1908
      %v2099 = vpop.f32.mrb[0].mxu0
      %v2100 = vadd.f32 %v1952, %v2099
      %v2101 = vpop.f32.mrb[0].mxu0
      %v2102 = vpop.f32.mrb[0].mxu0
      %v2103 = vpop.f32.mrb[0].mxu0
      %2104 = vdwg.mxu0
      %2105 = vmatprep.subr.bf16.mxu0 0
      %2106 = vmatpush1.bf16.msra.mxu0 %v2042
      %2107 = vmatprep.subr.bf16.mxu0 0
      %2108 = vmatpush1.bf16.msra.mxu0 %v2043
      %2109 = vmatprep.subr.bf16.mxu0 0
      %2110 = vmatpush1.bf16.msra.mxu0 0
      %2111 = vmatprep.subr.bf16.mxu0 0
      %2112 = vmatpush1.bf16.msra.mxu0 0
      %2113 = vmatprep.subr.bf16.mxu0 0
      %2114 = vmatpush1.bf16.msra.mxu0 0
      %2115 = vmatprep.subr.bf16.mxu0 0
      %2116 = vmatpush1.bf16.msra.mxu0 0
      %2117 = vmatprep.subr.bf16.mxu0 0
      %2118 = vmatpush1.bf16.msra.mxu0 0
      %2119 = vmatprep.subr.bf16.mxu0 0
      %2120 = vmatpush1.bf16.msra.mxu0 0
      %2121 = vmatprep.subr.bf16.mxu0 0
      %2122 = vmatpush1.bf16.msra.mxu0 0
      %2123 = vmatprep.subr.bf16.mxu0 0
      %2124 = vmatpush1.bf16.msra.mxu0 0
      %2125 = vmatprep.subr.bf16.mxu0 0
      %2126 = vmatpush1.bf16.msra.mxu0 0
      %2127 = vmatprep.subr.bf16.mxu0 0
      %2128 = vmatpush1.bf16.msra.mxu0 0
      %2129 = vmatprep.subr.bf16.mxu0 0
      %2130 = vmatpush1.bf16.msra.mxu0 0
      %2131 = vmatprep.subr.bf16.mxu0 0
      %2132 = vmatpush1.bf16.msra.mxu0 0
      %2133 = vmatprep.subr.bf16.mxu0 0
      %2134 = vmatpush1.bf16.msra.mxu0 0
      %2135 = vmatprep.subr.bf16.mxu0 0
      %2136 = vmatpush1.bf16.msra.mxu0 0
      %2137 = vmatprep.mubr.bf16.mxu0 0
      %2138 = vmatmul.mubr.bf16.gmra.mrb[0].mxu0 %v2063
      %v2139 = vpop.f32.mrb[0].mxu0
      %v2140 = vadd.f32 %v2100, %v2139
      %v2141 = vpop.f32.mrb[0].mxu0
      %v2142 = vpop.f32.mrb[0].mxu0
      %v2143 = vpop.f32.mrb[0].mxu0
      %2144 = vdwg.mxu0
      %vm2145 = vcmp.gt.f32.partialorder %v2140, 0.0
      %v2146 = vmin.f32 %v2140, 0.0
      %v2147 = vmul.f32 %v2146, 1.442695
      %v2148 = vpow.pop %v2147
      %v2149 = vsub.f32 %v2148, 1.0
      %v2150 = vsel %vm2145, %v2140, %v2149
      %v2151 = vpack.c.bf16 %v2150, %v2150
      %v2152 = vld [vmem:[%s491] sm:$0xff]
      %v2153 = vld [vmem:[%s491 + $0x8] sm:$0xff]
      %v2154 = vld [vmem:[%s491 + $0x10] sm:$0xff]
      %v2155 = vld [vmem:[%s491 + $0x18] sm:$0xff]
      %v2156 = vld [vmem:[%s491 + $0x20] sm:$0xff]
      %v2157 = vld [vmem:[%s491 + $0x28] sm:$0xff]
      %v2158 = vld [vmem:[%s491 + $0x30] sm:$0xff]
      %v2159 = vld [vmem:[%s491 + $0x38] sm:$0xff]
      %v2160 = vld [vmem:[%s491 + $0x40] sm:$0xff]
      %v2161 = vld [vmem:[%s491 + $0x48] sm:$0xff]
      %v2162 = vld [vmem:[%s491 + $0x50] sm:$0xff]
      %v2163 = vld [vmem:[%s491 + $0x58] sm:$0xff]
      %v2164 = vld [vmem:[%s491 + $0x60] sm:$0xff]
      %v2165 = vld [vmem:[%s491 + $0x68] sm:$0xff]
      %v2166 = vld [vmem:[%s491 + $0x70] sm:$0xff]
      %v2167 = vld [vmem:[%s491 + $0x78] sm:$0xff]
      %v2168 = vld [vmem:[%s495] sm:$0x3]
      %v2170 = vlaneseq
      %v2171 = vshrl.u32 %v2170, 7
      %v2172 = vsub.s32 0, %v2171
      %v2173 = vrot.slane %v2168, %v2172
      %v2174 = vlaneseq
      %v2175 = vshrl.u32 %v2174, 7
      %v2176 = vsub.s32 1, %v2175
      %v2177 = vrot.slane %v2168, %v2176
      %v2196 = vunpack.c.l.b16 %v2152
      %v2197 = vunpack.c.h.b16 %v2152
      %v2198 = vunpack.c.l.b16 %v2153
      %v2199 = vunpack.c.h.b16 %v2153
      %v2200 = vunpack.c.l.b16 %v2154
      %v2201 = vunpack.c.h.b16 %v2154
      %v2202 = vunpack.c.l.b16 %v2155
      %v2203 = vunpack.c.h.b16 %v2155
      %v2204 = vunpack.c.l.b16 %v2156
      %v2205 = vunpack.c.h.b16 %v2156
      %v2206 = vunpack.c.l.b16 %v2157
      %v2207 = vunpack.c.h.b16 %v2157
      %v2208 = vunpack.c.l.b16 %v2158
      %v2209 = vunpack.c.h.b16 %v2158
      %v2210 = vunpack.c.l.b16 %v2159
      %v2211 = vunpack.c.h.b16 %v2159
      %v2212 = vunpack.c.l.b16 %v2160
      %v2213 = vunpack.c.h.b16 %v2160
      %v2214 = vunpack.c.l.b16 %v2161
      %v2215 = vunpack.c.h.b16 %v2161
      %v2216 = vunpack.c.l.b16 %v2162
      %v2217 = vunpack.c.h.b16 %v2162
      %v2218 = vunpack.c.l.b16 %v2163
      %v2219 = vunpack.c.h.b16 %v2163
      %v2220 = vunpack.c.l.b16 %v2164
      %v2221 = vunpack.c.h.b16 %v2164
      %v2222 = vunpack.c.l.b16 %v2165
      %v2223 = vunpack.c.h.b16 %v2165
      %v2224 = vunpack.c.l.b16 %v2166
      %v2225 = vunpack.c.h.b16 %v2166
      %v2226 = vunpack.c.l.b16 %v2167
      %v2227 = vunpack.c.h.b16 %v2167
      %v2228 = vpack.c.b16 %v2198, %v2196
      %v2229 = vpack.c.b16 %v2199, %v2197
      %v2230 = vpack.c.b16 %v2202, %v2200
      %v2231 = vpack.c.b16 %v2203, %v2201
      %v2232 = vpack.c.b16 %v2206, %v2204
      %v2233 = vpack.c.b16 %v2207, %v2205
      %v2234 = vpack.c.b16 %v2210, %v2208
      %v2235 = vpack.c.b16 %v2211, %v2209
      %v2236 = vpack.c.b16 %v2214, %v2212
      %v2237 = vpack.c.b16 %v2215, %v2213
      %v2238 = vpack.c.b16 %v2218, %v2216
      %v2239 = vpack.c.b16 %v2219, %v2217
      %v2240 = vpack.c.b16 %v2222, %v2220
      %v2241 = vpack.c.b16 %v2223, %v2221
      %v2242 = vpack.c.b16 %v2226, %v2224
      %v2243 = vpack.c.b16 %v2227, %v2225
      %2260 = vmatprep.subr.bf16.mxu0 %v2229
      %2261 = vmatpush1.bf16.msra.mxu0 %v2228
      %2262 = vmatprep.subr.bf16.mxu0 %v2231
      %2263 = vmatpush1.bf16.msra.mxu0 %v2230
      %2264 = vmatprep.subr.bf16.mxu0 %v2233
      %2265 = vmatpush1.bf16.msra.mxu0 %v2232
      %2266 = vmatprep.subr.bf16.mxu0 %v2235
      %2267 = vmatpush1.bf16.msra.mxu0 %v2234
      %2268 = vmatprep.subr.bf16.mxu0 %v2237
      %2269 = vmatpush1.bf16.msra.mxu0 %v2236
      %2270 = vmatprep.subr.bf16.mxu0 %v2239
      %2271 = vmatpush1.bf16.msra.mxu0 %v2238
      %2272 = vmatprep.subr.bf16.mxu0 %v2241
      %2273 = vmatpush1.bf16.msra.mxu0 %v2240
      %2274 = vmatprep.subr.bf16.mxu0 %v2243
      %2275 = vmatpush1.bf16.msra.mxu0 %v2242
      %2276 = vmatprep.subr.bf16.mxu0 0
      %2277 = vmatpush1.bf16.msra.mxu0 0
      %2278 = vmatprep.subr.bf16.mxu0 0
      %2279 = vmatpush1.bf16.msra.mxu0 0
      %2280 = vmatprep.subr.bf16.mxu0 0
      %2281 = vmatpush1.bf16.msra.mxu0 0
      %2282 = vmatprep.subr.bf16.mxu0 0
      %2283 = vmatpush1.bf16.msra.mxu0 0
      %2284 = vmatprep.subr.bf16.mxu0 0
      %2285 = vmatpush1.bf16.msra.mxu0 0
      %2286 = vmatprep.subr.bf16.mxu0 0
      %2287 = vmatpush1.bf16.msra.mxu0 0
      %2288 = vmatprep.subr.bf16.mxu0 0
      %2289 = vmatpush1.bf16.msra.mxu0 0
      %2290 = vmatprep.subr.bf16.mxu0 0
      %2291 = vmatpush1.bf16.msra.mxu0 0
      %2292 = vmatprep.mubr.bf16.mxu0 0
      %2293 = vmatmul.mubr.bf16.gmra.mrb[0].mxu0 %v2151
      %v2294 = vpop.f32.mrb[0].mxu0
      %v2295 = vadd.f32 %v2173, %v2294
      %v2296 = vpop.f32.mrb[0].mxu0
      %v2297 = vadd.f32 %v2177, %v2296
      %v2298 = vpop.f32.mrb[0].mxu0
      %v2299 = vpop.f32.mrb[0].mxu0
      %2300 = vdwg.mxu0
      %vm2301 = vcmp.gt.f32.partialorder %v2295, 0.0
      %vm2302 = vcmp.gt.f32.partialorder %v2297, 0.0
      %v2303 = vmin.f32 %v2295, 0.0
      %v2304 = vmin.f32 %v2297, 0.0
      %v2305 = vmul.f32 %v2303, 1.442695
      %v2306 = vpow.pop %v2305
      %v2307 = vmul.f32 %v2304, 1.442695
      %v2308 = vpow.pop %v2307
      %v2309 = vsub.f32 %v2306, 1.0
      %v2310 = vsub.f32 %v2308, 1.0
      %v2311 = vsel %vm2301, %v2295, %v2309
      %v2312 = vsel %vm2302, %v2297, %v2310
      %v2313 = vpack.c.bf16 %v2311, %v2311
      %v2314 = vpack.c.bf16 %v2312, %v2312
      %v2315 = vld [vmem:[%s500] sm:$0xff]
      %v2316 = vld [vmem:[%s500 + $0x8] sm:$0xff]
      %v2317 = vld [vmem:[%s500 + $0x10] sm:$0xff]
      %v2318 = vld [vmem:[%s500 + $0x18] sm:$0xff]
      %v2319 = vld [vmem:[%s500 + $0x20] sm:$0xff]
      %v2320 = vld [vmem:[%s500 + $0x28] sm:$0xff]
      %v2321 = vld [vmem:[%s500 + $0x30] sm:$0xff]
      %v2322 = vld [vmem:[%s500 + $0x38] sm:$0xff]
      %v2323 = vld [vmem:[%s500 + $0x40] sm:$0xff]
      %v2324 = vld [vmem:[%s500 + $0x48] sm:$0xff]
      %v2325 = vld [vmem:[%s500 + $0x50] sm:$0xff]
      %v2326 = vld [vmem:[%s500 + $0x58] sm:$0xff]
      %v2327 = vld [vmem:[%s500 + $0x60] sm:$0xff]
      %v2328 = vld [vmem:[%s500 + $0x68] sm:$0xff]
      %v2329 = vld [vmem:[%s500 + $0x70] sm:$0xff]
      %v2330 = vld [vmem:[%s500 + $0x78] sm:$0xff]
      %v2331 = vld [vmem:[%s500 + $0x80] sm:$0xff]
      %v2332 = vld [vmem:[%s500 + $0x88] sm:$0xff]
      %v2333 = vld [vmem:[%s500 + $0x90] sm:$0xff]
      %v2334 = vld [vmem:[%s500 + $0x98] sm:$0xff]
      %v2335 = vld [vmem:[%s500 + $0xa0] sm:$0xff]
      %v2336 = vld [vmem:[%s500 + $0xa8] sm:$0xff]
      %v2337 = vld [vmem:[%s500 + $0xb0] sm:$0xff]
      %v2338 = vld [vmem:[%s500 + $0xb8] sm:$0xff]
      %v2339 = vld [vmem:[%s500 + $0xc0] sm:$0xff]
      %v2340 = vld [vmem:[%s500 + $0xc8] sm:$0xff]
      %v2341 = vld [vmem:[%s500 + $0xd0] sm:$0xff]
      %v2342 = vld [vmem:[%s500 + $0xd8] sm:$0xff]
      %v2343 = vld [vmem:[%s500 + $0xe0] sm:$0xff]
      %v2344 = vld [vmem:[%s500 + $0xe8] sm:$0xff]
      %v2345 = vld [vmem:[%s500 + $0xf0] sm:$0xff]
      %v2346 = vld [vmem:[%s500 + $0xf8] sm:$0xff]
      %v2347 = vld [vmem:[%s504] sm:$0x3]
      %v2349 = vlaneseq
      %v2350 = vshrl.u32 %v2349, 7
      %v2351 = vsub.s32 0, %v2350
      %v2352 = vrot.slane %v2347, %v2351
      %v2353 = vlaneseq
      %v2354 = vshrl.u32 %v2353, 7
      %v2355 = vsub.s32 1, %v2354
      %v2356 = vrot.slane %v2347, %v2355
      %v2391 = vunpack.c.l.b16 %v2315
      %v2392 = vunpack.c.h.b16 %v2315
      %v2393 = vunpack.c.l.b16 %v2316
      %v2394 = vunpack.c.h.b16 %v2316
      %v2395 = vunpack.c.l.b16 %v2317
      %v2396 = vunpack.c.h.b16 %v2317
      %v2397 = vunpack.c.l.b16 %v2318
      %v2398 = vunpack.c.h.b16 %v2318
      %v2399 = vunpack.c.l.b16 %v2319
      %v2400 = vunpack.c.h.b16 %v2319
      %v2401 = vunpack.c.l.b16 %v2320
      %v2402 = vunpack.c.h.b16 %v2320
      %v2403 = vunpack.c.l.b16 %v2321
      %v2404 = vunpack.c.h.b16 %v2321
      %v2405 = vunpack.c.l.b16 %v2322
      %v2406 = vunpack.c.h.b16 %v2322
      %v2407 = vunpack.c.l.b16 %v2323
      %v2408 = vunpack.c.h.b16 %v2323
      %v2409 = vunpack.c.l.b16 %v2324
      %v2410 = vunpack.c.h.b16 %v2324
      %v2411 = vunpack.c.l.b16 %v2325
      %v2412 = vunpack.c.h.b16 %v2325
      %v2413 = vunpack.c.l.b16 %v2326
      %v2414 = vunpack.c.h.b16 %v2326
      %v2415 = vunpack.c.l.b16 %v2327
      %v2416 = vunpack.c.h.b16 %v2327
      %v2417 = vunpack.c.l.b16 %v2328
      %v2418 = vunpack.c.h.b16 %v2328
      %v2419 = vunpack.c.l.b16 %v2329
      %v2420 = vunpack.c.h.b16 %v2329
      %v2421 = vunpack.c.l.b16 %v2330
      %v2422 = vunpack.c.h.b16 %v2330
      %v2423 = vunpack.c.l.b16 %v2331
      %v2424 = vunpack.c.h.b16 %v2331
      %v2425 = vunpack.c.l.b16 %v2332
      %v2426 = vunpack.c.h.b16 %v2332
      %v2427 = vunpack.c.l.b16 %v2333
      %v2428 = vunpack.c.h.b16 %v2333
      %v2429 = vunpack.c.l.b16 %v2334
      %v2430 = vunpack.c.h.b16 %v2334
      %v2431 = vunpack.c.l.b16 %v2335
      %v2432 = vunpack.c.h.b16 %v2335
      %v2433 = vunpack.c.l.b16 %v2336
      %v2434 = vunpack.c.h.b16 %v2336
      %v2435 = vunpack.c.l.b16 %v2337
      %v2436 = vunpack.c.h.b16 %v2337
      %v2437 = vunpack.c.l.b16 %v2338
      %v2438 = vunpack.c.h.b16 %v2338
      %v2439 = vunpack.c.l.b16 %v2339
      %v2440 = vunpack.c.h.b16 %v2339
      %v2441 = vunpack.c.l.b16 %v2340
      %v2442 = vunpack.c.h.b16 %v2340
      %v2443 = vunpack.c.l.b16 %v2341
      %v2444 = vunpack.c.h.b16 %v2341
      %v2445 = vunpack.c.l.b16 %v2342
      %v2446 = vunpack.c.h.b16 %v2342
      %v2447 = vunpack.c.l.b16 %v2343
      %v2448 = vunpack.c.h.b16 %v2343
      %v2449 = vunpack.c.l.b16 %v2344
      %v2450 = vunpack.c.h.b16 %v2344
      %v2451 = vunpack.c.l.b16 %v2345
      %v2452 = vunpack.c.h.b16 %v2345
      %v2453 = vunpack.c.l.b16 %v2346
      %v2454 = vunpack.c.h.b16 %v2346
      %v2455 = vpack.c.b16 %v2393, %v2391
      %v2456 = vpack.c.b16 %v2394, %v2392
      %v2457 = vpack.c.b16 %v2397, %v2395
      %v2458 = vpack.c.b16 %v2398, %v2396
      %v2459 = vpack.c.b16 %v2401, %v2399
      %v2460 = vpack.c.b16 %v2402, %v2400
      %v2461 = vpack.c.b16 %v2405, %v2403
      %v2462 = vpack.c.b16 %v2406, %v2404
      %v2463 = vpack.c.b16 %v2409, %v2407
      %v2464 = vpack.c.b16 %v2410, %v2408
      %v2465 = vpack.c.b16 %v2413, %v2411
      %v2466 = vpack.c.b16 %v2414, %v2412
      %v2467 = vpack.c.b16 %v2417, %v2415
      %v2468 = vpack.c.b16 %v2418, %v2416
      %v2469 = vpack.c.b16 %v2421, %v2419
      %v2470 = vpack.c.b16 %v2422, %v2420
      %v2471 = vpack.c.b16 %v2425, %v2423
      %v2472 = vpack.c.b16 %v2426, %v2424
      %v2473 = vpack.c.b16 %v2429, %v2427
      %v2474 = vpack.c.b16 %v2430, %v2428
      %v2475 = vpack.c.b16 %v2433, %v2431
      %v2476 = vpack.c.b16 %v2434, %v2432
      %v2477 = vpack.c.b16 %v2437, %v2435
      %v2478 = vpack.c.b16 %v2438, %v2436
      %v2479 = vpack.c.b16 %v2441, %v2439
      %v2480 = vpack.c.b16 %v2442, %v2440
      %v2481 = vpack.c.b16 %v2445, %v2443
      %v2482 = vpack.c.b16 %v2446, %v2444
      %v2483 = vpack.c.b16 %v2449, %v2447
      %v2484 = vpack.c.b16 %v2450, %v2448
      %v2485 = vpack.c.b16 %v2453, %v2451
      %v2486 = vpack.c.b16 %v2454, %v2452
      %2519 = vmatprep.subr.bf16.mxu0 %v2456
      %2520 = vmatpush1.bf16.msra.mxu0 %v2455
      %2521 = vmatprep.subr.bf16.mxu0 %v2458
      %2522 = vmatpush1.bf16.msra.mxu0 %v2457
      %2523 = vmatprep.subr.bf16.mxu0 %v2460
      %2524 = vmatpush1.bf16.msra.mxu0 %v2459
      %2525 = vmatprep.subr.bf16.mxu0 %v2462
      %2526 = vmatpush1.bf16.msra.mxu0 %v2461
      %2527 = vmatprep.subr.bf16.mxu0 %v2464
      %2528 = vmatpush1.bf16.msra.mxu0 %v2463
      %2529 = vmatprep.subr.bf16.mxu0 %v2466
      %2530 = vmatpush1.bf16.msra.mxu0 %v2465
      %2531 = vmatprep.subr.bf16.mxu0 %v2468
      %2532 = vmatpush1.bf16.msra.mxu0 %v2467
      %2533 = vmatprep.subr.bf16.mxu0 %v2470
      %2534 = vmatpush1.bf16.msra.mxu0 %v2469
      %2535 = vmatprep.subr.bf16.mxu0 %v2472
      %2536 = vmatpush1.bf16.msra.mxu0 %v2471
      %2537 = vmatprep.subr.bf16.mxu0 %v2474
      %2538 = vmatpush1.bf16.msra.mxu0 %v2473
      %2539 = vmatprep.subr.bf16.mxu0 %v2476
      %2540 = vmatpush1.bf16.msra.mxu0 %v2475
      %2541 = vmatprep.subr.bf16.mxu0 %v2478
      %2542 = vmatpush1.bf16.msra.mxu0 %v2477
      %2543 = vmatprep.subr.bf16.mxu0 %v2480
      %2544 = vmatpush1.bf16.msra.mxu0 %v2479
      %2545 = vmatprep.subr.bf16.mxu0 %v2482
      %2546 = vmatpush1.bf16.msra.mxu0 %v2481
      %2547 = vmatprep.subr.bf16.mxu0 %v2484
      %2548 = vmatpush1.bf16.msra.mxu0 %v2483
      %2549 = vmatprep.subr.bf16.mxu0 %v2486
      %2550 = vmatpush1.bf16.msra.mxu0 %v2485
      %2551 = vmatprep.mubr.bf16.mxu0 %v2314
      %2552 = vmatmul.mubr.bf16.gmra.mrb[0].mxu0 %v2313
      %v2553 = vpop.f32.mrb[0].mxu0
      %v2554 = vadd.f32 %v2352, %v2553
      %v2555 = vpop.f32.mrb[0].mxu0
      %v2556 = vadd.f32 %v2356, %v2555
      %v2557 = vpop.f32.mrb[0].mxu0
      %v2558 = vpop.f32.mrb[0].mxu0
      %2559 = vdwg.mxu0
      %vm2560 = vcmask 1041408
      %v2561 = vsel %vm2560, %v2556, 0.0
      %2562 = vadd.xlane.f32.xlu0 %v2561
      %v2563 = vpop.xlane.xlu0 %2562
      %v2564 = vmul.f32 %v2563, 0.16666667
      %2566 = vset.pattern.permute.xlu0 0
      %2567 = vperm.xlu0 %2566, %v2554
      %v2568 = vpop.permute.xlu0 %2567
      %v2570 = vadd.f32 %v2568, %v2556
      %v2571 = vsub.f32 %v2570, %v2564
      %v2572 = vlaneseq
      %v2573 = vand.u32 %v2572, 127
      %vm2574 = vcmp.lt.s32.totalorder %v2573, 6
      %v2575 = vsel %vm2574, %v2571, 0.0
      %2576 = vst [vmem:[%s511] sm:$0x3] %v2575
      %p2577 = scmp.lt.s32.totalorder %s24, 1
      %s2578 = scalar_select %p2577, %s24, 1
      %p2579 = scmp.lt.s32.totalorder %s25, 0
      %s2580 = scalar_select %p2579, %s25, 0
      %s2581 = sadd.s32 %s2580, %s2578
      %s2582 = smul.addr %s2581, 2
      %s2583 = scalar_lea.vmem %s9, %s2582
      // Predicated region
      $region57: #{rainbow_dqn_forward.5} parent=55 // pred_check
        %p2584 = pneg %p288
      $region58: #{rainbow_dqn_forward.5} parent=55 // pred_check_branch
        %2586 = sbr.rel (%p2584) target = $region60
      $region59: #{rainbow_dqn_forward.5} parent=55 // pred_region
        _
      $region60: #{rainbow_dqn_forward.5} parent=55 // pred_fallthru
        _
    $region56: #{rainbow_dqn_forward.5} parent=5 // pred_fallthru
      _
    %p2587 = scmp.le.s32.totalorder 2, %s15
    // Predicated region
    $region61: #{rainbow_dqn_forward.5} parent=5 // pred_check
      %p2588 = pneg %p2587
    $region62: #{rainbow_dqn_forward.5} parent=5 // pred_check_branch
      %2590 = sbr.rel (%p2588) target = $region64
    $region63: #{rainbow_dqn_forward.5} parent=5 // pred_region
      %s2591 = ssub.s32 %s15, 2
      // Predicated region
      $region65: #{rainbow_dqn_forward.5} parent=63 // pred_check
        %p2592 = pneg %p294
      $region66: #{rainbow_dqn_forward.5} parent=63 // pred_check_branch
        %2594 = sbr.rel (%p2592) target = $region68
      $region67: #{rainbow_dqn_forward.5} parent=63 // pred_region
        %p2595 = scmp.lt.s32.totalorder %s26, 1
        %s2596 = scalar_select %p2595, %s26, 1
        %p2597 = scmp.lt.s32.totalorder %s27, 0
        %s2598 = scalar_select %p2597, %s27, 0
        %s2599 = sadd.s32 %s2598, %s2596
        %s2600 = smul.addr %s2599, 2
        %s2601 = scalar_lea.vmem %s9, %s2600
      $region68: #{rainbow_dqn_forward.5} parent=63 // pred_fallthru
        _
    $region64: #{rainbow_dqn_forward.5} parent=5 // pred_fallthru
      _
  $region6: #{rainbow_dqn_forward.5} parent=0 // loop_footer
    %s19 = sadd.s32 1, %s15
  $region7: #{rainbow_dqn_forward.5} parent=0 // loop_footer_branch
    %14 = sbr.rel target = $region3
  $region8: #{rainbow_dqn_forward.5} parent=0 // loop_exit
    _

</llo_original>
